<compile_context>
chip_gen: v5e
topology: v5e:2x2
jax: 0.10.0
libtpu: 0.0.40
codegen_flags: <defaults>
</compile_context>

<pallas_src>
import functools

import jax
import jax.numpy as jnp
from jax.experimental import pallas as pl
from jax.experimental.pallas import tpu as pltpu


# ----------------------------------------------------------------------------- #
# In-kernel helpers
# ----------------------------------------------------------------------------- #
def _layer_norm(x, gamma, beta, eps=1e-12):
    # nn.LayerNorm semantics (biased variance over last axis), f32 statistics.
    mu = jnp.mean(x, axis=-1, keepdims=True)
    var = jnp.mean((x - mu) ** 2, axis=-1, keepdims=True)
    return (x - mu) * jax.lax.rsqrt(var + eps) * gamma + beta


def _mm(a, b):
    # bf16 MXU matmul with f32 accumulation (weights are stored in bf16).
    return jnp.dot(a.astype(jnp.bfloat16), b.astype(jnp.bfloat16),
                   preferred_element_type=jnp.float32)


# ----------------------------------------------------------------------------- #
# Fused kernel.  Grid = (batch_blocks, n_layers):
#   l == 0             : embedding LayerNorm -> persistent VMEM scratch h
#   every l            : one transformer block (attention + FFN) on h
#   l == n_layers - 1  : CLS rows -> classifier head -> output block
# Per-layer weights are streamed (BlockSpec indexed by l); activation h stays
# resident in VMEM for the whole stack.
# ----------------------------------------------------------------------------- #
def encoder_layer_kernel(x_ref, mask_ref, emb_g_ref, emb_b_ref,
                         wqkv_ref, bqkv_ref, wo_ref, bo_ref, ln1_g_ref, ln1_b_ref,
                         w1_ref, b1_ref, w2_ref, b2_ref, ln2_g_ref, ln2_b_ref,
                         wpre_ref, bpre_ref, wcls_ref, bcls_ref,
                         out_ref, h_ref, *, bt, n_head, d_head):
    l_idx = pl.program_id(1)
    n_layers = pl.num_programs(1)
    L = x_ref.shape[1]
    D = n_head * d_head
    M = bt * L
    inv_temp = float(d_head) ** -0.5

    # ---- layer 0: embedding LayerNorm, initialize the persistent activation ----
    @pl.when(l_idx == 0)
    def _():
        x = x_ref[...].reshape(M, D).astype(jnp.float32)        # bf16 -> f32 stats
        h_ref[...] = _layer_norm(x, emb_g_ref[...], emb_b_ref[...])

    h = h_ref[...]                                               # (M, D) f32

    # ---- multi-head self-attention: fused QKV over the whole batch block ----
    qkv = _mm(h, wqkv_ref[0]) + bqkv_ref[0]                      # (M, 3D) f32

    # TODO(synk): the per-head reshape/transpose relayouts below could be
    #             expressed with pltpu.einshape / flash-style tiling at scale.
    ctx_list = []
    for bi in range(bt):                                         # small static unroll
        qkv_b = qkv[bi * L:(bi + 1) * L, :]                      # (L, 3D)
        q = qkv_b[:, 0 * D:1 * D].reshape(L, n_head, d_head)
        k = qkv_b[:, 1 * D:2 * D].reshape(L, n_head, d_head)
        v = qkv_b[:, 2 * D:3 * D].reshape(L, n_head, d_head)
        qh = jnp.transpose(q, (1, 0, 2)).astype(jnp.bfloat16)    # (H, L, dh)
        kh = jnp.transpose(k, (1, 0, 2)).astype(jnp.bfloat16)
        vh = jnp.transpose(v, (1, 0, 2)).astype(jnp.bfloat16)

        s = jnp.einsum('hqd,hkd->hqk', qh, kh,
                       preferred_element_type=jnp.float32) * inv_temp   # (H, L, L)
        keep = mask_ref[bi][None, :, :] > 0.0                    # (1, 1, L) key mask
        s = jnp.where(keep, s, -1e9)
        s = s - jnp.max(s, axis=-1, keepdims=True)               # f32 softmax stats
        p = jnp.exp(s)
        p = p / jnp.sum(p, axis=-1, keepdims=True)               # exact reciprocal

        ctx = jnp.einsum('hqk,hkd->hqd', p.astype(jnp.bfloat16), vh,
                         preferred_element_type=jnp.float32)     # (H, L, dh)
        ctx_list.append(jnp.transpose(ctx, (1, 0, 2)).reshape(L, D))
    ctx_all = jnp.concatenate(ctx_list, axis=0)                  # (M, D)

    attn_out = _mm(ctx_all, wo_ref[0]) + bo_ref[0]               # single out-proj
    h = _layer_norm(attn_out + h, ln1_g_ref[0], ln1_b_ref[0])

    # ---- position-wise FFN ----
    f = _mm(h, w1_ref[0]) + b1_ref[0]
    # TODO(synk): tanh-approx GELU; DistilBERT uses exact erf GELU (~1e-3 close).
    f = jax.nn.gelu(f)
    f = _mm(f, w2_ref[0]) + b2_ref[0]
    h = _layer_norm(f + h, ln2_g_ref[0], ln2_b_ref[0])

    h_ref[...] = h                                               # persist for layer l+1

    # ---- last layer: CLS token -> Linear -> tanh -> (Dropout=id) -> Linear ----
    @pl.when(l_idx == n_layers - 1)
    def _():
        cls = jnp.concatenate([h[bi * L:bi * L + 1, :] for bi in range(bt)],
                              axis=0)                            # (Bt, D)
        pre = jnp.tanh(_mm(cls, wpre_ref[...]) + bpre_ref[...])  # (Bt, Dc)
        logits = _mm(pre, wcls_ref[...]) + bcls_ref[...]         # (Bt, C_pad) lane-dense
        out_ref[...] = logits[:, None, :]


# ----------------------------------------------------------------------------- #
# Wrapper
# ----------------------------------------------------------------------------- #
def forward(params, ids, attn_mask, *, n_layers, n_head, d_head, num_class,
            batch_block):
    B, L = ids.shape
    D = n_head * d_head
    assert B % batch_block == 0
    c_pad = params["w_cls"].shape[-1]

    # Embedding lookup + learned positional embeddings (gather = glue, in JAX).
    # Pass activations in bf16: halves input DMA; LN stats recomputed in f32.
    x = (params["word_emb"][ids] + params["pos_emb"][None, :L, :]).astype(jnp.bfloat16)
    mask = attn_mask.astype(jnp.float32)[:, None, :]             # (B, 1, L)

    const_args = [params["emb_ln_g"], params["emb_ln_b"]]
    layer_args = [params["wqkv"], params["bqkv"], params["wo"], params["bo"],
                  params["ln1_g"], params["ln1_b"],
                  params["w1"], params["b1"], params["w2"], params["b2"],
                  params["ln2_g"], params["ln2_b"]]
    head_args = [params["w_pre"], params["b_pre"], params["w_cls"], params["b_cls"]]

    def const_spec(a):                       # grid-invariant: fetched once
        nd = a.ndim
        return pl.BlockSpec(a.shape, lambda b, l, _nd=nd: (0,) * _nd)

    def layer_spec(a):                       # streamed per layer (prefetch l+1)
        nz = a.ndim - 1
        return pl.BlockSpec((1,) + a.shape[1:], lambda b, l, _nz=nz: (l,) + (0,) * _nz)

    in_specs = (
        [pl.BlockSpec((batch_block, L, D), lambda b, l: (b, 0, 0)),
         pl.BlockSpec((batch_block, 1, L), lambda b, l: (b, 0, 0))]
        + [const_spec(a) for a in const_args]
        + [layer_spec(a) for a in layer_args]
        + [const_spec(a) for a in head_args]
    )

    kernel = functools.partial(encoder_layer_kernel, bt=batch_block,
                               n_head=n_head, d_head=d_head)

    out = pl.pallas_call(
        kernel,
        out_shape=jax.ShapeDtypeStruct((B, 1, c_pad), jnp.float32),
        grid=(B // batch_block, n_layers),
        in_specs=in_specs,
        out_specs=pl.BlockSpec((batch_block, 1, c_pad), lambda b, l: (b, 0, 0)),
        scratch_shapes=[pltpu.VMEM((batch_block * L, D), jnp.float32)],
        compiler_params=pltpu.CompilerParams(
            dimension_semantics=("parallel", "arbitrary"),
            vmem_limit_bytes=48 * 1024 * 1024,   # fits v7x's 64 MiB physical VMEM
        ),
    )(x, mask, *const_args, *layer_args, *head_args)
    return out[:, 0, :num_class]                                 # (B, num_class)


# ----------------------------------------------------------------------------- #
# Deterministic parameter construction (architecture only; weights are random).
# ----------------------------------------------------------------------------- #
def init_params(key, *, vocab, max_pos, d_model, n_layers, n_head, d_ff,
                d_classifier, num_class, num_class_padded=128):
    step = [0]

    def nk():
        step[0] += 1
        return jax.random.fold_in(key, step[0])

    def dense(k, fi, fo):
        w = jax.random.normal(k, (fi, fo), jnp.float32) * (float(fi) ** -0.5)
        return w.astype(jnp.bfloat16)        # bf16 matmul weights

    # Classifier output padded to 128 lanes (lane-dense stores); padded columns
    # carry zero weight/bias and are sliced off in the wrapper.
    w_cls_core = jax.random.normal(nk(), (d_classifier, num_class), jnp.float32) \
        * (float(d_classifier) ** -0.5)
    w_cls = jnp.zeros((d_classifier, num_class_padded), jnp.float32)
    w_cls = w_cls.at[:, :num_class].set(w_cls_core).astype(jnp.bfloat16)

    params = {
        "word_emb": jax.random.normal(nk(), (vocab, d_model), jnp.float32) * 0.02,
        "pos_emb": jax.random.normal(nk(), (max_pos, d_model), jnp.float32) * 0.02,
        "emb_ln_g": jnp.ones((1, d_model), jnp.float32),
        "emb_ln_b": jnp.zeros((1, d_model), jnp.float32),
        "w_pre": dense(nk(), d_model, d_classifier),
        "b_pre": jnp.zeros((1, d_classifier), jnp.float32),
        "w_cls": w_cls,
        "b_cls": jnp.zeros((1, num_class_padded), jnp.float32),
    }

    wqkv, bqkv, wo, bo, ln1g, ln1b = [], [], [], [], [], []
    w1, b1, w2, b2, ln2g, ln2b = [], [], [], [], [], []
    for _ in range(n_layers):
        wqkv.append(dense(nk(), d_model, 3 * d_model))
        bqkv.append(jnp.zeros((1, 3 * d_model), jnp.float32))
        wo.append(dense(nk(), d_model, d_model))
        bo.append(jnp.zeros((1, d_model), jnp.float32))
        ln1g.append(jnp.ones((1, d_model), jnp.float32))
        ln1b.append(jnp.zeros((1, d_model), jnp.float32))
        w1.append(dense(nk(), d_model, d_ff))
        b1.append(jnp.zeros((1, d_ff), jnp.float32))
        w2.append(dense(nk(), d_ff, d_model))
        b2.append(jnp.zeros((1, d_model), jnp.float32))
        ln2g.append(jnp.ones((1, d_model), jnp.float32))
        ln2b.append(jnp.zeros((1, d_model), jnp.float32))

    params.update(
        wqkv=jnp.stack(wqkv), bqkv=jnp.stack(bqkv),
        wo=jnp.stack(wo), bo=jnp.stack(bo),
        ln1_g=jnp.stack(ln1g), ln1_b=jnp.stack(ln1b),
        w1=jnp.stack(w1), b1=jnp.stack(b1),
        w2=jnp.stack(w2), b2=jnp.stack(b2),
        ln2_g=jnp.stack(ln2g), ln2_b=jnp.stack(ln2b),
    )
    return params


# ----------------------------------------------------------------------------- #
if __name__ == "__main__":
    # Scaled-down DistilBERT-style config (real model: d_model=768, 6 layers,
    # 12 heads, d_ff=3072, d_classifier=768).
    vocab = 100
    max_pos = 64
    d_model = 128            # lane-dense (multiple of 128)
    n_layers = 4
    n_head = 4
    d_head = d_model // n_head
    d_ff = 256
    d_classifier = 128
    num_class = 2
    B, L = 8, 16
    batch_block = 4          # Bt rows per grid step -> M = Bt*L MXU rows

    key = jax.random.PRNGKey(0)
    params = init_params(key, vocab=vocab, max_pos=max_pos, d_model=d_model,
                         n_layers=n_layers, n_head=n_head, d_ff=d_ff,
                         d_classifier=d_classifier, num_class=num_class)

    kid = jax.random.fold_in(key, 12345)
    ids = jax.random.randint(kid, (B, L), 0, vocab)
    lengths = jnp.array([16, 11, 16, 8, 13, 16, 5, 16], dtype=jnp.int32)
    attn = (jnp.arange(L)[None, :] < lengths[:, None]).astype(jnp.float32)  # (B, L)

    fwd = jax.jit(functools.partial(forward, n_layers=n_layers, n_head=n_head,
                                    d_head=d_head, num_class=num_class,
                                    batch_block=batch_block))
    logits = fwd(params, ids, attn)
    jax.block_until_ready(logits)

    assert logits.shape == (B, num_class), logits.shape
    assert bool(jnp.all(jnp.isfinite(logits)))
    print("KERNEL_OK")
</pallas_src>

<mosaic_0001>
module attributes {stable_mosaic.version = 11 : i64} {
  func.func @encoder_layer_kernel(%arg0: i32, %arg1: i32, %arg2: memref<4x16x128xbf16, #tpu.memory_space<vmem>>, %arg3: memref<4x1x16xf32, #tpu.memory_space<vmem>>, %arg4: memref<1x128xf32, #tpu.memory_space<vmem>>, %arg5: memref<1x128xf32, #tpu.memory_space<vmem>>, %arg6: memref<1x128x384xbf16, #tpu.memory_space<vmem>>, %arg7: memref<1x1x384xf32, #tpu.memory_space<vmem>>, %arg8: memref<1x128x128xbf16, #tpu.memory_space<vmem>>, %arg9: memref<1x1x128xf32, #tpu.memory_space<vmem>>, %arg10: memref<1x1x128xf32, #tpu.memory_space<vmem>>, %arg11: memref<1x1x128xf32, #tpu.memory_space<vmem>>, %arg12: memref<1x128x256xbf16, #tpu.memory_space<vmem>>, %arg13: memref<1x1x256xf32, #tpu.memory_space<vmem>>, %arg14: memref<1x256x128xbf16, #tpu.memory_space<vmem>>, %arg15: memref<1x1x128xf32, #tpu.memory_space<vmem>>, %arg16: memref<1x1x128xf32, #tpu.memory_space<vmem>>, %arg17: memref<1x1x128xf32, #tpu.memory_space<vmem>>, %arg18: memref<128x128xbf16, #tpu.memory_space<vmem>>, %arg19: memref<1x128xf32, #tpu.memory_space<vmem>>, %arg20: memref<128x128xbf16, #tpu.memory_space<vmem>>, %arg21: memref<1x128xf32, #tpu.memory_space<vmem>>, %arg22: memref<4x1x128xf32, #tpu.memory_space<vmem>>, %arg23: memref<64x128xf32, #tpu.memory_space<vmem>>) attributes {dimension_semantics = [#tpu.dimension_semantics<parallel>, #tpu.dimension_semantics<arbitrary>], iteration_bounds = array<i64: 2, 4>, scalar_prefetch = 0 : i64, scratch_operands = 1 : i64, tpu.core_type = #tpu.core_type<tc>, window_params = [{transform_indices = @transform_0, window_bounds = array<i64: 4, 16, 128>}, {transform_indices = @transform_1, window_bounds = array<i64: 4, 1, 16>}, {pipeline_mode = #tpu.pipeline_mode<synchronous>, transform_indices = @transform_2, window_bounds = array<i64: 1, 128>}, {pipeline_mode = #tpu.pipeline_mode<synchronous>, transform_indices = @transform_3, window_bounds = array<i64: 1, 128>}, {transform_indices = @transform_4, window_bounds = array<i64: 1, 128, 384>}, {transform_indices = @transform_5, window_bounds = array<i64: 1, 1, 384>}, {transform_indices = @transform_6, window_bounds = array<i64: 1, 128, 128>}, {transform_indices = @transform_7, window_bounds = array<i64: 1, 1, 128>}, {transform_indices = @transform_8, window_bounds = array<i64: 1, 1, 128>}, {transform_indices = @transform_9, window_bounds = array<i64: 1, 1, 128>}, {transform_indices = @transform_10, window_bounds = array<i64: 1, 128, 256>}, {transform_indices = @transform_11, window_bounds = array<i64: 1, 1, 256>}, {transform_indices = @transform_12, window_bounds = array<i64: 1, 256, 128>}, {transform_indices = @transform_13, window_bounds = array<i64: 1, 1, 128>}, {transform_indices = @transform_14, window_bounds = array<i64: 1, 1, 128>}, {transform_indices = @transform_15, window_bounds = array<i64: 1, 1, 128>}, {pipeline_mode = #tpu.pipeline_mode<synchronous>, transform_indices = @transform_16, window_bounds = array<i64: 128, 128>}, {pipeline_mode = #tpu.pipeline_mode<synchronous>, transform_indices = @transform_17, window_bounds = array<i64: 1, 128>}, {pipeline_mode = #tpu.pipeline_mode<synchronous>, transform_indices = @transform_18, window_bounds = array<i64: 128, 128>}, {pipeline_mode = #tpu.pipeline_mode<synchronous>, transform_indices = @transform_19, window_bounds = array<i64: 1, 128>}, {transform_indices = @transform_20, window_bounds = array<i64: 4, 1, 128>}]} {
    %c0_i32 = arith.constant 0 : i32
    %0 = arith.cmpi eq, %arg1, %c0_i32 : i32
    %1 = arith.extui %0 : i1 to i32
    %c0_i32_0 = arith.constant 0 : i32
    %2 = arith.cmpi ne, %1, %c0_i32_0 : i32
    scf.if %2 {
      %c0_95 = arith.constant 0 : index
      %c0_96 = arith.constant 0 : index
      %c0_97 = arith.constant 0 : index
      %260 = vector.load %arg2[%c0_95, %c0_96, %c0_97] : memref<4x16x128xbf16, #tpu.memory_space<vmem>>, vector<4x16x128xbf16>
      %261 = vector.shape_cast %260 : vector<4x16x128xbf16> to vector<64x128xbf16>
      %262 = arith.extf %261 : vector<64x128xbf16> to vector<64x128xf32>
      %c0_98 = arith.constant 0 : index
      %c0_99 = arith.constant 0 : index
      %263 = vector.load %arg4[%c0_98, %c0_99] : memref<1x128xf32, #tpu.memory_space<vmem>>, vector<1x128xf32>
      %c0_100 = arith.constant 0 : index
      %c0_101 = arith.constant 0 : index
      %264 = vector.load %arg5[%c0_100, %c0_101] : memref<1x128xf32, #tpu.memory_space<vmem>>, vector<1x128xf32>
      %cst_102 = arith.constant dense<0.000000e+00> : vector<64xf32>
      %265 = vector.multi_reduction <add>, %262, %cst_102 [1] : vector<64x128xf32> to vector<64xf32>
      %266 = vector.shape_cast %265 : vector<64xf32> to vector<64x1xf32>
      %cst_103 = arith.constant 1.280000e+02 : f32
      %267 = vector.broadcast %cst_103 : f32 to vector<64x1xf32>
      %268 = arith.divf %266, %267 : vector<64x1xf32>
      %269 = vector.broadcast %268 : vector<64x1xf32> to vector<64x128xf32>
      %270 = arith.subf %262, %269 : vector<64x128xf32>
      %271 = arith.mulf %270, %270 : vector<64x128xf32>
      %cst_104 = arith.constant dense<0.000000e+00> : vector<64xf32>
      %272 = vector.multi_reduction <add>, %271, %cst_104 [1] : vector<64x128xf32> to vector<64xf32>
      %273 = vector.shape_cast %272 : vector<64xf32> to vector<64x1xf32>
      %cst_105 = arith.constant 1.280000e+02 : f32
      %274 = vector.broadcast %cst_105 : f32 to vector<64x1xf32>
      %275 = arith.divf %273, %274 : vector<64x1xf32>
      %276 = vector.broadcast %268 : vector<64x1xf32> to vector<64x128xf32>
      %277 = arith.subf %262, %276 : vector<64x128xf32>
      %cst_106 = arith.constant 9.99999996E-13 : f32
      %278 = vector.broadcast %cst_106 : f32 to vector<64x1xf32>
      %279 = arith.addf %275, %278 : vector<64x1xf32>
      %280 = math.rsqrt %279 : vector<64x1xf32>
      %281 = vector.broadcast %280 : vector<64x1xf32> to vector<64x128xf32>
      %282 = arith.mulf %277, %281 : vector<64x128xf32>
      %283 = vector.broadcast %263 : vector<1x128xf32> to vector<64x128xf32>
      %284 = arith.mulf %282, %283 : vector<64x128xf32>
      %285 = vector.broadcast %264 : vector<1x128xf32> to vector<64x128xf32>
      %286 = arith.addf %284, %285 : vector<64x128xf32>
      %c0_107 = arith.constant 0 : index
      %c0_108 = arith.constant 0 : index
      %287 = vector.load %arg23[%c0_107, %c0_108] : memref<64x128xf32, #tpu.memory_space<vmem>>, vector<64x128xf32>
      tpu.vector_store %arg23[%c0_107, %c0_108], %286 {strides = array<i32>} : memref<64x128xf32, #tpu.memory_space<vmem>>, vector<64x128xf32>,
    } else {
    }
    %c0 = arith.constant 0 : index
    %c0_1 = arith.constant 0 : index
    %3 = vector.load %arg23[%c0, %c0_1] : memref<64x128xf32, #tpu.memory_space<vmem>>, vector<64x128xf32>
    %c0_2 = arith.constant 0 : index
    %c0_3 = arith.constant 0 : index
    %c0_4 = arith.constant 0 : index
    %4 = vector.load %arg6[%c0_2, %c0_3, %c0_4] : memref<1x128x384xbf16, #tpu.memory_space<vmem>>, vector<1x128x384xbf16>
    %5 = vector.shape_cast %4 : vector<1x128x384xbf16> to vector<128x384xbf16>
    %6 = arith.truncf %3 : vector<64x128xf32> to vector<64x128xbf16>
    %cst = arith.constant dense<0.000000e+00> : vector<64x384xf32>
    %7 = tpu.matmul %6, %5, %cst {dimension_numbers = #tpu.dot_dimension_numbers<[1], [0], [0], [1], [0, 0, 1, 1], [], []>} : vector<64x128xbf16>, vector<128x384xbf16>, vector<64x384xf32> -> vector<64x384xf32>
    %c0_5 = arith.constant 0 : index
    %c0_6 = arith.constant 0 : index
    %c0_7 = arith.constant 0 : index
    %8 = vector.load %arg7[%c0_5, %c0_6, %c0_7] : memref<1x1x384xf32, #tpu.memory_space<vmem>>, vector<1x1x384xf32>
    %9 = vector.shape_cast %8 : vector<1x1x384xf32> to vector<1x384xf32>
    %10 = vector.broadcast %9 : vector<1x384xf32> to vector<64x384xf32>
    %11 = arith.addf %7, %10 : vector<64x384xf32>
    %12 = vector.extract_strided_slice %11 {offsets = [0, 0], sizes = [16, 384], strides = [1, 1]} : vector<64x384xf32> to vector<16x384xf32>
    %13 = vector.extract_strided_slice %12 {offsets = [0, 0], sizes = [16, 128], strides = [1, 1]} : vector<16x384xf32> to vector<16x128xf32>
    %14 = vector.shape_cast %13 : vector<16x128xf32> to vector<16x4x32xf32>
    %15 = vector.extract_strided_slice %12 {offsets = [0, 128], sizes = [16, 128], strides = [1, 1]} : vector<16x384xf32> to vector<16x128xf32>
    %16 = vector.shape_cast %15 : vector<16x128xf32> to vector<16x4x32xf32>
    %17 = vector.extract_strided_slice %12 {offsets = [0, 256], sizes = [16, 128], strides = [1, 1]} : vector<16x384xf32> to vector<16x128xf32>
    %18 = vector.shape_cast %17 : vector<16x128xf32> to vector<16x4x32xf32>
    %19 = tpu.transpose %14, [1, 0, 2] : vector<16x4x32xf32> -> vector<4x16x32xf32>
    %20 = arith.truncf %19 : vector<4x16x32xf32> to vector<4x16x32xbf16>
    %21 = tpu.transpose %16, [1, 0, 2] : vector<16x4x32xf32> -> vector<4x16x32xf32>
    %22 = arith.truncf %21 : vector<4x16x32xf32> to vector<4x16x32xbf16>
    %23 = tpu.transpose %18, [1, 0, 2] : vector<16x4x32xf32> -> vector<4x16x32xf32>
    %24 = arith.truncf %23 : vector<4x16x32xf32> to vector<4x16x32xbf16>
    "tpu.trace_start"() <{level = 10 : i32, message = "hqd,hkd->hqk"}> : () -> ()
    %cst_8 = arith.constant dense<0.000000e+00> : vector<4x16x16xf32>
    %25 = tpu.matmul %20, %22, %cst_8 {dimension_numbers = #tpu.dot_dimension_numbers<[2], [2], [1], [1], [0, 0, 0, 1, 1, 1], [0], [0]>} : vector<4x16x32xbf16>, vector<4x16x32xbf16>, vector<4x16x16xf32> -> vector<4x16x16xf32>
    "tpu.trace_stop"() : () -> ()
    %cst_9 = arith.constant 0.176776692 : f32
    %26 = vector.broadcast %cst_9 : f32 to vector<4x16x16xf32>
    %27 = arith.mulf %25, %26 : vector<4x16x16xf32>
    %c0_10 = arith.constant 0 : index
    %c0_11 = arith.constant 0 : index
    %c0_12 = arith.constant 0 : index
    %28 = vector.load %arg3[%c0_10, %c0_11, %c0_12] : memref<4x1x16xf32, #tpu.memory_space<vmem>>, vector<1x1x16xf32>
    %29 = vector.shape_cast %28 : vector<1x1x16xf32> to vector<1x16xf32>
    %30 = vector.shape_cast %29 : vector<1x16xf32> to vector<1x1x16xf32>
    %cst_13 = arith.constant 0.000000e+00 : f32
    %31 = vector.broadcast %cst_13 : f32 to vector<1x1x16xf32>
    %32 = arith.cmpf ogt, %30, %31 : vector<1x1x16xf32>
    %cst_14 = arith.constant -1.000000e+09 : f32
    %33 = vector.shape_cast %32 : vector<1x1x16xi1> to vector<1x1x16xi1>
    %34 = vector.broadcast %33 : vector<1x1x16xi1> to vector<4x16x16xi1>
    %35 = vector.broadcast %cst_14 : f32 to vector<4x16x16xf32>
    %36 = arith.select %34, %27, %35 : vector<4x16x16xi1>, vector<4x16x16xf32>
    %cst_15 = arith.constant dense<0xFF800000> : vector<4x16xf32>
    %37 = vector.multi_reduction <maximumf>, %36, %cst_15 [2] : vector<4x16x16xf32> to vector<4x16xf32>
    %38 = vector.shape_cast %37 : vector<4x16xf32> to vector<4x16x1xf32>
    %39 = vector.broadcast %38 : vector<4x16x1xf32> to vector<4x16x16xf32>
    %40 = arith.subf %36, %39 : vector<4x16x16xf32>
    %41 = math.exp %40 : vector<4x16x16xf32>
    %cst_16 = arith.constant dense<0.000000e+00> : vector<4x16xf32>
    %42 = vector.multi_reduction <add>, %41, %cst_16 [2] : vector<4x16x16xf32> to vector<4x16xf32>
    %43 = vector.shape_cast %42 : vector<4x16xf32> to vector<4x16x1xf32>
    %44 = vector.broadcast %43 : vector<4x16x1xf32> to vector<4x16x16xf32>
    %45 = arith.divf %41, %44 : vector<4x16x16xf32>
    %46 = arith.truncf %45 : vector<4x16x16xf32> to vector<4x16x16xbf16>
    "tpu.trace_start"() <{level = 10 : i32, message = "hqk,hkd->hqd"}> : () -> ()
    %cst_17 = arith.constant dense<0.000000e+00> : vector<4x16x32xf32>
    %47 = tpu.matmul %46, %24, %cst_17 {dimension_numbers = #tpu.dot_dimension_numbers<[2], [1], [1], [2], [0, 0, 0, 1, 1, 2], [0], [0]>} : vector<4x16x16xbf16>, vector<4x16x32xbf16>, vector<4x16x32xf32> -> vector<4x16x32xf32>
    "tpu.trace_stop"() : () -> ()
    %48 = tpu.transpose %47, [1, 0, 2] : vector<4x16x32xf32> -> vector<16x4x32xf32>
    %49 = vector.shape_cast %48 : vector<16x4x32xf32> to vector<16x128xf32>
    %50 = vector.extract_strided_slice %11 {offsets = [16, 0], sizes = [16, 384], strides = [1, 1]} : vector<64x384xf32> to vector<16x384xf32>
    %51 = vector.extract_strided_slice %50 {offsets = [0, 0], sizes = [16, 128], strides = [1, 1]} : vector<16x384xf32> to vector<16x128xf32>
    %52 = vector.shape_cast %51 : vector<16x128xf32> to vector<16x4x32xf32>
    %53 = vector.extract_strided_slice %50 {offsets = [0, 128], sizes = [16, 128], strides = [1, 1]} : vector<16x384xf32> to vector<16x128xf32>
    %54 = vector.shape_cast %53 : vector<16x128xf32> to vector<16x4x32xf32>
    %55 = vector.extract_strided_slice %50 {offsets = [0, 256], sizes = [16, 128], strides = [1, 1]} : vector<16x384xf32> to vector<16x128xf32>
    %56 = vector.shape_cast %55 : vector<16x128xf32> to vector<16x4x32xf32>
    %57 = tpu.transpose %52, [1, 0, 2] : vector<16x4x32xf32> -> vector<4x16x32xf32>
    %58 = arith.truncf %57 : vector<4x16x32xf32> to vector<4x16x32xbf16>
    %59 = tpu.transpose %54, [1, 0, 2] : vector<16x4x32xf32> -> vector<4x16x32xf32>
    %60 = arith.truncf %59 : vector<4x16x32xf32> to vector<4x16x32xbf16>
    %61 = tpu.transpose %56, [1, 0, 2] : vector<16x4x32xf32> -> vector<4x16x32xf32>
    %62 = arith.truncf %61 : vector<4x16x32xf32> to vector<4x16x32xbf16>
    "tpu.trace_start"() <{level = 10 : i32, message = "hqd,hkd->hqk"}> : () -> ()
    %cst_18 = arith.constant dense<0.000000e+00> : vector<4x16x16xf32>
    %63 = tpu.matmul %58, %60, %cst_18 {dimension_numbers = #tpu.dot_dimension_numbers<[2], [2], [1], [1], [0, 0, 0, 1, 1, 1], [0], [0]>} : vector<4x16x32xbf16>, vector<4x16x32xbf16>, vector<4x16x16xf32> -> vector<4x16x16xf32>
    "tpu.trace_stop"() : () -> ()
    %cst_19 = arith.constant 0.176776692 : f32
    %64 = vector.broadcast %cst_19 : f32 to vector<4x16x16xf32>
    %65 = arith.mulf %63, %64 : vector<4x16x16xf32>
    %c1 = arith.constant 1 : index
    %c0_20 = arith.constant 0 : index
    %c0_21 = arith.constant 0 : index
    %66 = vector.load %arg3[%c1, %c0_20, %c0_21] : memref<4x1x16xf32, #tpu.memory_space<vmem>>, vector<1x1x16xf32>
    %67 = vector.shape_cast %66 : vector<1x1x16xf32> to vector<1x16xf32>
    %68 = vector.shape_cast %67 : vector<1x16xf32> to vector<1x1x16xf32>
    %cst_22 = arith.constant 0.000000e+00 : f32
    %69 = vector.broadcast %cst_22 : f32 to vector<1x1x16xf32>
    %70 = arith.cmpf ogt, %68, %69 : vector<1x1x16xf32>
    %cst_23 = arith.constant -1.000000e+09 : f32
    %71 = vector.shape_cast %70 : vector<1x1x16xi1> to vector<1x1x16xi1>
    %72 = vector.broadcast %71 : vector<1x1x16xi1> to vector<4x16x16xi1>
    %73 = vector.broadcast %cst_23 : f32 to vector<4x16x16xf32>
    %74 = arith.select %72, %65, %73 : vector<4x16x16xi1>, vector<4x16x16xf32>
    %cst_24 = arith.constant dense<0xFF800000> : vector<4x16xf32>
    %75 = vector.multi_reduction <maximumf>, %74, %cst_24 [2] : vector<4x16x16xf32> to vector<4x16xf32>
    %76 = vector.shape_cast %75 : vector<4x16xf32> to vector<4x16x1xf32>
    %77 = vector.broadcast %76 : vector<4x16x1xf32> to vector<4x16x16xf32>
    %78 = arith.subf %74, %77 : vector<4x16x16xf32>
    %79 = math.exp %78 : vector<4x16x16xf32>
    %cst_25 = arith.constant dense<0.000000e+00> : vector<4x16xf32>
    %80 = vector.multi_reduction <add>, %79, %cst_25 [2] : vector<4x16x16xf32> to vector<4x16xf32>
    %81 = vector.shape_cast %80 : vector<4x16xf32> to vector<4x16x1xf32>
    %82 = vector.broadcast %81 : vector<4x16x1xf32> to vector<4x16x16xf32>
    %83 = arith.divf %79, %82 : vector<4x16x16xf32>
    %84 = arith.truncf %83 : vector<4x16x16xf32> to vector<4x16x16xbf16>
    "tpu.trace_start"() <{level = 10 : i32, message = "hqk,hkd->hqd"}> : () -> ()
    %cst_26 = arith.constant dense<0.000000e+00> : vector<4x16x32xf32>
    %85 = tpu.matmul %84, %62, %cst_26 {dimension_numbers = #tpu.dot_dimension_numbers<[2], [1], [1], [2], [0, 0, 0, 1, 1, 2], [0], [0]>} : vector<4x16x16xbf16>, vector<4x16x32xbf16>, vector<4x16x32xf32> -> vector<4x16x32xf32>
    "tpu.trace_stop"() : () -> ()
    %86 = tpu.transpose %85, [1, 0, 2] : vector<4x16x32xf32> -> vector<16x4x32xf32>
    %87 = vector.shape_cast %86 : vector<16x4x32xf32> to vector<16x128xf32>
    %88 = vector.extract_strided_slice %11 {offsets = [32, 0], sizes = [16, 384], strides = [1, 1]} : vector<64x384xf32> to vector<16x384xf32>
    %89 = vector.extract_strided_slice %88 {offsets = [0, 0], sizes = [16, 128], strides = [1, 1]} : vector<16x384xf32> to vector<16x128xf32>
    %90 = vector.shape_cast %89 : vector<16x128xf32> to vector<16x4x32xf32>
    %91 = vector.extract_strided_slice %88 {offsets = [0, 128], sizes = [16, 128], strides = [1, 1]} : vector<16x384xf32> to vector<16x128xf32>
    %92 = vector.shape_cast %91 : vector<16x128xf32> to vector<16x4x32xf32>
    %93 = vector.extract_strided_slice %88 {offsets = [0, 256], sizes = [16, 128], strides = [1, 1]} : vector<16x384xf32> to vector<16x128xf32>
    %94 = vector.shape_cast %93 : vector<16x128xf32> to vector<16x4x32xf32>
    %95 = tpu.transpose %90, [1, 0, 2] : vector<16x4x32xf32> -> vector<4x16x32xf32>
    %96 = arith.truncf %95 : vector<4x16x32xf32> to vector<4x16x32xbf16>
    %97 = tpu.transpose %92, [1, 0, 2] : vector<16x4x32xf32> -> vector<4x16x32xf32>
    %98 = arith.truncf %97 : vector<4x16x32xf32> to vector<4x16x32xbf16>
    %99 = tpu.transpose %94, [1, 0, 2] : vector<16x4x32xf32> -> vector<4x16x32xf32>
    %100 = arith.truncf %99 : vector<4x16x32xf32> to vector<4x16x32xbf16>
    "tpu.trace_start"() <{level = 10 : i32, message = "hqd,hkd->hqk"}> : () -> ()
    %cst_27 = arith.constant dense<0.000000e+00> : vector<4x16x16xf32>
    %101 = tpu.matmul %96, %98, %cst_27 {dimension_numbers = #tpu.dot_dimension_numbers<[2], [2], [1], [1], [0, 0, 0, 1, 1, 1], [0], [0]>} : vector<4x16x32xbf16>, vector<4x16x32xbf16>, vector<4x16x16xf32> -> vector<4x16x16xf32>
    "tpu.trace_stop"() : () -> ()
    %cst_28 = arith.constant 0.176776692 : f32
    %102 = vector.broadcast %cst_28 : f32 to vector<4x16x16xf32>
    %103 = arith.mulf %101, %102 : vector<4x16x16xf32>
    %c2 = arith.constant 2 : index
    %c0_29 = arith.constant 0 : index
    %c0_30 = arith.constant 0 : index
    %104 = vector.load %arg3[%c2, %c0_29, %c0_30] : memref<4x1x16xf32, #tpu.memory_space<vmem>>, vector<1x1x16xf32>
    %105 = vector.shape_cast %104 : vector<1x1x16xf32> to vector<1x16xf32>
    %106 = vector.shape_cast %105 : vector<1x16xf32> to vector<1x1x16xf32>
    %cst_31 = arith.constant 0.000000e+00 : f32
    %107 = vector.broadcast %cst_31 : f32 to vector<1x1x16xf32>
    %108 = arith.cmpf ogt, %106, %107 : vector<1x1x16xf32>
    %cst_32 = arith.constant -1.000000e+09 : f32
    %109 = vector.shape_cast %108 : vector<1x1x16xi1> to vector<1x1x16xi1>
    %110 = vector.broadcast %109 : vector<1x1x16xi1> to vector<4x16x16xi1>
    %111 = vector.broadcast %cst_32 : f32 to vector<4x16x16xf32>
    %112 = arith.select %110, %103, %111 : vector<4x16x16xi1>, vector<4x16x16xf32>
    %cst_33 = arith.constant dense<0xFF800000> : vector<4x16xf32>
    %113 = vector.multi_reduction <maximumf>, %112, %cst_33 [2] : vector<4x16x16xf32> to vector<4x16xf32>
    %114 = vector.shape_cast %113 : vector<4x16xf32> to vector<4x16x1xf32>
    %115 = vector.broadcast %114 : vector<4x16x1xf32> to vector<4x16x16xf32>
    %116 = arith.subf %112, %115 : vector<4x16x16xf32>
    %117 = math.exp %116 : vector<4x16x16xf32>
    %cst_34 = arith.constant dense<0.000000e+00> : vector<4x16xf32>
    %118 = vector.multi_reduction <add>, %117, %cst_34 [2] : vector<4x16x16xf32> to vector<4x16xf32>
    %119 = vector.shape_cast %118 : vector<4x16xf32> to vector<4x16x1xf32>
    %120 = vector.broadcast %119 : vector<4x16x1xf32> to vector<4x16x16xf32>
    %121 = arith.divf %117, %120 : vector<4x16x16xf32>
    %122 = arith.truncf %121 : vector<4x16x16xf32> to vector<4x16x16xbf16>
    "tpu.trace_start"() <{level = 10 : i32, message = "hqk,hkd->hqd"}> : () -> ()
    %cst_35 = arith.constant dense<0.000000e+00> : vector<4x16x32xf32>
    %123 = tpu.matmul %122, %100, %cst_35 {dimension_numbers = #tpu.dot_dimension_numbers<[2], [1], [1], [2], [0, 0, 0, 1, 1, 2], [0], [0]>} : vector<4x16x16xbf16>, vector<4x16x32xbf16>, vector<4x16x32xf32> -> vector<4x16x32xf32>
    "tpu.trace_stop"() : () -> ()
    %124 = tpu.transpose %123, [1, 0, 2] : vector<4x16x32xf32> -> vector<16x4x32xf32>
    %125 = vector.shape_cast %124 : vector<16x4x32xf32> to vector<16x128xf32>
    %126 = vector.extract_strided_slice %11 {offsets = [48, 0], sizes = [16, 384], strides = [1, 1]} : vector<64x384xf32> to vector<16x384xf32>
    %127 = vector.extract_strided_slice %126 {offsets = [0, 0], sizes = [16, 128], strides = [1, 1]} : vector<16x384xf32> to vector<16x128xf32>
    %128 = vector.shape_cast %127 : vector<16x128xf32> to vector<16x4x32xf32>
    %129 = vector.extract_strided_slice %126 {offsets = [0, 128], sizes = [16, 128], strides = [1, 1]} : vector<16x384xf32> to vector<16x128xf32>
    %130 = vector.shape_cast %129 : vector<16x128xf32> to vector<16x4x32xf32>
    %131 = vector.extract_strided_slice %126 {offsets = [0, 256], sizes = [16, 128], strides = [1, 1]} : vector<16x384xf32> to vector<16x128xf32>
    %132 = vector.shape_cast %131 : vector<16x128xf32> to vector<16x4x32xf32>
    %133 = tpu.transpose %128, [1, 0, 2] : vector<16x4x32xf32> -> vector<4x16x32xf32>
    %134 = arith.truncf %133 : vector<4x16x32xf32> to vector<4x16x32xbf16>
    %135 = tpu.transpose %130, [1, 0, 2] : vector<16x4x32xf32> -> vector<4x16x32xf32>
    %136 = arith.truncf %135 : vector<4x16x32xf32> to vector<4x16x32xbf16>
    %137 = tpu.transpose %132, [1, 0, 2] : vector<16x4x32xf32> -> vector<4x16x32xf32>
    %138 = arith.truncf %137 : vector<4x16x32xf32> to vector<4x16x32xbf16>
    "tpu.trace_start"() <{level = 10 : i32, message = "hqd,hkd->hqk"}> : () -> ()
    %cst_36 = arith.constant dense<0.000000e+00> : vector<4x16x16xf32>
    %139 = tpu.matmul %134, %136, %cst_36 {dimension_numbers = #tpu.dot_dimension_numbers<[2], [2], [1], [1], [0, 0, 0, 1, 1, 1], [0], [0]>} : vector<4x16x32xbf16>, vector<4x16x32xbf16>, vector<4x16x16xf32> -> vector<4x16x16xf32>
    "tpu.trace_stop"() : () -> ()
    %cst_37 = arith.constant 0.176776692 : f32
    %140 = vector.broadcast %cst_37 : f32 to vector<4x16x16xf32>
    %141 = arith.mulf %139, %140 : vector<4x16x16xf32>
    %c3 = arith.constant 3 : index
    %c0_38 = arith.constant 0 : index
    %c0_39 = arith.constant 0 : index
    %142 = vector.load %arg3[%c3, %c0_38, %c0_39] : memref<4x1x16xf32, #tpu.memory_space<vmem>>, vector<1x1x16xf32>
    %143 = vector.shape_cast %142 : vector<1x1x16xf32> to vector<1x16xf32>
    %144 = vector.shape_cast %143 : vector<1x16xf32> to vector<1x1x16xf32>
    %cst_40 = arith.constant 0.000000e+00 : f32
    %145 = vector.broadcast %cst_40 : f32 to vector<1x1x16xf32>
    %146 = arith.cmpf ogt, %144, %145 : vector<1x1x16xf32>
    %cst_41 = arith.constant -1.000000e+09 : f32
    %147 = vector.shape_cast %146 : vector<1x1x16xi1> to vector<1x1x16xi1>
    %148 = vector.broadcast %147 : vector<1x1x16xi1> to vector<4x16x16xi1>
    %149 = vector.broadcast %cst_41 : f32 to vector<4x16x16xf32>
    %150 = arith.select %148, %141, %149 : vector<4x16x16xi1>, vector<4x16x16xf32>
    %cst_42 = arith.constant dense<0xFF800000> : vector<4x16xf32>
    %151 = vector.multi_reduction <maximumf>, %150, %cst_42 [2] : vector<4x16x16xf32> to vector<4x16xf32>
    %152 = vector.shape_cast %151 : vector<4x16xf32> to vector<4x16x1xf32>
    %153 = vector.broadcast %152 : vector<4x16x1xf32> to vector<4x16x16xf32>
    %154 = arith.subf %150, %153 : vector<4x16x16xf32>
    %155 = math.exp %154 : vector<4x16x16xf32>
    %cst_43 = arith.constant dense<0.000000e+00> : vector<4x16xf32>
    %156 = vector.multi_reduction <add>, %155, %cst_43 [2] : vector<4x16x16xf32> to vector<4x16xf32>
    %157 = vector.shape_cast %156 : vector<4x16xf32> to vector<4x16x1xf32>
    %158 = vector.broadcast %157 : vector<4x16x1xf32> to vector<4x16x16xf32>
    %159 = arith.divf %155, %158 : vector<4x16x16xf32>
    %160 = arith.truncf %159 : vector<4x16x16xf32> to vector<4x16x16xbf16>
    "tpu.trace_start"() <{level = 10 : i32, message = "hqk,hkd->hqd"}> : () -> ()
    %cst_44 = arith.constant dense<0.000000e+00> : vector<4x16x32xf32>
    %161 = tpu.matmul %160, %138, %cst_44 {dimension_numbers = #tpu.dot_dimension_numbers<[2], [1], [1], [2], [0, 0, 0, 1, 1, 2], [0], [0]>} : vector<4x16x16xbf16>, vector<4x16x32xbf16>, vector<4x16x32xf32> -> vector<4x16x32xf32>
    "tpu.trace_stop"() : () -> ()
    %162 = tpu.transpose %161, [1, 0, 2] : vector<4x16x32xf32> -> vector<16x4x32xf32>
    %163 = vector.shape_cast %162 : vector<16x4x32xf32> to vector<16x128xf32>
    %164 = tpu.concatenate %49, %87, %125, %163 in 0 : vector<16x128xf32>, vector<16x128xf32>, vector<16x128xf32>, vector<16x128xf32> -> vector<64x128xf32>
    %c0_45 = arith.constant 0 : index
    %c0_46 = arith.constant 0 : index
    %c0_47 = arith.constant 0 : index
    %165 = vector.load %arg8[%c0_45, %c0_46, %c0_47] : memref<1x128x128xbf16, #tpu.memory_space<vmem>>, vector<1x128x128xbf16>
    %166 = vector.shape_cast %165 : vector<1x128x128xbf16> to vector<128x128xbf16>
    %167 = arith.truncf %164 : vector<64x128xf32> to vector<64x128xbf16>
    %cst_48 = arith.constant dense<0.000000e+00> : vector<64x128xf32>
    %168 = tpu.matmul %167, %166, %cst_48 {dimension_numbers = #tpu.dot_dimension_numbers<[1], [0], [0], [1], [0, 0, 1, 1], [], []>} : vector<64x128xbf16>, vector<128x128xbf16>, vector<64x128xf32> -> vector<64x128xf32>
    %c0_49 = arith.constant 0 : index
    %c0_50 = arith.constant 0 : index
    %c0_51 = arith.constant 0 : index
    %169 = vector.load %arg9[%c0_49, %c0_50, %c0_51] : memref<1x1x128xf32, #tpu.memory_space<vmem>>, vector<1x1x128xf32>
    %170 = vector.shape_cast %169 : vector<1x1x128xf32> to vector<1x128xf32>
    %171 = vector.broadcast %170 : vector<1x128xf32> to vector<64x128xf32>
    %172 = arith.addf %168, %171 : vector<64x128xf32>
    %173 = arith.addf %172, %3 : vector<64x128xf32>
    %c0_52 = arith.constant 0 : index
    %c0_53 = arith.constant 0 : index
    %c0_54 = arith.constant 0 : index
    %174 = vector.load %arg10[%c0_52, %c0_53, %c0_54] : memref<1x1x128xf32, #tpu.memory_space<vmem>>, vector<1x1x128xf32>
    %175 = vector.shape_cast %174 : vector<1x1x128xf32> to vector<1x128xf32>
    %c0_55 = arith.constant 0 : index
    %c0_56 = arith.constant 0 : index
    %c0_57 = arith.constant 0 : index
    %176 = vector.load %arg11[%c0_55, %c0_56, %c0_57] : memref<1x1x128xf32, #tpu.memory_space<vmem>>, vector<1x1x128xf32>
    %177 = vector.shape_cast %176 : vector<1x1x128xf32> to vector<1x128xf32>
    %cst_58 = arith.constant dense<0.000000e+00> : vector<64xf32>
    %178 = vector.multi_reduction <add>, %173, %cst_58 [1] : vector<64x128xf32> to vector<64xf32>
    %179 = vector.shape_cast %178 : vector<64xf32> to vector<64x1xf32>
    %cst_59 = arith.constant 1.280000e+02 : f32
    %180 = vector.broadcast %cst_59 : f32 to vector<64x1xf32>
    %181 = arith.divf %179, %180 : vector<64x1xf32>
    %182 = vector.broadcast %181 : vector<64x1xf32> to vector<64x128xf32>
    %183 = arith.subf %173, %182 : vector<64x128xf32>
    %184 = arith.mulf %183, %183 : vector<64x128xf32>
    %cst_60 = arith.constant dense<0.000000e+00> : vector<64xf32>
    %185 = vector.multi_reduction <add>, %184, %cst_60 [1] : vector<64x128xf32> to vector<64xf32>
    %186 = vector.shape_cast %185 : vector<64xf32> to vector<64x1xf32>
    %cst_61 = arith.constant 1.280000e+02 : f32
    %187 = vector.broadcast %cst_61 : f32 to vector<64x1xf32>
    %188 = arith.divf %186, %187 : vector<64x1xf32>
    %189 = vector.broadcast %181 : vector<64x1xf32> to vector<64x128xf32>
    %190 = arith.subf %173, %189 : vector<64x128xf32>
    %cst_62 = arith.constant 9.99999996E-13 : f32
    %191 = vector.broadcast %cst_62 : f32 to vector<64x1xf32>
    %192 = arith.addf %188, %191 : vector<64x1xf32>
    %193 = math.rsqrt %192 : vector<64x1xf32>
    %194 = vector.broadcast %193 : vector<64x1xf32> to vector<64x128xf32>
    %195 = arith.mulf %190, %194 : vector<64x128xf32>
    %196 = vector.broadcast %175 : vector<1x128xf32> to vector<64x128xf32>
    %197 = arith.mulf %195, %196 : vector<64x128xf32>
    %198 = vector.broadcast %177 : vector<1x128xf32> to vector<64x128xf32>
    %199 = arith.addf %197, %198 : vector<64x128xf32>
    %c0_63 = arith.constant 0 : index
    %c0_64 = arith.constant 0 : index
    %c0_65 = arith.constant 0 : index
    %200 = vector.load %arg12[%c0_63, %c0_64, %c0_65] : memref<1x128x256xbf16, #tpu.memory_space<vmem>>, vector<1x128x256xbf16>
    %201 = vector.shape_cast %200 : vector<1x128x256xbf16> to vector<128x256xbf16>
    %202 = arith.truncf %199 : vector<64x128xf32> to vector<64x128xbf16>
    %cst_66 = arith.constant dense<0.000000e+00> : vector<64x256xf32>
    %203 = tpu.matmul %202, %201, %cst_66 {dimension_numbers = #tpu.dot_dimension_numbers<[1], [0], [0], [1], [0, 0, 1, 1], [], []>} : vector<64x128xbf16>, vector<128x256xbf16>, vector<64x256xf32> -> vector<64x256xf32>
    %c0_67 = arith.constant 0 : index
    %c0_68 = arith.constant 0 : index
    %c0_69 = arith.constant 0 : index
    %204 = vector.load %arg13[%c0_67, %c0_68, %c0_69] : memref<1x1x256xf32, #tpu.memory_space<vmem>>, vector<1x1x256xf32>
    %205 = vector.shape_cast %204 : vector<1x1x256xf32> to vector<1x256xf32>
    %206 = vector.broadcast %205 : vector<1x256xf32> to vector<64x256xf32>
    %207 = arith.addf %203, %206 : vector<64x256xf32>
    %208 = arith.mulf %207, %207 : vector<64x256xf32>
    %209 = arith.mulf %207, %208 : vector<64x256xf32>
    %cst_70 = arith.constant 4.471500e-02 : f32
    %210 = vector.broadcast %cst_70 : f32 to vector<64x256xf32>
    %211 = arith.mulf %210, %209 : vector<64x256xf32>
    %212 = arith.addf %207, %211 : vector<64x256xf32>
    %cst_71 = arith.constant 0.797884583 : f32
    %213 = vector.broadcast %cst_71 : f32 to vector<64x256xf32>
    %214 = arith.mulf %213, %212 : vector<64x256xf32>
    %215 = math.tanh %214 : vector<64x256xf32>
    %cst_72 = arith.constant 1.000000e+00 : f32
    %216 = vector.broadcast %cst_72 : f32 to vector<64x256xf32>
    %217 = arith.addf %216, %215 : vector<64x256xf32>
    %cst_73 = arith.constant 5.000000e-01 : f32
    %218 = vector.broadcast %cst_73 : f32 to vector<64x256xf32>
    %219 = arith.mulf %218, %217 : vector<64x256xf32>
    %220 = arith.mulf %207, %219 : vector<64x256xf32>
    %c0_74 = arith.constant 0 : index
    %c0_75 = arith.constant 0 : index
    %c0_76 = arith.constant 0 : index
    %221 = vector.load %arg14[%c0_74, %c0_75, %c0_76] : memref<1x256x128xbf16, #tpu.memory_space<vmem>>, vector<1x256x128xbf16>
    %222 = vector.shape_cast %221 : vector<1x256x128xbf16> to vector<256x128xbf16>
    %223 = arith.truncf %220 : vector<64x256xf32> to vector<64x256xbf16>
    %cst_77 = arith.constant dense<0.000000e+00> : vector<64x128xf32>
    %224 = tpu.matmul %223, %222, %cst_77 {dimension_numbers = #tpu.dot_dimension_numbers<[1], [0], [0], [1], [0, 0, 1, 1], [], []>} : vector<64x256xbf16>, vector<256x128xbf16>, vector<64x128xf32> -> vector<64x128xf32>
    %c0_78 = arith.constant 0 : index
    %c0_79 = arith.constant 0 : index
    %c0_80 = arith.constant 0 : index
    %225 = vector.load %arg15[%c0_78, %c0_79, %c0_80] : memref<1x1x128xf32, #tpu.memory_space<vmem>>, vector<1x1x128xf32>
    %226 = vector.shape_cast %225 : vector<1x1x128xf32> to vector<1x128xf32>
    %227 = vector.broadcast %226 : vector<1x128xf32> to vector<64x128xf32>
    %228 = arith.addf %224, %227 : vector<64x128xf32>
    %229 = arith.addf %228, %199 : vector<64x128xf32>
    %c0_81 = arith.constant 0 : index
    %c0_82 = arith.constant 0 : index
    %c0_83 = arith.constant 0 : index
    %230 = vector.load %arg16[%c0_81, %c0_82, %c0_83] : memref<1x1x128xf32, #tpu.memory_space<vmem>>, vector<1x1x128xf32>
    %231 = vector.shape_cast %230 : vector<1x1x128xf32> to vector<1x128xf32>
    %c0_84 = arith.constant 0 : index
    %c0_85 = arith.constant 0 : index
    %c0_86 = arith.constant 0 : index
    %232 = vector.load %arg17[%c0_84, %c0_85, %c0_86] : memref<1x1x128xf32, #tpu.memory_space<vmem>>, vector<1x1x128xf32>
    %233 = vector.shape_cast %232 : vector<1x1x128xf32> to vector<1x128xf32>
    %cst_87 = arith.constant dense<0.000000e+00> : vector<64xf32>
    %234 = vector.multi_reduction <add>, %229, %cst_87 [1] : vector<64x128xf32> to vector<64xf32>
    %235 = vector.shape_cast %234 : vector<64xf32> to vector<64x1xf32>
    %cst_88 = arith.constant 1.280000e+02 : f32
    %236 = vector.broadcast %cst_88 : f32 to vector<64x1xf32>
    %237 = arith.divf %235, %236 : vector<64x1xf32>
    %238 = vector.broadcast %237 : vector<64x1xf32> to vector<64x128xf32>
    %239 = arith.subf %229, %238 : vector<64x128xf32>
    %240 = arith.mulf %239, %239 : vector<64x128xf32>
    %cst_89 = arith.constant dense<0.000000e+00> : vector<64xf32>
    %241 = vector.multi_reduction <add>, %240, %cst_89 [1] : vector<64x128xf32> to vector<64xf32>
    %242 = vector.shape_cast %241 : vector<64xf32> to vector<64x1xf32>
    %cst_90 = arith.constant 1.280000e+02 : f32
    %243 = vector.broadcast %cst_90 : f32 to vector<64x1xf32>
    %244 = arith.divf %242, %243 : vector<64x1xf32>
    %245 = vector.broadcast %237 : vector<64x1xf32> to vector<64x128xf32>
    %246 = arith.subf %229, %245 : vector<64x128xf32>
    %cst_91 = arith.constant 9.99999996E-13 : f32
    %247 = vector.broadcast %cst_91 : f32 to vector<64x1xf32>
    %248 = arith.addf %244, %247 : vector<64x1xf32>
    %249 = math.rsqrt %248 : vector<64x1xf32>
    %250 = vector.broadcast %249 : vector<64x1xf32> to vector<64x128xf32>
    %251 = arith.mulf %246, %250 : vector<64x128xf32>
    %252 = vector.broadcast %231 : vector<1x128xf32> to vector<64x128xf32>
    %253 = arith.mulf %251, %252 : vector<64x128xf32>
    %254 = vector.broadcast %233 : vector<1x128xf32> to vector<64x128xf32>
    %255 = arith.addf %253, %254 : vector<64x128xf32>
    %c0_92 = arith.constant 0 : index
    %c0_93 = arith.constant 0 : index
    %256 = vector.load %arg23[%c0_92, %c0_93] : memref<64x128xf32, #tpu.memory_space<vmem>>, vector<64x128xf32>
    tpu.vector_store %arg23[%c0_92, %c0_93], %255 {strides = array<i32>} : memref<64x128xf32, #tpu.memory_space<vmem>>, vector<64x128xf32>,
    %c3_i32 = arith.constant 3 : i32
    %257 = arith.cmpi eq, %arg1, %c3_i32 : i32
    %258 = arith.extui %257 : i1 to i32
    %c0_i32_94 = arith.constant 0 : i32
    %259 = arith.cmpi ne, %258, %c0_i32_94 : i32
    scf.if %259 {
      %260 = vector.extract_strided_slice %255 {offsets = [0, 0], sizes = [1, 128], strides = [1, 1]} : vector<64x128xf32> to vector<1x128xf32>
      %261 = vector.extract_strided_slice %255 {offsets = [16, 0], sizes = [1, 128], strides = [1, 1]} : vector<64x128xf32> to vector<1x128xf32>
      %262 = vector.extract_strided_slice %255 {offsets = [32, 0], sizes = [1, 128], strides = [1, 1]} : vector<64x128xf32> to vector<1x128xf32>
      %263 = vector.extract_strided_slice %255 {offsets = [48, 0], sizes = [1, 128], strides = [1, 1]} : vector<64x128xf32> to vector<1x128xf32>
      %264 = tpu.concatenate %260, %261, %262, %263 in 0 : vector<1x128xf32>, vector<1x128xf32>, vector<1x128xf32>, vector<1x128xf32> -> vector<4x128xf32>
      %c0_95 = arith.constant 0 : index
      %c0_96 = arith.constant 0 : index
      %265 = vector.load %arg18[%c0_95, %c0_96] : memref<128x128xbf16, #tpu.memory_space<vmem>>, vector<128x128xbf16>
      %266 = arith.truncf %264 : vector<4x128xf32> to vector<4x128xbf16>
      %cst_97 = arith.constant dense<0.000000e+00> : vector<4x128xf32>
      %267 = tpu.matmul %266, %265, %cst_97 {dimension_numbers = #tpu.dot_dimension_numbers<[1], [0], [0], [1], [0, 0, 1, 1], [], []>} : vector<4x128xbf16>, vector<128x128xbf16>, vector<4x128xf32> -> vector<4x128xf32>
      %c0_98 = arith.constant 0 : index
      %c0_99 = arith.constant 0 : index
      %268 = vector.load %arg19[%c0_98, %c0_99] : memref<1x128xf32, #tpu.memory_space<vmem>>, vector<1x128xf32>
      %269 = vector.broadcast %268 : vector<1x128xf32> to vector<4x128xf32>
      %270 = arith.addf %267, %269 : vector<4x128xf32>
      %271 = math.tanh %270 : vector<4x128xf32>
      %c0_100 = arith.constant 0 : index
      %c0_101 = arith.constant 0 : index
      %272 = vector.load %arg20[%c0_100, %c0_101] : memref<128x128xbf16, #tpu.memory_space<vmem>>, vector<128x128xbf16>
      %273 = arith.truncf %271 : vector<4x128xf32> to vector<4x128xbf16>
      %cst_102 = arith.constant dense<0.000000e+00> : vector<4x128xf32>
      %274 = tpu.matmul %273, %272, %cst_102 {dimension_numbers = #tpu.dot_dimension_numbers<[1], [0], [0], [1], [0, 0, 1, 1], [], []>} : vector<4x128xbf16>, vector<128x128xbf16>, vector<4x128xf32> -> vector<4x128xf32>
      %c0_103 = arith.constant 0 : index
      %c0_104 = arith.constant 0 : index
      %275 = vector.load %arg21[%c0_103, %c0_104] : memref<1x128xf32, #tpu.memory_space<vmem>>, vector<1x128xf32>
      %276 = vector.broadcast %275 : vector<1x128xf32> to vector<4x128xf32>
      %277 = arith.addf %274, %276 : vector<4x128xf32>
      %278 = vector.shape_cast %277 : vector<4x128xf32> to vector<4x1x128xf32>
      %c0_105 = arith.constant 0 : index
      %c0_106 = arith.constant 0 : index
      %c0_107 = arith.constant 0 : index
      %279 = vector.load %arg22[%c0_105, %c0_106, %c0_107] : memref<4x1x128xf32, #tpu.memory_space<vmem>>, vector<4x1x128xf32>
      tpu.vector_store %arg22[%c0_105, %c0_106, %c0_107], %278 {strides = array<i32>} : memref<4x1x128xf32, #tpu.memory_space<vmem>>, vector<4x1x128xf32>,
    } else {
    }
    return
  }
  func.func @transform_0(%arg0: i32, %arg1: i32) -> (i32, i32, i32) {
    %c0_i32 = arith.constant 0 : i32
    %c0_i32_0 = arith.constant 0 : i32
    %c0_i32_1 = arith.constant 0 : i32
    return %arg0, %c0_i32, %c0_i32_0 : i32, i32, i32
  }
  func.func @transform_1(%arg0: i32, %arg1: i32) -> (i32, i32, i32) {
    %c0_i32 = arith.constant 0 : i32
    %c0_i32_0 = arith.constant 0 : i32
    %c0_i32_1 = arith.constant 0 : i32
    return %arg0, %c0_i32, %c0_i32_0 : i32, i32, i32
  }
  func.func @transform_2(%arg0: i32, %arg1: i32) -> (i32, i32) {
    %c0_i32 = arith.constant 0 : i32
    %c0_i32_0 = arith.constant 0 : i32
    %c0_i32_1 = arith.constant 0 : i32
    return %c0_i32, %c0_i32_0 : i32, i32
  }
  func.func @transform_3(%arg0: i32, %arg1: i32) -> (i32, i32) {
    %c0_i32 = arith.constant 0 : i32
    %c0_i32_0 = arith.constant 0 : i32
    %c0_i32_1 = arith.constant 0 : i32
    return %c0_i32, %c0_i32_0 : i32, i32
  }
  func.func @transform_4(%arg0: i32, %arg1: i32) -> (i32, i32, i32) {
    %c0_i32 = arith.constant 0 : i32
    %c0_i32_0 = arith.constant 0 : i32
    %c0_i32_1 = arith.constant 0 : i32
    return %arg1, %c0_i32, %c0_i32_0 : i32, i32, i32
  }
  func.func @transform_5(%arg0: i32, %arg1: i32) -> (i32, i32, i32) {
    %c0_i32 = arith.constant 0 : i32
    %c0_i32_0 = arith.constant 0 : i32
    %c0_i32_1 = arith.constant 0 : i32
    return %arg1, %c0_i32, %c0_i32_0 : i32, i32, i32
  }
  func.func @transform_6(%arg0: i32, %arg1: i32) -> (i32, i32, i32) {
    %c0_i32 = arith.constant 0 : i32
    %c0_i32_0 = arith.constant 0 : i32
    %c0_i32_1 = arith.constant 0 : i32
    return %arg1, %c0_i32, %c0_i32_0 : i32, i32, i32
  }
  func.func @transform_7(%arg0: i32, %arg1: i32) -> (i32, i32, i32) {
    %c0_i32 = arith.constant 0 : i32
    %c0_i32_0 = arith.constant 0 : i32
    %c0_i32_1 = arith.constant 0 : i32
    return %arg1, %c0_i32, %c0_i32_0 : i32, i32, i32
  }
  func.func @transform_8(%arg0: i32, %arg1: i32) -> (i32, i32, i32) {
    %c0_i32 = arith.constant 0 : i32
    %c0_i32_0 = arith.constant 0 : i32
    %c0_i32_1 = arith.constant 0 : i32
    return %arg1, %c0_i32, %c0_i32_0 : i32, i32, i32
  }
  func.func @transform_9(%arg0: i32, %arg1: i32) -> (i32, i32, i32) {
    %c0_i32 = arith.constant 0 : i32
    %c0_i32_0 = arith.constant 0 : i32
    %c0_i32_1 = arith.constant 0 : i32
    return %arg1, %c0_i32, %c0_i32_0 : i32, i32, i32
  }
  func.func @transform_10(%arg0: i32, %arg1: i32) -> (i32, i32, i32) {
    %c0_i32 = arith.constant 0 : i32
    %c0_i32_0 = arith.constant 0 : i32
    %c0_i32_1 = arith.constant 0 : i32
    return %arg1, %c0_i32, %c0_i32_0 : i32, i32, i32
  }
  func.func @transform_11(%arg0: i32, %arg1: i32) -> (i32, i32, i32) {
    %c0_i32 = arith.constant 0 : i32
    %c0_i32_0 = arith.constant 0 : i32
    %c0_i32_1 = arith.constant 0 : i32
    return %arg1, %c0_i32, %c0_i32_0 : i32, i32, i32
  }
  func.func @transform_12(%arg0: i32, %arg1: i32) -> (i32, i32, i32) {
    %c0_i32 = arith.constant 0 : i32
    %c0_i32_0 = arith.constant 0 : i32
    %c0_i32_1 = arith.constant 0 : i32
    return %arg1, %c0_i32, %c0_i32_0 : i32, i32, i32
  }
  func.func @transform_13(%arg0: i32, %arg1: i32) -> (i32, i32, i32) {
    %c0_i32 = arith.constant 0 : i32
    %c0_i32_0 = arith.constant 0 : i32
    %c0_i32_1 = arith.constant 0 : i32
    return %arg1, %c0_i32, %c0_i32_0 : i32, i32, i32
  }
  func.func @transform_14(%arg0: i32, %arg1: i32) -> (i32, i32, i32) {
    %c0_i32 = arith.constant 0 : i32
    %c0_i32_0 = arith.constant 0 : i32
    %c0_i32_1 = arith.constant 0 : i32
    return %arg1, %c0_i32, %c0_i32_0 : i32, i32, i32
  }
  func.func @transform_15(%arg0: i32, %arg1: i32) -> (i32, i32, i32) {
    %c0_i32 = arith.constant 0 : i32
    %c0_i32_0 = arith.constant 0 : i32
    %c0_i32_1 = arith.constant 0 : i32
    return %arg1, %c0_i32, %c0_i32_0 : i32, i32, i32
  }
  func.func @transform_16(%arg0: i32, %arg1: i32) -> (i32, i32) {
    %c0_i32 = arith.constant 0 : i32
    %c0_i32_0 = arith.constant 0 : i32
    %c0_i32_1 = arith.constant 0 : i32
    return %c0_i32, %c0_i32_0 : i32, i32
  }
  func.func @transform_17(%arg0: i32, %arg1: i32) -> (i32, i32) {
    %c0_i32 = arith.constant 0 : i32
    %c0_i32_0 = arith.constant 0 : i32
    %c0_i32_1 = arith.constant 0 : i32
    return %c0_i32, %c0_i32_0 : i32, i32
  }
  func.func @transform_18(%arg0: i32, %arg1: i32) -> (i32, i32) {
    %c0_i32 = arith.constant 0 : i32
    %c0_i32_0 = arith.constant 0 : i32
    %c0_i32_1 = arith.constant 0 : i32
    return %c0_i32, %c0_i32_0 : i32, i32
  }
  func.func @transform_19(%arg0: i32, %arg1: i32) -> (i32, i32) {
    %c0_i32 = arith.constant 0 : i32
    %c0_i32_0 = arith.constant 0 : i32
    %c0_i32_1 = arith.constant 0 : i32
    return %c0_i32, %c0_i32_0 : i32, i32
  }
  func.func @transform_20(%arg0: i32, %arg1: i32) -> (i32, i32, i32) {
    %c0_i32 = arith.constant 0 : i32
    %c0_i32_0 = arith.constant 0 : i32
    %c0_i32_1 = arith.constant 0 : i32
    return %arg0, %c0_i32, %c0_i32_0 : i32, i32, i32
  }
}

</mosaic_0001>

<llo_original>
// kernel: forward.1
$region0: #{forward.1}
  #allocation0 [shape = 'u32[]', space=smem, size = 0x4, offset = 0x4, fixed_abs, tag = 'smem constant byte address 0x4 - core index']
  #allocation1 [shape = 'u32[72,128]{1,0:T(1,128)}', space=vmem, size = 0x9000, scoped, tag = 'internal scratch']
  #allocation2 [shape = 'f32[64,128]{1,0:T(8,128)}', space=vmem, size = 0x8000, scoped, tag = 'scratch operand']
  %s0 = inlined_call_operand.vmem [shape: bf16[8,16,128], index: 0, kind: input, shape index: {}]
  %s1 = inlined_call_operand.hbm [shape: f32[8,1,16], index: 1, kind: input, shape index: {}]
  %s2 = inlined_call_operand.vmem [shape: f32[1,128], index: 2, kind: input, shape index: {}]
  %s3 = inlined_call_operand.vmem [shape: f32[1,128], index: 3, kind: input, shape index: {}]
  %s4 = inlined_call_operand.vmem [shape: bf16[4,128,384], index: 4, kind: input, shape index: {}]
  %s5 = inlined_call_operand.vmem [shape: f32[4,1,384], index: 5, kind: input, shape index: {}]
  %s6 = inlined_call_operand.hbm [shape: bf16[4,128,128], index: 6, kind: input, shape index: {}]
  %s7 = inlined_call_operand.vmem [shape: f32[4,1,128], index: 7, kind: input, shape index: {}]
  %s8 = inlined_call_operand.hbm [shape: f32[4,1,128], index: 8, kind: input, shape index: {}]
  %s9 = inlined_call_operand.hbm [shape: f32[4,1,128], index: 9, kind: input, shape index: {}]
  %s10 = inlined_call_operand.vmem [shape: bf16[4,128,256], index: 10, kind: input, shape index: {}]
  %s11 = inlined_call_operand.hbm [shape: f32[4,1,256], index: 11, kind: input, shape index: {}]
  %s12 = inlined_call_operand.hbm [shape: bf16[4,256,128], index: 12, kind: input, shape index: {}]
  %s13 = inlined_call_operand.hbm [shape: f32[4,1,128], index: 13, kind: input, shape index: {}]
  %s14 = inlined_call_operand.hbm [shape: f32[4,1,128], index: 14, kind: input, shape index: {}]
  %s15 = inlined_call_operand.hbm [shape: f32[4,1,128], index: 15, kind: input, shape index: {}]
  %s16 = inlined_call_operand.vmem [shape: bf16[128,128], index: 16, kind: input, shape index: {}]
  %s17 = inlined_call_operand.vmem [shape: f32[1,128], index: 17, kind: input, shape index: {}]
  %s18 = inlined_call_operand.vmem [shape: bf16[128,128], index: 18, kind: input, shape index: {}]
  %s19 = inlined_call_operand.hbm [shape: f32[1,128], index: 19, kind: input, shape index: {}]
  %s20 = inlined_call_operand.vmem [shape: f32[8,1,128], index: 20, kind: output, shape index: {}]
  %s21 = sld [smem:[#allocation0]]
  $region161: #{forward.1} parent=0
    _
  %s23 = ssub.s32 1, %s21
  %s24 = scalar_select 0, %s23, %s21
  $region1: #{forward.1} parent=0
    #allocation3 [shape = 'u8[4096]{0}', space=vmem, size = 0x1000, scoped, tag = 'input window, operand 1']
    #allocation4 [shape = 's32[2]{0}', space=sflag, size = 0x8, scoped, tag = 'scoped memory for forward.1']
    #allocation5 [shape = 'u8[65536]{0}', space=vmem, size = 0x10000, scoped, tag = 'input window, operand 6']
    #allocation6 [shape = 's32[2]{0}', space=sflag, size = 0x8, scoped, tag = 'scoped memory for forward.1']
    #allocation7 [shape = 'u8[1024]{0}', space=vmem, size = 0x400, scoped, tag = 'input window, operand 8']
    #allocation8 [shape = 'u8[1024]{0}', space=vmem, size = 0x400, scoped, tag = 'input window, operand 9']
    #allocation9 [shape = 's32[2]{0}', space=sflag, size = 0x8, scoped, tag = 'scoped memory for forward.1']
    #allocation10 [shape = 'u8[2048]{0}', space=vmem, size = 0x800, scoped, tag = 'input window, operand 11']
    #allocation11 [shape = 'u8[131072]{0}', space=vmem, size = 0x20000, scoped, tag = 'input window, operand 12']
    #allocation12 [shape = 's32[2]{0}', space=sflag, size = 0x8, scoped, tag = 'scoped memory for forward.1']
    #allocation13 [shape = 'u8[1024]{0}', space=vmem, size = 0x400, scoped, tag = 'input window, operand 13']
    #allocation14 [shape = 'u8[1024]{0}', space=vmem, size = 0x400, scoped, tag = 'input window, operand 14']
    #allocation15 [shape = 's32[2]{0}', space=sflag, size = 0x8, scoped, tag = 'scoped memory for forward.1']
    #allocation16 [shape = 'u8[1024]{0}', space=vmem, size = 0x400, scoped, tag = 'input window, operand 15']
    #allocation17 [shape = 'u8[512]{0}', space=vmem, size = 0x400, scoped, tag = 'input window, operand 19, single buffered']
    #allocation18 [shape = 's32[1]{0}', space=sflag, size = 0x4, scoped, tag = 'scoped memory for forward.1']
    %25 = vsyncpa [#allocation4], 0
    %s26 = scalar_lea.sflag [#allocation4], 1
    %27 = vsyncpa %s26, 0
    %28 = vsyncpa [#allocation6], 0
    %s29 = scalar_lea.sflag [#allocation6], 1
    %30 = vsyncpa %s29, 0
    %31 = vsyncpa [#allocation9], 0
    %s32 = scalar_lea.sflag [#allocation9], 1
    %33 = vsyncpa %s32, 0
    %34 = vsyncpa [#allocation12], 0
    %s35 = scalar_lea.sflag [#allocation12], 1
    %36 = vsyncpa %s35, 0
    %37 = vsyncpa [#allocation15], 0
    %s38 = scalar_lea.sflag [#allocation15], 1
    %39 = vsyncpa %s38, 0
    %40 = vsyncpa [#allocation18], 0
    loop: start=0, step=1, limit=10
    $region2: #{forward.1} parent=1 // loop_pre_header
      _
    $region3: #{forward.1} parent=1 // loop_header
      %s42 = sphi 0, %s46
      %p43 = scmp.ge.s32.totalorder %s42, 10
      %s49 = sphi 0, %s61
      %s50 = sphi 0, %s57
      %s51 = sphi 0, %s49
      %s52 = sphi 0, %s50
      %s53 = sphi 0, %s51
      %s54 = sphi 0, %s52
      %s64 = sphi 0, %s66
      %s67 = sphi 0, %s64
      %s68 = sphi 0, %s67
      %s84 = sphi 0, %s68
      %s90 = sphi 0, %s92
      %s93 = sphi 0, %s90
      %s94 = sphi 0, %s93
      %s110 = sphi 0, %s94
      %s114 = sphi 0, %s114
      %s116 = sphi 0, %s114
      %s117 = sphi 0, %s116
      %s131 = sphi 0, %s117
      %s135 = sphi 0, %s135
      %s137 = sphi 0, %s135
      %s138 = sphi 0, %s137
      %s152 = sphi 0, %s138
      %s158 = sphi 0, %s160
      %s161 = sphi 0, %s158
      %s162 = sphi 0, %s161
      %s178 = sphi 0, %s162
      %s184 = sphi 0, %s186
      %s187 = sphi 0, %s184
      %s188 = sphi 0, %s187
      %s204 = sphi 0, %s188
      %s210 = sphi 0, %s212
      %s213 = sphi 0, %s210
      %s214 = sphi 0, %s213
      %s230 = sphi 0, %s214
      %s236 = sphi 0, %s238
      %s239 = sphi 0, %s236
      %s240 = sphi 0, %s239
      %s256 = sphi 0, %s240
      %s262 = sphi 0, %s264
      %s265 = sphi 0, %s262
      %s266 = sphi 0, %s265
      %s282 = sphi 0, %s266
      %s288 = sphi 0, %s290
      %s291 = sphi 0, %s288
      %s292 = sphi 0, %s291
      %s308 = sphi 0, %s292
      %s314 = sphi 0, %s316
      %s317 = sphi 0, %s314
      %s318 = sphi 0, %s317
      %s334 = sphi 0, %s318
      %s340 = sphi 0, %s342
      %s343 = sphi 0, %s340
      %s344 = sphi 0, %s343
      %s360 = sphi 0, %s344
      %s366 = sphi 0, %s368
      %s369 = sphi 0, %s366
      %s370 = sphi 0, %s369
      %s386 = sphi 0, %s370
      %s392 = sphi 0, %s394
      %s395 = sphi 0, %s392
      %s396 = sphi 0, %s395
      %s412 = sphi 0, %s396
      %s418 = sphi 0, %s420
      %s421 = sphi 0, %s418
      %s422 = sphi 0, %s421
      %s438 = sphi 0, %s422
      %s444 = sphi 0, %s446
      %s447 = sphi 0, %s444
      %s448 = sphi 0, %s447
      %s464 = sphi 0, %s448
      %s468 = sphi 0, %s468
      %s470 = sphi 0, %s468
      %s471 = sphi 0, %s470
      %s485 = sphi 0, %s471
      %s489 = sphi 0, %s489
      %s491 = sphi 0, %s489
      %s492 = sphi 0, %s491
      %s506 = sphi 0, %s492
      %s510 = sphi 0, %s510
      %s512 = sphi 0, %s510
      %s513 = sphi 0, %s512
      %s527 = sphi 0, %s513
      %s531 = sphi 0, %s531
      %s533 = sphi 0, %s531
      %s534 = sphi 0, %s533
      %s548 = sphi 0, %s534
      %s554 = sphi 0, %s556
      %s557 = sphi 0, %s554
      %s558 = sphi 0, %s557
      %s574 = sphi 0, %s558
    $region4: #{forward.1} parent=1 // loop_header_branch
      %45 = sbr.rel (%p43) target = $region8
    $region5: #{forward.1} parent=1 // loop_body
      %s47 = ssub.s32 %s42, 1
      %s48 = ssub.s32 %s42, 2
      %s55 = sadd.s32 1, %s50
      %p56 = scmp.ge.s32.totalorder %s55, 4
      %s57 = scalar_select %p56, 0, %s55
      %s58 = sadd.s32 1, %s49
      %s59 = scalar_select %p56, %s58, %s49
      %p60 = scmp.ge.s32.totalorder %s59, 2
      %s61 = scalar_select %p60, 0, %s59
      %s62 = ssub.s32 %s49, %s61
      %p63 = scmp.eq.s32.totalorder %s62, 0
      %s65 = sadd.s32 %s64, 1
      %s66 = scalar_select %p63, %s64, %s65
      %p69 = pneg %p63
      %p70 = scmp.eq.s32.totalorder %s42, 7
      %p71 = por %p69, %p70
      %p72 = scmp.ne.s32.totalorder %s64, %s67
      %p73 = scmp.eq.s32.totalorder %s42, 0
      %p74 = por %p72, %p73
      %p75 = scmp.ne.s32.totalorder %s64, %s67
      %p76 = scmp.eq.s32.totalorder %s47, 7
      %p77 = por %p75, %p76
      %p78 = scmp.ne.s32.totalorder %s67, %s68
      %p79 = scmp.eq.s32.totalorder %s47, 0
      %p80 = por %p78, %p79
      %p81 = scmp.ne.s32.totalorder %s67, %s68
      %p82 = scmp.eq.s32.totalorder %s48, 7
      %p83 = por %p81, %p82
      %p85 = scmp.ne.s32.totalorder %s68, %s84
      %p86 = scmp.eq.s32.totalorder %s48, 0
      %p87 = por %p85, %p86
      %s88 = ssub.s32 %s49, %s61
      %p89 = scmp.eq.s32.totalorder %s88, 0
      %s91 = sadd.s32 %s90, 1
      %s92 = scalar_select %p89, %s90, %s91
      %p95 = pneg %p89
      %p96 = scmp.eq.s32.totalorder %s42, 7
      %p97 = por %p95, %p96
      %p98 = scmp.ne.s32.totalorder %s90, %s93
      %p99 = scmp.eq.s32.totalorder %s42, 0
      %p100 = por %p98, %p99
      %p101 = scmp.ne.s32.totalorder %s90, %s93
      %p102 = scmp.eq.s32.totalorder %s47, 7
      %p103 = por %p101, %p102
      %p104 = scmp.ne.s32.totalorder %s93, %s94
      %p105 = scmp.eq.s32.totalorder %s47, 0
      %p106 = por %p104, %p105
      %p107 = scmp.ne.s32.totalorder %s93, %s94
      %p108 = scmp.eq.s32.totalorder %s48, 7
      %p109 = por %p107, %p108
      %p111 = scmp.ne.s32.totalorder %s94, %s110
      %p112 = scmp.eq.s32.totalorder %s48, 0
      %p113 = por %p111, %p112
      %s115 = sadd.s32 %s114, 1
      %p118 = scmp.eq.s32.totalorder %s42, 7
      %p119 = scmp.ne.s32.totalorder %s114, %s116
      %p120 = scmp.eq.s32.totalorder %s42, 0
      %p121 = por %p119, %p120
      %p122 = scmp.ne.s32.totalorder %s114, %s116
      %p123 = scmp.eq.s32.totalorder %s47, 7
      %p124 = por %p122, %p123
      %p125 = scmp.ne.s32.totalorder %s116, %s117
      %p126 = scmp.eq.s32.totalorder %s47, 0
      %p127 = por %p125, %p126
      %p128 = scmp.ne.s32.totalorder %s116, %s117
      %p129 = scmp.eq.s32.totalorder %s48, 7
      %p130 = por %p128, %p129
      %p132 = scmp.ne.s32.totalorder %s117, %s131
      %p133 = scmp.eq.s32.totalorder %s48, 0
      %p134 = por %p132, %p133
      %s136 = sadd.s32 %s135, 1
      %p139 = scmp.eq.s32.totalorder %s42, 7
      %p140 = scmp.ne.s32.totalorder %s135, %s137
      %p141 = scmp.eq.s32.totalorder %s42, 0
      %p142 = por %p140, %p141
      %p143 = scmp.ne.s32.totalorder %s135, %s137
      %p144 = scmp.eq.s32.totalorder %s47, 7
      %p145 = por %p143, %p144
      %p146 = scmp.ne.s32.totalorder %s137, %s138
      %p147 = scmp.eq.s32.totalorder %s47, 0
      %p148 = por %p146, %p147
      %p149 = scmp.ne.s32.totalorder %s137, %s138
      %p150 = scmp.eq.s32.totalorder %s48, 7
      %p151 = por %p149, %p150
      %p153 = scmp.ne.s32.totalorder %s138, %s152
      %p154 = scmp.eq.s32.totalorder %s48, 0
      %p155 = por %p153, %p154
      %s156 = ssub.s32 %s50, %s57
      %p157 = scmp.eq.s32.totalorder %s156, 0
      %s159 = sadd.s32 %s158, 1
      %s160 = scalar_select %p157, %s158, %s159
      %p163 = pneg %p157
      %p164 = scmp.eq.s32.totalorder %s42, 7
      %p165 = por %p163, %p164
      %p166 = scmp.ne.s32.totalorder %s158, %s161
      %p167 = scmp.eq.s32.totalorder %s42, 0
      %p168 = por %p166, %p167
      %p169 = scmp.ne.s32.totalorder %s158, %s161
      %p170 = scmp.eq.s32.totalorder %s47, 7
      %p171 = por %p169, %p170
      %p172 = scmp.ne.s32.totalorder %s161, %s162
      %p173 = scmp.eq.s32.totalorder %s47, 0
      %p174 = por %p172, %p173
      %p175 = scmp.ne.s32.totalorder %s161, %s162
      %p176 = scmp.eq.s32.totalorder %s48, 7
      %p177 = por %p175, %p176
      %p179 = scmp.ne.s32.totalorder %s162, %s178
      %p180 = scmp.eq.s32.totalorder %s48, 0
      %p181 = por %p179, %p180
      %s182 = ssub.s32 %s50, %s57
      %p183 = scmp.eq.s32.totalorder %s182, 0
      %s185 = sadd.s32 %s184, 1
      %s186 = scalar_select %p183, %s184, %s185
      %p189 = pneg %p183
      %p190 = scmp.eq.s32.totalorder %s42, 7
      %p191 = por %p189, %p190
      %p192 = scmp.ne.s32.totalorder %s184, %s187
      %p193 = scmp.eq.s32.totalorder %s42, 0
      %p194 = por %p192, %p193
      %p195 = scmp.ne.s32.totalorder %s184, %s187
      %p196 = scmp.eq.s32.totalorder %s47, 7
      %p197 = por %p195, %p196
      %p198 = scmp.ne.s32.totalorder %s187, %s188
      %p199 = scmp.eq.s32.totalorder %s47, 0
      %p200 = por %p198, %p199
      %p201 = scmp.ne.s32.totalorder %s187, %s188
      %p202 = scmp.eq.s32.totalorder %s48, 7
      %p203 = por %p201, %p202
      %p205 = scmp.ne.s32.totalorder %s188, %s204
      %p206 = scmp.eq.s32.totalorder %s48, 0
      %p207 = por %p205, %p206
      %s208 = ssub.s32 %s50, %s57
      %p209 = scmp.eq.s32.totalorder %s208, 0
      %s211 = sadd.s32 %s210, 1
      %s212 = scalar_select %p209, %s210, %s211
      %p215 = pneg %p209
      %p216 = scmp.eq.s32.totalorder %s42, 7
      %p217 = por %p215, %p216
      %p218 = scmp.ne.s32.totalorder %s210, %s213
      %p219 = scmp.eq.s32.totalorder %s42, 0
      %p220 = por %p218, %p219
      %p221 = scmp.ne.s32.totalorder %s210, %s213
      %p222 = scmp.eq.s32.totalorder %s47, 7
      %p223 = por %p221, %p222
      %p224 = scmp.ne.s32.totalorder %s213, %s214
      %p225 = scmp.eq.s32.totalorder %s47, 0
      %p226 = por %p224, %p225
      %p227 = scmp.ne.s32.totalorder %s213, %s214
      %p228 = scmp.eq.s32.totalorder %s48, 7
      %p229 = por %p227, %p228
      %p231 = scmp.ne.s32.totalorder %s214, %s230
      %p232 = scmp.eq.s32.totalorder %s48, 0
      %p233 = por %p231, %p232
      %s234 = ssub.s32 %s50, %s57
      %p235 = scmp.eq.s32.totalorder %s234, 0
      %s237 = sadd.s32 %s236, 1
      %s238 = scalar_select %p235, %s236, %s237
      %p241 = pneg %p235
      %p242 = scmp.eq.s32.totalorder %s42, 7
      %p243 = por %p241, %p242
      %p244 = scmp.ne.s32.totalorder %s236, %s239
      %p245 = scmp.eq.s32.totalorder %s42, 0
      %p246 = por %p244, %p245
      %p247 = scmp.ne.s32.totalorder %s236, %s239
      %p248 = scmp.eq.s32.totalorder %s47, 7
      %p249 = por %p247, %p248
      %p250 = scmp.ne.s32.totalorder %s239, %s240
      %p251 = scmp.eq.s32.totalorder %s47, 0
      %p252 = por %p250, %p251
      %p253 = scmp.ne.s32.totalorder %s239, %s240
      %p254 = scmp.eq.s32.totalorder %s48, 7
      %p255 = por %p253, %p254
      %p257 = scmp.ne.s32.totalorder %s240, %s256
      %p258 = scmp.eq.s32.totalorder %s48, 0
      %p259 = por %p257, %p258
      %s260 = ssub.s32 %s50, %s57
      %p261 = scmp.eq.s32.totalorder %s260, 0
      %s263 = sadd.s32 %s262, 1
      %s264 = scalar_select %p261, %s262, %s263
      %p267 = pneg %p261
      %p268 = scmp.eq.s32.totalorder %s42, 7
      %p269 = por %p267, %p268
      %p270 = scmp.ne.s32.totalorder %s262, %s265
      %p271 = scmp.eq.s32.totalorder %s42, 0
      %p272 = por %p270, %p271
      %p273 = scmp.ne.s32.totalorder %s262, %s265
      %p274 = scmp.eq.s32.totalorder %s47, 7
      %p275 = por %p273, %p274
      %p276 = scmp.ne.s32.totalorder %s265, %s266
      %p277 = scmp.eq.s32.totalorder %s47, 0
      %p278 = por %p276, %p277
      %p279 = scmp.ne.s32.totalorder %s265, %s266
      %p280 = scmp.eq.s32.totalorder %s48, 7
      %p281 = por %p279, %p280
      %p283 = scmp.ne.s32.totalorder %s266, %s282
      %p284 = scmp.eq.s32.totalorder %s48, 0
      %p285 = por %p283, %p284
      %s286 = ssub.s32 %s50, %s57
      %p287 = scmp.eq.s32.totalorder %s286, 0
      %s289 = sadd.s32 %s288, 1
      %s290 = scalar_select %p287, %s288, %s289
      %p293 = pneg %p287
      %p294 = scmp.eq.s32.totalorder %s42, 7
      %p295 = por %p293, %p294
      %p296 = scmp.ne.s32.totalorder %s288, %s291
      %p297 = scmp.eq.s32.totalorder %s42, 0
      %p298 = por %p296, %p297
      %p299 = scmp.ne.s32.totalorder %s288, %s291
      %p300 = scmp.eq.s32.totalorder %s47, 7
      %p301 = por %p299, %p300
      %p302 = scmp.ne.s32.totalorder %s291, %s292
      %p303 = scmp.eq.s32.totalorder %s47, 0
      %p304 = por %p302, %p303
      %p305 = scmp.ne.s32.totalorder %s291, %s292
      %p306 = scmp.eq.s32.totalorder %s48, 7
      %p307 = por %p305, %p306
      %p309 = scmp.ne.s32.totalorder %s292, %s308
      %p310 = scmp.eq.s32.totalorder %s48, 0
      %p311 = por %p309, %p310
      %s312 = ssub.s32 %s50, %s57
      %p313 = scmp.eq.s32.totalorder %s312, 0
      %s315 = sadd.s32 %s314, 1
      %s316 = scalar_select %p313, %s314, %s315
      %p319 = pneg %p313
      %p320 = scmp.eq.s32.totalorder %s42, 7
      %p321 = por %p319, %p320
      %p322 = scmp.ne.s32.totalorder %s314, %s317
      %p323 = scmp.eq.s32.totalorder %s42, 0
      %p324 = por %p322, %p323
      %p325 = scmp.ne.s32.totalorder %s314, %s317
      %p326 = scmp.eq.s32.totalorder %s47, 7
      %p327 = por %p325, %p326
      %p328 = scmp.ne.s32.totalorder %s317, %s318
      %p329 = scmp.eq.s32.totalorder %s47, 0
      %p330 = por %p328, %p329
      %p331 = scmp.ne.s32.totalorder %s317, %s318
      %p332 = scmp.eq.s32.totalorder %s48, 7
      %p333 = por %p331, %p332
      %p335 = scmp.ne.s32.totalorder %s318, %s334
      %p336 = scmp.eq.s32.totalorder %s48, 0
      %p337 = por %p335, %p336
      %s338 = ssub.s32 %s50, %s57
      %p339 = scmp.eq.s32.totalorder %s338, 0
      %s341 = sadd.s32 %s340, 1
      %s342 = scalar_select %p339, %s340, %s341
      %p345 = pneg %p339
      %p346 = scmp.eq.s32.totalorder %s42, 7
      %p347 = por %p345, %p346
      %p348 = scmp.ne.s32.totalorder %s340, %s343
      %p349 = scmp.eq.s32.totalorder %s42, 0
      %p350 = por %p348, %p349
      %p351 = scmp.ne.s32.totalorder %s340, %s343
      %p352 = scmp.eq.s32.totalorder %s47, 7
      %p353 = por %p351, %p352
      %p354 = scmp.ne.s32.totalorder %s343, %s344
      %p355 = scmp.eq.s32.totalorder %s47, 0
      %p356 = por %p354, %p355
      %p357 = scmp.ne.s32.totalorder %s343, %s344
      %p358 = scmp.eq.s32.totalorder %s48, 7
      %p359 = por %p357, %p358
      %p361 = scmp.ne.s32.totalorder %s344, %s360
      %p362 = scmp.eq.s32.totalorder %s48, 0
      %p363 = por %p361, %p362
      %s364 = ssub.s32 %s50, %s57
      %p365 = scmp.eq.s32.totalorder %s364, 0
      %s367 = sadd.s32 %s366, 1
      %s368 = scalar_select %p365, %s366, %s367
      %p371 = pneg %p365
      %p372 = scmp.eq.s32.totalorder %s42, 7
      %p373 = por %p371, %p372
      %p374 = scmp.ne.s32.totalorder %s366, %s369
      %p375 = scmp.eq.s32.totalorder %s42, 0
      %p376 = por %p374, %p375
      %p377 = scmp.ne.s32.totalorder %s366, %s369
      %p378 = scmp.eq.s32.totalorder %s47, 7
      %p379 = por %p377, %p378
      %p380 = scmp.ne.s32.totalorder %s369, %s370
      %p381 = scmp.eq.s32.totalorder %s47, 0
      %p382 = por %p380, %p381
      %p383 = scmp.ne.s32.totalorder %s369, %s370
      %p384 = scmp.eq.s32.totalorder %s48, 7
      %p385 = por %p383, %p384
      %p387 = scmp.ne.s32.totalorder %s370, %s386
      %p388 = scmp.eq.s32.totalorder %s48, 0
      %p389 = por %p387, %p388
      %s390 = ssub.s32 %s50, %s57
      %p391 = scmp.eq.s32.totalorder %s390, 0
      %s393 = sadd.s32 %s392, 1
      %s394 = scalar_select %p391, %s392, %s393
      %p397 = pneg %p391
      %p398 = scmp.eq.s32.totalorder %s42, 7
      %p399 = por %p397, %p398
      %p400 = scmp.ne.s32.totalorder %s392, %s395
      %p401 = scmp.eq.s32.totalorder %s42, 0
      %p402 = por %p400, %p401
      %p403 = scmp.ne.s32.totalorder %s392, %s395
      %p404 = scmp.eq.s32.totalorder %s47, 7
      %p405 = por %p403, %p404
      %p406 = scmp.ne.s32.totalorder %s395, %s396
      %p407 = scmp.eq.s32.totalorder %s47, 0
      %p408 = por %p406, %p407
      %p409 = scmp.ne.s32.totalorder %s395, %s396
      %p410 = scmp.eq.s32.totalorder %s48, 7
      %p411 = por %p409, %p410
      %p413 = scmp.ne.s32.totalorder %s396, %s412
      %p414 = scmp.eq.s32.totalorder %s48, 0
      %p415 = por %p413, %p414
      %s416 = ssub.s32 %s50, %s57
      %p417 = scmp.eq.s32.totalorder %s416, 0
      %s419 = sadd.s32 %s418, 1
      %s420 = scalar_select %p417, %s418, %s419
      %p423 = pneg %p417
      %p424 = scmp.eq.s32.totalorder %s42, 7
      %p425 = por %p423, %p424
      %p426 = scmp.ne.s32.totalorder %s418, %s421
      %p427 = scmp.eq.s32.totalorder %s42, 0
      %p428 = por %p426, %p427
      %p429 = scmp.ne.s32.totalorder %s418, %s421
      %p430 = scmp.eq.s32.totalorder %s47, 7
      %p431 = por %p429, %p430
      %p432 = scmp.ne.s32.totalorder %s421, %s422
      %p433 = scmp.eq.s32.totalorder %s47, 0
      %p434 = por %p432, %p433
      %p435 = scmp.ne.s32.totalorder %s421, %s422
      %p436 = scmp.eq.s32.totalorder %s48, 7
      %p437 = por %p435, %p436
      %p439 = scmp.ne.s32.totalorder %s422, %s438
      %p440 = scmp.eq.s32.totalorder %s48, 0
      %p441 = por %p439, %p440
      %s442 = ssub.s32 %s50, %s57
      %p443 = scmp.eq.s32.totalorder %s442, 0
      %s445 = sadd.s32 %s444, 1
      %s446 = scalar_select %p443, %s444, %s445
      %p449 = pneg %p443
      %p450 = scmp.eq.s32.totalorder %s42, 7
      %p451 = por %p449, %p450
      %p452 = scmp.ne.s32.totalorder %s444, %s447
      %p453 = scmp.eq.s32.totalorder %s42, 0
      %p454 = por %p452, %p453
      %p455 = scmp.ne.s32.totalorder %s444, %s447
      %p456 = scmp.eq.s32.totalorder %s47, 7
      %p457 = por %p455, %p456
      %p458 = scmp.ne.s32.totalorder %s447, %s448
      %p459 = scmp.eq.s32.totalorder %s47, 0
      %p460 = por %p458, %p459
      %p461 = scmp.ne.s32.totalorder %s447, %s448
      %p462 = scmp.eq.s32.totalorder %s48, 7
      %p463 = por %p461, %p462
      %p465 = scmp.ne.s32.totalorder %s448, %s464
      %p466 = scmp.eq.s32.totalorder %s48, 0
      %p467 = por %p465, %p466
      %s469 = sadd.s32 %s468, 1
      %p472 = scmp.eq.s32.totalorder %s42, 7
      %p473 = scmp.ne.s32.totalorder %s468, %s470
      %p474 = scmp.eq.s32.totalorder %s42, 0
      %p475 = por %p473, %p474
      %p476 = scmp.ne.s32.totalorder %s468, %s470
      %p477 = scmp.eq.s32.totalorder %s47, 7
      %p478 = por %p476, %p477
      %p479 = scmp.ne.s32.totalorder %s470, %s471
      %p480 = scmp.eq.s32.totalorder %s47, 0
      %p481 = por %p479, %p480
      %p482 = scmp.ne.s32.totalorder %s470, %s471
      %p483 = scmp.eq.s32.totalorder %s48, 7
      %p484 = por %p482, %p483
      %p486 = scmp.ne.s32.totalorder %s471, %s485
      %p487 = scmp.eq.s32.totalorder %s48, 0
      %p488 = por %p486, %p487
      %s490 = sadd.s32 %s489, 1
      %p493 = scmp.eq.s32.totalorder %s42, 7
      %p494 = scmp.ne.s32.totalorder %s489, %s491
      %p495 = scmp.eq.s32.totalorder %s42, 0
      %p496 = por %p494, %p495
      %p497 = scmp.ne.s32.totalorder %s489, %s491
      %p498 = scmp.eq.s32.totalorder %s47, 7
      %p499 = por %p497, %p498
      %p500 = scmp.ne.s32.totalorder %s491, %s492
      %p501 = scmp.eq.s32.totalorder %s47, 0
      %p502 = por %p500, %p501
      %p503 = scmp.ne.s32.totalorder %s491, %s492
      %p504 = scmp.eq.s32.totalorder %s48, 7
      %p505 = por %p503, %p504
      %p507 = scmp.ne.s32.totalorder %s492, %s506
      %p508 = scmp.eq.s32.totalorder %s48, 0
      %p509 = por %p507, %p508
      %s511 = sadd.s32 %s510, 1
      %p514 = scmp.eq.s32.totalorder %s42, 7
      %p515 = scmp.ne.s32.totalorder %s510, %s512
      %p516 = scmp.eq.s32.totalorder %s42, 0
      %p517 = por %p515, %p516
      %p518 = scmp.ne.s32.totalorder %s510, %s512
      %p519 = scmp.eq.s32.totalorder %s47, 7
      %p520 = por %p518, %p519
      %p521 = scmp.ne.s32.totalorder %s512, %s513
      %p522 = scmp.eq.s32.totalorder %s47, 0
      %p523 = por %p521, %p522
      %p524 = scmp.ne.s32.totalorder %s512, %s513
      %p525 = scmp.eq.s32.totalorder %s48, 7
      %p526 = por %p524, %p525
      %p528 = scmp.ne.s32.totalorder %s513, %s527
      %p529 = scmp.eq.s32.totalorder %s48, 0
      %p530 = por %p528, %p529
      %s532 = sadd.s32 %s531, 1
      %p535 = scmp.eq.s32.totalorder %s42, 7
      %p536 = scmp.ne.s32.totalorder %s531, %s533
      %p537 = scmp.eq.s32.totalorder %s42, 0
      %p538 = por %p536, %p537
      %p539 = scmp.ne.s32.totalorder %s531, %s533
      %p540 = scmp.eq.s32.totalorder %s47, 7
      %p541 = por %p539, %p540
      %p542 = scmp.ne.s32.totalorder %s533, %s534
      %p543 = scmp.eq.s32.totalorder %s47, 0
      %p544 = por %p542, %p543
      %p545 = scmp.ne.s32.totalorder %s533, %s534
      %p546 = scmp.eq.s32.totalorder %s48, 7
      %p547 = por %p545, %p546
      %p549 = scmp.ne.s32.totalorder %s534, %s548
      %p550 = scmp.eq.s32.totalorder %s48, 0
      %p551 = por %p549, %p550
      %s552 = ssub.s32 %s49, %s61
      %p553 = scmp.eq.s32.totalorder %s552, 0
      %s555 = sadd.s32 %s554, 1
      %s556 = scalar_select %p553, %s554, %s555
      %p559 = pneg %p553
      %p560 = scmp.eq.s32.totalorder %s42, 7
      %p561 = por %p559, %p560
      %p562 = scmp.ne.s32.totalorder %s554, %s557
      %p563 = scmp.eq.s32.totalorder %s42, 0
      %p564 = por %p562, %p563
      %p565 = scmp.ne.s32.totalorder %s554, %s557
      %p566 = scmp.eq.s32.totalorder %s47, 7
      %p567 = por %p565, %p566
      %p568 = scmp.ne.s32.totalorder %s557, %s558
      %p569 = scmp.eq.s32.totalorder %s47, 0
      %p570 = por %p568, %p569
      %p571 = scmp.ne.s32.totalorder %s557, %s558
      %p572 = scmp.eq.s32.totalorder %s48, 7
      %p573 = por %p571, %p572
      %p575 = scmp.ne.s32.totalorder %s558, %s574
      %p576 = scmp.eq.s32.totalorder %s48, 0
      %p577 = por %p575, %p576
      %p578 = scmp.le.s32.totalorder 1, %s42
      %p579 = scmp.lt.s32.totalorder %s42, 9
      %p580 = pnand %p578, %p579
      %p581 = pneg %p580
      // Predicated region
      $region9: #{forward.1} parent=5 // pred_check
        _
      $region10: #{forward.1} parent=5 // pred_check_branch
        %583 = sbr.rel (%p580) target = $region12
      $region11: #{forward.1} parent=5 // pred_region
        %s584 = ssub.s32 %s42, 1
        // Predicated region
        $region13: #{forward.1} parent=11 // pred_check
          %p585 = pneg %p127
        $region14: #{forward.1} parent=11 // pred_check_branch
          %587 = sbr.rel (%p585) target = $region16
        $region15: #{forward.1} parent=11 // pred_region
          _
        $region16: #{forward.1} parent=11 // pred_fallthru
          _
        // Predicated region
        $region17: #{forward.1} parent=11 // pred_check
          %p588 = pneg %p148
        $region18: #{forward.1} parent=11 // pred_check_branch
          %590 = sbr.rel (%p588) target = $region20
        $region19: #{forward.1} parent=11 // pred_region
          _
        $region20: #{forward.1} parent=11 // pred_fallthru
          _
        // Predicated region
        $region21: #{forward.1} parent=11 // pred_check
          %p591 = pneg %p481
        $region22: #{forward.1} parent=11 // pred_check_branch
          %593 = sbr.rel (%p591) target = $region24
        $region23: #{forward.1} parent=11 // pred_region
          _
        $region24: #{forward.1} parent=11 // pred_fallthru
          _
        // Predicated region
        $region25: #{forward.1} parent=11 // pred_check
          %p594 = pneg %p502
        $region26: #{forward.1} parent=11 // pred_check_branch
          %596 = sbr.rel (%p594) target = $region28
        $region27: #{forward.1} parent=11 // pred_region
          _
        $region28: #{forward.1} parent=11 // pred_fallthru
          _
        // Predicated region
        $region29: #{forward.1} parent=11 // pred_check
          %p597 = pneg %p523
        $region30: #{forward.1} parent=11 // pred_check_branch
          %599 = sbr.rel (%p597) target = $region32
        $region31: #{forward.1} parent=11 // pred_region
          _
        $region32: #{forward.1} parent=11 // pred_fallthru
          _
        // Predicated region
        $region33: #{forward.1} parent=11 // pred_check
          %p600 = pneg %p544
        $region34: #{forward.1} parent=11 // pred_check_branch
          %602 = sbr.rel (%p600) target = $region36
        $region35: #{forward.1} parent=11 // pred_region
          %604 = vsyncadd [#allocation18], 0
          %s606 = sshll.u32 %s19, 4
          %s607 = int_to_ptr.hbm [resolvable:$true] %s606
          %s608 = sshll.u32 [#allocation17], 4
          %s609 = int_to_ptr.vmem [resolvable:$true] %s608
          %611 = dma.hbm_to_vmem [thread:$0]  %s607, 16, %s609, [#allocation18]
        $region36: #{forward.1} parent=11 // pred_fallthru
          _
      $region12: #{forward.1} parent=5 // pred_fallthru
        _
      %p612 = scmp.lt.s32.totalorder %s42, 8
      // Predicated region
      $region37: #{forward.1} parent=5 // pred_check
        %p613 = pneg %p612
      $region38: #{forward.1} parent=5 // pred_check_branch
        %615 = sbr.rel (%p613) target = $region40
      $region39: #{forward.1} parent=5 // pred_region
        // Predicated region
        $region41: #{forward.1} parent=39 // pred_check
          %p616 = pneg %p74
        $region42: #{forward.1} parent=39 // pred_check_branch
          %618 = sbr.rel (%p616) target = $region44
        $region43: #{forward.1} parent=39 // pred_region
          %s619 = smul.u32 4, %s49
          %p620 = scmp.lt.s32.totalorder %s619, 7
          %s621 = scalar_select %p620, %s619, 7
          %s622 = smul.addr %s621, 2
          %s623 = smul.addr %s622, 4
          %s624 = scalar_lea.vmem %s0, %s623
          %s625 = smul.u32 4, %s49
        $region44: #{forward.1} parent=39 // pred_fallthru
          _
        // Predicated region
        $region45: #{forward.1} parent=39 // pred_check
          %p626 = pneg %p100
        $region46: #{forward.1} parent=39 // pred_check_branch
          %628 = sbr.rel (%p626) target = $region48
        $region47: #{forward.1} parent=39 // pred_region
          %s629 = sand.u32 %s90, 1
          %s630 = scalar_lea.sflag [#allocation4], %s629
          %s631 = sand.u32 %s90, 1
          %s632 = smul.addr %s631, 4
          %s633 = scalar_lea.vmem [#allocation3], %s632
          %s634 = smul.u32 4, %s49
          %636 = vsyncadd %s630, 0
          %s637 = scalar_lea.hbm %s1, %s634
          %s638 = sshll.u32 %s637, 4
          %s639 = int_to_ptr.hbm [resolvable:$true] %s638
          %s640 = sshll.u32 %s633, 4
          %s641 = int_to_ptr.vmem [resolvable:$true] %s640
          %646 = dma.hbm_to_vmem [thread:$0]  %s639, 64, %s641, %s630, 16, 16, 1
        $region48: #{forward.1} parent=39 // pred_fallthru
          _
        // Predicated region
        $region49: #{forward.1} parent=39 // pred_check
          %p647 = pneg %p168
        $region50: #{forward.1} parent=39 // pred_check_branch
          %649 = sbr.rel (%p647) target = $region52
        $region51: #{forward.1} parent=39 // pred_region
          %p650 = scmp.lt.s32.totalorder %s50, 3
          %s651 = scalar_select %p650, %s50, 3
          %s652 = smul.addr %s651, 48
          %s653 = smul.addr %s652, 4
          %s654 = scalar_lea.vmem %s4, %s653
        $region52: #{forward.1} parent=39 // pred_fallthru
          _
        // Predicated region
        $region53: #{forward.1} parent=39 // pred_check
          %p655 = pneg %p194
        $region54: #{forward.1} parent=39 // pred_check_branch
          %657 = sbr.rel (%p655) target = $region56
        $region55: #{forward.1} parent=39 // pred_region
          %p658 = scmp.lt.s32.totalorder %s50, 3
          %s659 = scalar_select %p658, %s50, 3
          %s660 = smul.addr %s659, 3
          %s661 = scalar_lea.vmem %s5, %s660
        $region56: #{forward.1} parent=39 // pred_fallthru
          _
        // Predicated region
        $region57: #{forward.1} parent=39 // pred_check
          %p662 = pneg %p220
        $region58: #{forward.1} parent=39 // pred_check_branch
          %664 = sbr.rel (%p662) target = $region60
        $region59: #{forward.1} parent=39 // pred_region
          %s665 = sand.u32 %s42, 1
          %s666 = scalar_lea.sflag [#allocation6], %s665
          %s667 = sand.u32 %s210, 1
          %s668 = smul.addr %s667, 64
          %s669 = scalar_lea.vmem [#allocation5], %s668
          %671 = vsyncadd %s666, 0
          %s672 = smul.addr %s50, 16
          %s673 = smul.addr %s672, 4
          %s674 = scalar_lea.hbm %s6, %s673
          %s675 = sshll.u32 %s674, 4
          %s676 = int_to_ptr.hbm [resolvable:$true] %s675
          %s677 = sshll.u32 %s669, 4
          %s678 = int_to_ptr.vmem [resolvable:$true] %s677
          %683 = dma.hbm_to_vmem [thread:$0]  %s676, 1024, %s678, %s666, 64, 64, 4
        $region60: #{forward.1} parent=39 // pred_fallthru
          _
        // Predicated region
        $region61: #{forward.1} parent=39 // pred_check
          %p684 = pneg %p246
        $region62: #{forward.1} parent=39 // pred_check_branch
          %686 = sbr.rel (%p684) target = $region64
        $region63: #{forward.1} parent=39 // pred_region
          %p687 = scmp.lt.s32.totalorder %s50, 3
          %s688 = scalar_select %p687, %s50, 3
          %s689 = scalar_lea.vmem %s7, %s688
        $region64: #{forward.1} parent=39 // pred_fallthru
          _
        // Predicated region
        $region65: #{forward.1} parent=39 // pred_check
          %p690 = pneg %p272
        $region66: #{forward.1} parent=39 // pred_check_branch
          %692 = sbr.rel (%p690) target = $region68
        $region67: #{forward.1} parent=39 // pred_region
          %s693 = sand.u32 %s42, 1
          %s694 = scalar_lea.sflag [#allocation6], %s693
          %s695 = sand.u32 %s262, 1
          %s696 = scalar_lea.vmem [#allocation7], %s695
          %698 = vsyncadd %s694, 0
          %s699 = scalar_lea.hbm %s8, %s50
          %s701 = sshll.u32 %s699, 4
          %s702 = int_to_ptr.hbm [resolvable:$true] %s701
          %s703 = sshll.u32 %s696, 4
          %s704 = int_to_ptr.vmem [resolvable:$true] %s703
          %706 = dma.hbm_to_vmem [thread:$0]  %s702, 16, %s704, %s694
        $region68: #{forward.1} parent=39 // pred_fallthru
          _
        // Predicated region
        $region69: #{forward.1} parent=39 // pred_check
          %p707 = pneg %p298
        $region70: #{forward.1} parent=39 // pred_check_branch
          %709 = sbr.rel (%p707) target = $region72
        $region71: #{forward.1} parent=39 // pred_region
          %s710 = sand.u32 %s42, 1
          %s711 = scalar_lea.sflag [#allocation9], %s710
          %s712 = sand.u32 %s288, 1
          %s713 = scalar_lea.vmem [#allocation8], %s712
          %715 = vsyncadd %s711, 0
          %s716 = scalar_lea.hbm %s9, %s50
          %s718 = sshll.u32 %s716, 4
          %s719 = int_to_ptr.hbm [resolvable:$true] %s718
          %s720 = sshll.u32 %s713, 4
          %s721 = int_to_ptr.vmem [resolvable:$true] %s720
          %723 = dma.hbm_to_vmem [thread:$0]  %s719, 16, %s721, %s711
        $region72: #{forward.1} parent=39 // pred_fallthru
          _
        // Predicated region
        $region73: #{forward.1} parent=39 // pred_check
          %p724 = pneg %p324
        $region74: #{forward.1} parent=39 // pred_check_branch
          %726 = sbr.rel (%p724) target = $region76
        $region75: #{forward.1} parent=39 // pred_region
          %p727 = scmp.lt.s32.totalorder %s50, 3
          %s728 = scalar_select %p727, %s50, 3
          %s729 = smul.addr %s728, 32
          %s730 = smul.addr %s729, 4
          %s731 = scalar_lea.vmem %s10, %s730
        $region76: #{forward.1} parent=39 // pred_fallthru
          _
        // Predicated region
        $region77: #{forward.1} parent=39 // pred_check
          %p732 = pneg %p350
        $region78: #{forward.1} parent=39 // pred_check_branch
          %734 = sbr.rel (%p732) target = $region80
        $region79: #{forward.1} parent=39 // pred_region
          %s735 = sand.u32 %s42, 1
          %s736 = scalar_lea.sflag [#allocation9], %s735
          %s737 = sand.u32 %s340, 1
          %s738 = smul.addr %s737, 2
          %s739 = scalar_lea.vmem [#allocation10], %s738
          %741 = vsyncadd %s736, 0
          %s742 = smul.addr %s50, 2
          %s743 = scalar_lea.hbm %s11, %s742
          %s745 = sshll.u32 %s743, 4
          %s746 = int_to_ptr.hbm [resolvable:$true] %s745
          %s747 = sshll.u32 %s739, 4
          %s748 = int_to_ptr.vmem [resolvable:$true] %s747
          %750 = dma.hbm_to_vmem [thread:$0]  %s746, 32, %s748, %s736
        $region80: #{forward.1} parent=39 // pred_fallthru
          _
        // Predicated region
        $region81: #{forward.1} parent=39 // pred_check
          %p751 = pneg %p376
        $region82: #{forward.1} parent=39 // pred_check_branch
          %753 = sbr.rel (%p751) target = $region84
        $region83: #{forward.1} parent=39 // pred_region
          %s754 = sand.u32 %s42, 1
          %s755 = scalar_lea.sflag [#allocation12], %s754
          %s756 = sand.u32 %s366, 1
          %s757 = smul.addr %s756, 128
          %s758 = scalar_lea.vmem [#allocation11], %s757
          %760 = vsyncadd %s755, 0
          %s761 = smul.addr %s50, 32
          %s762 = smul.addr %s761, 4
          %s763 = scalar_lea.hbm %s12, %s762
          %s764 = sshll.u32 %s763, 4
          %s765 = int_to_ptr.hbm [resolvable:$true] %s764
          %s766 = sshll.u32 %s758, 4
          %s767 = int_to_ptr.vmem [resolvable:$true] %s766
          %772 = dma.hbm_to_vmem [thread:$0]  %s765, 2048, %s767, %s755, 64, 64, 4
        $region84: #{forward.1} parent=39 // pred_fallthru
          _
        // Predicated region
        $region85: #{forward.1} parent=39 // pred_check
          %p773 = pneg %p402
        $region86: #{forward.1} parent=39 // pred_check_branch
          %775 = sbr.rel (%p773) target = $region88
        $region87: #{forward.1} parent=39 // pred_region
          %s776 = sand.u32 %s42, 1
          %s777 = scalar_lea.sflag [#allocation12], %s776
          %s778 = sand.u32 %s392, 1
          %s779 = scalar_lea.vmem [#allocation13], %s778
          %781 = vsyncadd %s777, 0
          %s782 = scalar_lea.hbm %s13, %s50
          %s784 = sshll.u32 %s782, 4
          %s785 = int_to_ptr.hbm [resolvable:$true] %s784
          %s786 = sshll.u32 %s779, 4
          %s787 = int_to_ptr.vmem [resolvable:$true] %s786
          %789 = dma.hbm_to_vmem [thread:$0]  %s785, 16, %s787, %s777
        $region88: #{forward.1} parent=39 // pred_fallthru
          _
        // Predicated region
        $region89: #{forward.1} parent=39 // pred_check
          %p790 = pneg %p428
        $region90: #{forward.1} parent=39 // pred_check_branch
          %792 = sbr.rel (%p790) target = $region92
        $region91: #{forward.1} parent=39 // pred_region
          %s793 = sand.u32 %s42, 1
          %s794 = scalar_lea.sflag [#allocation15], %s793
          %s795 = sand.u32 %s418, 1
          %s796 = scalar_lea.vmem [#allocation14], %s795
          %798 = vsyncadd %s794, 0
          %s799 = scalar_lea.hbm %s14, %s50
          %s801 = sshll.u32 %s799, 4
          %s802 = int_to_ptr.hbm [resolvable:$true] %s801
          %s803 = sshll.u32 %s796, 4
          %s804 = int_to_ptr.vmem [resolvable:$true] %s803
          %806 = dma.hbm_to_vmem [thread:$0]  %s802, 16, %s804, %s794
        $region92: #{forward.1} parent=39 // pred_fallthru
          _
        // Predicated region
        $region93: #{forward.1} parent=39 // pred_check
          %p807 = pneg %p454
        $region94: #{forward.1} parent=39 // pred_check_branch
          %809 = sbr.rel (%p807) target = $region96
        $region95: #{forward.1} parent=39 // pred_region
          %s810 = sand.u32 %s42, 1
          %s811 = scalar_lea.sflag [#allocation15], %s810
          %s812 = sand.u32 %s444, 1
          %s813 = scalar_lea.vmem [#allocation16], %s812
          %815 = vsyncadd %s811, 0
          %s816 = scalar_lea.hbm %s15, %s50
          %s818 = sshll.u32 %s816, 4
          %s819 = int_to_ptr.hbm [resolvable:$true] %s818
          %s820 = sshll.u32 %s813, 4
          %s821 = int_to_ptr.vmem [resolvable:$true] %s820
          %823 = dma.hbm_to_vmem [thread:$0]  %s819, 16, %s821, %s811
        $region96: #{forward.1} parent=39 // pred_fallthru
          _
      $region40: #{forward.1} parent=5 // pred_fallthru
        _
      %p824 = scmp.le.s32.totalorder 1, %s42
      %p825 = scmp.lt.s32.totalorder %s42, 9
      %p826 = pnand %p824, %p825
      %p827 = pneg %p826
      // Predicated region
      $region97: #{forward.1} parent=5 // pred_check
        _
      $region98: #{forward.1} parent=5 // pred_check_branch
        %829 = sbr.rel (%p826) target = $region100
      $region99: #{forward.1} parent=5 // pred_region
        %s830 = ssub.s32 %s42, 1
        %s831 = sand.u32 %s93, 1
        %s832 = scalar_lea.sflag [#allocation4], %s831
        %s833 = sand.u32 %s93, 1
        %s834 = smul.addr %s833, 4
        %s835 = scalar_lea.vmem [#allocation3], %s834
        // Predicated region
        $region101: #{forward.1} parent=99 // pred_check
          %p836 = pneg %p106
        $region102: #{forward.1} parent=99 // pred_check_branch
          %838 = sbr.rel (%p836) target = $region104
        $region103: #{forward.1} parent=99 // pred_region
          %840 = dma.done %s832, 64
        $region104: #{forward.1} parent=99 // pred_fallthru
          _
        %s841 = sand.u32 %s47, 1
        %s842 = scalar_lea.sflag [#allocation6], %s841
        %s843 = sand.u32 %s213, 1
        %s844 = smul.addr %s843, 64
        %s845 = scalar_lea.vmem [#allocation5], %s844
        // Predicated region
        $region105: #{forward.1} parent=99 // pred_check
          %p846 = pneg %p226
        $region106: #{forward.1} parent=99 // pred_check_branch
          %848 = sbr.rel (%p846) target = $region108
        $region107: #{forward.1} parent=99 // pred_region
          %850 = dma.done %s842, 1024
        $region108: #{forward.1} parent=99 // pred_fallthru
          _
        %s851 = sand.u32 %s47, 1
        %s852 = scalar_lea.sflag [#allocation6], %s851
        %s853 = sand.u32 %s265, 1
        %s854 = scalar_lea.vmem [#allocation7], %s853
        // Predicated region
        $region109: #{forward.1} parent=99 // pred_check
          %p855 = pneg %p278
        $region110: #{forward.1} parent=99 // pred_check_branch
          %857 = sbr.rel (%p855) target = $region112
        $region111: #{forward.1} parent=99 // pred_region
          %859 = dma.done %s852, 16
        $region112: #{forward.1} parent=99 // pred_fallthru
          _
        %s860 = sand.u32 %s47, 1
        %s861 = scalar_lea.sflag [#allocation9], %s860
        %s862 = sand.u32 %s291, 1
        %s863 = scalar_lea.vmem [#allocation8], %s862
        // Predicated region
        $region113: #{forward.1} parent=99 // pred_check
          %p864 = pneg %p304
        $region114: #{forward.1} parent=99 // pred_check_branch
          %866 = sbr.rel (%p864) target = $region116
        $region115: #{forward.1} parent=99 // pred_region
          %868 = dma.done %s861, 16
        $region116: #{forward.1} parent=99 // pred_fallthru
          _
        %s869 = sand.u32 %s47, 1
        %s870 = scalar_lea.sflag [#allocation9], %s869
        %s871 = sand.u32 %s343, 1
        %s872 = smul.addr %s871, 2
        %s873 = scalar_lea.vmem [#allocation10], %s872
        // Predicated region
        $region117: #{forward.1} parent=99 // pred_check
          %p874 = pneg %p356
        $region118: #{forward.1} parent=99 // pred_check_branch
          %876 = sbr.rel (%p874) target = $region120
        $region119: #{forward.1} parent=99 // pred_region
          %878 = dma.done %s870, 32
        $region120: #{forward.1} parent=99 // pred_fallthru
          _
        %s879 = sand.u32 %s47, 1
        %s880 = scalar_lea.sflag [#allocation12], %s879
        %s881 = sand.u32 %s369, 1
        %s882 = smul.addr %s881, 128
        %s883 = scalar_lea.vmem [#allocation11], %s882
        // Predicated region
        $region121: #{forward.1} parent=99 // pred_check
          %p884 = pneg %p382
        $region122: #{forward.1} parent=99 // pred_check_branch
          %886 = sbr.rel (%p884) target = $region124
        $region123: #{forward.1} parent=99 // pred_region
          %888 = dma.done %s880, 2048
        $region124: #{forward.1} parent=99 // pred_fallthru
          _
        %s889 = sand.u32 %s47, 1
        %s890 = scalar_lea.sflag [#allocation12], %s889
        %s891 = sand.u32 %s395, 1
        %s892 = scalar_lea.vmem [#allocation13], %s891
        // Predicated region
        $region125: #{forward.1} parent=99 // pred_check
          %p893 = pneg %p408
        $region126: #{forward.1} parent=99 // pred_check_branch
          %895 = sbr.rel (%p893) target = $region128
        $region127: #{forward.1} parent=99 // pred_region
          %897 = dma.done %s890, 16
        $region128: #{forward.1} parent=99 // pred_fallthru
          _
        %s898 = sand.u32 %s47, 1
        %s899 = scalar_lea.sflag [#allocation15], %s898
        %s900 = sand.u32 %s421, 1
        %s901 = scalar_lea.vmem [#allocation14], %s900
        // Predicated region
        $region129: #{forward.1} parent=99 // pred_check
          %p902 = pneg %p434
        $region130: #{forward.1} parent=99 // pred_check_branch
          %904 = sbr.rel (%p902) target = $region132
        $region131: #{forward.1} parent=99 // pred_region
          %906 = dma.done %s899, 16
        $region132: #{forward.1} parent=99 // pred_fallthru
          _
        %s907 = sand.u32 %s47, 1
        %s908 = scalar_lea.sflag [#allocation15], %s907
        %s909 = sand.u32 %s447, 1
        %s910 = scalar_lea.vmem [#allocation16], %s909
        // Predicated region
        $region133: #{forward.1} parent=99 // pred_check
          %p911 = pneg %p460
        $region134: #{forward.1} parent=99 // pred_check_branch
          %913 = sbr.rel (%p911) target = $region136
        $region135: #{forward.1} parent=99 // pred_region
          %915 = dma.done %s908, 16
        $region136: #{forward.1} parent=99 // pred_fallthru
          _
        // Predicated region
        $region137: #{forward.1} parent=99 // pred_check
          %p916 = pneg %p544
        $region138: #{forward.1} parent=99 // pred_check_branch
          %918 = sbr.rel (%p916) target = $region140
        $region139: #{forward.1} parent=99 // pred_region
          %920 = dma.done [#allocation18], 16
        $region140: #{forward.1} parent=99 // pred_fallthru
          _
        %s921 = smul.u32 4, %s51
        %p922 = scmp.lt.s32.totalorder %s921, 7
        %s923 = scalar_select %p922, %s921, 7
        %s924 = smul.addr %s923, 2
        %s925 = smul.addr %s924, 4
        %s926 = scalar_lea.vmem %s0, %s925
        %p927 = pneg %p80
        %p928 = pneg %p77
        %s929 = sand.u32 %s93, 1
        %s930 = scalar_lea.sflag [#allocation4], %s929
        %s931 = sand.u32 %s93, 1
        %s932 = smul.addr %s931, 4
        %s933 = scalar_lea.vmem [#allocation3], %s932
        %p934 = pneg %p106
        %p935 = pneg %p103
        %p936 = pneg %p127
        %p937 = pneg %p124
        %p938 = pneg %p148
        %p939 = pneg %p145
        %p940 = scmp.lt.s32.totalorder %s52, 3
        %s941 = scalar_select %p940, %s52, 3
        %s942 = smul.addr %s941, 48
        %s943 = smul.addr %s942, 4
        %s944 = scalar_lea.vmem %s4, %s943
        %p945 = pneg %p174
        %p946 = pneg %p171
        %p947 = scmp.lt.s32.totalorder %s52, 3
        %s948 = scalar_select %p947, %s52, 3
        %s949 = smul.addr %s948, 3
        %s950 = scalar_lea.vmem %s5, %s949
        %p951 = pneg %p200
        %p952 = pneg %p197
        %s953 = sand.u32 %s47, 1
        %s954 = scalar_lea.sflag [#allocation6], %s953
        %s955 = sand.u32 %s213, 1
        %s956 = smul.addr %s955, 64
        %s957 = scalar_lea.vmem [#allocation5], %s956
        %p958 = pneg %p226
        %p959 = pneg %p223
        %p960 = scmp.lt.s32.totalorder %s52, 3
        %s961 = scalar_select %p960, %s52, 3
        %s962 = scalar_lea.vmem %s7, %s961
        %p963 = pneg %p252
        %p964 = pneg %p249
        %s965 = sand.u32 %s47, 1
        %s966 = scalar_lea.sflag [#allocation6], %s965
        %s967 = sand.u32 %s265, 1
        %s968 = scalar_lea.vmem [#allocation7], %s967
        %p969 = pneg %p278
        %p970 = pneg %p275
        %s971 = sand.u32 %s47, 1
        %s972 = scalar_lea.sflag [#allocation9], %s971
        %s973 = sand.u32 %s291, 1
        %s974 = scalar_lea.vmem [#allocation8], %s973
        %p975 = pneg %p304
        %p976 = pneg %p301
        %p977 = scmp.lt.s32.totalorder %s52, 3
        %s978 = scalar_select %p977, %s52, 3
        %s979 = smul.addr %s978, 32
        %s980 = smul.addr %s979, 4
        %s981 = scalar_lea.vmem %s10, %s980
        %p982 = pneg %p330
        %p983 = pneg %p327
        %s984 = sand.u32 %s47, 1
        %s985 = scalar_lea.sflag [#allocation9], %s984
        %s986 = sand.u32 %s343, 1
        %s987 = smul.addr %s986, 2
        %s988 = scalar_lea.vmem [#allocation10], %s987
        %p989 = pneg %p356
        %p990 = pneg %p353
        %s991 = sand.u32 %s47, 1
        %s992 = scalar_lea.sflag [#allocation12], %s991
        %s993 = sand.u32 %s369, 1
        %s994 = smul.addr %s993, 128
        %s995 = scalar_lea.vmem [#allocation11], %s994
        %p996 = pneg %p382
        %p997 = pneg %p379
        %s998 = sand.u32 %s47, 1
        %s999 = scalar_lea.sflag [#allocation12], %s998
        %s1000 = sand.u32 %s395, 1
        %s1001 = scalar_lea.vmem [#allocation13], %s1000
        %p1002 = pneg %p408
        %p1003 = pneg %p405
        %s1004 = sand.u32 %s47, 1
        %s1005 = scalar_lea.sflag [#allocation15], %s1004
        %s1006 = sand.u32 %s421, 1
        %s1007 = scalar_lea.vmem [#allocation14], %s1006
        %p1008 = pneg %p434
        %p1009 = pneg %p431
        %s1010 = sand.u32 %s47, 1
        %s1011 = scalar_lea.sflag [#allocation15], %s1010
        %s1012 = sand.u32 %s447, 1
        %s1013 = scalar_lea.vmem [#allocation16], %s1012
        %p1014 = pneg %p460
        %p1015 = pneg %p457
        %p1016 = pneg %p481
        %p1017 = pneg %p478
        %p1018 = pneg %p502
        %p1019 = pneg %p499
        %p1020 = pneg %p523
        %p1021 = pneg %p520
        %p1022 = pneg %p544
        %p1023 = pneg %p541
        %p1024 = pneg %p570
        %p1025 = pneg %p567
        %s1026 = smul.u32 4, %s51
        %p1027 = scmp.lt.s32.totalorder %s1026, 7
        %s1028 = scalar_select %p1027, %s1026, 7
        %s1029 = scalar_lea.vmem %s20, %s1028
        %s1030 = smul.u32 4, %s51
        %p1031 = scmp.lt.s32.totalorder %s1030, 7
        %s1032 = scalar_select %p1031, %s1030, 7
        %s1033 = smul.addr %s1032, 2
        %s1034 = smul.addr %s1033, 4
        %s1035 = scalar_lea.vmem %s0, %s1034
        %s1036 = smul.u32 4, %s51
        %s1037 = smul.u32 4, %s51
        %p1038 = scmp.lt.s32.totalorder %s52, 3
        %s1039 = scalar_select %p1038, %s52, 3
        %s1040 = smul.addr %s1039, 48
        %s1041 = smul.addr %s1040, 4
        %s1042 = scalar_lea.vmem %s4, %s1041
        %p1043 = scmp.lt.s32.totalorder %s52, 3
        %s1044 = scalar_select %p1043, %s52, 3
        %s1045 = smul.addr %s1044, 3
        %s1046 = scalar_lea.vmem %s5, %s1045
        %p1047 = scmp.lt.s32.totalorder %s52, 3
        %s1048 = scalar_select %p1047, %s52, 3
        %s1049 = scalar_lea.vmem %s7, %s1048
        %p1050 = scmp.lt.s32.totalorder %s52, 3
        %s1051 = scalar_select %p1050, %s52, 3
        %s1052 = smul.addr %s1051, 32
        %s1053 = smul.addr %s1052, 4
        %s1054 = scalar_lea.vmem %s10, %s1053
        %s1055 = smul.u32 4, %s51
        %p1056 = scmp.lt.s32.totalorder %s1055, 7
        %s1057 = scalar_select %p1056, %s1055, 7
        %s1058 = scalar_lea.vmem %s20, %s1057
        %s1059 = smul.u32 4, %s51
        %p1061 = scmp.eq.s32.totalorder %s52, 0
        // Predicated region
        $region141: #{forward.1} parent=99 // pred_check
          %p1062 = pneg %p1061
        $region142: #{forward.1} parent=99 // pred_check_branch
          %1064 = sbr.rel (%p1062) target = $region144
        $region143: #{forward.1} parent=99 // pred_region
          %v1065 = vld [vmem:[%s1035] sm:$0xf]
          %v1066 = vld [vmem:[%s1035 + $0x4] sm:$0xf]
          %v1067 = vld [vmem:[%s1035 + $0x8] sm:$0xf]
          %v1068 = vld [vmem:[%s1035 + $0xc] sm:$0xf]
          %v1069 = vld [vmem:[%s1035 + $0x10] sm:$0xf]
          %v1070 = vld [vmem:[%s1035 + $0x14] sm:$0xf]
          %v1071 = vld [vmem:[%s1035 + $0x18] sm:$0xf]
          %v1072 = vld [vmem:[%s1035 + $0x1c] sm:$0xf]
          %v1073 = vunpack.c.l.bf16 %v1065
          %v1074 = vunpack.c.l.bf16 %v1066
          %v1075 = vunpack.c.l.bf16 %v1067
          %v1076 = vunpack.c.l.bf16 %v1068
          %v1077 = vunpack.c.l.bf16 %v1069
          %v1078 = vunpack.c.l.bf16 %v1070
          %v1079 = vunpack.c.l.bf16 %v1071
          %v1080 = vunpack.c.l.bf16 %v1072
          %v1081 = vld [vmem:[%s2] sm:$0x1]
          %v1082 = vld [vmem:[%s3] sm:$0x1]
          %1083 = vadd.xlane.f32.xlu0 %v1073
          %v1084 = vpop.xlane.xlu0 %1083
          %1085 = vadd.xlane.f32.xlu0 %v1074
          %v1086 = vpop.xlane.xlu0 %1085
          %1087 = vadd.xlane.f32.xlu0 %v1075
          %v1088 = vpop.xlane.xlu0 %1087
          %1089 = vadd.xlane.f32.xlu0 %v1076
          %v1090 = vpop.xlane.xlu0 %1089
          %1091 = vadd.xlane.f32.xlu0 %v1077
          %v1092 = vpop.xlane.xlu0 %1091
          %1093 = vadd.xlane.f32.xlu0 %v1078
          %v1094 = vpop.xlane.xlu0 %1093
          %1095 = vadd.xlane.f32.xlu0 %v1079
          %v1096 = vpop.xlane.xlu0 %1095
          %1097 = vadd.xlane.f32.xlu0 %v1080
          %v1098 = vpop.xlane.xlu0 %1097
          %v1099 = vrcp.pop 128.0
          %v1100 = vmul.f32 128.0, %v1099
          %v1101 = vsub.f32 1.0, %v1100
          %v1102 = vmul.f32 %v1099, %v1101
          %v1103 = vadd.f32 %v1099, %v1102
          %vm1104 = vweird.f32 %v1099
          %v1105 = vsel %vm1104, %v1099, %v1103
          %v1106 = vmul.f32 %v1084, %v1105
          %v1107 = vmul.f32 %v1086, %v1105
          %v1108 = vmul.f32 %v1088, %v1105
          %v1109 = vmul.f32 %v1090, %v1105
          %v1110 = vmul.f32 %v1092, %v1105
          %v1111 = vmul.f32 %v1094, %v1105
          %v1112 = vmul.f32 %v1096, %v1105
          %v1113 = vmul.f32 %v1098, %v1105
          %v1114 = vsub.f32 %v1073, %v1106
          %v1115 = vsub.f32 %v1074, %v1107
          %v1116 = vsub.f32 %v1075, %v1108
          %v1117 = vsub.f32 %v1076, %v1109
          %v1118 = vsub.f32 %v1077, %v1110
          %v1119 = vsub.f32 %v1078, %v1111
          %v1120 = vsub.f32 %v1079, %v1112
          %v1121 = vsub.f32 %v1080, %v1113
          %v1122 = vmul.f32 %v1114, %v1114
          %v1123 = vmul.f32 %v1115, %v1115
          %v1124 = vmul.f32 %v1116, %v1116
          %v1125 = vmul.f32 %v1117, %v1117
          %v1126 = vmul.f32 %v1118, %v1118
          %v1127 = vmul.f32 %v1119, %v1119
          %v1128 = vmul.f32 %v1120, %v1120
          %v1129 = vmul.f32 %v1121, %v1121
          %1130 = vadd.xlane.f32.xlu0 %v1122
          %v1131 = vpop.xlane.xlu0 %1130
          %1132 = vadd.xlane.f32.xlu0 %v1123
          %v1133 = vpop.xlane.xlu0 %1132
          %1134 = vadd.xlane.f32.xlu0 %v1124
          %v1135 = vpop.xlane.xlu0 %1134
          %1136 = vadd.xlane.f32.xlu0 %v1125
          %v1137 = vpop.xlane.xlu0 %1136
          %1138 = vadd.xlane.f32.xlu0 %v1126
          %v1139 = vpop.xlane.xlu0 %1138
          %1140 = vadd.xlane.f32.xlu0 %v1127
          %v1141 = vpop.xlane.xlu0 %1140
          %1142 = vadd.xlane.f32.xlu0 %v1128
          %v1143 = vpop.xlane.xlu0 %1142
          %1144 = vadd.xlane.f32.xlu0 %v1129
          %v1145 = vpop.xlane.xlu0 %1144
          %v1146 = vmul.f32 %v1131, %v1105
          %v1147 = vmul.f32 %v1133, %v1105
          %v1148 = vmul.f32 %v1135, %v1105
          %v1149 = vmul.f32 %v1137, %v1105
          %v1150 = vmul.f32 %v1139, %v1105
          %v1151 = vmul.f32 %v1141, %v1105
          %v1152 = vmul.f32 %v1143, %v1105
          %v1153 = vmul.f32 %v1145, %v1105
          %v1154 = vadd.f32 %v1146, 1e-12
          %v1155 = vadd.f32 %v1147, 1e-12
          %v1156 = vadd.f32 %v1148, 1e-12
          %v1157 = vadd.f32 %v1149, 1e-12
          %v1158 = vadd.f32 %v1150, 1e-12
          %v1159 = vadd.f32 %v1151, 1e-12
          %v1160 = vadd.f32 %v1152, 1e-12
          %v1161 = vadd.f32 %v1153, 1e-12
          %v1162 = vrsqrt.pop %v1154
          %v1163 = vmul.f32 %v1162, %v1154
          %v1164 = vmul.f32 %v1163, %v1162
          %v1165 = vmul.f32 0.5, %v1164
          %v1166 = vsub.f32 1.5, %v1165
          %v1167 = vmul.f32 %v1162, %v1166
          %vm1168 = vweird.f32 %v1154
          %vm1169 = vweird.f32 %v1162
          %vm1170 = vmor %vm1168, %vm1169
          %v1171 = vsel %vm1170, %v1162, %v1167
          %v1172 = vrsqrt.pop %v1155
          %v1173 = vmul.f32 %v1172, %v1155
          %v1174 = vmul.f32 %v1173, %v1172
          %v1175 = vmul.f32 0.5, %v1174
          %v1176 = vsub.f32 1.5, %v1175
          %v1177 = vmul.f32 %v1172, %v1176
          %vm1178 = vweird.f32 %v1155
          %vm1179 = vweird.f32 %v1172
          %vm1180 = vmor %vm1178, %vm1179
          %v1181 = vsel %vm1180, %v1172, %v1177
          %v1182 = vrsqrt.pop %v1156
          %v1183 = vmul.f32 %v1182, %v1156
          %v1184 = vmul.f32 %v1183, %v1182
          %v1185 = vmul.f32 0.5, %v1184
          %v1186 = vsub.f32 1.5, %v1185
          %v1187 = vmul.f32 %v1182, %v1186
          %vm1188 = vweird.f32 %v1156
          %vm1189 = vweird.f32 %v1182
          %vm1190 = vmor %vm1188, %vm1189
          %v1191 = vsel %vm1190, %v1182, %v1187
          %v1192 = vrsqrt.pop %v1157
          %v1193 = vmul.f32 %v1192, %v1157
          %v1194 = vmul.f32 %v1193, %v1192
          %v1195 = vmul.f32 0.5, %v1194
          %v1196 = vsub.f32 1.5, %v1195
          %v1197 = vmul.f32 %v1192, %v1196
          %vm1198 = vweird.f32 %v1157
          %vm1199 = vweird.f32 %v1192
          %vm1200 = vmor %vm1198, %vm1199
          %v1201 = vsel %vm1200, %v1192, %v1197
          %v1202 = vrsqrt.pop %v1158
          %v1203 = vmul.f32 %v1202, %v1158
          %v1204 = vmul.f32 %v1203, %v1202
          %v1205 = vmul.f32 0.5, %v1204
          %v1206 = vsub.f32 1.5, %v1205
          %v1207 = vmul.f32 %v1202, %v1206
          %vm1208 = vweird.f32 %v1158
          %vm1209 = vweird.f32 %v1202
          %vm1210 = vmor %vm1208, %vm1209
          %v1211 = vsel %vm1210, %v1202, %v1207
          %v1212 = vrsqrt.pop %v1159
          %v1213 = vmul.f32 %v1212, %v1159
          %v1214 = vmul.f32 %v1213, %v1212
          %v1215 = vmul.f32 0.5, %v1214
          %v1216 = vsub.f32 1.5, %v1215
          %v1217 = vmul.f32 %v1212, %v1216
          %vm1218 = vweird.f32 %v1159
          %vm1219 = vweird.f32 %v1212
          %vm1220 = vmor %vm1218, %vm1219
          %v1221 = vsel %vm1220, %v1212, %v1217
          %v1222 = vrsqrt.pop %v1160
          %v1223 = vmul.f32 %v1222, %v1160
          %v1224 = vmul.f32 %v1223, %v1222
          %v1225 = vmul.f32 0.5, %v1224
          %v1226 = vsub.f32 1.5, %v1225
          %v1227 = vmul.f32 %v1222, %v1226
          %vm1228 = vweird.f32 %v1160
          %vm1229 = vweird.f32 %v1222
          %vm1230 = vmor %vm1228, %vm1229
          %v1231 = vsel %vm1230, %v1222, %v1227
          %v1232 = vrsqrt.pop %v1161
          %v1233 = vmul.f32 %v1232, %v1161
          %v1234 = vmul.f32 %v1233, %v1232
          %v1235 = vmul.f32 0.5, %v1234
          %v1236 = vsub.f32 1.5, %v1235
          %v1237 = vmul.f32 %v1232, %v1236
          %vm1238 = vweird.f32 %v1161
          %vm1239 = vweird.f32 %v1232
          %vm1240 = vmor %vm1238, %vm1239
          %v1241 = vsel %vm1240, %v1232, %v1237
          %v1242 = vmul.f32 %v1114, %v1171
          %v1243 = vmul.f32 %v1115, %v1181
          %v1244 = vmul.f32 %v1116, %v1191
          %v1245 = vmul.f32 %v1117, %v1201
          %v1246 = vmul.f32 %v1118, %v1211
          %v1247 = vmul.f32 %v1119, %v1221
          %v1248 = vmul.f32 %v1120, %v1231
          %v1249 = vmul.f32 %v1121, %v1241
          %v1251 = vperm.slane %v1081, 0
          %v1253 = vmul.f32 %v1242, %v1251
          %v1254 = vmul.f32 %v1243, %v1251
          %v1255 = vmul.f32 %v1244, %v1251
          %v1256 = vmul.f32 %v1245, %v1251
          %v1257 = vmul.f32 %v1246, %v1251
          %v1258 = vmul.f32 %v1247, %v1251
          %v1259 = vmul.f32 %v1248, %v1251
          %v1260 = vmul.f32 %v1249, %v1251
          %v1262 = vperm.slane %v1082, 0
          %v1264 = vadd.f32 %v1253, %v1262
          %v1265 = vadd.f32 %v1254, %v1262
          %v1266 = vadd.f32 %v1255, %v1262
          %v1267 = vadd.f32 %v1256, %v1262
          %v1268 = vadd.f32 %v1257, %v1262
          %v1269 = vadd.f32 %v1258, %v1262
          %v1270 = vadd.f32 %v1259, %v1262
          %v1271 = vadd.f32 %v1260, %v1262
          %1272 = vst [vmem:[#allocation2] sm:$0xff] %v1264
          %1273 = vst [vmem:[#allocation2 + $0x8] sm:$0xff] %v1265
          %1274 = vst [vmem:[#allocation2 + $0x10] sm:$0xff] %v1266
          %1275 = vst [vmem:[#allocation2 + $0x18] sm:$0xff] %v1267
          %1276 = vst [vmem:[#allocation2 + $0x20] sm:$0xff] %v1268
          %1277 = vst [vmem:[#allocation2 + $0x28] sm:$0xff] %v1269
          %1278 = vst [vmem:[#allocation2 + $0x30] sm:$0xff] %v1270
          %1279 = vst [vmem:[#allocation2 + $0x38] sm:$0xff] %v1271
        $region144: #{forward.1} parent=99 // pred_fallthru
          _
        %v1280 = vld [vmem:[#allocation2] sm:$0xff]
        %v1281 = vld [vmem:[#allocation2 + $0x8] sm:$0xff]
        %v1282 = vld [vmem:[#allocation2 + $0x10] sm:$0xff]
        %v1283 = vld [vmem:[#allocation2 + $0x18] sm:$0xff]
        %v1284 = vld [vmem:[#allocation2 + $0x20] sm:$0xff]
        %v1285 = vld [vmem:[#allocation2 + $0x28] sm:$0xff]
        %v1286 = vld [vmem:[#allocation2 + $0x30] sm:$0xff]
        %v1287 = vld [vmem:[#allocation2 + $0x38] sm:$0xff]
        %v1288 = vld [vmem:[%s1042] sm:$0xff]
        %v1289 = vld [vmem:[%s1042 + $0x8] sm:$0xf]
        %v1290 = vld [vmem:[%s1042 + $0xc] sm:$0xff]
        %v1291 = vld [vmem:[%s1042 + $0x14] sm:$0xf]
        %v1292 = vld [vmem:[%s1042 + $0x18] sm:$0xff]
        %v1293 = vld [vmem:[%s1042 + $0x20] sm:$0xf]
        %v1294 = vld [vmem:[%s1042 + $0x24] sm:$0xff]
        %v1295 = vld [vmem:[%s1042 + $0x2c] sm:$0xf]
        %v1296 = vld [vmem:[%s1042 + $0x30] sm:$0xff]
        %v1297 = vld [vmem:[%s1042 + $0x38] sm:$0xf]
        %v1298 = vld [vmem:[%s1042 + $0x3c] sm:$0xff]
        %v1299 = vld [vmem:[%s1042 + $0x44] sm:$0xf]
        %v1300 = vld [vmem:[%s1042 + $0x48] sm:$0xff]
        %v1301 = vld [vmem:[%s1042 + $0x50] sm:$0xf]
        %v1302 = vld [vmem:[%s1042 + $0x54] sm:$0xff]
        %v1303 = vld [vmem:[%s1042 + $0x5c] sm:$0xf]
        %v1304 = vld [vmem:[%s1042 + $0x60] sm:$0xff]
        %v1305 = vld [vmem:[%s1042 + $0x68] sm:$0xf]
        %v1306 = vld [vmem:[%s1042 + $0x6c] sm:$0xff]
        %v1307 = vld [vmem:[%s1042 + $0x74] sm:$0xf]
        %v1308 = vld [vmem:[%s1042 + $0x78] sm:$0xff]
        %v1309 = vld [vmem:[%s1042 + $0x80] sm:$0xf]
        %v1310 = vld [vmem:[%s1042 + $0x84] sm:$0xff]
        %v1311 = vld [vmem:[%s1042 + $0x8c] sm:$0xf]
        %v1312 = vld [vmem:[%s1042 + $0x90] sm:$0xff]
        %v1313 = vld [vmem:[%s1042 + $0x98] sm:$0xf]
        %v1314 = vld [vmem:[%s1042 + $0x9c] sm:$0xff]
        %v1315 = vld [vmem:[%s1042 + $0xa4] sm:$0xf]
        %v1316 = vld [vmem:[%s1042 + $0xa8] sm:$0xff]
        %v1317 = vld [vmem:[%s1042 + $0xb0] sm:$0xf]
        %v1318 = vld [vmem:[%s1042 + $0xb4] sm:$0xff]
        %v1319 = vld [vmem:[%s1042 + $0xbc] sm:$0xf]
        %v1320 = vpack.c.bf16 %v1281, %v1280
        %v1321 = vpack.c.bf16 %v1283, %v1282
        %v1322 = vpack.c.bf16 %v1285, %v1284
        %v1323 = vpack.c.bf16 %v1287, %v1286
        %v1324 = vld [vmem:[%s1046] sm:$0x7]
        %v1326 = vperm.slane %v1324, 0
        %v1327 = vperm.slane %v1324, 1
        %v1328 = vperm.slane %v1324, 2
        %v1364 = vunpack.c.l.b16 %v1288
        %v1365 = vunpack.c.h.b16 %v1288
        %v1366 = vunpack.c.l.b16 %v1289
        %v1367 = vunpack.c.l.b16 %v1290
        %v1368 = vunpack.c.h.b16 %v1290
        %v1369 = vunpack.c.l.b16 %v1291
        %v1370 = vunpack.c.l.b16 %v1292
        %v1371 = vunpack.c.h.b16 %v1292
        %v1372 = vunpack.c.l.b16 %v1293
        %v1373 = vunpack.c.l.b16 %v1294
        %v1374 = vunpack.c.h.b16 %v1294
        %v1375 = vunpack.c.l.b16 %v1295
        %v1376 = vunpack.c.l.b16 %v1296
        %v1377 = vunpack.c.h.b16 %v1296
        %v1378 = vunpack.c.l.b16 %v1297
        %v1379 = vunpack.c.l.b16 %v1298
        %v1380 = vunpack.c.h.b16 %v1298
        %v1381 = vunpack.c.l.b16 %v1299
        %v1382 = vunpack.c.l.b16 %v1300
        %v1383 = vunpack.c.h.b16 %v1300
        %v1384 = vunpack.c.l.b16 %v1301
        %v1385 = vunpack.c.l.b16 %v1302
        %v1386 = vunpack.c.h.b16 %v1302
        %v1387 = vunpack.c.l.b16 %v1303
        %v1388 = vunpack.c.l.b16 %v1304
        %v1389 = vunpack.c.h.b16 %v1304
        %v1390 = vunpack.c.l.b16 %v1305
        %v1391 = vunpack.c.l.b16 %v1306
        %v1392 = vunpack.c.h.b16 %v1306
        %v1393 = vunpack.c.l.b16 %v1307
        %v1394 = vunpack.c.l.b16 %v1308
        %v1395 = vunpack.c.h.b16 %v1308
        %v1396 = vunpack.c.l.b16 %v1309
        %v1397 = vunpack.c.l.b16 %v1310
        %v1398 = vunpack.c.h.b16 %v1310
        %v1399 = vunpack.c.l.b16 %v1311
        %v1400 = vunpack.c.l.b16 %v1312
        %v1401 = vunpack.c.h.b16 %v1312
        %v1402 = vunpack.c.l.b16 %v1313
        %v1403 = vunpack.c.l.b16 %v1314
        %v1404 = vunpack.c.h.b16 %v1314
        %v1405 = vunpack.c.l.b16 %v1315
        %v1406 = vunpack.c.l.b16 %v1316
        %v1407 = vunpack.c.h.b16 %v1316
        %v1408 = vunpack.c.l.b16 %v1317
        %v1409 = vunpack.c.l.b16 %v1318
        %v1410 = vunpack.c.h.b16 %v1318
        %v1411 = vunpack.c.l.b16 %v1319
        %v1412 = vpack.c.b16 %v1367, %v1364
        %v1413 = vpack.c.b16 %v1368, %v1365
        %v1414 = vpack.c.b16 %v1369, %v1366
        %v1415 = vpack.c.b16 %v1373, %v1370
        %v1416 = vpack.c.b16 %v1374, %v1371
        %v1417 = vpack.c.b16 %v1375, %v1372
        %v1418 = vpack.c.b16 %v1379, %v1376
        %v1419 = vpack.c.b16 %v1380, %v1377
        %v1420 = vpack.c.b16 %v1381, %v1378
        %v1421 = vpack.c.b16 %v1385, %v1382
        %v1422 = vpack.c.b16 %v1386, %v1383
        %v1423 = vpack.c.b16 %v1387, %v1384
        %v1424 = vpack.c.b16 %v1391, %v1388
        %v1425 = vpack.c.b16 %v1392, %v1389
        %v1426 = vpack.c.b16 %v1393, %v1390
        %v1427 = vpack.c.b16 %v1397, %v1394
        %v1428 = vpack.c.b16 %v1398, %v1395
        %v1429 = vpack.c.b16 %v1399, %v1396
        %v1430 = vpack.c.b16 %v1403, %v1400
        %v1431 = vpack.c.b16 %v1404, %v1401
        %v1432 = vpack.c.b16 %v1405, %v1402
        %v1433 = vpack.c.b16 %v1409, %v1406
        %v1434 = vpack.c.b16 %v1410, %v1407
        %v1435 = vpack.c.b16 %v1411, %v1408
        %1460 = vmatpush.bf16.msra.mxu0 %v1433
        %1461 = vmatpush.bf16.msra.mxu0 %v1430
        %1462 = vmatpush.bf16.msra.mxu0 %v1427
        %1463 = vmatpush.bf16.msra.mxu0 %v1424
        %1464 = vmatpush.bf16.msra.mxu0 %v1421
        %1465 = vmatpush.bf16.msra.mxu0 %v1418
        %1466 = vmatpush.bf16.msra.mxu0 %v1415
        %1467 = vmatpush.bf16.msra.mxu0 %v1412
        %1468 = vmatmul.bf16.gmra.mxu0 %v1320
        %v1469 = vpop.f32.mrf.mxu0
        %v1470 = vadd.f32 %v1326, %v1469
        %v1471 = vpop.f32.mrf.mxu0
        %v1472 = vadd.f32 %v1326, %v1471
        %1473 = vmatmul.bf16.gmra.mxu0 %v1321
        %v1474 = vpop.f32.mrf.mxu0
        %v1475 = vadd.f32 %v1326, %v1474
        %v1476 = vpop.f32.mrf.mxu0
        %v1477 = vadd.f32 %v1326, %v1476
        %1478 = vmatmul.bf16.gmra.mxu0 %v1322
        %v1479 = vpop.f32.mrf.mxu0
        %v1480 = vadd.f32 %v1326, %v1479
        %v1481 = vpop.f32.mrf.mxu0
        %v1482 = vadd.f32 %v1326, %v1481
        %1483 = vmatmul.bf16.gmra.mxu0 %v1323
        %v1484 = vpop.f32.mrf.mxu0
        %v1485 = vadd.f32 %v1326, %v1484
        %v1486 = vpop.f32.mrf.mxu0
        %v1487 = vadd.f32 %v1326, %v1486
        %1488 = vdwg.mxu0
        %1489 = vmatpush.bf16.msra.mxu0 %v1434
        %1490 = vmatpush.bf16.msra.mxu0 %v1431
        %1491 = vmatpush.bf16.msra.mxu0 %v1428
        %1492 = vmatpush.bf16.msra.mxu0 %v1425
        %1493 = vmatpush.bf16.msra.mxu0 %v1422
        %1494 = vmatpush.bf16.msra.mxu0 %v1419
        %1495 = vmatpush.bf16.msra.mxu0 %v1416
        %1496 = vmatpush.bf16.msra.mxu0 %v1413
        %1497 = vmatmul.bf16.gmra.mxu0 %v1320
        %v1498 = vpop.f32.mrf.mxu0
        %v1499 = vadd.f32 %v1327, %v1498
        %v1500 = vpop.f32.mrf.mxu0
        %v1501 = vadd.f32 %v1327, %v1500
        %1502 = vmatmul.bf16.gmra.mxu0 %v1321
        %v1503 = vpop.f32.mrf.mxu0
        %v1504 = vadd.f32 %v1327, %v1503
        %v1505 = vpop.f32.mrf.mxu0
        %v1506 = vadd.f32 %v1327, %v1505
        %1507 = vmatmul.bf16.gmra.mxu0 %v1322
        %v1508 = vpop.f32.mrf.mxu0
        %v1509 = vadd.f32 %v1327, %v1508
        %v1510 = vpop.f32.mrf.mxu0
        %v1511 = vadd.f32 %v1327, %v1510
        %1512 = vmatmul.bf16.gmra.mxu0 %v1323
        %v1513 = vpop.f32.mrf.mxu0
        %v1514 = vadd.f32 %v1327, %v1513
        %v1515 = vpop.f32.mrf.mxu0
        %v1516 = vadd.f32 %v1327, %v1515
        %1517 = vdwg.mxu0
        %1518 = vmatpush.bf16.msra.mxu0 %v1435
        %1519 = vmatpush.bf16.msra.mxu0 %v1432
        %1520 = vmatpush.bf16.msra.mxu0 %v1429
        %1521 = vmatpush.bf16.msra.mxu0 %v1426
        %1522 = vmatpush.bf16.msra.mxu0 %v1423
        %1523 = vmatpush.bf16.msra.mxu0 %v1420
        %1524 = vmatpush.bf16.msra.mxu0 %v1417
        %1525 = vmatpush.bf16.msra.mxu0 %v1414
        %1526 = vmatmul.bf16.gmra.mxu0 %v1320
        %v1527 = vpop.f32.mrf.mxu0
        %v1528 = vadd.f32 %v1328, %v1527
        %v1529 = vpop.f32.mrf.mxu0
        %v1530 = vadd.f32 %v1328, %v1529
        %1531 = vmatmul.bf16.gmra.mxu0 %v1321
        %v1532 = vpop.f32.mrf.mxu0
        %v1533 = vadd.f32 %v1328, %v1532
        %v1534 = vpop.f32.mrf.mxu0
        %v1535 = vadd.f32 %v1328, %v1534
        %1536 = vmatmul.bf16.gmra.mxu0 %v1322
        %v1537 = vpop.f32.mrf.mxu0
        %v1538 = vadd.f32 %v1328, %v1537
        %v1539 = vpop.f32.mrf.mxu0
        %v1540 = vadd.f32 %v1328, %v1539
        %1541 = vmatmul.bf16.gmra.mxu0 %v1323
        %v1542 = vpop.f32.mrf.mxu0
        %v1543 = vadd.f32 %v1328, %v1542
        %v1544 = vpop.f32.mrf.mxu0
        %v1545 = vadd.f32 %v1328, %v1544
        %1546 = vdwg.mxu0
        %1549 = vrot.lane.b32.xlu0 %v1470, 96
        %v1550 = vpop.permute.xlu0 %1549
        %1551 = vrot.lane.b32.xlu0 %v1472, 96
        %v1552 = vpop.permute.xlu0 %1551
        %1555 = vrot.lane.b32.xlu0 %v1470, 64
        %v1556 = vpop.permute.xlu0 %1555
        %1557 = vrot.lane.b32.xlu0 %v1472, 64
        %v1558 = vpop.permute.xlu0 %1557
        %1561 = vrot.lane.b32.xlu0 %v1470, 32
        %v1562 = vpop.permute.xlu0 %1561
        %1563 = vrot.lane.b32.xlu0 %v1472, 32
        %v1564 = vpop.permute.xlu0 %1563
        %v1567 = vrot.slane %v1556, 4
        %vm1568 = vcmask 1047556
        %v1569 = vsel %vm1568, %v1567, %v1470
        %v1570 = vrot.slane %v1470, 4
        %v1571 = vsel %vm1568, %v1556, %v1570
        %v1573 = vunpack.c.l.s4 1983009808
        %v1574 = vunpack.c.0.s8 %v1573
        %v1575 = vperm.slane %v1569, %v1574
        %v1577 = vunpack.c.l.s4 1983009808
        %v1578 = vunpack.c.0.s8 %v1577
        %v1579 = vperm.slane %v1571, %v1578
        %v1580 = vrot.slane %v1562, 4
        %v1581 = vsel %vm1568, %v1580, %v1550
        %v1582 = vrot.slane %v1550, 4
        %v1583 = vsel %vm1568, %v1562, %v1582
        %v1585 = vunpack.c.l.s4 1983009808
        %v1586 = vunpack.c.0.s8 %v1585
        %v1587 = vperm.slane %v1581, %v1586
        %v1589 = vunpack.c.l.s4 1983009808
        %v1590 = vunpack.c.0.s8 %v1589
        %v1591 = vperm.slane %v1583, %v1590
        %v1592 = vrot.slane %v1587, 4
        %v1593 = vsel %vm1568, %v1592, %v1575
        %v1594 = vrot.slane %v1575, 4
        %v1595 = vsel %vm1568, %v1587, %v1594
        %v1597 = vunpack.c.l.s4 1934713408
        %v1598 = vunpack.c.0.s8 %v1597
        %v1599 = vperm.slane %v1593, %v1598
        %v1601 = vunpack.c.l.s4 1934713408
        %v1602 = vunpack.c.0.s8 %v1601
        %v1603 = vperm.slane %v1595, %v1602
        %v1604 = vrot.slane %v1591, 4
        %v1605 = vsel %vm1568, %v1604, %v1579
        %v1606 = vrot.slane %v1579, 4
        %v1607 = vsel %vm1568, %v1591, %v1606
        %v1609 = vunpack.c.l.s4 1934713408
        %v1610 = vunpack.c.0.s8 %v1609
        %v1611 = vperm.slane %v1605, %v1610
        %v1613 = vunpack.c.l.s4 1934713408
        %v1614 = vunpack.c.0.s8 %v1613
        %v1615 = vperm.slane %v1607, %v1614
        %v1616 = vrot.slane %v1599, 4
        %v1617 = vsel %vm1568, 0.0, %v1616
        %v1618 = vrot.slane %v1603, 4
        %v1619 = vsel %vm1568, 0.0, %v1618
        %v1620 = vrot.slane %v1611, 4
        %v1621 = vsel %vm1568, 0.0, %v1620
        %v1622 = vrot.slane %v1615, 4
        %v1623 = vsel %vm1568, 0.0, %v1622
        %v1624 = vrot.slane %v1558, 4
        %v1625 = vsel %vm1568, %v1624, %v1472
        %v1626 = vrot.slane %v1472, 4
        %v1627 = vsel %vm1568, %v1558, %v1626
        %v1629 = vunpack.c.l.s4 1983009808
        %v1630 = vunpack.c.0.s8 %v1629
        %v1631 = vperm.slane %v1625, %v1630
        %v1633 = vunpack.c.l.s4 1983009808
        %v1634 = vunpack.c.0.s8 %v1633
        %v1635 = vperm.slane %v1627, %v1634
        %v1636 = vrot.slane %v1564, 4
        %v1637 = vsel %vm1568, %v1636, %v1552
        %v1638 = vrot.slane %v1552, 4
        %v1639 = vsel %vm1568, %v1564, %v1638
        %v1641 = vunpack.c.l.s4 1983009808
        %v1642 = vunpack.c.0.s8 %v1641
        %v1643 = vperm.slane %v1637, %v1642
        %v1645 = vunpack.c.l.s4 1983009808
        %v1646 = vunpack.c.0.s8 %v1645
        %v1647 = vperm.slane %v1639, %v1646
        %v1648 = vrot.slane %v1643, 4
        %v1649 = vsel %vm1568, %v1648, %v1631
        %v1650 = vrot.slane %v1631, 4
        %v1651 = vsel %vm1568, %v1643, %v1650
        %v1653 = vunpack.c.l.s4 1934713408
        %v1654 = vunpack.c.0.s8 %v1653
        %v1655 = vperm.slane %v1649, %v1654
        %v1657 = vunpack.c.l.s4 1934713408
        %v1658 = vunpack.c.0.s8 %v1657
        %v1659 = vperm.slane %v1651, %v1658
        %v1660 = vrot.slane %v1647, 4
        %v1661 = vsel %vm1568, %v1660, %v1635
        %v1662 = vrot.slane %v1635, 4
        %v1663 = vsel %vm1568, %v1647, %v1662
        %v1665 = vunpack.c.l.s4 1934713408
        %v1666 = vunpack.c.0.s8 %v1665
        %v1667 = vperm.slane %v1661, %v1666
        %v1669 = vunpack.c.l.s4 1934713408
        %v1670 = vunpack.c.0.s8 %v1669
        %v1671 = vperm.slane %v1663, %v1670
        %v1672 = vrot.slane %v1655, 4
        %v1673 = vsel %vm1568, 0.0, %v1672
        %v1674 = vrot.slane %v1659, 4
        %v1675 = vsel %vm1568, 0.0, %v1674
        %v1676 = vrot.slane %v1667, 4
        %v1677 = vsel %vm1568, 0.0, %v1676
        %v1678 = vrot.slane %v1671, 4
        %v1679 = vsel %vm1568, 0.0, %v1678
        %1682 = vrot.lane.b32.xlu0 %v1499, 96
        %v1683 = vpop.permute.xlu0 %1682
        %1684 = vrot.lane.b32.xlu0 %v1501, 96
        %v1685 = vpop.permute.xlu0 %1684
        %1688 = vrot.lane.b32.xlu0 %v1499, 64
        %v1689 = vpop.permute.xlu0 %1688
        %1690 = vrot.lane.b32.xlu0 %v1501, 64
        %v1691 = vpop.permute.xlu0 %1690
        %1694 = vrot.lane.b32.xlu0 %v1499, 32
        %v1695 = vpop.permute.xlu0 %1694
        %1696 = vrot.lane.b32.xlu0 %v1501, 32
        %v1697 = vpop.permute.xlu0 %1696
        %v1700 = vrot.slane %v1689, 4
        %v1701 = vsel %vm1568, %v1700, %v1499
        %v1702 = vrot.slane %v1499, 4
        %v1703 = vsel %vm1568, %v1689, %v1702
        %v1705 = vunpack.c.l.s4 1983009808
        %v1706 = vunpack.c.0.s8 %v1705
        %v1707 = vperm.slane %v1701, %v1706
        %v1709 = vunpack.c.l.s4 1983009808
        %v1710 = vunpack.c.0.s8 %v1709
        %v1711 = vperm.slane %v1703, %v1710
        %v1712 = vrot.slane %v1695, 4
        %v1713 = vsel %vm1568, %v1712, %v1683
        %v1714 = vrot.slane %v1683, 4
        %v1715 = vsel %vm1568, %v1695, %v1714
        %v1717 = vunpack.c.l.s4 1983009808
        %v1718 = vunpack.c.0.s8 %v1717
        %v1719 = vperm.slane %v1713, %v1718
        %v1721 = vunpack.c.l.s4 1983009808
        %v1722 = vunpack.c.0.s8 %v1721
        %v1723 = vperm.slane %v1715, %v1722
        %v1724 = vrot.slane %v1719, 4
        %v1725 = vsel %vm1568, %v1724, %v1707
        %v1726 = vrot.slane %v1707, 4
        %v1727 = vsel %vm1568, %v1719, %v1726
        %v1729 = vunpack.c.l.s4 1934713408
        %v1730 = vunpack.c.0.s8 %v1729
        %v1731 = vperm.slane %v1725, %v1730
        %v1733 = vunpack.c.l.s4 1934713408
        %v1734 = vunpack.c.0.s8 %v1733
        %v1735 = vperm.slane %v1727, %v1734
        %v1736 = vrot.slane %v1723, 4
        %v1737 = vsel %vm1568, %v1736, %v1711
        %v1738 = vrot.slane %v1711, 4
        %v1739 = vsel %vm1568, %v1723, %v1738
        %v1741 = vunpack.c.l.s4 1934713408
        %v1742 = vunpack.c.0.s8 %v1741
        %v1743 = vperm.slane %v1737, %v1742
        %v1745 = vunpack.c.l.s4 1934713408
        %v1746 = vunpack.c.0.s8 %v1745
        %v1747 = vperm.slane %v1739, %v1746
        %v1748 = vrot.slane %v1731, 4
        %v1749 = vsel %vm1568, 0.0, %v1748
        %v1750 = vrot.slane %v1735, 4
        %v1751 = vsel %vm1568, 0.0, %v1750
        %v1752 = vrot.slane %v1743, 4
        %v1753 = vsel %vm1568, 0.0, %v1752
        %v1754 = vrot.slane %v1747, 4
        %v1755 = vsel %vm1568, 0.0, %v1754
        %v1756 = vrot.slane %v1691, 4
        %v1757 = vsel %vm1568, %v1756, %v1501
        %v1758 = vrot.slane %v1501, 4
        %v1759 = vsel %vm1568, %v1691, %v1758
        %v1761 = vunpack.c.l.s4 1983009808
        %v1762 = vunpack.c.0.s8 %v1761
        %v1763 = vperm.slane %v1757, %v1762
        %v1765 = vunpack.c.l.s4 1983009808
        %v1766 = vunpack.c.0.s8 %v1765
        %v1767 = vperm.slane %v1759, %v1766
        %v1768 = vrot.slane %v1697, 4
        %v1769 = vsel %vm1568, %v1768, %v1685
        %v1770 = vrot.slane %v1685, 4
        %v1771 = vsel %vm1568, %v1697, %v1770
        %v1773 = vunpack.c.l.s4 1983009808
        %v1774 = vunpack.c.0.s8 %v1773
        %v1775 = vperm.slane %v1769, %v1774
        %v1777 = vunpack.c.l.s4 1983009808
        %v1778 = vunpack.c.0.s8 %v1777
        %v1779 = vperm.slane %v1771, %v1778
        %v1780 = vrot.slane %v1775, 4
        %v1781 = vsel %vm1568, %v1780, %v1763
        %v1782 = vrot.slane %v1763, 4
        %v1783 = vsel %vm1568, %v1775, %v1782
        %v1785 = vunpack.c.l.s4 1934713408
        %v1786 = vunpack.c.0.s8 %v1785
        %v1787 = vperm.slane %v1781, %v1786
        %v1789 = vunpack.c.l.s4 1934713408
        %v1790 = vunpack.c.0.s8 %v1789
        %v1791 = vperm.slane %v1783, %v1790
        %v1792 = vrot.slane %v1779, 4
        %v1793 = vsel %vm1568, %v1792, %v1767
        %v1794 = vrot.slane %v1767, 4
        %v1795 = vsel %vm1568, %v1779, %v1794
        %v1797 = vunpack.c.l.s4 1934713408
        %v1798 = vunpack.c.0.s8 %v1797
        %v1799 = vperm.slane %v1793, %v1798
        %v1801 = vunpack.c.l.s4 1934713408
        %v1802 = vunpack.c.0.s8 %v1801
        %v1803 = vperm.slane %v1795, %v1802
        %v1804 = vrot.slane %v1787, 4
        %v1805 = vsel %vm1568, 0.0, %v1804
        %v1806 = vrot.slane %v1791, 4
        %v1807 = vsel %vm1568, 0.0, %v1806
        %v1808 = vrot.slane %v1799, 4
        %v1809 = vsel %vm1568, 0.0, %v1808
        %v1810 = vrot.slane %v1803, 4
        %v1811 = vsel %vm1568, 0.0, %v1810
        %1814 = vrot.lane.b32.xlu0 %v1528, 96
        %v1815 = vpop.permute.xlu0 %1814
        %1816 = vrot.lane.b32.xlu0 %v1530, 96
        %v1817 = vpop.permute.xlu0 %1816
        %1820 = vrot.lane.b32.xlu0 %v1528, 64
        %v1821 = vpop.permute.xlu0 %1820
        %1822 = vrot.lane.b32.xlu0 %v1530, 64
        %v1823 = vpop.permute.xlu0 %1822
        %1826 = vrot.lane.b32.xlu0 %v1528, 32
        %v1827 = vpop.permute.xlu0 %1826
        %1828 = vrot.lane.b32.xlu0 %v1530, 32
        %v1829 = vpop.permute.xlu0 %1828
        %v1832 = vrot.slane %v1821, 4
        %v1833 = vsel %vm1568, %v1832, %v1528
        %v1834 = vrot.slane %v1528, 4
        %v1835 = vsel %vm1568, %v1821, %v1834
        %v1837 = vunpack.c.l.s4 1983009808
        %v1838 = vunpack.c.0.s8 %v1837
        %v1839 = vperm.slane %v1833, %v1838
        %v1841 = vunpack.c.l.s4 1983009808
        %v1842 = vunpack.c.0.s8 %v1841
        %v1843 = vperm.slane %v1835, %v1842
        %v1844 = vrot.slane %v1827, 4
        %v1845 = vsel %vm1568, %v1844, %v1815
        %v1846 = vrot.slane %v1815, 4
        %v1847 = vsel %vm1568, %v1827, %v1846
        %v1849 = vunpack.c.l.s4 1983009808
        %v1850 = vunpack.c.0.s8 %v1849
        %v1851 = vperm.slane %v1845, %v1850
        %v1853 = vunpack.c.l.s4 1983009808
        %v1854 = vunpack.c.0.s8 %v1853
        %v1855 = vperm.slane %v1847, %v1854
        %v1856 = vrot.slane %v1851, 4
        %v1857 = vsel %vm1568, %v1856, %v1839
        %v1858 = vrot.slane %v1839, 4
        %v1859 = vsel %vm1568, %v1851, %v1858
        %v1861 = vunpack.c.l.s4 1934713408
        %v1862 = vunpack.c.0.s8 %v1861
        %v1863 = vperm.slane %v1857, %v1862
        %v1865 = vunpack.c.l.s4 1934713408
        %v1866 = vunpack.c.0.s8 %v1865
        %v1867 = vperm.slane %v1859, %v1866
        %v1868 = vrot.slane %v1855, 4
        %v1869 = vsel %vm1568, %v1868, %v1843
        %v1870 = vrot.slane %v1843, 4
        %v1871 = vsel %vm1568, %v1855, %v1870
        %v1873 = vunpack.c.l.s4 1934713408
        %v1874 = vunpack.c.0.s8 %v1873
        %v1875 = vperm.slane %v1869, %v1874
        %v1877 = vunpack.c.l.s4 1934713408
        %v1878 = vunpack.c.0.s8 %v1877
        %v1879 = vperm.slane %v1871, %v1878
        %v1880 = vrot.slane %v1863, 4
        %v1881 = vsel %vm1568, 0.0, %v1880
        %v1882 = vrot.slane %v1867, 4
        %v1883 = vsel %vm1568, 0.0, %v1882
        %v1884 = vrot.slane %v1875, 4
        %v1885 = vsel %vm1568, 0.0, %v1884
        %v1886 = vrot.slane %v1879, 4
        %v1887 = vsel %vm1568, 0.0, %v1886
        %v1888 = vrot.slane %v1823, 4
        %v1889 = vsel %vm1568, %v1888, %v1530
        %v1890 = vrot.slane %v1530, 4
        %v1891 = vsel %vm1568, %v1823, %v1890
        %v1893 = vunpack.c.l.s4 1983009808
        %v1894 = vunpack.c.0.s8 %v1893
        %v1895 = vperm.slane %v1889, %v1894
        %v1897 = vunpack.c.l.s4 1983009808
        %v1898 = vunpack.c.0.s8 %v1897
        %v1899 = vperm.slane %v1891, %v1898
        %v1900 = vrot.slane %v1829, 4
        %v1901 = vsel %vm1568, %v1900, %v1817
        %v1902 = vrot.slane %v1817, 4
        %v1903 = vsel %vm1568, %v1829, %v1902
        %v1905 = vunpack.c.l.s4 1983009808
        %v1906 = vunpack.c.0.s8 %v1905
        %v1907 = vperm.slane %v1901, %v1906
        %v1909 = vunpack.c.l.s4 1983009808
        %v1910 = vunpack.c.0.s8 %v1909
        %v1911 = vperm.slane %v1903, %v1910
        %v1912 = vrot.slane %v1907, 4
        %v1913 = vsel %vm1568, %v1912, %v1895
        %v1914 = vrot.slane %v1895, 4
        %v1915 = vsel %vm1568, %v1907, %v1914
        %v1917 = vunpack.c.l.s4 1934713408
        %v1918 = vunpack.c.0.s8 %v1917
        %v1919 = vperm.slane %v1913, %v1918
        %v1921 = vunpack.c.l.s4 1934713408
        %v1922 = vunpack.c.0.s8 %v1921
        %v1923 = vperm.slane %v1915, %v1922
        %v1924 = vrot.slane %v1911, 4
        %v1925 = vsel %vm1568, %v1924, %v1899
        %v1926 = vrot.slane %v1899, 4
        %v1927 = vsel %vm1568, %v1911, %v1926
        %v1929 = vunpack.c.l.s4 1934713408
        %v1930 = vunpack.c.0.s8 %v1929
        %v1931 = vperm.slane %v1925, %v1930
        %v1933 = vunpack.c.l.s4 1934713408
        %v1934 = vunpack.c.0.s8 %v1933
        %v1935 = vperm.slane %v1927, %v1934
        %v1936 = vrot.slane %v1919, 4
        %v1937 = vsel %vm1568, 0.0, %v1936
        %v1938 = vrot.slane %v1923, 4
        %v1939 = vsel %vm1568, 0.0, %v1938
        %v1940 = vrot.slane %v1931, 4
        %v1941 = vsel %vm1568, 0.0, %v1940
        %v1942 = vrot.slane %v1935, 4
        %v1943 = vsel %vm1568, 0.0, %v1942
        %v1944 = vsel %vm1568, %v1618, %v1599
        %v1946 = vunpack.c.l.s4 1983009808
        %v1947 = vunpack.c.0.s8 %v1946
        %v1948 = vperm.slane %v1944, %v1947
        %v1949 = vrot.slane %v1619, 4
        %v1950 = vsel %vm1568, %v1949, %v1617
        %v1952 = vunpack.c.l.s4 1983009808
        %v1953 = vunpack.c.0.s8 %v1952
        %v1954 = vperm.slane %v1950, %v1953
        %v1955 = vsel %vm1568, %v1622, %v1611
        %v1957 = vunpack.c.l.s4 1983009808
        %v1958 = vunpack.c.0.s8 %v1957
        %v1959 = vperm.slane %v1955, %v1958
        %v1960 = vrot.slane %v1623, 4
        %v1961 = vsel %vm1568, %v1960, %v1621
        %v1963 = vunpack.c.l.s4 1983009808
        %v1964 = vunpack.c.0.s8 %v1963
        %v1965 = vperm.slane %v1961, %v1964
        %v1966 = vrot.slane %v1954, 4
        %v1967 = vsel %vm1568, %v1966, %v1948
        %v1968 = vrot.slane %v1948, 4
        %v1969 = vsel %vm1568, %v1954, %v1968
        %v1971 = vunpack.c.l.s4 1934713408
        %v1972 = vunpack.c.0.s8 %v1971
        %v1973 = vperm.slane %v1967, %v1972
        %v1975 = vunpack.c.l.s4 1934713408
        %v1976 = vunpack.c.0.s8 %v1975
        %v1977 = vperm.slane %v1969, %v1976
        %v1978 = vrot.slane %v1965, 4
        %v1979 = vsel %vm1568, %v1978, %v1959
        %v1980 = vrot.slane %v1959, 4
        %v1981 = vsel %vm1568, %v1965, %v1980
        %v1983 = vunpack.c.l.s4 1934713408
        %v1984 = vunpack.c.0.s8 %v1983
        %v1985 = vperm.slane %v1979, %v1984
        %v1987 = vunpack.c.l.s4 1934713408
        %v1988 = vunpack.c.0.s8 %v1987
        %v1989 = vperm.slane %v1981, %v1988
        %v1990 = vrot.slane %v1985, 4
        %v1991 = vsel %vm1568, %v1990, %v1973
        %v1992 = vrot.slane %v1973, 4
        %v1993 = vsel %vm1568, %v1985, %v1992
        %v1994 = vrot.slane %v1989, 4
        %v1995 = vsel %vm1568, %v1994, %v1977
        %v1996 = vrot.slane %v1977, 4
        %v1997 = vsel %vm1568, %v1989, %v1996
        %v1998 = vsel %vm1568, %v1674, %v1655
        %v2000 = vunpack.c.l.s4 1983009808
        %v2001 = vunpack.c.0.s8 %v2000
        %v2002 = vperm.slane %v1998, %v2001
        %v2003 = vrot.slane %v1675, 4
        %v2004 = vsel %vm1568, %v2003, %v1673
        %v2006 = vunpack.c.l.s4 1983009808
        %v2007 = vunpack.c.0.s8 %v2006
        %v2008 = vperm.slane %v2004, %v2007
        %v2009 = vsel %vm1568, %v1678, %v1667
        %v2011 = vunpack.c.l.s4 1983009808
        %v2012 = vunpack.c.0.s8 %v2011
        %v2013 = vperm.slane %v2009, %v2012
        %v2014 = vrot.slane %v1679, 4
        %v2015 = vsel %vm1568, %v2014, %v1677
        %v2017 = vunpack.c.l.s4 1983009808
        %v2018 = vunpack.c.0.s8 %v2017
        %v2019 = vperm.slane %v2015, %v2018
        %v2020 = vrot.slane %v2008, 4
        %v2021 = vsel %vm1568, %v2020, %v2002
        %v2022 = vrot.slane %v2002, 4
        %v2023 = vsel %vm1568, %v2008, %v2022
        %v2025 = vunpack.c.l.s4 1934713408
        %v2026 = vunpack.c.0.s8 %v2025
        %v2027 = vperm.slane %v2021, %v2026
        %v2029 = vunpack.c.l.s4 1934713408
        %v2030 = vunpack.c.0.s8 %v2029
        %v2031 = vperm.slane %v2023, %v2030
        %v2032 = vrot.slane %v2019, 4
        %v2033 = vsel %vm1568, %v2032, %v2013
        %v2034 = vrot.slane %v2013, 4
        %v2035 = vsel %vm1568, %v2019, %v2034
        %v2037 = vunpack.c.l.s4 1934713408
        %v2038 = vunpack.c.0.s8 %v2037
        %v2039 = vperm.slane %v2033, %v2038
        %v2041 = vunpack.c.l.s4 1934713408
        %v2042 = vunpack.c.0.s8 %v2041
        %v2043 = vperm.slane %v2035, %v2042
        %v2044 = vrot.slane %v2039, 4
        %v2045 = vsel %vm1568, %v2044, %v2027
        %v2046 = vrot.slane %v2027, 4
        %v2047 = vsel %vm1568, %v2039, %v2046
        %v2048 = vrot.slane %v2043, 4
        %v2049 = vsel %vm1568, %v2048, %v2031
        %v2050 = vrot.slane %v2031, 4
        %v2051 = vsel %vm1568, %v2043, %v2050
        %v2052 = vpack.c.bf16 %v1991, %v1991
        %v2053 = vpack.c.bf16 %v2045, %v2045
        %v2054 = vpack.c.bf16 %v1993, %v1993
        %v2055 = vpack.c.bf16 %v2047, %v2047
        %v2056 = vpack.c.bf16 %v1995, %v1995
        %v2057 = vpack.c.bf16 %v2049, %v2049
        %v2058 = vpack.c.bf16 %v1997, %v1997
        %v2059 = vpack.c.bf16 %v2051, %v2051
        %v2060 = vsel %vm1568, %v1750, %v1731
        %v2062 = vunpack.c.l.s4 1983009808
        %v2063 = vunpack.c.0.s8 %v2062
        %v2064 = vperm.slane %v2060, %v2063
        %v2065 = vrot.slane %v1751, 4
        %v2066 = vsel %vm1568, %v2065, %v1749
        %v2068 = vunpack.c.l.s4 1983009808
        %v2069 = vunpack.c.0.s8 %v2068
        %v2070 = vperm.slane %v2066, %v2069
        %v2071 = vsel %vm1568, %v1754, %v1743
        %v2073 = vunpack.c.l.s4 1983009808
        %v2074 = vunpack.c.0.s8 %v2073
        %v2075 = vperm.slane %v2071, %v2074
        %v2076 = vrot.slane %v1755, 4
        %v2077 = vsel %vm1568, %v2076, %v1753
        %v2079 = vunpack.c.l.s4 1983009808
        %v2080 = vunpack.c.0.s8 %v2079
        %v2081 = vperm.slane %v2077, %v2080
        %v2082 = vrot.slane %v2070, 4
        %v2083 = vsel %vm1568, %v2082, %v2064
        %v2084 = vrot.slane %v2064, 4
        %v2085 = vsel %vm1568, %v2070, %v2084
        %v2087 = vunpack.c.l.s4 1934713408
        %v2088 = vunpack.c.0.s8 %v2087
        %v2089 = vperm.slane %v2083, %v2088
        %v2091 = vunpack.c.l.s4 1934713408
        %v2092 = vunpack.c.0.s8 %v2091
        %v2093 = vperm.slane %v2085, %v2092
        %v2094 = vrot.slane %v2081, 4
        %v2095 = vsel %vm1568, %v2094, %v2075
        %v2096 = vrot.slane %v2075, 4
        %v2097 = vsel %vm1568, %v2081, %v2096
        %v2099 = vunpack.c.l.s4 1934713408
        %v2100 = vunpack.c.0.s8 %v2099
        %v2101 = vperm.slane %v2095, %v2100
        %v2103 = vunpack.c.l.s4 1934713408
        %v2104 = vunpack.c.0.s8 %v2103
        %v2105 = vperm.slane %v2097, %v2104
        %v2106 = vrot.slane %v2101, 4
        %v2107 = vsel %vm1568, %v2106, %v2089
        %v2108 = vrot.slane %v2089, 4
        %v2109 = vsel %vm1568, %v2101, %v2108
        %v2110 = vrot.slane %v2105, 4
        %v2111 = vsel %vm1568, %v2110, %v2093
        %v2112 = vrot.slane %v2093, 4
        %v2113 = vsel %vm1568, %v2105, %v2112
        %v2114 = vsel %vm1568, %v1806, %v1787
        %v2116 = vunpack.c.l.s4 1983009808
        %v2117 = vunpack.c.0.s8 %v2116
        %v2118 = vperm.slane %v2114, %v2117
        %v2119 = vrot.slane %v1807, 4
        %v2120 = vsel %vm1568, %v2119, %v1805
        %v2122 = vunpack.c.l.s4 1983009808
        %v2123 = vunpack.c.0.s8 %v2122
        %v2124 = vperm.slane %v2120, %v2123
        %v2125 = vsel %vm1568, %v1810, %v1799
        %v2127 = vunpack.c.l.s4 1983009808
        %v2128 = vunpack.c.0.s8 %v2127
        %v2129 = vperm.slane %v2125, %v2128
        %v2130 = vrot.slane %v1811, 4
        %v2131 = vsel %vm1568, %v2130, %v1809
        %v2133 = vunpack.c.l.s4 1983009808
        %v2134 = vunpack.c.0.s8 %v2133
        %v2135 = vperm.slane %v2131, %v2134
        %v2136 = vrot.slane %v2124, 4
        %v2137 = vsel %vm1568, %v2136, %v2118
        %v2138 = vrot.slane %v2118, 4
        %v2139 = vsel %vm1568, %v2124, %v2138
        %v2141 = vunpack.c.l.s4 1934713408
        %v2142 = vunpack.c.0.s8 %v2141
        %v2143 = vperm.slane %v2137, %v2142
        %v2145 = vunpack.c.l.s4 1934713408
        %v2146 = vunpack.c.0.s8 %v2145
        %v2147 = vperm.slane %v2139, %v2146
        %v2148 = vrot.slane %v2135, 4
        %v2149 = vsel %vm1568, %v2148, %v2129
        %v2150 = vrot.slane %v2129, 4
        %v2151 = vsel %vm1568, %v2135, %v2150
        %v2153 = vunpack.c.l.s4 1934713408
        %v2154 = vunpack.c.0.s8 %v2153
        %v2155 = vperm.slane %v2149, %v2154
        %v2157 = vunpack.c.l.s4 1934713408
        %v2158 = vunpack.c.0.s8 %v2157
        %v2159 = vperm.slane %v2151, %v2158
        %v2160 = vrot.slane %v2155, 4
        %v2161 = vsel %vm1568, %v2160, %v2143
        %v2162 = vrot.slane %v2143, 4
        %v2163 = vsel %vm1568, %v2155, %v2162
        %v2164 = vrot.slane %v2159, 4
        %v2165 = vsel %vm1568, %v2164, %v2147
        %v2166 = vrot.slane %v2147, 4
        %v2167 = vsel %vm1568, %v2159, %v2166
        %v2168 = vpack.c.bf16 %v2107, %v2107
        %v2169 = vpack.c.bf16 %v2161, %v2161
        %v2170 = vpack.c.bf16 %v2109, %v2109
        %v2171 = vpack.c.bf16 %v2163, %v2163
        %v2172 = vpack.c.bf16 %v2111, %v2111
        %v2173 = vpack.c.bf16 %v2165, %v2165
        %v2174 = vpack.c.bf16 %v2113, %v2113
        %v2175 = vpack.c.bf16 %v2167, %v2167
        %v2176 = vsel %vm1568, %v1882, %v1863
        %v2178 = vunpack.c.l.s4 1983009808
        %v2179 = vunpack.c.0.s8 %v2178
        %v2180 = vperm.slane %v2176, %v2179
        %v2181 = vrot.slane %v1883, 4
        %v2182 = vsel %vm1568, %v2181, %v1881
        %v2184 = vunpack.c.l.s4 1983009808
        %v2185 = vunpack.c.0.s8 %v2184
        %v2186 = vperm.slane %v2182, %v2185
        %v2187 = vsel %vm1568, %v1886, %v1875
        %v2189 = vunpack.c.l.s4 1983009808
        %v2190 = vunpack.c.0.s8 %v2189
        %v2191 = vperm.slane %v2187, %v2190
        %v2192 = vrot.slane %v1887, 4
        %v2193 = vsel %vm1568, %v2192, %v1885
        %v2195 = vunpack.c.l.s4 1983009808
        %v2196 = vunpack.c.0.s8 %v2195
        %v2197 = vperm.slane %v2193, %v2196
        %v2198 = vrot.slane %v2186, 4
        %v2199 = vsel %vm1568, %v2198, %v2180
        %v2200 = vrot.slane %v2180, 4
        %v2201 = vsel %vm1568, %v2186, %v2200
        %v2203 = vunpack.c.l.s4 1934713408
        %v2204 = vunpack.c.0.s8 %v2203
        %v2205 = vperm.slane %v2199, %v2204
        %v2207 = vunpack.c.l.s4 1934713408
        %v2208 = vunpack.c.0.s8 %v2207
        %v2209 = vperm.slane %v2201, %v2208
        %v2210 = vrot.slane %v2197, 4
        %v2211 = vsel %vm1568, %v2210, %v2191
        %v2212 = vrot.slane %v2191, 4
        %v2213 = vsel %vm1568, %v2197, %v2212
        %v2215 = vunpack.c.l.s4 1934713408
        %v2216 = vunpack.c.0.s8 %v2215
        %v2217 = vperm.slane %v2211, %v2216
        %v2219 = vunpack.c.l.s4 1934713408
        %v2220 = vunpack.c.0.s8 %v2219
        %v2221 = vperm.slane %v2213, %v2220
        %v2222 = vrot.slane %v2217, 4
        %v2223 = vsel %vm1568, %v2222, %v2205
        %v2224 = vrot.slane %v2205, 4
        %v2225 = vsel %vm1568, %v2217, %v2224
        %v2226 = vrot.slane %v2221, 4
        %v2227 = vsel %vm1568, %v2226, %v2209
        %v2228 = vrot.slane %v2209, 4
        %v2229 = vsel %vm1568, %v2221, %v2228
        %v2230 = vsel %vm1568, %v1938, %v1919
        %v2232 = vunpack.c.l.s4 1983009808
        %v2233 = vunpack.c.0.s8 %v2232
        %v2234 = vperm.slane %v2230, %v2233
        %v2235 = vrot.slane %v1939, 4
        %v2236 = vsel %vm1568, %v2235, %v1937
        %v2238 = vunpack.c.l.s4 1983009808
        %v2239 = vunpack.c.0.s8 %v2238
        %v2240 = vperm.slane %v2236, %v2239
        %v2241 = vsel %vm1568, %v1942, %v1931
        %v2243 = vunpack.c.l.s4 1983009808
        %v2244 = vunpack.c.0.s8 %v2243
        %v2245 = vperm.slane %v2241, %v2244
        %v2246 = vrot.slane %v1943, 4
        %v2247 = vsel %vm1568, %v2246, %v1941
        %v2249 = vunpack.c.l.s4 1983009808
        %v2250 = vunpack.c.0.s8 %v2249
        %v2251 = vperm.slane %v2247, %v2250
        %v2252 = vrot.slane %v2240, 4
        %v2253 = vsel %vm1568, %v2252, %v2234
        %v2254 = vrot.slane %v2234, 4
        %v2255 = vsel %vm1568, %v2240, %v2254
        %v2257 = vunpack.c.l.s4 1934713408
        %v2258 = vunpack.c.0.s8 %v2257
        %v2259 = vperm.slane %v2253, %v2258
        %v2261 = vunpack.c.l.s4 1934713408
        %v2262 = vunpack.c.0.s8 %v2261
        %v2263 = vperm.slane %v2255, %v2262
        %v2264 = vrot.slane %v2251, 4
        %v2265 = vsel %vm1568, %v2264, %v2245
        %v2266 = vrot.slane %v2245, 4
        %v2267 = vsel %vm1568, %v2251, %v2266
        %v2269 = vunpack.c.l.s4 1934713408
        %v2270 = vunpack.c.0.s8 %v2269
        %v2271 = vperm.slane %v2265, %v2270
        %v2273 = vunpack.c.l.s4 1934713408
        %v2274 = vunpack.c.0.s8 %v2273
        %v2275 = vperm.slane %v2267, %v2274
        %v2276 = vrot.slane %v2271, 4
        %v2277 = vsel %vm1568, %v2276, %v2259
        %v2278 = vrot.slane %v2259, 4
        %v2279 = vsel %vm1568, %v2271, %v2278
        %v2280 = vrot.slane %v2275, 4
        %v2281 = vsel %vm1568, %v2280, %v2263
        %v2282 = vrot.slane %v2263, 4
        %v2283 = vsel %vm1568, %v2275, %v2282
        %v2284 = vpack.c.bf16 %v2223, %v2223
        %v2285 = vpack.c.bf16 %v2277, %v2277
        %v2286 = vpack.c.bf16 %v2225, %v2225
        %v2287 = vpack.c.bf16 %v2279, %v2279
        %v2288 = vpack.c.bf16 %v2227, %v2227
        %v2289 = vpack.c.bf16 %v2281, %v2281
        %v2290 = vpack.c.bf16 %v2229, %v2229
        %v2291 = vpack.c.bf16 %v2283, %v2283
        %v2294 = vunpack.c.l.b16 %v2052
        %v2295 = vunpack.c.l.b16 %v2053
        %v2296 = vpack.c.b16 %v2295, %v2294
        %v2299 = vunpack.c.l.b16 %v2168
        %v2300 = vunpack.c.l.b16 %v2169
        %v2301 = vpack.c.b16 %v2300, %v2299
        %vm2302 = vcmask 261120
        %v2304 = vsel %vm2302, %v2296, 0
        %v2307 = vsel %vm2302, %v2301, 0
        %2309 = vmatpush.bf16.xpose.msra.mxu0 0
        %2310 = vmatpush.bf16.xpose.msra.mxu0 0
        %2311 = vmatpush.bf16.xpose.msra.mxu0 0
        %2312 = vmatpush.bf16.xpose.msra.mxu0 0
        %2313 = vmatpush.bf16.xpose.msra.mxu0 0
        %2314 = vmatpush.bf16.xpose.msra.mxu0 0
        %2315 = vmatpush.bf16.xpose.msra.mxu0 0
        %2316 = vmatpush.bf16.xpose.msra.mxu0 %v2307
        %2317 = vmatmul.bf16.gmra.mxu0 %v2304
        %v2318 = vpop.f32.mrf.mxu0
        %v2319 = vadd.f32 0.0, %v2318
        %v2320 = vpop.f32.mrf.mxu0
        %v2321 = vadd.f32 0.0, %v2320
        %2322 = vdwg.mxu0
        %v2325 = vunpack.c.l.b16 %v2054
        %v2326 = vunpack.c.l.b16 %v2055
        %v2327 = vpack.c.b16 %v2326, %v2325
        %v2330 = vunpack.c.l.b16 %v2170
        %v2331 = vunpack.c.l.b16 %v2171
        %v2332 = vpack.c.b16 %v2331, %v2330
        %v2334 = vsel %vm2302, %v2327, 0
        %v2337 = vsel %vm2302, %v2332, 0
        %2339 = vmatpush.bf16.xpose.msra.mxu0 0
        %2340 = vmatpush.bf16.xpose.msra.mxu0 0
        %2341 = vmatpush.bf16.xpose.msra.mxu0 0
        %2342 = vmatpush.bf16.xpose.msra.mxu0 0
        %2343 = vmatpush.bf16.xpose.msra.mxu0 0
        %2344 = vmatpush.bf16.xpose.msra.mxu0 0
        %2345 = vmatpush.bf16.xpose.msra.mxu0 0
        %2346 = vmatpush.bf16.xpose.msra.mxu0 %v2337
        %2347 = vmatmul.bf16.gmra.mxu0 %v2334
        %v2348 = vpop.f32.mrf.mxu0
        %v2349 = vadd.f32 0.0, %v2348
        %v2350 = vpop.f32.mrf.mxu0
        %v2351 = vadd.f32 0.0, %v2350
        %2352 = vdwg.mxu0
        %v2355 = vunpack.c.l.b16 %v2056
        %v2356 = vunpack.c.l.b16 %v2057
        %v2357 = vpack.c.b16 %v2356, %v2355
        %v2360 = vunpack.c.l.b16 %v2172
        %v2361 = vunpack.c.l.b16 %v2173
        %v2362 = vpack.c.b16 %v2361, %v2360
        %v2364 = vsel %vm2302, %v2357, 0
        %v2367 = vsel %vm2302, %v2362, 0
        %2369 = vmatpush.bf16.xpose.msra.mxu0 0
        %2370 = vmatpush.bf16.xpose.msra.mxu0 0
        %2371 = vmatpush.bf16.xpose.msra.mxu0 0
        %2372 = vmatpush.bf16.xpose.msra.mxu0 0
        %2373 = vmatpush.bf16.xpose.msra.mxu0 0
        %2374 = vmatpush.bf16.xpose.msra.mxu0 0
        %2375 = vmatpush.bf16.xpose.msra.mxu0 0
        %2376 = vmatpush.bf16.xpose.msra.mxu0 %v2367
        %2377 = vmatmul.bf16.gmra.mxu0 %v2364
        %v2378 = vpop.f32.mrf.mxu0
        %v2379 = vadd.f32 0.0, %v2378
        %v2380 = vpop.f32.mrf.mxu0
        %v2381 = vadd.f32 0.0, %v2380
        %2382 = vdwg.mxu0
        %v2385 = vunpack.c.l.b16 %v2058
        %v2386 = vunpack.c.l.b16 %v2059
        %v2387 = vpack.c.b16 %v2386, %v2385
        %v2390 = vunpack.c.l.b16 %v2174
        %v2391 = vunpack.c.l.b16 %v2175
        %v2392 = vpack.c.b16 %v2391, %v2390
        %v2394 = vsel %vm2302, %v2387, 0
        %v2397 = vsel %vm2302, %v2392, 0
        %2399 = vmatpush.bf16.xpose.msra.mxu0 0
        %2400 = vmatpush.bf16.xpose.msra.mxu0 0
        %2401 = vmatpush.bf16.xpose.msra.mxu0 0
        %2402 = vmatpush.bf16.xpose.msra.mxu0 0
        %2403 = vmatpush.bf16.xpose.msra.mxu0 0
        %2404 = vmatpush.bf16.xpose.msra.mxu0 0
        %2405 = vmatpush.bf16.xpose.msra.mxu0 0
        %2406 = vmatpush.bf16.xpose.msra.mxu0 %v2397
        %2407 = vmatmul.bf16.gmra.mxu0 %v2394
        %v2408 = vpop.f32.mrf.mxu0
        %v2409 = vadd.f32 0.0, %v2408
        %v2410 = vpop.f32.mrf.mxu0
        %v2411 = vadd.f32 0.0, %v2410
        %2412 = vdwg.mxu0
        %v2413 = vmul.f32 %v2319, 0.17677669
        %v2414 = vmul.f32 %v2321, 0.17677669
        %v2415 = vmul.f32 %v2349, 0.17677669
        %v2416 = vmul.f32 %v2351, 0.17677669
        %v2417 = vmul.f32 %v2379, 0.17677669
        %v2418 = vmul.f32 %v2381, 0.17677669
        %v2419 = vmul.f32 %v2409, 0.17677669
        %v2420 = vmul.f32 %v2411, 0.17677669
        %v2421 = vld [vmem:[%s835] sm:$0x1]
        %vm2422 = vcmp.gt.f32.partialorder %v2421, 0.0
        %v2423 = vsel %vm2422, 1, 0
        %v2424 = vperm.slane %v2423, 0
        %vm2425 = vcmp.eq.s32.totalorder %v2424, 1
        %v2426 = vsel %vm2425, %v2413, -1e+09
        %v2427 = vsel %vm2425, %v2414, -1e+09
        %v2428 = vsel %vm2425, %v2415, -1e+09
        %v2429 = vsel %vm2425, %v2416, -1e+09
        %v2430 = vsel %vm2425, %v2417, -1e+09
        %v2431 = vsel %vm2425, %v2418, -1e+09
        %v2432 = vsel %vm2425, %v2419, -1e+09
        %v2433 = vsel %vm2425, %v2420, -1e+09
        %vm2434 = vcmask 130048
        %v2435 = vsel %vm2434, %v2426, -inf
        %2436 = vmax.xlane.f32.xlu0 %v2435
        %v2437 = vpop.xlane.xlu0 %2436
        %v2438 = vsel %vm2434, %v2427, -inf
        %2439 = vmax.xlane.f32.xlu0 %v2438
        %v2440 = vpop.xlane.xlu0 %2439
        %v2441 = vsel %vm2434, %v2428, -inf
        %2442 = vmax.xlane.f32.xlu0 %v2441
        %v2443 = vpop.xlane.xlu0 %2442
        %v2444 = vsel %vm2434, %v2429, -inf
        %2445 = vmax.xlane.f32.xlu0 %v2444
        %v2446 = vpop.xlane.xlu0 %2445
        %v2447 = vsel %vm2434, %v2430, -inf
        %2448 = vmax.xlane.f32.xlu0 %v2447
        %v2449 = vpop.xlane.xlu0 %2448
        %v2450 = vsel %vm2434, %v2431, -inf
        %2451 = vmax.xlane.f32.xlu0 %v2450
        %v2452 = vpop.xlane.xlu0 %2451
        %v2453 = vsel %vm2434, %v2432, -inf
        %2454 = vmax.xlane.f32.xlu0 %v2453
        %v2455 = vpop.xlane.xlu0 %2454
        %v2456 = vsel %vm2434, %v2433, -inf
        %2457 = vmax.xlane.f32.xlu0 %v2456
        %v2458 = vpop.xlane.xlu0 %2457
        %v2459 = vsub.f32 %v2426, %v2437
        %v2460 = vsub.f32 %v2427, %v2440
        %v2461 = vsub.f32 %v2428, %v2443
        %v2462 = vsub.f32 %v2429, %v2446
        %v2463 = vsub.f32 %v2430, %v2449
        %v2464 = vsub.f32 %v2431, %v2452
        %v2465 = vsub.f32 %v2432, %v2455
        %v2466 = vsub.f32 %v2433, %v2458
        %v2467 = vmul.f32 %v2459, 1.442695
        %v2468 = vpow.pop %v2467
        %v2469 = vmul.f32 %v2460, 1.442695
        %v2470 = vpow.pop %v2469
        %v2471 = vmul.f32 %v2461, 1.442695
        %v2472 = vpow.pop %v2471
        %v2473 = vmul.f32 %v2462, 1.442695
        %v2474 = vpow.pop %v2473
        %v2475 = vmul.f32 %v2463, 1.442695
        %v2476 = vpow.pop %v2475
        %v2477 = vmul.f32 %v2464, 1.442695
        %v2478 = vpow.pop %v2477
        %v2479 = vmul.f32 %v2465, 1.442695
        %v2480 = vpow.pop %v2479
        %v2481 = vmul.f32 %v2466, 1.442695
        %v2482 = vpow.pop %v2481
        %v2483 = vsel %vm2434, %v2468, 0.0
        %2484 = vadd.xlane.f32.xlu0 %v2483
        %v2485 = vpop.xlane.xlu0 %2484
        %v2486 = vsel %vm2434, %v2470, 0.0
        %2487 = vadd.xlane.f32.xlu0 %v2486
        %v2488 = vpop.xlane.xlu0 %2487
        %v2489 = vsel %vm2434, %v2472, 0.0
        %2490 = vadd.xlane.f32.xlu0 %v2489
        %v2491 = vpop.xlane.xlu0 %2490
        %v2492 = vsel %vm2434, %v2474, 0.0
        %2493 = vadd.xlane.f32.xlu0 %v2492
        %v2494 = vpop.xlane.xlu0 %2493
        %v2495 = vsel %vm2434, %v2476, 0.0
        %2496 = vadd.xlane.f32.xlu0 %v2495
        %v2497 = vpop.xlane.xlu0 %2496
        %v2498 = vsel %vm2434, %v2478, 0.0
        %2499 = vadd.xlane.f32.xlu0 %v2498
        %v2500 = vpop.xlane.xlu0 %2499
        %v2501 = vsel %vm2434, %v2480, 0.0
        %2502 = vadd.xlane.f32.xlu0 %v2501
        %v2503 = vpop.xlane.xlu0 %2502
        %v2504 = vsel %vm2434, %v2482, 0.0
        %2505 = vadd.xlane.f32.xlu0 %v2504
        %v2506 = vpop.xlane.xlu0 %2505
        %v2507 = vrcp.pop %v2485
        %v2508 = vmul.f32 %v2485, %v2507
        %v2509 = vsub.f32 1.0, %v2508
        %v2510 = vmul.f32 %v2507, %v2509
        %v2511 = vadd.f32 %v2507, %v2510
        %vm2512 = vweird.f32 %v2485
        %vm2513 = vweird.f32 %v2507
        %vm2514 = vmor %vm2512, %vm2513
        %v2515 = vsel %vm2514, %v2507, %v2511
        %v2516 = vand.u32 2147483647, %v2485
        %vm2517 = vcmp.eq.f32.partialorder %v2516, 8.507059e+37
        %v2518 = vand.u32 %v2485, 2147483648
        %v2519 = vor.u32 1.1754944e-38, %v2518
        %v2520 = vsel %vm2517, %v2519, %v2515
        %v2521 = vmul.f32 %v2468, %v2520
        %v2522 = vrcp.pop %v2488
        %v2523 = vmul.f32 %v2488, %v2522
        %v2524 = vsub.f32 1.0, %v2523
        %v2525 = vmul.f32 %v2522, %v2524
        %v2526 = vadd.f32 %v2522, %v2525
        %vm2527 = vweird.f32 %v2488
        %vm2528 = vweird.f32 %v2522
        %vm2529 = vmor %vm2527, %vm2528
        %v2530 = vsel %vm2529, %v2522, %v2526
        %v2531 = vand.u32 2147483647, %v2488
        %vm2532 = vcmp.eq.f32.partialorder %v2531, 8.507059e+37
        %v2533 = vand.u32 %v2488, 2147483648
        %v2534 = vor.u32 1.1754944e-38, %v2533
        %v2535 = vsel %vm2532, %v2534, %v2530
        %v2536 = vmul.f32 %v2470, %v2535
        %v2537 = vrcp.pop %v2491
        %v2538 = vmul.f32 %v2491, %v2537
        %v2539 = vsub.f32 1.0, %v2538
        %v2540 = vmul.f32 %v2537, %v2539
        %v2541 = vadd.f32 %v2537, %v2540
        %vm2542 = vweird.f32 %v2491
        %vm2543 = vweird.f32 %v2537
        %vm2544 = vmor %vm2542, %vm2543
        %v2545 = vsel %vm2544, %v2537, %v2541
        %v2546 = vand.u32 2147483647, %v2491
        %vm2547 = vcmp.eq.f32.partialorder %v2546, 8.507059e+37
        %v2548 = vand.u32 %v2491, 2147483648
        %v2549 = vor.u32 1.1754944e-38, %v2548
        %v2550 = vsel %vm2547, %v2549, %v2545
        %v2551 = vmul.f32 %v2472, %v2550
        %v2552 = vrcp.pop %v2494
        %v2553 = vmul.f32 %v2494, %v2552
        %v2554 = vsub.f32 1.0, %v2553
        %v2555 = vmul.f32 %v2552, %v2554
        %v2556 = vadd.f32 %v2552, %v2555
        %vm2557 = vweird.f32 %v2494
        %vm2558 = vweird.f32 %v2552
        %vm2559 = vmor %vm2557, %vm2558
        %v2560 = vsel %vm2559, %v2552, %v2556
        %v2561 = vand.u32 2147483647, %v2494
        %vm2562 = vcmp.eq.f32.partialorder %v2561, 8.507059e+37
        %v2563 = vand.u32 %v2494, 2147483648
        %v2564 = vor.u32 1.1754944e-38, %v2563
        %v2565 = vsel %vm2562, %v2564, %v2560
        %v2566 = vmul.f32 %v2474, %v2565
        %v2567 = vrcp.pop %v2497
        %v2568 = vmul.f32 %v2497, %v2567
        %v2569 = vsub.f32 1.0, %v2568
        %v2570 = vmul.f32 %v2567, %v2569
        %v2571 = vadd.f32 %v2567, %v2570
        %vm2572 = vweird.f32 %v2497
        %vm2573 = vweird.f32 %v2567
        %vm2574 = vmor %vm2572, %vm2573
        %v2575 = vsel %vm2574, %v2567, %v2571
        %v2576 = vand.u32 2147483647, %v2497
        %vm2577 = vcmp.eq.f32.partialorder %v2576, 8.507059e+37
        %v2578 = vand.u32 %v2497, 2147483648
        %v2579 = vor.u32 1.1754944e-38, %v2578
        %v2580 = vsel %vm2577, %v2579, %v2575
        %v2581 = vmul.f32 %v2476, %v2580
        %v2582 = vrcp.pop %v2500
        %v2583 = vmul.f32 %v2500, %v2582
        %v2584 = vsub.f32 1.0, %v2583
        %v2585 = vmul.f32 %v2582, %v2584
        %v2586 = vadd.f32 %v2582, %v2585
        %vm2587 = vweird.f32 %v2500
        %vm2588 = vweird.f32 %v2582
        %vm2589 = vmor %vm2587, %vm2588
        %v2590 = vsel %vm2589, %v2582, %v2586
        %v2591 = vand.u32 2147483647, %v2500
        %vm2592 = vcmp.eq.f32.partialorder %v2591, 8.507059e+37
        %v2593 = vand.u32 %v2500, 2147483648
        %v2594 = vor.u32 1.1754944e-38, %v2593
        %v2595 = vsel %vm2592, %v2594, %v2590
        %v2596 = vmul.f32 %v2478, %v2595
        %v2597 = vrcp.pop %v2503
        %v2598 = vmul.f32 %v2503, %v2597
        %v2599 = vsub.f32 1.0, %v2598
        %v2600 = vmul.f32 %v2597, %v2599
        %v2601 = vadd.f32 %v2597, %v2600
        %vm2602 = vweird.f32 %v2503
        %vm2603 = vweird.f32 %v2597
        %vm2604 = vmor %vm2602, %vm2603
        %v2605 = vsel %vm2604, %v2597, %v2601
        %v2606 = vand.u32 2147483647, %v2503
        %vm2607 = vcmp.eq.f32.partialorder %v2606, 8.507059e+37
        %v2608 = vand.u32 %v2503, 2147483648
        %v2609 = vor.u32 1.1754944e-38, %v2608
        %v2610 = vsel %vm2607, %v2609, %v2605
        %v2611 = vmul.f32 %v2480, %v2610
        %v2612 = vrcp.pop %v2506
        %v2613 = vmul.f32 %v2506, %v2612
        %v2614 = vsub.f32 1.0, %v2613
        %v2615 = vmul.f32 %v2612, %v2614
        %v2616 = vadd.f32 %v2612, %v2615
        %vm2617 = vweird.f32 %v2506
        %vm2618 = vweird.f32 %v2612
        %vm2619 = vmor %vm2617, %vm2618
        %v2620 = vsel %vm2619, %v2612, %v2616
        %v2621 = vand.u32 2147483647, %v2506
        %vm2622 = vcmp.eq.f32.partialorder %v2621, 8.507059e+37
        %v2623 = vand.u32 %v2506, 2147483648
        %v2624 = vor.u32 1.1754944e-38, %v2623
        %v2625 = vsel %vm2622, %v2624, %v2620
        %v2626 = vmul.f32 %v2482, %v2625
        %v2627 = vpack.c.bf16 %v2521, %v2521
        %v2628 = vpack.c.bf16 %v2536, %v2536
        %v2629 = vpack.c.bf16 %v2551, %v2551
        %v2630 = vpack.c.bf16 %v2566, %v2566
        %v2631 = vpack.c.bf16 %v2581, %v2581
        %v2632 = vpack.c.bf16 %v2596, %v2596
        %v2633 = vpack.c.bf16 %v2611, %v2611
        %v2634 = vpack.c.bf16 %v2626, %v2626
        %v2637 = vunpack.c.l.b16 %v2627
        %v2638 = vunpack.c.l.b16 %v2628
        %v2639 = vpack.c.b16 %v2638, %v2637
        %v2642 = vunpack.c.l.b16 %v2284
        %v2643 = vunpack.c.l.b16 %v2285
        %v2644 = vpack.c.b16 %v2643, %v2642
        %v2647 = vsel %vm2434, %v2639, 0
        %2649 = vmatpush.bf16.msra.mxu0 0
        %2650 = vmatpush.bf16.msra.mxu0 0
        %2651 = vmatpush.bf16.msra.mxu0 0
        %2652 = vmatpush.bf16.msra.mxu0 0
        %2653 = vmatpush.bf16.msra.mxu0 0
        %2654 = vmatpush.bf16.msra.mxu0 0
        %2655 = vmatpush.bf16.msra.mxu0 0
        %2656 = vmatpush.bf16.msra.mxu0 %v2644
        %2657 = vmatmul.bf16.gmra.mxu0 %v2647
        %v2658 = vpop.f32.mrf.mxu0
        %v2659 = vadd.f32 0.0, %v2658
        %v2660 = vpop.f32.mrf.mxu0
        %v2661 = vadd.f32 0.0, %v2660
        %2662 = vdwg.mxu0
        %v2665 = vunpack.c.l.b16 %v2629
        %v2666 = vunpack.c.l.b16 %v2630
        %v2667 = vpack.c.b16 %v2666, %v2665
        %v2670 = vunpack.c.l.b16 %v2286
        %v2671 = vunpack.c.l.b16 %v2287
        %v2672 = vpack.c.b16 %v2671, %v2670
        %v2675 = vsel %vm2434, %v2667, 0
        %2677 = vmatpush.bf16.msra.mxu0 0
        %2678 = vmatpush.bf16.msra.mxu0 0
        %2679 = vmatpush.bf16.msra.mxu0 0
        %2680 = vmatpush.bf16.msra.mxu0 0
        %2681 = vmatpush.bf16.msra.mxu0 0
        %2682 = vmatpush.bf16.msra.mxu0 0
        %2683 = vmatpush.bf16.msra.mxu0 0
        %2684 = vmatpush.bf16.msra.mxu0 %v2672
        %2685 = vmatmul.bf16.gmra.mxu0 %v2675
        %v2686 = vpop.f32.mrf.mxu0
        %v2687 = vadd.f32 0.0, %v2686
        %v2688 = vpop.f32.mrf.mxu0
        %v2689 = vadd.f32 0.0, %v2688
        %2690 = vdwg.mxu0
        %v2693 = vunpack.c.l.b16 %v2631
        %v2694 = vunpack.c.l.b16 %v2632
        %v2695 = vpack.c.b16 %v2694, %v2693
        %v2698 = vunpack.c.l.b16 %v2288
        %v2699 = vunpack.c.l.b16 %v2289
        %v2700 = vpack.c.b16 %v2699, %v2698
        %v2703 = vsel %vm2434, %v2695, 0
        %2705 = vmatpush.bf16.msra.mxu0 0
        %2706 = vmatpush.bf16.msra.mxu0 0
        %2707 = vmatpush.bf16.msra.mxu0 0
        %2708 = vmatpush.bf16.msra.mxu0 0
        %2709 = vmatpush.bf16.msra.mxu0 0
        %2710 = vmatpush.bf16.msra.mxu0 0
        %2711 = vmatpush.bf16.msra.mxu0 0
        %2712 = vmatpush.bf16.msra.mxu0 %v2700
        %2713 = vmatmul.bf16.gmra.mxu0 %v2703
        %v2714 = vpop.f32.mrf.mxu0
        %v2715 = vadd.f32 0.0, %v2714
        %v2716 = vpop.f32.mrf.mxu0
        %v2717 = vadd.f32 0.0, %v2716
        %2718 = vdwg.mxu0
        %v2721 = vunpack.c.l.b16 %v2633
        %v2722 = vunpack.c.l.b16 %v2634
        %v2723 = vpack.c.b16 %v2722, %v2721
        %v2726 = vunpack.c.l.b16 %v2290
        %v2727 = vunpack.c.l.b16 %v2291
        %v2728 = vpack.c.b16 %v2727, %v2726
        %v2731 = vsel %vm2434, %v2723, 0
        %2733 = vmatpush.bf16.msra.mxu0 0
        %2734 = vmatpush.bf16.msra.mxu0 0
        %2735 = vmatpush.bf16.msra.mxu0 0
        %2736 = vmatpush.bf16.msra.mxu0 0
        %2737 = vmatpush.bf16.msra.mxu0 0
        %2738 = vmatpush.bf16.msra.mxu0 0
        %2739 = vmatpush.bf16.msra.mxu0 0
        %2740 = vmatpush.bf16.msra.mxu0 %v2728
        %2741 = vmatmul.bf16.gmra.mxu0 %v2731
        %v2742 = vpop.f32.mrf.mxu0
        %v2743 = vadd.f32 0.0, %v2742
        %v2744 = vpop.f32.mrf.mxu0
        %v2745 = vadd.f32 0.0, %v2744
        %2746 = vdwg.mxu0
        %v2747 = vrot.slane %v2715, 4
        %v2748 = vsel %vm1568, %v2747, %v2659
        %v2749 = vrot.slane %v2659, 4
        %v2750 = vsel %vm1568, %v2715, %v2749
        %v2752 = vunpack.c.l.s4 1983009808
        %v2753 = vunpack.c.0.s8 %v2752
        %v2754 = vperm.slane %v2748, %v2753
        %v2756 = vunpack.c.l.s4 1983009808
        %v2757 = vunpack.c.0.s8 %v2756
        %v2758 = vperm.slane %v2750, %v2757
        %v2759 = vrot.slane %v2743, 4
        %v2760 = vsel %vm1568, %v2759, %v2687
        %v2761 = vrot.slane %v2687, 4
        %v2762 = vsel %vm1568, %v2743, %v2761
        %v2764 = vunpack.c.l.s4 1983009808
        %v2765 = vunpack.c.0.s8 %v2764
        %v2766 = vperm.slane %v2760, %v2765
        %v2768 = vunpack.c.l.s4 1983009808
        %v2769 = vunpack.c.0.s8 %v2768
        %v2770 = vperm.slane %v2762, %v2769
        %v2771 = vrot.slane %v2766, 4
        %v2772 = vsel %vm1568, %v2771, %v2754
        %v2773 = vrot.slane %v2754, 4
        %v2774 = vsel %vm1568, %v2766, %v2773
        %v2776 = vunpack.c.l.s4 1934713408
        %v2777 = vunpack.c.0.s8 %v2776
        %v2778 = vperm.slane %v2772, %v2777
        %v2780 = vunpack.c.l.s4 1934713408
        %v2781 = vunpack.c.0.s8 %v2780
        %v2782 = vperm.slane %v2774, %v2781
        %v2783 = vrot.slane %v2770, 4
        %v2784 = vsel %vm1568, %v2783, %v2758
        %v2785 = vrot.slane %v2758, 4
        %v2786 = vsel %vm1568, %v2770, %v2785
        %v2788 = vunpack.c.l.s4 1934713408
        %v2789 = vunpack.c.0.s8 %v2788
        %v2790 = vperm.slane %v2784, %v2789
        %v2792 = vunpack.c.l.s4 1934713408
        %v2793 = vunpack.c.0.s8 %v2792
        %v2794 = vperm.slane %v2786, %v2793
        %v2795 = vrot.slane %v2778, 4
        %v2796 = vsel %vm1568, 0.0, %v2795
        %v2797 = vrot.slane %v2782, 4
        %v2798 = vsel %vm1568, 0.0, %v2797
        %v2799 = vrot.slane %v2790, 4
        %v2800 = vsel %vm1568, 0.0, %v2799
        %v2801 = vrot.slane %v2794, 4
        %v2802 = vsel %vm1568, 0.0, %v2801
        %v2803 = vrot.slane %v2717, 4
        %v2804 = vsel %vm1568, %v2803, %v2661
        %v2805 = vrot.slane %v2661, 4
        %v2806 = vsel %vm1568, %v2717, %v2805
        %v2808 = vunpack.c.l.s4 1983009808
        %v2809 = vunpack.c.0.s8 %v2808
        %v2810 = vperm.slane %v2804, %v2809
        %v2812 = vunpack.c.l.s4 1983009808
        %v2813 = vunpack.c.0.s8 %v2812
        %v2814 = vperm.slane %v2806, %v2813
        %v2815 = vrot.slane %v2745, 4
        %v2816 = vsel %vm1568, %v2815, %v2689
        %v2817 = vrot.slane %v2689, 4
        %v2818 = vsel %vm1568, %v2745, %v2817
        %v2820 = vunpack.c.l.s4 1983009808
        %v2821 = vunpack.c.0.s8 %v2820
        %v2822 = vperm.slane %v2816, %v2821
        %v2824 = vunpack.c.l.s4 1983009808
        %v2825 = vunpack.c.0.s8 %v2824
        %v2826 = vperm.slane %v2818, %v2825
        %v2827 = vrot.slane %v2822, 4
        %v2828 = vsel %vm1568, %v2827, %v2810
        %v2829 = vrot.slane %v2810, 4
        %v2830 = vsel %vm1568, %v2822, %v2829
        %v2832 = vunpack.c.l.s4 1934713408
        %v2833 = vunpack.c.0.s8 %v2832
        %v2834 = vperm.slane %v2828, %v2833
        %v2836 = vunpack.c.l.s4 1934713408
        %v2837 = vunpack.c.0.s8 %v2836
        %v2838 = vperm.slane %v2830, %v2837
        %v2839 = vrot.slane %v2826, 4
        %v2840 = vsel %vm1568, %v2839, %v2814
        %v2841 = vrot.slane %v2814, 4
        %v2842 = vsel %vm1568, %v2826, %v2841
        %v2844 = vunpack.c.l.s4 1934713408
        %v2845 = vunpack.c.0.s8 %v2844
        %v2846 = vperm.slane %v2840, %v2845
        %v2848 = vunpack.c.l.s4 1934713408
        %v2849 = vunpack.c.0.s8 %v2848
        %v2850 = vperm.slane %v2842, %v2849
        %v2851 = vrot.slane %v2834, 4
        %v2852 = vsel %vm1568, 0.0, %v2851
        %v2853 = vrot.slane %v2838, 4
        %v2854 = vsel %vm1568, 0.0, %v2853
        %v2855 = vrot.slane %v2846, 4
        %v2856 = vsel %vm1568, 0.0, %v2855
        %v2857 = vrot.slane %v2850, 4
        %v2858 = vsel %vm1568, 0.0, %v2857
        %v2859 = vsel %vm1568, %v2797, %v2778
        %v2861 = vunpack.c.l.s4 1983009808
        %v2862 = vunpack.c.0.s8 %v2861
        %v2863 = vperm.slane %v2859, %v2862
        %v2864 = vrot.slane %v2798, 4
        %v2865 = vsel %vm1568, %v2864, %v2796
        %v2867 = vunpack.c.l.s4 1983009808
        %v2868 = vunpack.c.0.s8 %v2867
        %v2869 = vperm.slane %v2865, %v2868
        %v2870 = vsel %vm1568, %v2801, %v2790
        %v2872 = vunpack.c.l.s4 1983009808
        %v2873 = vunpack.c.0.s8 %v2872
        %v2874 = vperm.slane %v2870, %v2873
        %v2875 = vrot.slane %v2802, 4
        %v2876 = vsel %vm1568, %v2875, %v2800
        %v2878 = vunpack.c.l.s4 1983009808
        %v2879 = vunpack.c.0.s8 %v2878
        %v2880 = vperm.slane %v2876, %v2879
        %v2881 = vrot.slane %v2869, 4
        %v2882 = vsel %vm1568, %v2881, %v2863
        %v2883 = vrot.slane %v2863, 4
        %v2884 = vsel %vm1568, %v2869, %v2883
        %v2886 = vunpack.c.l.s4 1934713408
        %v2887 = vunpack.c.0.s8 %v2886
        %v2888 = vperm.slane %v2882, %v2887
        %v2890 = vunpack.c.l.s4 1934713408
        %v2891 = vunpack.c.0.s8 %v2890
        %v2892 = vperm.slane %v2884, %v2891
        %v2893 = vrot.slane %v2880, 4
        %v2894 = vsel %vm1568, %v2893, %v2874
        %v2895 = vrot.slane %v2874, 4
        %v2896 = vsel %vm1568, %v2880, %v2895
        %v2898 = vunpack.c.l.s4 1934713408
        %v2899 = vunpack.c.0.s8 %v2898
        %v2900 = vperm.slane %v2894, %v2899
        %v2902 = vunpack.c.l.s4 1934713408
        %v2903 = vunpack.c.0.s8 %v2902
        %v2904 = vperm.slane %v2896, %v2903
        %v2905 = vrot.slane %v2900, 4
        %v2906 = vsel %vm1568, %v2905, %v2888
        %v2907 = vrot.slane %v2888, 4
        %v2908 = vsel %vm1568, %v2900, %v2907
        %v2909 = vrot.slane %v2904, 4
        %v2910 = vsel %vm1568, %v2909, %v2892
        %v2911 = vrot.slane %v2892, 4
        %v2912 = vsel %vm1568, %v2904, %v2911
        %v2913 = vsel %vm1568, %v2853, %v2834
        %v2915 = vunpack.c.l.s4 1983009808
        %v2916 = vunpack.c.0.s8 %v2915
        %v2917 = vperm.slane %v2913, %v2916
        %v2918 = vrot.slane %v2854, 4
        %v2919 = vsel %vm1568, %v2918, %v2852
        %v2921 = vunpack.c.l.s4 1983009808
        %v2922 = vunpack.c.0.s8 %v2921
        %v2923 = vperm.slane %v2919, %v2922
        %v2924 = vsel %vm1568, %v2857, %v2846
        %v2926 = vunpack.c.l.s4 1983009808
        %v2927 = vunpack.c.0.s8 %v2926
        %v2928 = vperm.slane %v2924, %v2927
        %v2929 = vrot.slane %v2858, 4
        %v2930 = vsel %vm1568, %v2929, %v2856
        %v2932 = vunpack.c.l.s4 1983009808
        %v2933 = vunpack.c.0.s8 %v2932
        %v2934 = vperm.slane %v2930, %v2933
        %v2935 = vrot.slane %v2923, 4
        %v2936 = vsel %vm1568, %v2935, %v2917
        %v2937 = vrot.slane %v2917, 4
        %v2938 = vsel %vm1568, %v2923, %v2937
        %v2940 = vunpack.c.l.s4 1934713408
        %v2941 = vunpack.c.0.s8 %v2940
        %v2942 = vperm.slane %v2936, %v2941
        %v2944 = vunpack.c.l.s4 1934713408
        %v2945 = vunpack.c.0.s8 %v2944
        %v2946 = vperm.slane %v2938, %v2945
        %v2947 = vrot.slane %v2934, 4
        %v2948 = vsel %vm1568, %v2947, %v2928
        %v2949 = vrot.slane %v2928, 4
        %v2950 = vsel %vm1568, %v2934, %v2949
        %v2952 = vunpack.c.l.s4 1934713408
        %v2953 = vunpack.c.0.s8 %v2952
        %v2954 = vperm.slane %v2948, %v2953
        %v2956 = vunpack.c.l.s4 1934713408
        %v2957 = vunpack.c.0.s8 %v2956
        %v2958 = vperm.slane %v2950, %v2957
        %v2959 = vrot.slane %v2954, 4
        %v2960 = vsel %vm1568, %v2959, %v2942
        %v2961 = vrot.slane %v2942, 4
        %v2962 = vsel %vm1568, %v2954, %v2961
        %v2963 = vrot.slane %v2958, 4
        %v2964 = vsel %vm1568, %v2963, %v2946
        %v2965 = vrot.slane %v2946, 4
        %v2966 = vsel %vm1568, %v2958, %v2965
        %2969 = vrot.lane.b32.xlu0 %v2908, 32
        %v2970 = vpop.permute.xlu0 %2969
        %2971 = vrot.lane.b32.xlu0 %v2962, 32
        %v2972 = vpop.permute.xlu0 %2971
        %2977 = vrot.lane.b32.xlu0 %v2910, 64
        %v2978 = vpop.permute.xlu0 %2977
        %2979 = vrot.lane.b32.xlu0 %v2964, 64
        %v2980 = vpop.permute.xlu0 %2979
        %2985 = vrot.lane.b32.xlu0 %v2912, 96
        %v2986 = vpop.permute.xlu0 %2985
        %2987 = vrot.lane.b32.xlu0 %v2966, 96
        %v2988 = vpop.permute.xlu0 %2987
        %v2991 = vsel %vm2302, %v2906, %v2970
        %v2992 = vsel %vm2302, %v2960, %v2972
        %vm2993 = vcmask 523264
        %v2994 = vsel %vm2993, %v2991, %v2978
        %v2995 = vsel %vm2993, %v2992, %v2980
        %vm2996 = vcmask 785408
        %v2997 = vsel %vm2996, %v2994, %v2986
        %v2998 = vsel %vm2996, %v2995, %v2988
        %3001 = vrot.lane.b32.xlu0 %v1475, 96
        %v3002 = vpop.permute.xlu0 %3001
        %3003 = vrot.lane.b32.xlu0 %v1477, 96
        %v3004 = vpop.permute.xlu0 %3003
        %3007 = vrot.lane.b32.xlu0 %v1475, 64
        %v3008 = vpop.permute.xlu0 %3007
        %3009 = vrot.lane.b32.xlu0 %v1477, 64
        %v3010 = vpop.permute.xlu0 %3009
        %3013 = vrot.lane.b32.xlu0 %v1475, 32
        %v3014 = vpop.permute.xlu0 %3013
        %3015 = vrot.lane.b32.xlu0 %v1477, 32
        %v3016 = vpop.permute.xlu0 %3015
        %v3019 = vrot.slane %v3008, 4
        %v3020 = vsel %vm1568, %v3019, %v1475
        %v3021 = vrot.slane %v1475, 4
        %v3022 = vsel %vm1568, %v3008, %v3021
        %v3024 = vunpack.c.l.s4 1983009808
        %v3025 = vunpack.c.0.s8 %v3024
        %v3026 = vperm.slane %v3020, %v3025
        %v3028 = vunpack.c.l.s4 1983009808
        %v3029 = vunpack.c.0.s8 %v3028
        %v3030 = vperm.slane %v3022, %v3029
        %v3031 = vrot.slane %v3014, 4
        %v3032 = vsel %vm1568, %v3031, %v3002
        %v3033 = vrot.slane %v3002, 4
        %v3034 = vsel %vm1568, %v3014, %v3033
        %v3036 = vunpack.c.l.s4 1983009808
        %v3037 = vunpack.c.0.s8 %v3036
        %v3038 = vperm.slane %v3032, %v3037
        %v3040 = vunpack.c.l.s4 1983009808
        %v3041 = vunpack.c.0.s8 %v3040
        %v3042 = vperm.slane %v3034, %v3041
        %v3043 = vrot.slane %v3038, 4
        %v3044 = vsel %vm1568, %v3043, %v3026
        %v3045 = vrot.slane %v3026, 4
        %v3046 = vsel %vm1568, %v3038, %v3045
        %v3048 = vunpack.c.l.s4 1934713408
        %v3049 = vunpack.c.0.s8 %v3048
        %v3050 = vperm.slane %v3044, %v3049
        %v3052 = vunpack.c.l.s4 1934713408
        %v3053 = vunpack.c.0.s8 %v3052
        %v3054 = vperm.slane %v3046, %v3053
        %v3055 = vrot.slane %v3042, 4
        %v3056 = vsel %vm1568, %v3055, %v3030
        %v3057 = vrot.slane %v3030, 4
        %v3058 = vsel %vm1568, %v3042, %v3057
        %v3060 = vunpack.c.l.s4 1934713408
        %v3061 = vunpack.c.0.s8 %v3060
        %v3062 = vperm.slane %v3056, %v3061
        %v3064 = vunpack.c.l.s4 1934713408
        %v3065 = vunpack.c.0.s8 %v3064
        %v3066 = vperm.slane %v3058, %v3065
        %v3067 = vrot.slane %v3050, 4
        %v3068 = vsel %vm1568, 0.0, %v3067
        %v3069 = vrot.slane %v3054, 4
        %v3070 = vsel %vm1568, 0.0, %v3069
        %v3071 = vrot.slane %v3062, 4
        %v3072 = vsel %vm1568, 0.0, %v3071
        %v3073 = vrot.slane %v3066, 4
        %v3074 = vsel %vm1568, 0.0, %v3073
        %v3075 = vrot.slane %v3010, 4
        %v3076 = vsel %vm1568, %v3075, %v1477
        %v3077 = vrot.slane %v1477, 4
        %v3078 = vsel %vm1568, %v3010, %v3077
        %v3080 = vunpack.c.l.s4 1983009808
        %v3081 = vunpack.c.0.s8 %v3080
        %v3082 = vperm.slane %v3076, %v3081
        %v3084 = vunpack.c.l.s4 1983009808
        %v3085 = vunpack.c.0.s8 %v3084
        %v3086 = vperm.slane %v3078, %v3085
        %v3087 = vrot.slane %v3016, 4
        %v3088 = vsel %vm1568, %v3087, %v3004
        %v3089 = vrot.slane %v3004, 4
        %v3090 = vsel %vm1568, %v3016, %v3089
        %v3092 = vunpack.c.l.s4 1983009808
        %v3093 = vunpack.c.0.s8 %v3092
        %v3094 = vperm.slane %v3088, %v3093
        %v3096 = vunpack.c.l.s4 1983009808
        %v3097 = vunpack.c.0.s8 %v3096
        %v3098 = vperm.slane %v3090, %v3097
        %v3099 = vrot.slane %v3094, 4
        %v3100 = vsel %vm1568, %v3099, %v3082
        %v3101 = vrot.slane %v3082, 4
        %v3102 = vsel %vm1568, %v3094, %v3101
        %v3104 = vunpack.c.l.s4 1934713408
        %v3105 = vunpack.c.0.s8 %v3104
        %v3106 = vperm.slane %v3100, %v3105
        %v3108 = vunpack.c.l.s4 1934713408
        %v3109 = vunpack.c.0.s8 %v3108
        %v3110 = vperm.slane %v3102, %v3109
        %v3111 = vrot.slane %v3098, 4
        %v3112 = vsel %vm1568, %v3111, %v3086
        %v3113 = vrot.slane %v3086, 4
        %v3114 = vsel %vm1568, %v3098, %v3113
        %v3116 = vunpack.c.l.s4 1934713408
        %v3117 = vunpack.c.0.s8 %v3116
        %v3118 = vperm.slane %v3112, %v3117
        %v3120 = vunpack.c.l.s4 1934713408
        %v3121 = vunpack.c.0.s8 %v3120
        %v3122 = vperm.slane %v3114, %v3121
        %v3123 = vrot.slane %v3106, 4
        %v3124 = vsel %vm1568, 0.0, %v3123
        %v3125 = vrot.slane %v3110, 4
        %v3126 = vsel %vm1568, 0.0, %v3125
        %v3127 = vrot.slane %v3118, 4
        %v3128 = vsel %vm1568, 0.0, %v3127
        %v3129 = vrot.slane %v3122, 4
        %v3130 = vsel %vm1568, 0.0, %v3129
        %3133 = vrot.lane.b32.xlu0 %v1504, 96
        %v3134 = vpop.permute.xlu0 %3133
        %3135 = vrot.lane.b32.xlu0 %v1506, 96
        %v3136 = vpop.permute.xlu0 %3135
        %3139 = vrot.lane.b32.xlu0 %v1504, 64
        %v3140 = vpop.permute.xlu0 %3139
        %3141 = vrot.lane.b32.xlu0 %v1506, 64
        %v3142 = vpop.permute.xlu0 %3141
        %3145 = vrot.lane.b32.xlu0 %v1504, 32
        %v3146 = vpop.permute.xlu0 %3145
        %3147 = vrot.lane.b32.xlu0 %v1506, 32
        %v3148 = vpop.permute.xlu0 %3147
        %v3151 = vrot.slane %v3140, 4
        %v3152 = vsel %vm1568, %v3151, %v1504
        %v3153 = vrot.slane %v1504, 4
        %v3154 = vsel %vm1568, %v3140, %v3153
        %v3156 = vunpack.c.l.s4 1983009808
        %v3157 = vunpack.c.0.s8 %v3156
        %v3158 = vperm.slane %v3152, %v3157
        %v3160 = vunpack.c.l.s4 1983009808
        %v3161 = vunpack.c.0.s8 %v3160
        %v3162 = vperm.slane %v3154, %v3161
        %v3163 = vrot.slane %v3146, 4
        %v3164 = vsel %vm1568, %v3163, %v3134
        %v3165 = vrot.slane %v3134, 4
        %v3166 = vsel %vm1568, %v3146, %v3165
        %v3168 = vunpack.c.l.s4 1983009808
        %v3169 = vunpack.c.0.s8 %v3168
        %v3170 = vperm.slane %v3164, %v3169
        %v3172 = vunpack.c.l.s4 1983009808
        %v3173 = vunpack.c.0.s8 %v3172
        %v3174 = vperm.slane %v3166, %v3173
        %v3175 = vrot.slane %v3170, 4
        %v3176 = vsel %vm1568, %v3175, %v3158
        %v3177 = vrot.slane %v3158, 4
        %v3178 = vsel %vm1568, %v3170, %v3177
        %v3180 = vunpack.c.l.s4 1934713408
        %v3181 = vunpack.c.0.s8 %v3180
        %v3182 = vperm.slane %v3176, %v3181
        %v3184 = vunpack.c.l.s4 1934713408
        %v3185 = vunpack.c.0.s8 %v3184
        %v3186 = vperm.slane %v3178, %v3185
        %v3187 = vrot.slane %v3174, 4
        %v3188 = vsel %vm1568, %v3187, %v3162
        %v3189 = vrot.slane %v3162, 4
        %v3190 = vsel %vm1568, %v3174, %v3189
        %v3192 = vunpack.c.l.s4 1934713408
        %v3193 = vunpack.c.0.s8 %v3192
        %v3194 = vperm.slane %v3188, %v3193
        %v3196 = vunpack.c.l.s4 1934713408
        %v3197 = vunpack.c.0.s8 %v3196
        %v3198 = vperm.slane %v3190, %v3197
        %v3199 = vrot.slane %v3182, 4
        %v3200 = vsel %vm1568, 0.0, %v3199
        %v3201 = vrot.slane %v3186, 4
        %v3202 = vsel %vm1568, 0.0, %v3201
        %v3203 = vrot.slane %v3194, 4
        %v3204 = vsel %vm1568, 0.0, %v3203
        %v3205 = vrot.slane %v3198, 4
        %v3206 = vsel %vm1568, 0.0, %v3205
        %v3207 = vrot.slane %v3142, 4
        %v3208 = vsel %vm1568, %v3207, %v1506
        %v3209 = vrot.slane %v1506, 4
        %v3210 = vsel %vm1568, %v3142, %v3209
        %v3212 = vunpack.c.l.s4 1983009808
        %v3213 = vunpack.c.0.s8 %v3212
        %v3214 = vperm.slane %v3208, %v3213
        %v3216 = vunpack.c.l.s4 1983009808
        %v3217 = vunpack.c.0.s8 %v3216
        %v3218 = vperm.slane %v3210, %v3217
        %v3219 = vrot.slane %v3148, 4
        %v3220 = vsel %vm1568, %v3219, %v3136
        %v3221 = vrot.slane %v3136, 4
        %v3222 = vsel %vm1568, %v3148, %v3221
        %v3224 = vunpack.c.l.s4 1983009808
        %v3225 = vunpack.c.0.s8 %v3224
        %v3226 = vperm.slane %v3220, %v3225
        %v3228 = vunpack.c.l.s4 1983009808
        %v3229 = vunpack.c.0.s8 %v3228
        %v3230 = vperm.slane %v3222, %v3229
        %v3231 = vrot.slane %v3226, 4
        %v3232 = vsel %vm1568, %v3231, %v3214
        %v3233 = vrot.slane %v3214, 4
        %v3234 = vsel %vm1568, %v3226, %v3233
        %v3236 = vunpack.c.l.s4 1934713408
        %v3237 = vunpack.c.0.s8 %v3236
        %v3238 = vperm.slane %v3232, %v3237
        %v3240 = vunpack.c.l.s4 1934713408
        %v3241 = vunpack.c.0.s8 %v3240
        %v3242 = vperm.slane %v3234, %v3241
        %v3243 = vrot.slane %v3230, 4
        %v3244 = vsel %vm1568, %v3243, %v3218
        %v3245 = vrot.slane %v3218, 4
        %v3246 = vsel %vm1568, %v3230, %v3245
        %v3248 = vunpack.c.l.s4 1934713408
        %v3249 = vunpack.c.0.s8 %v3248
        %v3250 = vperm.slane %v3244, %v3249
        %v3252 = vunpack.c.l.s4 1934713408
        %v3253 = vunpack.c.0.s8 %v3252
        %v3254 = vperm.slane %v3246, %v3253
        %v3255 = vrot.slane %v3238, 4
        %v3256 = vsel %vm1568, 0.0, %v3255
        %v3257 = vrot.slane %v3242, 4
        %v3258 = vsel %vm1568, 0.0, %v3257
        %v3259 = vrot.slane %v3250, 4
        %v3260 = vsel %vm1568, 0.0, %v3259
        %v3261 = vrot.slane %v3254, 4
        %v3262 = vsel %vm1568, 0.0, %v3261
        %3265 = vrot.lane.b32.xlu0 %v1533, 96
        %v3266 = vpop.permute.xlu0 %3265
        %3267 = vrot.lane.b32.xlu0 %v1535, 96
        %v3268 = vpop.permute.xlu0 %3267
        %3271 = vrot.lane.b32.xlu0 %v1533, 64
        %v3272 = vpop.permute.xlu0 %3271
        %3273 = vrot.lane.b32.xlu0 %v1535, 64
        %v3274 = vpop.permute.xlu0 %3273
        %3277 = vrot.lane.b32.xlu0 %v1533, 32
        %v3278 = vpop.permute.xlu0 %3277
        %3279 = vrot.lane.b32.xlu0 %v1535, 32
        %v3280 = vpop.permute.xlu0 %3279
        %v3283 = vrot.slane %v3272, 4
        %v3284 = vsel %vm1568, %v3283, %v1533
        %v3285 = vrot.slane %v1533, 4
        %v3286 = vsel %vm1568, %v3272, %v3285
        %v3288 = vunpack.c.l.s4 1983009808
        %v3289 = vunpack.c.0.s8 %v3288
        %v3290 = vperm.slane %v3284, %v3289
        %v3292 = vunpack.c.l.s4 1983009808
        %v3293 = vunpack.c.0.s8 %v3292
        %v3294 = vperm.slane %v3286, %v3293
        %v3295 = vrot.slane %v3278, 4
        %v3296 = vsel %vm1568, %v3295, %v3266
        %v3297 = vrot.slane %v3266, 4
        %v3298 = vsel %vm1568, %v3278, %v3297
        %v3300 = vunpack.c.l.s4 1983009808
        %v3301 = vunpack.c.0.s8 %v3300
        %v3302 = vperm.slane %v3296, %v3301
        %v3304 = vunpack.c.l.s4 1983009808
        %v3305 = vunpack.c.0.s8 %v3304
        %v3306 = vperm.slane %v3298, %v3305
        %v3307 = vrot.slane %v3302, 4
        %v3308 = vsel %vm1568, %v3307, %v3290
        %v3309 = vrot.slane %v3290, 4
        %v3310 = vsel %vm1568, %v3302, %v3309
        %v3312 = vunpack.c.l.s4 1934713408
        %v3313 = vunpack.c.0.s8 %v3312
        %v3314 = vperm.slane %v3308, %v3313
        %v3316 = vunpack.c.l.s4 1934713408
        %v3317 = vunpack.c.0.s8 %v3316
        %v3318 = vperm.slane %v3310, %v3317
        %v3319 = vrot.slane %v3306, 4
        %v3320 = vsel %vm1568, %v3319, %v3294
        %v3321 = vrot.slane %v3294, 4
        %v3322 = vsel %vm1568, %v3306, %v3321
        %v3324 = vunpack.c.l.s4 1934713408
        %v3325 = vunpack.c.0.s8 %v3324
        %v3326 = vperm.slane %v3320, %v3325
        %v3328 = vunpack.c.l.s4 1934713408
        %v3329 = vunpack.c.0.s8 %v3328
        %v3330 = vperm.slane %v3322, %v3329
        %v3331 = vrot.slane %v3314, 4
        %v3332 = vsel %vm1568, 0.0, %v3331
        %v3333 = vrot.slane %v3318, 4
        %v3334 = vsel %vm1568, 0.0, %v3333
        %v3335 = vrot.slane %v3326, 4
        %v3336 = vsel %vm1568, 0.0, %v3335
        %v3337 = vrot.slane %v3330, 4
        %v3338 = vsel %vm1568, 0.0, %v3337
        %v3339 = vrot.slane %v3274, 4
        %v3340 = vsel %vm1568, %v3339, %v1535
        %v3341 = vrot.slane %v1535, 4
        %v3342 = vsel %vm1568, %v3274, %v3341
        %v3344 = vunpack.c.l.s4 1983009808
        %v3345 = vunpack.c.0.s8 %v3344
        %v3346 = vperm.slane %v3340, %v3345
        %v3348 = vunpack.c.l.s4 1983009808
        %v3349 = vunpack.c.0.s8 %v3348
        %v3350 = vperm.slane %v3342, %v3349
        %v3351 = vrot.slane %v3280, 4
        %v3352 = vsel %vm1568, %v3351, %v3268
        %v3353 = vrot.slane %v3268, 4
        %v3354 = vsel %vm1568, %v3280, %v3353
        %v3356 = vunpack.c.l.s4 1983009808
        %v3357 = vunpack.c.0.s8 %v3356
        %v3358 = vperm.slane %v3352, %v3357
        %v3360 = vunpack.c.l.s4 1983009808
        %v3361 = vunpack.c.0.s8 %v3360
        %v3362 = vperm.slane %v3354, %v3361
        %v3363 = vrot.slane %v3358, 4
        %v3364 = vsel %vm1568, %v3363, %v3346
        %v3365 = vrot.slane %v3346, 4
        %v3366 = vsel %vm1568, %v3358, %v3365
        %v3368 = vunpack.c.l.s4 1934713408
        %v3369 = vunpack.c.0.s8 %v3368
        %v3370 = vperm.slane %v3364, %v3369
        %v3372 = vunpack.c.l.s4 1934713408
        %v3373 = vunpack.c.0.s8 %v3372
        %v3374 = vperm.slane %v3366, %v3373
        %v3375 = vrot.slane %v3362, 4
        %v3376 = vsel %vm1568, %v3375, %v3350
        %v3377 = vrot.slane %v3350, 4
        %v3378 = vsel %vm1568, %v3362, %v3377
        %v3380 = vunpack.c.l.s4 1934713408
        %v3381 = vunpack.c.0.s8 %v3380
        %v3382 = vperm.slane %v3376, %v3381
        %v3384 = vunpack.c.l.s4 1934713408
        %v3385 = vunpack.c.0.s8 %v3384
        %v3386 = vperm.slane %v3378, %v3385
        %v3387 = vrot.slane %v3370, 4
        %v3388 = vsel %vm1568, 0.0, %v3387
        %v3389 = vrot.slane %v3374, 4
        %v3390 = vsel %vm1568, 0.0, %v3389
        %v3391 = vrot.slane %v3382, 4
        %v3392 = vsel %vm1568, 0.0, %v3391
        %v3393 = vrot.slane %v3386, 4
        %v3394 = vsel %vm1568, 0.0, %v3393
        %v3395 = vsel %vm1568, %v3069, %v3050
        %v3397 = vunpack.c.l.s4 1983009808
        %v3398 = vunpack.c.0.s8 %v3397
        %v3399 = vperm.slane %v3395, %v3398
        %v3400 = vrot.slane %v3070, 4
        %v3401 = vsel %vm1568, %v3400, %v3068
        %v3403 = vunpack.c.l.s4 1983009808
        %v3404 = vunpack.c.0.s8 %v3403
        %v3405 = vperm.slane %v3401, %v3404
        %v3406 = vsel %vm1568, %v3073, %v3062
        %v3408 = vunpack.c.l.s4 1983009808
        %v3409 = vunpack.c.0.s8 %v3408
        %v3410 = vperm.slane %v3406, %v3409
        %v3411 = vrot.slane %v3074, 4
        %v3412 = vsel %vm1568, %v3411, %v3072
        %v3414 = vunpack.c.l.s4 1983009808
        %v3415 = vunpack.c.0.s8 %v3414
        %v3416 = vperm.slane %v3412, %v3415
        %v3417 = vrot.slane %v3405, 4
        %v3418 = vsel %vm1568, %v3417, %v3399
        %v3419 = vrot.slane %v3399, 4
        %v3420 = vsel %vm1568, %v3405, %v3419
        %v3422 = vunpack.c.l.s4 1934713408
        %v3423 = vunpack.c.0.s8 %v3422
        %v3424 = vperm.slane %v3418, %v3423
        %v3426 = vunpack.c.l.s4 1934713408
        %v3427 = vunpack.c.0.s8 %v3426
        %v3428 = vperm.slane %v3420, %v3427
        %v3429 = vrot.slane %v3416, 4
        %v3430 = vsel %vm1568, %v3429, %v3410
        %v3431 = vrot.slane %v3410, 4
        %v3432 = vsel %vm1568, %v3416, %v3431
        %v3434 = vunpack.c.l.s4 1934713408
        %v3435 = vunpack.c.0.s8 %v3434
        %v3436 = vperm.slane %v3430, %v3435
        %v3438 = vunpack.c.l.s4 1934713408
        %v3439 = vunpack.c.0.s8 %v3438
        %v3440 = vperm.slane %v3432, %v3439
        %v3441 = vrot.slane %v3436, 4
        %v3442 = vsel %vm1568, %v3441, %v3424
        %v3443 = vrot.slane %v3424, 4
        %v3444 = vsel %vm1568, %v3436, %v3443
        %v3445 = vrot.slane %v3440, 4
        %v3446 = vsel %vm1568, %v3445, %v3428
        %v3447 = vrot.slane %v3428, 4
        %v3448 = vsel %vm1568, %v3440, %v3447
        %v3449 = vsel %vm1568, %v3125, %v3106
        %v3451 = vunpack.c.l.s4 1983009808
        %v3452 = vunpack.c.0.s8 %v3451
        %v3453 = vperm.slane %v3449, %v3452
        %v3454 = vrot.slane %v3126, 4
        %v3455 = vsel %vm1568, %v3454, %v3124
        %v3457 = vunpack.c.l.s4 1983009808
        %v3458 = vunpack.c.0.s8 %v3457
        %v3459 = vperm.slane %v3455, %v3458
        %v3460 = vsel %vm1568, %v3129, %v3118
        %v3462 = vunpack.c.l.s4 1983009808
        %v3463 = vunpack.c.0.s8 %v3462
        %v3464 = vperm.slane %v3460, %v3463
        %v3465 = vrot.slane %v3130, 4
        %v3466 = vsel %vm1568, %v3465, %v3128
        %v3468 = vunpack.c.l.s4 1983009808
        %v3469 = vunpack.c.0.s8 %v3468
        %v3470 = vperm.slane %v3466, %v3469
        %v3471 = vrot.slane %v3459, 4
        %v3472 = vsel %vm1568, %v3471, %v3453
        %v3473 = vrot.slane %v3453, 4
        %v3474 = vsel %vm1568, %v3459, %v3473
        %v3476 = vunpack.c.l.s4 1934713408
        %v3477 = vunpack.c.0.s8 %v3476
        %v3478 = vperm.slane %v3472, %v3477
        %v3480 = vunpack.c.l.s4 1934713408
        %v3481 = vunpack.c.0.s8 %v3480
        %v3482 = vperm.slane %v3474, %v3481
        %v3483 = vrot.slane %v3470, 4
        %v3484 = vsel %vm1568, %v3483, %v3464
        %v3485 = vrot.slane %v3464, 4
        %v3486 = vsel %vm1568, %v3470, %v3485
        %v3488 = vunpack.c.l.s4 1934713408
        %v3489 = vunpack.c.0.s8 %v3488
        %v3490 = vperm.slane %v3484, %v3489
        %v3492 = vunpack.c.l.s4 1934713408
        %v3493 = vunpack.c.0.s8 %v3492
        %v3494 = vperm.slane %v3486, %v3493
        %v3495 = vrot.slane %v3490, 4
        %v3496 = vsel %vm1568, %v3495, %v3478
        %v3497 = vrot.slane %v3478, 4
        %v3498 = vsel %vm1568, %v3490, %v3497
        %v3499 = vrot.slane %v3494, 4
        %v3500 = vsel %vm1568, %v3499, %v3482
        %v3501 = vrot.slane %v3482, 4
        %v3502 = vsel %vm1568, %v3494, %v3501
        %v3503 = vpack.c.bf16 %v3442, %v3442
        %v3504 = vpack.c.bf16 %v3496, %v3496
        %v3505 = vpack.c.bf16 %v3444, %v3444
        %v3506 = vpack.c.bf16 %v3498, %v3498
        %v3507 = vpack.c.bf16 %v3446, %v3446
        %v3508 = vpack.c.bf16 %v3500, %v3500
        %v3509 = vpack.c.bf16 %v3448, %v3448
        %v3510 = vpack.c.bf16 %v3502, %v3502
        %v3511 = vsel %vm1568, %v3201, %v3182
        %v3513 = vunpack.c.l.s4 1983009808
        %v3514 = vunpack.c.0.s8 %v3513
        %v3515 = vperm.slane %v3511, %v3514
        %v3516 = vrot.slane %v3202, 4
        %v3517 = vsel %vm1568, %v3516, %v3200
        %v3519 = vunpack.c.l.s4 1983009808
        %v3520 = vunpack.c.0.s8 %v3519
        %v3521 = vperm.slane %v3517, %v3520
        %v3522 = vsel %vm1568, %v3205, %v3194
        %v3524 = vunpack.c.l.s4 1983009808
        %v3525 = vunpack.c.0.s8 %v3524
        %v3526 = vperm.slane %v3522, %v3525
        %v3527 = vrot.slane %v3206, 4
        %v3528 = vsel %vm1568, %v3527, %v3204
        %v3530 = vunpack.c.l.s4 1983009808
        %v3531 = vunpack.c.0.s8 %v3530
        %v3532 = vperm.slane %v3528, %v3531
        %v3533 = vrot.slane %v3521, 4
        %v3534 = vsel %vm1568, %v3533, %v3515
        %v3535 = vrot.slane %v3515, 4
        %v3536 = vsel %vm1568, %v3521, %v3535
        %v3538 = vunpack.c.l.s4 1934713408
        %v3539 = vunpack.c.0.s8 %v3538
        %v3540 = vperm.slane %v3534, %v3539
        %v3542 = vunpack.c.l.s4 1934713408
        %v3543 = vunpack.c.0.s8 %v3542
        %v3544 = vperm.slane %v3536, %v3543
        %v3545 = vrot.slane %v3532, 4
        %v3546 = vsel %vm1568, %v3545, %v3526
        %v3547 = vrot.slane %v3526, 4
        %v3548 = vsel %vm1568, %v3532, %v3547
        %v3550 = vunpack.c.l.s4 1934713408
        %v3551 = vunpack.c.0.s8 %v3550
        %v3552 = vperm.slane %v3546, %v3551
        %v3554 = vunpack.c.l.s4 1934713408
        %v3555 = vunpack.c.0.s8 %v3554
        %v3556 = vperm.slane %v3548, %v3555
        %v3557 = vrot.slane %v3552, 4
        %v3558 = vsel %vm1568, %v3557, %v3540
        %v3559 = vrot.slane %v3540, 4
        %v3560 = vsel %vm1568, %v3552, %v3559
        %v3561 = vrot.slane %v3556, 4
        %v3562 = vsel %vm1568, %v3561, %v3544
        %v3563 = vrot.slane %v3544, 4
        %v3564 = vsel %vm1568, %v3556, %v3563
        %v3565 = vsel %vm1568, %v3257, %v3238
        %v3567 = vunpack.c.l.s4 1983009808
        %v3568 = vunpack.c.0.s8 %v3567
        %v3569 = vperm.slane %v3565, %v3568
        %v3570 = vrot.slane %v3258, 4
        %v3571 = vsel %vm1568, %v3570, %v3256
        %v3573 = vunpack.c.l.s4 1983009808
        %v3574 = vunpack.c.0.s8 %v3573
        %v3575 = vperm.slane %v3571, %v3574
        %v3576 = vsel %vm1568, %v3261, %v3250
        %v3578 = vunpack.c.l.s4 1983009808
        %v3579 = vunpack.c.0.s8 %v3578
        %v3580 = vperm.slane %v3576, %v3579
        %v3581 = vrot.slane %v3262, 4
        %v3582 = vsel %vm1568, %v3581, %v3260
        %v3584 = vunpack.c.l.s4 1983009808
        %v3585 = vunpack.c.0.s8 %v3584
        %v3586 = vperm.slane %v3582, %v3585
        %v3587 = vrot.slane %v3575, 4
        %v3588 = vsel %vm1568, %v3587, %v3569
        %v3589 = vrot.slane %v3569, 4
        %v3590 = vsel %vm1568, %v3575, %v3589
        %v3592 = vunpack.c.l.s4 1934713408
        %v3593 = vunpack.c.0.s8 %v3592
        %v3594 = vperm.slane %v3588, %v3593
        %v3596 = vunpack.c.l.s4 1934713408
        %v3597 = vunpack.c.0.s8 %v3596
        %v3598 = vperm.slane %v3590, %v3597
        %v3599 = vrot.slane %v3586, 4
        %v3600 = vsel %vm1568, %v3599, %v3580
        %v3601 = vrot.slane %v3580, 4
        %v3602 = vsel %vm1568, %v3586, %v3601
        %v3604 = vunpack.c.l.s4 1934713408
        %v3605 = vunpack.c.0.s8 %v3604
        %v3606 = vperm.slane %v3600, %v3605
        %v3608 = vunpack.c.l.s4 1934713408
        %v3609 = vunpack.c.0.s8 %v3608
        %v3610 = vperm.slane %v3602, %v3609
        %v3611 = vrot.slane %v3606, 4
        %v3612 = vsel %vm1568, %v3611, %v3594
        %v3613 = vrot.slane %v3594, 4
        %v3614 = vsel %vm1568, %v3606, %v3613
        %v3615 = vrot.slane %v3610, 4
        %v3616 = vsel %vm1568, %v3615, %v3598
        %v3617 = vrot.slane %v3598, 4
        %v3618 = vsel %vm1568, %v3610, %v3617
        %v3619 = vpack.c.bf16 %v3558, %v3558
        %v3620 = vpack.c.bf16 %v3612, %v3612
        %v3621 = vpack.c.bf16 %v3560, %v3560
        %v3622 = vpack.c.bf16 %v3614, %v3614
        %v3623 = vpack.c.bf16 %v3562, %v3562
        %v3624 = vpack.c.bf16 %v3616, %v3616
        %v3625 = vpack.c.bf16 %v3564, %v3564
        %v3626 = vpack.c.bf16 %v3618, %v3618
        %v3627 = vsel %vm1568, %v3333, %v3314
        %v3629 = vunpack.c.l.s4 1983009808
        %v3630 = vunpack.c.0.s8 %v3629
        %v3631 = vperm.slane %v3627, %v3630
        %v3632 = vrot.slane %v3334, 4
        %v3633 = vsel %vm1568, %v3632, %v3332
        %v3635 = vunpack.c.l.s4 1983009808
        %v3636 = vunpack.c.0.s8 %v3635
        %v3637 = vperm.slane %v3633, %v3636
        %v3638 = vsel %vm1568, %v3337, %v3326
        %v3640 = vunpack.c.l.s4 1983009808
        %v3641 = vunpack.c.0.s8 %v3640
        %v3642 = vperm.slane %v3638, %v3641
        %v3643 = vrot.slane %v3338, 4
        %v3644 = vsel %vm1568, %v3643, %v3336
        %v3646 = vunpack.c.l.s4 1983009808
        %v3647 = vunpack.c.0.s8 %v3646
        %v3648 = vperm.slane %v3644, %v3647
        %v3649 = vrot.slane %v3637, 4
        %v3650 = vsel %vm1568, %v3649, %v3631
        %v3651 = vrot.slane %v3631, 4
        %v3652 = vsel %vm1568, %v3637, %v3651
        %v3654 = vunpack.c.l.s4 1934713408
        %v3655 = vunpack.c.0.s8 %v3654
        %v3656 = vperm.slane %v3650, %v3655
        %v3658 = vunpack.c.l.s4 1934713408
        %v3659 = vunpack.c.0.s8 %v3658
        %v3660 = vperm.slane %v3652, %v3659
        %v3661 = vrot.slane %v3648, 4
        %v3662 = vsel %vm1568, %v3661, %v3642
        %v3663 = vrot.slane %v3642, 4
        %v3664 = vsel %vm1568, %v3648, %v3663
        %v3666 = vunpack.c.l.s4 1934713408
        %v3667 = vunpack.c.0.s8 %v3666
        %v3668 = vperm.slane %v3662, %v3667
        %v3670 = vunpack.c.l.s4 1934713408
        %v3671 = vunpack.c.0.s8 %v3670
        %v3672 = vperm.slane %v3664, %v3671
        %v3673 = vrot.slane %v3668, 4
        %v3674 = vsel %vm1568, %v3673, %v3656
        %v3675 = vrot.slane %v3656, 4
        %v3676 = vsel %vm1568, %v3668, %v3675
        %v3677 = vrot.slane %v3672, 4
        %v3678 = vsel %vm1568, %v3677, %v3660
        %v3679 = vrot.slane %v3660, 4
        %v3680 = vsel %vm1568, %v3672, %v3679
        %v3681 = vsel %vm1568, %v3389, %v3370
        %v3683 = vunpack.c.l.s4 1983009808
        %v3684 = vunpack.c.0.s8 %v3683
        %v3685 = vperm.slane %v3681, %v3684
        %v3686 = vrot.slane %v3390, 4
        %v3687 = vsel %vm1568, %v3686, %v3388
        %v3689 = vunpack.c.l.s4 1983009808
        %v3690 = vunpack.c.0.s8 %v3689
        %v3691 = vperm.slane %v3687, %v3690
        %v3692 = vsel %vm1568, %v3393, %v3382
        %v3694 = vunpack.c.l.s4 1983009808
        %v3695 = vunpack.c.0.s8 %v3694
        %v3696 = vperm.slane %v3692, %v3695
        %v3697 = vrot.slane %v3394, 4
        %v3698 = vsel %vm1568, %v3697, %v3392
        %v3700 = vunpack.c.l.s4 1983009808
        %v3701 = vunpack.c.0.s8 %v3700
        %v3702 = vperm.slane %v3698, %v3701
        %v3703 = vrot.slane %v3691, 4
        %v3704 = vsel %vm1568, %v3703, %v3685
        %v3705 = vrot.slane %v3685, 4
        %v3706 = vsel %vm1568, %v3691, %v3705
        %v3708 = vunpack.c.l.s4 1934713408
        %v3709 = vunpack.c.0.s8 %v3708
        %v3710 = vperm.slane %v3704, %v3709
        %v3712 = vunpack.c.l.s4 1934713408
        %v3713 = vunpack.c.0.s8 %v3712
        %v3714 = vperm.slane %v3706, %v3713
        %v3715 = vrot.slane %v3702, 4
        %v3716 = vsel %vm1568, %v3715, %v3696
        %v3717 = vrot.slane %v3696, 4
        %v3718 = vsel %vm1568, %v3702, %v3717
        %v3720 = vunpack.c.l.s4 1934713408
        %v3721 = vunpack.c.0.s8 %v3720
        %v3722 = vperm.slane %v3716, %v3721
        %v3724 = vunpack.c.l.s4 1934713408
        %v3725 = vunpack.c.0.s8 %v3724
        %v3726 = vperm.slane %v3718, %v3725
        %v3727 = vrot.slane %v3722, 4
        %v3728 = vsel %vm1568, %v3727, %v3710
        %v3729 = vrot.slane %v3710, 4
        %v3730 = vsel %vm1568, %v3722, %v3729
        %v3731 = vrot.slane %v3726, 4
        %v3732 = vsel %vm1568, %v3731, %v3714
        %v3733 = vrot.slane %v3714, 4
        %v3734 = vsel %vm1568, %v3726, %v3733
        %v3735 = vpack.c.bf16 %v3674, %v3674
        %v3736 = vpack.c.bf16 %v3728, %v3728
        %v3737 = vpack.c.bf16 %v3676, %v3676
        %v3738 = vpack.c.bf16 %v3730, %v3730
        %v3739 = vpack.c.bf16 %v3678, %v3678
        %v3740 = vpack.c.bf16 %v3732, %v3732
        %v3741 = vpack.c.bf16 %v3680, %v3680
        %v3742 = vpack.c.bf16 %v3734, %v3734
        %v3745 = vunpack.c.l.b16 %v3503
        %v3746 = vunpack.c.l.b16 %v3504
        %v3747 = vpack.c.b16 %v3746, %v3745
        %v3750 = vunpack.c.l.b16 %v3619
        %v3751 = vunpack.c.l.b16 %v3620
        %v3752 = vpack.c.b16 %v3751, %v3750
        %v3754 = vsel %vm2302, %v3747, 0
        %v3757 = vsel %vm2302, %v3752, 0
        %3759 = vmatpush.bf16.xpose.msra.mxu0 0
        %3760 = vmatpush.bf16.xpose.msra.mxu0 0
        %3761 = vmatpush.bf16.xpose.msra.mxu0 0
        %3762 = vmatpush.bf16.xpose.msra.mxu0 0
        %3763 = vmatpush.bf16.xpose.msra.mxu0 0
        %3764 = vmatpush.bf16.xpose.msra.mxu0 0
        %3765 = vmatpush.bf16.xpose.msra.mxu0 0
        %3766 = vmatpush.bf16.xpose.msra.mxu0 %v3757
        %3767 = vmatmul.bf16.gmra.mxu0 %v3754
        %v3768 = vpop.f32.mrf.mxu0
        %v3769 = vadd.f32 0.0, %v3768
        %v3770 = vpop.f32.mrf.mxu0
        %v3771 = vadd.f32 0.0, %v3770
        %3772 = vdwg.mxu0
        %v3775 = vunpack.c.l.b16 %v3505
        %v3776 = vunpack.c.l.b16 %v3506
        %v3777 = vpack.c.b16 %v3776, %v3775
        %v3780 = vunpack.c.l.b16 %v3621
        %v3781 = vunpack.c.l.b16 %v3622
        %v3782 = vpack.c.b16 %v3781, %v3780
        %v3784 = vsel %vm2302, %v3777, 0
        %v3787 = vsel %vm2302, %v3782, 0
        %3789 = vmatpush.bf16.xpose.msra.mxu0 0
        %3790 = vmatpush.bf16.xpose.msra.mxu0 0
        %3791 = vmatpush.bf16.xpose.msra.mxu0 0
        %3792 = vmatpush.bf16.xpose.msra.mxu0 0
        %3793 = vmatpush.bf16.xpose.msra.mxu0 0
        %3794 = vmatpush.bf16.xpose.msra.mxu0 0
        %3795 = vmatpush.bf16.xpose.msra.mxu0 0
        %3796 = vmatpush.bf16.xpose.msra.mxu0 %v3787
        %3797 = vmatmul.bf16.gmra.mxu0 %v3784
        %v3798 = vpop.f32.mrf.mxu0
        %v3799 = vadd.f32 0.0, %v3798
        %v3800 = vpop.f32.mrf.mxu0
        %v3801 = vadd.f32 0.0, %v3800
        %3802 = vdwg.mxu0
        %v3805 = vunpack.c.l.b16 %v3507
        %v3806 = vunpack.c.l.b16 %v3508
        %v3807 = vpack.c.b16 %v3806, %v3805
        %v3810 = vunpack.c.l.b16 %v3623
        %v3811 = vunpack.c.l.b16 %v3624
        %v3812 = vpack.c.b16 %v3811, %v3810
        %v3814 = vsel %vm2302, %v3807, 0
        %v3817 = vsel %vm2302, %v3812, 0
        %3819 = vmatpush.bf16.xpose.msra.mxu0 0
        %3820 = vmatpush.bf16.xpose.msra.mxu0 0
        %3821 = vmatpush.bf16.xpose.msra.mxu0 0
        %3822 = vmatpush.bf16.xpose.msra.mxu0 0
        %3823 = vmatpush.bf16.xpose.msra.mxu0 0
        %3824 = vmatpush.bf16.xpose.msra.mxu0 0
        %3825 = vmatpush.bf16.xpose.msra.mxu0 0
        %3826 = vmatpush.bf16.xpose.msra.mxu0 %v3817
        %3827 = vmatmul.bf16.gmra.mxu0 %v3814
        %v3828 = vpop.f32.mrf.mxu0
        %v3829 = vadd.f32 0.0, %v3828
        %v3830 = vpop.f32.mrf.mxu0
        %v3831 = vadd.f32 0.0, %v3830
        %3832 = vdwg.mxu0
        %v3835 = vunpack.c.l.b16 %v3509
        %v3836 = vunpack.c.l.b16 %v3510
        %v3837 = vpack.c.b16 %v3836, %v3835
        %v3840 = vunpack.c.l.b16 %v3625
        %v3841 = vunpack.c.l.b16 %v3626
        %v3842 = vpack.c.b16 %v3841, %v3840
        %v3844 = vsel %vm2302, %v3837, 0
        %v3847 = vsel %vm2302, %v3842, 0
        %3849 = vmatpush.bf16.xpose.msra.mxu0 0
        %3850 = vmatpush.bf16.xpose.msra.mxu0 0
        %3851 = vmatpush.bf16.xpose.msra.mxu0 0
        %3852 = vmatpush.bf16.xpose.msra.mxu0 0
        %3853 = vmatpush.bf16.xpose.msra.mxu0 0
        %3854 = vmatpush.bf16.xpose.msra.mxu0 0
        %3855 = vmatpush.bf16.xpose.msra.mxu0 0
        %3856 = vmatpush.bf16.xpose.msra.mxu0 %v3847
        %3857 = vmatmul.bf16.gmra.mxu0 %v3844
        %v3858 = vpop.f32.mrf.mxu0
        %v3859 = vadd.f32 0.0, %v3858
        %v3860 = vpop.f32.mrf.mxu0
        %v3861 = vadd.f32 0.0, %v3860
        %3862 = vdwg.mxu0
        %v3863 = vmul.f32 %v3769, 0.17677669
        %v3864 = vmul.f32 %v3771, 0.17677669
        %v3865 = vmul.f32 %v3799, 0.17677669
        %v3866 = vmul.f32 %v3801, 0.17677669
        %v3867 = vmul.f32 %v3829, 0.17677669
        %v3868 = vmul.f32 %v3831, 0.17677669
        %v3869 = vmul.f32 %v3859, 0.17677669
        %v3870 = vmul.f32 %v3861, 0.17677669
        %s3871 = scalar_lea.vmem %s835, 1 [#allocation3]
        %v3872 = vld [vmem:[%s3871] sm:$0x1]
        %vm3873 = vcmp.gt.f32.partialorder %v3872, 0.0
        %v3874 = vsel %vm3873, 1, 0
        %v3875 = vperm.slane %v3874, 0
        %vm3876 = vcmp.eq.s32.totalorder %v3875, 1
        %v3877 = vsel %vm3876, %v3863, -1e+09
        %v3878 = vsel %vm3876, %v3864, -1e+09
        %v3879 = vsel %vm3876, %v3865, -1e+09
        %v3880 = vsel %vm3876, %v3866, -1e+09
        %v3881 = vsel %vm3876, %v3867, -1e+09
        %v3882 = vsel %vm3876, %v3868, -1e+09
        %v3883 = vsel %vm3876, %v3869, -1e+09
        %v3884 = vsel %vm3876, %v3870, -1e+09
        %v3885 = vsel %vm2434, %v3877, -inf
        %3886 = vmax.xlane.f32.xlu0 %v3885
        %v3887 = vpop.xlane.xlu0 %3886
        %v3888 = vsel %vm2434, %v3878, -inf
        %3889 = vmax.xlane.f32.xlu0 %v3888
        %v3890 = vpop.xlane.xlu0 %3889
        %v3891 = vsel %vm2434, %v3879, -inf
        %3892 = vmax.xlane.f32.xlu0 %v3891
        %v3893 = vpop.xlane.xlu0 %3892
        %v3894 = vsel %vm2434, %v3880, -inf
        %3895 = vmax.xlane.f32.xlu0 %v3894
        %v3896 = vpop.xlane.xlu0 %3895
        %v3897 = vsel %vm2434, %v3881, -inf
        %3898 = vmax.xlane.f32.xlu0 %v3897
        %v3899 = vpop.xlane.xlu0 %3898
        %v3900 = vsel %vm2434, %v3882, -inf
        %3901 = vmax.xlane.f32.xlu0 %v3900
        %v3902 = vpop.xlane.xlu0 %3901
        %v3903 = vsel %vm2434, %v3883, -inf
        %3904 = vmax.xlane.f32.xlu0 %v3903
        %v3905 = vpop.xlane.xlu0 %3904
        %v3906 = vsel %vm2434, %v3884, -inf
        %3907 = vmax.xlane.f32.xlu0 %v3906
        %v3908 = vpop.xlane.xlu0 %3907
        %v3909 = vsub.f32 %v3877, %v3887
        %v3910 = vsub.f32 %v3878, %v3890
        %v3911 = vsub.f32 %v3879, %v3893
        %v3912 = vsub.f32 %v3880, %v3896
        %v3913 = vsub.f32 %v3881, %v3899
        %v3914 = vsub.f32 %v3882, %v3902
        %v3915 = vsub.f32 %v3883, %v3905
        %v3916 = vsub.f32 %v3884, %v3908
        %v3917 = vmul.f32 %v3909, 1.442695
        %v3918 = vpow.pop %v3917
        %v3919 = vmul.f32 %v3910, 1.442695
        %v3920 = vpow.pop %v3919
        %v3921 = vmul.f32 %v3911, 1.442695
        %v3922 = vpow.pop %v3921
        %v3923 = vmul.f32 %v3912, 1.442695
        %v3924 = vpow.pop %v3923
        %v3925 = vmul.f32 %v3913, 1.442695
        %v3926 = vpow.pop %v3925
        %v3927 = vmul.f32 %v3914, 1.442695
        %v3928 = vpow.pop %v3927
        %v3929 = vmul.f32 %v3915, 1.442695
        %v3930 = vpow.pop %v3929
        %v3931 = vmul.f32 %v3916, 1.442695
        %v3932 = vpow.pop %v3931
        %v3933 = vsel %vm2434, %v3918, 0.0
        %3934 = vadd.xlane.f32.xlu0 %v3933
        %v3935 = vpop.xlane.xlu0 %3934
        %v3936 = vsel %vm2434, %v3920, 0.0
        %3937 = vadd.xlane.f32.xlu0 %v3936
        %v3938 = vpop.xlane.xlu0 %3937
        %v3939 = vsel %vm2434, %v3922, 0.0
        %3940 = vadd.xlane.f32.xlu0 %v3939
        %v3941 = vpop.xlane.xlu0 %3940
        %v3942 = vsel %vm2434, %v3924, 0.0
        %3943 = vadd.xlane.f32.xlu0 %v3942
        %v3944 = vpop.xlane.xlu0 %3943
        %v3945 = vsel %vm2434, %v3926, 0.0
        %3946 = vadd.xlane.f32.xlu0 %v3945
        %v3947 = vpop.xlane.xlu0 %3946
        %v3948 = vsel %vm2434, %v3928, 0.0
        %3949 = vadd.xlane.f32.xlu0 %v3948
        %v3950 = vpop.xlane.xlu0 %3949
        %v3951 = vsel %vm2434, %v3930, 0.0
        %3952 = vadd.xlane.f32.xlu0 %v3951
        %v3953 = vpop.xlane.xlu0 %3952
        %v3954 = vsel %vm2434, %v3932, 0.0
        %3955 = vadd.xlane.f32.xlu0 %v3954
        %v3956 = vpop.xlane.xlu0 %3955
        %v3957 = vrcp.pop %v3935
        %v3958 = vmul.f32 %v3935, %v3957
        %v3959 = vsub.f32 1.0, %v3958
        %v3960 = vmul.f32 %v3957, %v3959
        %v3961 = vadd.f32 %v3957, %v3960
        %vm3962 = vweird.f32 %v3935
        %vm3963 = vweird.f32 %v3957
        %vm3964 = vmor %vm3962, %vm3963
        %v3965 = vsel %vm3964, %v3957, %v3961
        %v3966 = vand.u32 2147483647, %v3935
        %vm3967 = vcmp.eq.f32.partialorder %v3966, 8.507059e+37
        %v3968 = vand.u32 %v3935, 2147483648
        %v3969 = vor.u32 1.1754944e-38, %v3968
        %v3970 = vsel %vm3967, %v3969, %v3965
        %v3971 = vmul.f32 %v3918, %v3970
        %v3972 = vrcp.pop %v3938
        %v3973 = vmul.f32 %v3938, %v3972
        %v3974 = vsub.f32 1.0, %v3973
        %v3975 = vmul.f32 %v3972, %v3974
        %v3976 = vadd.f32 %v3972, %v3975
        %vm3977 = vweird.f32 %v3938
        %vm3978 = vweird.f32 %v3972
        %vm3979 = vmor %vm3977, %vm3978
        %v3980 = vsel %vm3979, %v3972, %v3976
        %v3981 = vand.u32 2147483647, %v3938
        %vm3982 = vcmp.eq.f32.partialorder %v3981, 8.507059e+37
        %v3983 = vand.u32 %v3938, 2147483648
        %v3984 = vor.u32 1.1754944e-38, %v3983
        %v3985 = vsel %vm3982, %v3984, %v3980
        %v3986 = vmul.f32 %v3920, %v3985
        %v3987 = vrcp.pop %v3941
        %v3988 = vmul.f32 %v3941, %v3987
        %v3989 = vsub.f32 1.0, %v3988
        %v3990 = vmul.f32 %v3987, %v3989
        %v3991 = vadd.f32 %v3987, %v3990
        %vm3992 = vweird.f32 %v3941
        %vm3993 = vweird.f32 %v3987
        %vm3994 = vmor %vm3992, %vm3993
        %v3995 = vsel %vm3994, %v3987, %v3991
        %v3996 = vand.u32 2147483647, %v3941
        %vm3997 = vcmp.eq.f32.partialorder %v3996, 8.507059e+37
        %v3998 = vand.u32 %v3941, 2147483648
        %v3999 = vor.u32 1.1754944e-38, %v3998
        %v4000 = vsel %vm3997, %v3999, %v3995
        %v4001 = vmul.f32 %v3922, %v4000
        %v4002 = vrcp.pop %v3944
        %v4003 = vmul.f32 %v3944, %v4002
        %v4004 = vsub.f32 1.0, %v4003
        %v4005 = vmul.f32 %v4002, %v4004
        %v4006 = vadd.f32 %v4002, %v4005
        %vm4007 = vweird.f32 %v3944
        %vm4008 = vweird.f32 %v4002
        %vm4009 = vmor %vm4007, %vm4008
        %v4010 = vsel %vm4009, %v4002, %v4006
        %v4011 = vand.u32 2147483647, %v3944
        %vm4012 = vcmp.eq.f32.partialorder %v4011, 8.507059e+37
        %v4013 = vand.u32 %v3944, 2147483648
        %v4014 = vor.u32 1.1754944e-38, %v4013
        %v4015 = vsel %vm4012, %v4014, %v4010
        %v4016 = vmul.f32 %v3924, %v4015
        %v4017 = vrcp.pop %v3947
        %v4018 = vmul.f32 %v3947, %v4017
        %v4019 = vsub.f32 1.0, %v4018
        %v4020 = vmul.f32 %v4017, %v4019
        %v4021 = vadd.f32 %v4017, %v4020
        %vm4022 = vweird.f32 %v3947
        %vm4023 = vweird.f32 %v4017
        %vm4024 = vmor %vm4022, %vm4023
        %v4025 = vsel %vm4024, %v4017, %v4021
        %v4026 = vand.u32 2147483647, %v3947
        %vm4027 = vcmp.eq.f32.partialorder %v4026, 8.507059e+37
        %v4028 = vand.u32 %v3947, 2147483648
        %v4029 = vor.u32 1.1754944e-38, %v4028
        %v4030 = vsel %vm4027, %v4029, %v4025
        %v4031 = vmul.f32 %v3926, %v4030
        %v4032 = vrcp.pop %v3950
        %v4033 = vmul.f32 %v3950, %v4032
        %v4034 = vsub.f32 1.0, %v4033
        %v4035 = vmul.f32 %v4032, %v4034
        %v4036 = vadd.f32 %v4032, %v4035
        %vm4037 = vweird.f32 %v3950
        %vm4038 = vweird.f32 %v4032
        %vm4039 = vmor %vm4037, %vm4038
        %v4040 = vsel %vm4039, %v4032, %v4036
        %v4041 = vand.u32 2147483647, %v3950
        %vm4042 = vcmp.eq.f32.partialorder %v4041, 8.507059e+37
        %v4043 = vand.u32 %v3950, 2147483648
        %v4044 = vor.u32 1.1754944e-38, %v4043
        %v4045 = vsel %vm4042, %v4044, %v4040
        %v4046 = vmul.f32 %v3928, %v4045
        %v4047 = vrcp.pop %v3953
        %v4048 = vmul.f32 %v3953, %v4047
        %v4049 = vsub.f32 1.0, %v4048
        %v4050 = vmul.f32 %v4047, %v4049
        %v4051 = vadd.f32 %v4047, %v4050
        %vm4052 = vweird.f32 %v3953
        %vm4053 = vweird.f32 %v4047
        %vm4054 = vmor %vm4052, %vm4053
        %v4055 = vsel %vm4054, %v4047, %v4051
        %v4056 = vand.u32 2147483647, %v3953
        %vm4057 = vcmp.eq.f32.partialorder %v4056, 8.507059e+37
        %v4058 = vand.u32 %v3953, 2147483648
        %v4059 = vor.u32 1.1754944e-38, %v4058
        %v4060 = vsel %vm4057, %v4059, %v4055
        %v4061 = vmul.f32 %v3930, %v4060
        %v4062 = vrcp.pop %v3956
        %v4063 = vmul.f32 %v3956, %v4062
        %v4064 = vsub.f32 1.0, %v4063
        %v4065 = vmul.f32 %v4062, %v4064
        %v4066 = vadd.f32 %v4062, %v4065
        %vm4067 = vweird.f32 %v3956
        %vm4068 = vweird.f32 %v4062
        %vm4069 = vmor %vm4067, %vm4068
        %v4070 = vsel %vm4069, %v4062, %v4066
        %v4071 = vand.u32 2147483647, %v3956
        %vm4072 = vcmp.eq.f32.partialorder %v4071, 8.507059e+37
        %v4073 = vand.u32 %v3956, 2147483648
        %v4074 = vor.u32 1.1754944e-38, %v4073
        %v4075 = vsel %vm4072, %v4074, %v4070
        %v4076 = vmul.f32 %v3932, %v4075
        %v4077 = vpack.c.bf16 %v3971, %v3971
        %v4078 = vpack.c.bf16 %v3986, %v3986
        %v4079 = vpack.c.bf16 %v4001, %v4001
        %v4080 = vpack.c.bf16 %v4016, %v4016
        %v4081 = vpack.c.bf16 %v4031, %v4031
        %v4082 = vpack.c.bf16 %v4046, %v4046
        %v4083 = vpack.c.bf16 %v4061, %v4061
        %v4084 = vpack.c.bf16 %v4076, %v4076
        %v4087 = vunpack.c.l.b16 %v4077
        %v4088 = vunpack.c.l.b16 %v4078
        %v4089 = vpack.c.b16 %v4088, %v4087
        %v4092 = vunpack.c.l.b16 %v3735
        %v4093 = vunpack.c.l.b16 %v3736
        %v4094 = vpack.c.b16 %v4093, %v4092
        %v4097 = vsel %vm2434, %v4089, 0
        %4099 = vmatpush.bf16.msra.mxu0 0
        %4100 = vmatpush.bf16.msra.mxu0 0
        %4101 = vmatpush.bf16.msra.mxu0 0
        %4102 = vmatpush.bf16.msra.mxu0 0
        %4103 = vmatpush.bf16.msra.mxu0 0
        %4104 = vmatpush.bf16.msra.mxu0 0
        %4105 = vmatpush.bf16.msra.mxu0 0
        %4106 = vmatpush.bf16.msra.mxu0 %v4094
        %4107 = vmatmul.bf16.gmra.mxu0 %v4097
        %v4108 = vpop.f32.mrf.mxu0
        %v4109 = vadd.f32 0.0, %v4108
        %v4110 = vpop.f32.mrf.mxu0
        %v4111 = vadd.f32 0.0, %v4110
        %4112 = vdwg.mxu0
        %v4115 = vunpack.c.l.b16 %v4079
        %v4116 = vunpack.c.l.b16 %v4080
        %v4117 = vpack.c.b16 %v4116, %v4115
        %v4120 = vunpack.c.l.b16 %v3737
        %v4121 = vunpack.c.l.b16 %v3738
        %v4122 = vpack.c.b16 %v4121, %v4120
        %v4125 = vsel %vm2434, %v4117, 0
        %4127 = vmatpush.bf16.msra.mxu0 0
        %4128 = vmatpush.bf16.msra.mxu0 0
        %4129 = vmatpush.bf16.msra.mxu0 0
        %4130 = vmatpush.bf16.msra.mxu0 0
        %4131 = vmatpush.bf16.msra.mxu0 0
        %4132 = vmatpush.bf16.msra.mxu0 0
        %4133 = vmatpush.bf16.msra.mxu0 0
        %4134 = vmatpush.bf16.msra.mxu0 %v4122
        %4135 = vmatmul.bf16.gmra.mxu0 %v4125
        %v4136 = vpop.f32.mrf.mxu0
        %v4137 = vadd.f32 0.0, %v4136
        %v4138 = vpop.f32.mrf.mxu0
        %v4139 = vadd.f32 0.0, %v4138
        %4140 = vdwg.mxu0
        %v4143 = vunpack.c.l.b16 %v4081
        %v4144 = vunpack.c.l.b16 %v4082
        %v4145 = vpack.c.b16 %v4144, %v4143
        %v4148 = vunpack.c.l.b16 %v3739
        %v4149 = vunpack.c.l.b16 %v3740
        %v4150 = vpack.c.b16 %v4149, %v4148
        %v4153 = vsel %vm2434, %v4145, 0
        %4155 = vmatpush.bf16.msra.mxu0 0
        %4156 = vmatpush.bf16.msra.mxu0 0
        %4157 = vmatpush.bf16.msra.mxu0 0
        %4158 = vmatpush.bf16.msra.mxu0 0
        %4159 = vmatpush.bf16.msra.mxu0 0
        %4160 = vmatpush.bf16.msra.mxu0 0
        %4161 = vmatpush.bf16.msra.mxu0 0
        %4162 = vmatpush.bf16.msra.mxu0 %v4150
        %4163 = vmatmul.bf16.gmra.mxu0 %v4153
        %v4164 = vpop.f32.mrf.mxu0
        %v4165 = vadd.f32 0.0, %v4164
        %v4166 = vpop.f32.mrf.mxu0
        %v4167 = vadd.f32 0.0, %v4166
        %4168 = vdwg.mxu0
        %v4171 = vunpack.c.l.b16 %v4083
        %v4172 = vunpack.c.l.b16 %v4084
        %v4173 = vpack.c.b16 %v4172, %v4171
        %v4176 = vunpack.c.l.b16 %v3741
        %v4177 = vunpack.c.l.b16 %v3742
        %v4178 = vpack.c.b16 %v4177, %v4176
        %v4181 = vsel %vm2434, %v4173, 0
        %4183 = vmatpush.bf16.msra.mxu0 0
        %4184 = vmatpush.bf16.msra.mxu0 0
        %4185 = vmatpush.bf16.msra.mxu0 0
        %4186 = vmatpush.bf16.msra.mxu0 0
        %4187 = vmatpush.bf16.msra.mxu0 0
        %4188 = vmatpush.bf16.msra.mxu0 0
        %4189 = vmatpush.bf16.msra.mxu0 0
        %4190 = vmatpush.bf16.msra.mxu0 %v4178
        %4191 = vmatmul.bf16.gmra.mxu0 %v4181
        %v4192 = vpop.f32.mrf.mxu0
        %v4193 = vadd.f32 0.0, %v4192
        %v4194 = vpop.f32.mrf.mxu0
        %v4195 = vadd.f32 0.0, %v4194
        %4196 = vdwg.mxu0
        %v4197 = vrot.slane %v4165, 4
        %v4198 = vsel %vm1568, %v4197, %v4109
        %v4199 = vrot.slane %v4109, 4
        %v4200 = vsel %vm1568, %v4165, %v4199
        %v4202 = vunpack.c.l.s4 1983009808
        %v4203 = vunpack.c.0.s8 %v4202
        %v4204 = vperm.slane %v4198, %v4203
        %v4206 = vunpack.c.l.s4 1983009808
        %v4207 = vunpack.c.0.s8 %v4206
        %v4208 = vperm.slane %v4200, %v4207
        %v4209 = vrot.slane %v4193, 4
        %v4210 = vsel %vm1568, %v4209, %v4137
        %v4211 = vrot.slane %v4137, 4
        %v4212 = vsel %vm1568, %v4193, %v4211
        %v4214 = vunpack.c.l.s4 1983009808
        %v4215 = vunpack.c.0.s8 %v4214
        %v4216 = vperm.slane %v4210, %v4215
        %v4218 = vunpack.c.l.s4 1983009808
        %v4219 = vunpack.c.0.s8 %v4218
        %v4220 = vperm.slane %v4212, %v4219
        %v4221 = vrot.slane %v4216, 4
        %v4222 = vsel %vm1568, %v4221, %v4204
        %v4223 = vrot.slane %v4204, 4
        %v4224 = vsel %vm1568, %v4216, %v4223
        %v4226 = vunpack.c.l.s4 1934713408
        %v4227 = vunpack.c.0.s8 %v4226
        %v4228 = vperm.slane %v4222, %v4227
        %v4230 = vunpack.c.l.s4 1934713408
        %v4231 = vunpack.c.0.s8 %v4230
        %v4232 = vperm.slane %v4224, %v4231
        %v4233 = vrot.slane %v4220, 4
        %v4234 = vsel %vm1568, %v4233, %v4208
        %v4235 = vrot.slane %v4208, 4
        %v4236 = vsel %vm1568, %v4220, %v4235
        %v4238 = vunpack.c.l.s4 1934713408
        %v4239 = vunpack.c.0.s8 %v4238
        %v4240 = vperm.slane %v4234, %v4239
        %v4242 = vunpack.c.l.s4 1934713408
        %v4243 = vunpack.c.0.s8 %v4242
        %v4244 = vperm.slane %v4236, %v4243
        %v4245 = vrot.slane %v4228, 4
        %v4246 = vsel %vm1568, 0.0, %v4245
        %v4247 = vrot.slane %v4232, 4
        %v4248 = vsel %vm1568, 0.0, %v4247
        %v4249 = vrot.slane %v4240, 4
        %v4250 = vsel %vm1568, 0.0, %v4249
        %v4251 = vrot.slane %v4244, 4
        %v4252 = vsel %vm1568, 0.0, %v4251
        %v4253 = vrot.slane %v4167, 4
        %v4254 = vsel %vm1568, %v4253, %v4111
        %v4255 = vrot.slane %v4111, 4
        %v4256 = vsel %vm1568, %v4167, %v4255
        %v4258 = vunpack.c.l.s4 1983009808
        %v4259 = vunpack.c.0.s8 %v4258
        %v4260 = vperm.slane %v4254, %v4259
        %v4262 = vunpack.c.l.s4 1983009808
        %v4263 = vunpack.c.0.s8 %v4262
        %v4264 = vperm.slane %v4256, %v4263
        %v4265 = vrot.slane %v4195, 4
        %v4266 = vsel %vm1568, %v4265, %v4139
        %v4267 = vrot.slane %v4139, 4
        %v4268 = vsel %vm1568, %v4195, %v4267
        %v4270 = vunpack.c.l.s4 1983009808
        %v4271 = vunpack.c.0.s8 %v4270
        %v4272 = vperm.slane %v4266, %v4271
        %v4274 = vunpack.c.l.s4 1983009808
        %v4275 = vunpack.c.0.s8 %v4274
        %v4276 = vperm.slane %v4268, %v4275
        %v4277 = vrot.slane %v4272, 4
        %v4278 = vsel %vm1568, %v4277, %v4260
        %v4279 = vrot.slane %v4260, 4
        %v4280 = vsel %vm1568, %v4272, %v4279
        %v4282 = vunpack.c.l.s4 1934713408
        %v4283 = vunpack.c.0.s8 %v4282
        %v4284 = vperm.slane %v4278, %v4283
        %v4286 = vunpack.c.l.s4 1934713408
        %v4287 = vunpack.c.0.s8 %v4286
        %v4288 = vperm.slane %v4280, %v4287
        %v4289 = vrot.slane %v4276, 4
        %v4290 = vsel %vm1568, %v4289, %v4264
        %v4291 = vrot.slane %v4264, 4
        %v4292 = vsel %vm1568, %v4276, %v4291
        %v4294 = vunpack.c.l.s4 1934713408
        %v4295 = vunpack.c.0.s8 %v4294
        %v4296 = vperm.slane %v4290, %v4295
        %v4298 = vunpack.c.l.s4 1934713408
        %v4299 = vunpack.c.0.s8 %v4298
        %v4300 = vperm.slane %v4292, %v4299
        %v4301 = vrot.slane %v4284, 4
        %v4302 = vsel %vm1568, 0.0, %v4301
        %v4303 = vrot.slane %v4288, 4
        %v4304 = vsel %vm1568, 0.0, %v4303
        %v4305 = vrot.slane %v4296, 4
        %v4306 = vsel %vm1568, 0.0, %v4305
        %v4307 = vrot.slane %v4300, 4
        %v4308 = vsel %vm1568, 0.0, %v4307
        %v4309 = vsel %vm1568, %v4247, %v4228
        %v4311 = vunpack.c.l.s4 1983009808
        %v4312 = vunpack.c.0.s8 %v4311
        %v4313 = vperm.slane %v4309, %v4312
        %v4314 = vrot.slane %v4248, 4
        %v4315 = vsel %vm1568, %v4314, %v4246
        %v4317 = vunpack.c.l.s4 1983009808
        %v4318 = vunpack.c.0.s8 %v4317
        %v4319 = vperm.slane %v4315, %v4318
        %v4320 = vsel %vm1568, %v4251, %v4240
        %v4322 = vunpack.c.l.s4 1983009808
        %v4323 = vunpack.c.0.s8 %v4322
        %v4324 = vperm.slane %v4320, %v4323
        %v4325 = vrot.slane %v4252, 4
        %v4326 = vsel %vm1568, %v4325, %v4250
        %v4328 = vunpack.c.l.s4 1983009808
        %v4329 = vunpack.c.0.s8 %v4328
        %v4330 = vperm.slane %v4326, %v4329
        %v4331 = vrot.slane %v4319, 4
        %v4332 = vsel %vm1568, %v4331, %v4313
        %v4333 = vrot.slane %v4313, 4
        %v4334 = vsel %vm1568, %v4319, %v4333
        %v4336 = vunpack.c.l.s4 1934713408
        %v4337 = vunpack.c.0.s8 %v4336
        %v4338 = vperm.slane %v4332, %v4337
        %v4340 = vunpack.c.l.s4 1934713408
        %v4341 = vunpack.c.0.s8 %v4340
        %v4342 = vperm.slane %v4334, %v4341
        %v4343 = vrot.slane %v4330, 4
        %v4344 = vsel %vm1568, %v4343, %v4324
        %v4345 = vrot.slane %v4324, 4
        %v4346 = vsel %vm1568, %v4330, %v4345
        %v4348 = vunpack.c.l.s4 1934713408
        %v4349 = vunpack.c.0.s8 %v4348
        %v4350 = vperm.slane %v4344, %v4349
        %v4352 = vunpack.c.l.s4 1934713408
        %v4353 = vunpack.c.0.s8 %v4352
        %v4354 = vperm.slane %v4346, %v4353
        %v4355 = vrot.slane %v4350, 4
        %v4356 = vsel %vm1568, %v4355, %v4338
        %v4357 = vrot.slane %v4338, 4
        %v4358 = vsel %vm1568, %v4350, %v4357
        %v4359 = vrot.slane %v4354, 4
        %v4360 = vsel %vm1568, %v4359, %v4342
        %v4361 = vrot.slane %v4342, 4
        %v4362 = vsel %vm1568, %v4354, %v4361
        %v4363 = vsel %vm1568, %v4303, %v4284
        %v4365 = vunpack.c.l.s4 1983009808
        %v4366 = vunpack.c.0.s8 %v4365
        %v4367 = vperm.slane %v4363, %v4366
        %v4368 = vrot.slane %v4304, 4
        %v4369 = vsel %vm1568, %v4368, %v4302
        %v4371 = vunpack.c.l.s4 1983009808
        %v4372 = vunpack.c.0.s8 %v4371
        %v4373 = vperm.slane %v4369, %v4372
        %v4374 = vsel %vm1568, %v4307, %v4296
        %v4376 = vunpack.c.l.s4 1983009808
        %v4377 = vunpack.c.0.s8 %v4376
        %v4378 = vperm.slane %v4374, %v4377
        %v4379 = vrot.slane %v4308, 4
        %v4380 = vsel %vm1568, %v4379, %v4306
        %v4382 = vunpack.c.l.s4 1983009808
        %v4383 = vunpack.c.0.s8 %v4382
        %v4384 = vperm.slane %v4380, %v4383
        %v4385 = vrot.slane %v4373, 4
        %v4386 = vsel %vm1568, %v4385, %v4367
        %v4387 = vrot.slane %v4367, 4
        %v4388 = vsel %vm1568, %v4373, %v4387
        %v4390 = vunpack.c.l.s4 1934713408
        %v4391 = vunpack.c.0.s8 %v4390
        %v4392 = vperm.slane %v4386, %v4391
        %v4394 = vunpack.c.l.s4 1934713408
        %v4395 = vunpack.c.0.s8 %v4394
        %v4396 = vperm.slane %v4388, %v4395
        %v4397 = vrot.slane %v4384, 4
        %v4398 = vsel %vm1568, %v4397, %v4378
        %v4399 = vrot.slane %v4378, 4
        %v4400 = vsel %vm1568, %v4384, %v4399
        %v4402 = vunpack.c.l.s4 1934713408
        %v4403 = vunpack.c.0.s8 %v4402
        %v4404 = vperm.slane %v4398, %v4403
        %v4406 = vunpack.c.l.s4 1934713408
        %v4407 = vunpack.c.0.s8 %v4406
        %v4408 = vperm.slane %v4400, %v4407
        %v4409 = vrot.slane %v4404, 4
        %v4410 = vsel %vm1568, %v4409, %v4392
        %v4411 = vrot.slane %v4392, 4
        %v4412 = vsel %vm1568, %v4404, %v4411
        %v4413 = vrot.slane %v4408, 4
        %v4414 = vsel %vm1568, %v4413, %v4396
        %v4415 = vrot.slane %v4396, 4
        %v4416 = vsel %vm1568, %v4408, %v4415
        %4419 = vrot.lane.b32.xlu0 %v4358, 32
        %v4420 = vpop.permute.xlu0 %4419
        %4421 = vrot.lane.b32.xlu0 %v4412, 32
        %v4422 = vpop.permute.xlu0 %4421
        %4427 = vrot.lane.b32.xlu0 %v4360, 64
        %v4428 = vpop.permute.xlu0 %4427
        %4429 = vrot.lane.b32.xlu0 %v4414, 64
        %v4430 = vpop.permute.xlu0 %4429
        %4435 = vrot.lane.b32.xlu0 %v4362, 96
        %v4436 = vpop.permute.xlu0 %4435
        %4437 = vrot.lane.b32.xlu0 %v4416, 96
        %v4438 = vpop.permute.xlu0 %4437
        %v4441 = vsel %vm2302, %v4356, %v4420
        %v4442 = vsel %vm2302, %v4410, %v4422
        %v4443 = vsel %vm2993, %v4441, %v4428
        %v4444 = vsel %vm2993, %v4442, %v4430
        %v4445 = vsel %vm2996, %v4443, %v4436
        %v4446 = vsel %vm2996, %v4444, %v4438
        %4449 = vrot.lane.b32.xlu0 %v1480, 96
        %v4450 = vpop.permute.xlu0 %4449
        %4451 = vrot.lane.b32.xlu0 %v1482, 96
        %v4452 = vpop.permute.xlu0 %4451
        %4455 = vrot.lane.b32.xlu0 %v1480, 64
        %v4456 = vpop.permute.xlu0 %4455
        %4457 = vrot.lane.b32.xlu0 %v1482, 64
        %v4458 = vpop.permute.xlu0 %4457
        %4461 = vrot.lane.b32.xlu0 %v1480, 32
        %v4462 = vpop.permute.xlu0 %4461
        %4463 = vrot.lane.b32.xlu0 %v1482, 32
        %v4464 = vpop.permute.xlu0 %4463
        %v4467 = vrot.slane %v4456, 4
        %v4468 = vsel %vm1568, %v4467, %v1480
        %v4469 = vrot.slane %v1480, 4
        %v4470 = vsel %vm1568, %v4456, %v4469
        %v4472 = vunpack.c.l.s4 1983009808
        %v4473 = vunpack.c.0.s8 %v4472
        %v4474 = vperm.slane %v4468, %v4473
        %v4476 = vunpack.c.l.s4 1983009808
        %v4477 = vunpack.c.0.s8 %v4476
        %v4478 = vperm.slane %v4470, %v4477
        %v4479 = vrot.slane %v4462, 4
        %v4480 = vsel %vm1568, %v4479, %v4450
        %v4481 = vrot.slane %v4450, 4
        %v4482 = vsel %vm1568, %v4462, %v4481
        %v4484 = vunpack.c.l.s4 1983009808
        %v4485 = vunpack.c.0.s8 %v4484
        %v4486 = vperm.slane %v4480, %v4485
        %v4488 = vunpack.c.l.s4 1983009808
        %v4489 = vunpack.c.0.s8 %v4488
        %v4490 = vperm.slane %v4482, %v4489
        %v4491 = vrot.slane %v4486, 4
        %v4492 = vsel %vm1568, %v4491, %v4474
        %v4493 = vrot.slane %v4474, 4
        %v4494 = vsel %vm1568, %v4486, %v4493
        %v4496 = vunpack.c.l.s4 1934713408
        %v4497 = vunpack.c.0.s8 %v4496
        %v4498 = vperm.slane %v4492, %v4497
        %v4500 = vunpack.c.l.s4 1934713408
        %v4501 = vunpack.c.0.s8 %v4500
        %v4502 = vperm.slane %v4494, %v4501
        %v4503 = vrot.slane %v4490, 4
        %v4504 = vsel %vm1568, %v4503, %v4478
        %v4505 = vrot.slane %v4478, 4
        %v4506 = vsel %vm1568, %v4490, %v4505
        %v4508 = vunpack.c.l.s4 1934713408
        %v4509 = vunpack.c.0.s8 %v4508
        %v4510 = vperm.slane %v4504, %v4509
        %v4512 = vunpack.c.l.s4 1934713408
        %v4513 = vunpack.c.0.s8 %v4512
        %v4514 = vperm.slane %v4506, %v4513
        %v4515 = vrot.slane %v4498, 4
        %v4516 = vsel %vm1568, 0.0, %v4515
        %v4517 = vrot.slane %v4502, 4
        %v4518 = vsel %vm1568, 0.0, %v4517
        %v4519 = vrot.slane %v4510, 4
        %v4520 = vsel %vm1568, 0.0, %v4519
        %v4521 = vrot.slane %v4514, 4
        %v4522 = vsel %vm1568, 0.0, %v4521
        %v4523 = vrot.slane %v4458, 4
        %v4524 = vsel %vm1568, %v4523, %v1482
        %v4525 = vrot.slane %v1482, 4
        %v4526 = vsel %vm1568, %v4458, %v4525
        %v4528 = vunpack.c.l.s4 1983009808
        %v4529 = vunpack.c.0.s8 %v4528
        %v4530 = vperm.slane %v4524, %v4529
        %v4532 = vunpack.c.l.s4 1983009808
        %v4533 = vunpack.c.0.s8 %v4532
        %v4534 = vperm.slane %v4526, %v4533
        %v4535 = vrot.slane %v4464, 4
        %v4536 = vsel %vm1568, %v4535, %v4452
        %v4537 = vrot.slane %v4452, 4
        %v4538 = vsel %vm1568, %v4464, %v4537
        %v4540 = vunpack.c.l.s4 1983009808
        %v4541 = vunpack.c.0.s8 %v4540
        %v4542 = vperm.slane %v4536, %v4541
        %v4544 = vunpack.c.l.s4 1983009808
        %v4545 = vunpack.c.0.s8 %v4544
        %v4546 = vperm.slane %v4538, %v4545
        %v4547 = vrot.slane %v4542, 4
        %v4548 = vsel %vm1568, %v4547, %v4530
        %v4549 = vrot.slane %v4530, 4
        %v4550 = vsel %vm1568, %v4542, %v4549
        %v4552 = vunpack.c.l.s4 1934713408
        %v4553 = vunpack.c.0.s8 %v4552
        %v4554 = vperm.slane %v4548, %v4553
        %v4556 = vunpack.c.l.s4 1934713408
        %v4557 = vunpack.c.0.s8 %v4556
        %v4558 = vperm.slane %v4550, %v4557
        %v4559 = vrot.slane %v4546, 4
        %v4560 = vsel %vm1568, %v4559, %v4534
        %v4561 = vrot.slane %v4534, 4
        %v4562 = vsel %vm1568, %v4546, %v4561
        %v4564 = vunpack.c.l.s4 1934713408
        %v4565 = vunpack.c.0.s8 %v4564
        %v4566 = vperm.slane %v4560, %v4565
        %v4568 = vunpack.c.l.s4 1934713408
        %v4569 = vunpack.c.0.s8 %v4568
        %v4570 = vperm.slane %v4562, %v4569
        %v4571 = vrot.slane %v4554, 4
        %v4572 = vsel %vm1568, 0.0, %v4571
        %v4573 = vrot.slane %v4558, 4
        %v4574 = vsel %vm1568, 0.0, %v4573
        %v4575 = vrot.slane %v4566, 4
        %v4576 = vsel %vm1568, 0.0, %v4575
        %v4577 = vrot.slane %v4570, 4
        %v4578 = vsel %vm1568, 0.0, %v4577
        %4581 = vrot.lane.b32.xlu0 %v1509, 96
        %v4582 = vpop.permute.xlu0 %4581
        %4583 = vrot.lane.b32.xlu0 %v1511, 96
        %v4584 = vpop.permute.xlu0 %4583
        %4587 = vrot.lane.b32.xlu0 %v1509, 64
        %v4588 = vpop.permute.xlu0 %4587
        %4589 = vrot.lane.b32.xlu0 %v1511, 64
        %v4590 = vpop.permute.xlu0 %4589
        %4593 = vrot.lane.b32.xlu0 %v1509, 32
        %v4594 = vpop.permute.xlu0 %4593
        %4595 = vrot.lane.b32.xlu0 %v1511, 32
        %v4596 = vpop.permute.xlu0 %4595
        %v4599 = vrot.slane %v4588, 4
        %v4600 = vsel %vm1568, %v4599, %v1509
        %v4601 = vrot.slane %v1509, 4
        %v4602 = vsel %vm1568, %v4588, %v4601
        %v4604 = vunpack.c.l.s4 1983009808
        %v4605 = vunpack.c.0.s8 %v4604
        %v4606 = vperm.slane %v4600, %v4605
        %v4608 = vunpack.c.l.s4 1983009808
        %v4609 = vunpack.c.0.s8 %v4608
        %v4610 = vperm.slane %v4602, %v4609
        %v4611 = vrot.slane %v4594, 4
        %v4612 = vsel %vm1568, %v4611, %v4582
        %v4613 = vrot.slane %v4582, 4
        %v4614 = vsel %vm1568, %v4594, %v4613
        %v4616 = vunpack.c.l.s4 1983009808
        %v4617 = vunpack.c.0.s8 %v4616
        %v4618 = vperm.slane %v4612, %v4617
        %v4620 = vunpack.c.l.s4 1983009808
        %v4621 = vunpack.c.0.s8 %v4620
        %v4622 = vperm.slane %v4614, %v4621
        %v4623 = vrot.slane %v4618, 4
        %v4624 = vsel %vm1568, %v4623, %v4606
        %v4625 = vrot.slane %v4606, 4
        %v4626 = vsel %vm1568, %v4618, %v4625
        %v4628 = vunpack.c.l.s4 1934713408
        %v4629 = vunpack.c.0.s8 %v4628
        %v4630 = vperm.slane %v4624, %v4629
        %v4632 = vunpack.c.l.s4 1934713408
        %v4633 = vunpack.c.0.s8 %v4632
        %v4634 = vperm.slane %v4626, %v4633
        %v4635 = vrot.slane %v4622, 4
        %v4636 = vsel %vm1568, %v4635, %v4610
        %v4637 = vrot.slane %v4610, 4
        %v4638 = vsel %vm1568, %v4622, %v4637
        %v4640 = vunpack.c.l.s4 1934713408
        %v4641 = vunpack.c.0.s8 %v4640
        %v4642 = vperm.slane %v4636, %v4641
        %v4644 = vunpack.c.l.s4 1934713408
        %v4645 = vunpack.c.0.s8 %v4644
        %v4646 = vperm.slane %v4638, %v4645
        %v4647 = vrot.slane %v4630, 4
        %v4648 = vsel %vm1568, 0.0, %v4647
        %v4649 = vrot.slane %v4634, 4
        %v4650 = vsel %vm1568, 0.0, %v4649
        %v4651 = vrot.slane %v4642, 4
        %v4652 = vsel %vm1568, 0.0, %v4651
        %v4653 = vrot.slane %v4646, 4
        %v4654 = vsel %vm1568, 0.0, %v4653
        %v4655 = vrot.slane %v4590, 4
        %v4656 = vsel %vm1568, %v4655, %v1511
        %v4657 = vrot.slane %v1511, 4
        %v4658 = vsel %vm1568, %v4590, %v4657
        %v4660 = vunpack.c.l.s4 1983009808
        %v4661 = vunpack.c.0.s8 %v4660
        %v4662 = vperm.slane %v4656, %v4661
        %v4664 = vunpack.c.l.s4 1983009808
        %v4665 = vunpack.c.0.s8 %v4664
        %v4666 = vperm.slane %v4658, %v4665
        %v4667 = vrot.slane %v4596, 4
        %v4668 = vsel %vm1568, %v4667, %v4584
        %v4669 = vrot.slane %v4584, 4
        %v4670 = vsel %vm1568, %v4596, %v4669
        %v4672 = vunpack.c.l.s4 1983009808
        %v4673 = vunpack.c.0.s8 %v4672
        %v4674 = vperm.slane %v4668, %v4673
        %v4676 = vunpack.c.l.s4 1983009808
        %v4677 = vunpack.c.0.s8 %v4676
        %v4678 = vperm.slane %v4670, %v4677
        %v4679 = vrot.slane %v4674, 4
        %v4680 = vsel %vm1568, %v4679, %v4662
        %v4681 = vrot.slane %v4662, 4
        %v4682 = vsel %vm1568, %v4674, %v4681
        %v4684 = vunpack.c.l.s4 1934713408
        %v4685 = vunpack.c.0.s8 %v4684
        %v4686 = vperm.slane %v4680, %v4685
        %v4688 = vunpack.c.l.s4 1934713408
        %v4689 = vunpack.c.0.s8 %v4688
        %v4690 = vperm.slane %v4682, %v4689
        %v4691 = vrot.slane %v4678, 4
        %v4692 = vsel %vm1568, %v4691, %v4666
        %v4693 = vrot.slane %v4666, 4
        %v4694 = vsel %vm1568, %v4678, %v4693
        %v4696 = vunpack.c.l.s4 1934713408
        %v4697 = vunpack.c.0.s8 %v4696
        %v4698 = vperm.slane %v4692, %v4697
        %v4700 = vunpack.c.l.s4 1934713408
        %v4701 = vunpack.c.0.s8 %v4700
        %v4702 = vperm.slane %v4694, %v4701
        %v4703 = vrot.slane %v4686, 4
        %v4704 = vsel %vm1568, 0.0, %v4703
        %v4705 = vrot.slane %v4690, 4
        %v4706 = vsel %vm1568, 0.0, %v4705
        %v4707 = vrot.slane %v4698, 4
        %v4708 = vsel %vm1568, 0.0, %v4707
        %v4709 = vrot.slane %v4702, 4
        %v4710 = vsel %vm1568, 0.0, %v4709
        %4713 = vrot.lane.b32.xlu0 %v1538, 96
        %v4714 = vpop.permute.xlu0 %4713
        %4715 = vrot.lane.b32.xlu0 %v1540, 96
        %v4716 = vpop.permute.xlu0 %4715
        %4719 = vrot.lane.b32.xlu0 %v1538, 64
        %v4720 = vpop.permute.xlu0 %4719
        %4721 = vrot.lane.b32.xlu0 %v1540, 64
        %v4722 = vpop.permute.xlu0 %4721
        %4725 = vrot.lane.b32.xlu0 %v1538, 32
        %v4726 = vpop.permute.xlu0 %4725
        %4727 = vrot.lane.b32.xlu0 %v1540, 32
        %v4728 = vpop.permute.xlu0 %4727
        %v4731 = vrot.slane %v4720, 4
        %v4732 = vsel %vm1568, %v4731, %v1538
        %v4733 = vrot.slane %v1538, 4
        %v4734 = vsel %vm1568, %v4720, %v4733
        %v4736 = vunpack.c.l.s4 1983009808
        %v4737 = vunpack.c.0.s8 %v4736
        %v4738 = vperm.slane %v4732, %v4737
        %v4740 = vunpack.c.l.s4 1983009808
        %v4741 = vunpack.c.0.s8 %v4740
        %v4742 = vperm.slane %v4734, %v4741
        %v4743 = vrot.slane %v4726, 4
        %v4744 = vsel %vm1568, %v4743, %v4714
        %v4745 = vrot.slane %v4714, 4
        %v4746 = vsel %vm1568, %v4726, %v4745
        %v4748 = vunpack.c.l.s4 1983009808
        %v4749 = vunpack.c.0.s8 %v4748
        %v4750 = vperm.slane %v4744, %v4749
        %v4752 = vunpack.c.l.s4 1983009808
        %v4753 = vunpack.c.0.s8 %v4752
        %v4754 = vperm.slane %v4746, %v4753
        %v4755 = vrot.slane %v4750, 4
        %v4756 = vsel %vm1568, %v4755, %v4738
        %v4757 = vrot.slane %v4738, 4
        %v4758 = vsel %vm1568, %v4750, %v4757
        %v4760 = vunpack.c.l.s4 1934713408
        %v4761 = vunpack.c.0.s8 %v4760
        %v4762 = vperm.slane %v4756, %v4761
        %v4764 = vunpack.c.l.s4 1934713408
        %v4765 = vunpack.c.0.s8 %v4764
        %v4766 = vperm.slane %v4758, %v4765
        %v4767 = vrot.slane %v4754, 4
        %v4768 = vsel %vm1568, %v4767, %v4742
        %v4769 = vrot.slane %v4742, 4
        %v4770 = vsel %vm1568, %v4754, %v4769
        %v4772 = vunpack.c.l.s4 1934713408
        %v4773 = vunpack.c.0.s8 %v4772
        %v4774 = vperm.slane %v4768, %v4773
        %v4776 = vunpack.c.l.s4 1934713408
        %v4777 = vunpack.c.0.s8 %v4776
        %v4778 = vperm.slane %v4770, %v4777
        %v4779 = vrot.slane %v4762, 4
        %v4780 = vsel %vm1568, 0.0, %v4779
        %v4781 = vrot.slane %v4766, 4
        %v4782 = vsel %vm1568, 0.0, %v4781
        %v4783 = vrot.slane %v4774, 4
        %v4784 = vsel %vm1568, 0.0, %v4783
        %v4785 = vrot.slane %v4778, 4
        %v4786 = vsel %vm1568, 0.0, %v4785
        %v4787 = vrot.slane %v4722, 4
        %v4788 = vsel %vm1568, %v4787, %v1540
        %v4789 = vrot.slane %v1540, 4
        %v4790 = vsel %vm1568, %v4722, %v4789
        %v4792 = vunpack.c.l.s4 1983009808
        %v4793 = vunpack.c.0.s8 %v4792
        %v4794 = vperm.slane %v4788, %v4793
        %v4796 = vunpack.c.l.s4 1983009808
        %v4797 = vunpack.c.0.s8 %v4796
        %v4798 = vperm.slane %v4790, %v4797
        %v4799 = vrot.slane %v4728, 4
        %v4800 = vsel %vm1568, %v4799, %v4716
        %v4801 = vrot.slane %v4716, 4
        %v4802 = vsel %vm1568, %v4728, %v4801
        %v4804 = vunpack.c.l.s4 1983009808
        %v4805 = vunpack.c.0.s8 %v4804
        %v4806 = vperm.slane %v4800, %v4805
        %v4808 = vunpack.c.l.s4 1983009808
        %v4809 = vunpack.c.0.s8 %v4808
        %v4810 = vperm.slane %v4802, %v4809
        %v4811 = vrot.slane %v4806, 4
        %v4812 = vsel %vm1568, %v4811, %v4794
        %v4813 = vrot.slane %v4794, 4
        %v4814 = vsel %vm1568, %v4806, %v4813
        %v4816 = vunpack.c.l.s4 1934713408
        %v4817 = vunpack.c.0.s8 %v4816
        %v4818 = vperm.slane %v4812, %v4817
        %v4820 = vunpack.c.l.s4 1934713408
        %v4821 = vunpack.c.0.s8 %v4820
        %v4822 = vperm.slane %v4814, %v4821
        %v4823 = vrot.slane %v4810, 4
        %v4824 = vsel %vm1568, %v4823, %v4798
        %v4825 = vrot.slane %v4798, 4
        %v4826 = vsel %vm1568, %v4810, %v4825
        %v4828 = vunpack.c.l.s4 1934713408
        %v4829 = vunpack.c.0.s8 %v4828
        %v4830 = vperm.slane %v4824, %v4829
        %v4832 = vunpack.c.l.s4 1934713408
        %v4833 = vunpack.c.0.s8 %v4832
        %v4834 = vperm.slane %v4826, %v4833
        %v4835 = vrot.slane %v4818, 4
        %v4836 = vsel %vm1568, 0.0, %v4835
        %v4837 = vrot.slane %v4822, 4
        %v4838 = vsel %vm1568, 0.0, %v4837
        %v4839 = vrot.slane %v4830, 4
        %v4840 = vsel %vm1568, 0.0, %v4839
        %v4841 = vrot.slane %v4834, 4
        %v4842 = vsel %vm1568, 0.0, %v4841
        %v4843 = vsel %vm1568, %v4517, %v4498
        %v4845 = vunpack.c.l.s4 1983009808
        %v4846 = vunpack.c.0.s8 %v4845
        %v4847 = vperm.slane %v4843, %v4846
        %v4848 = vrot.slane %v4518, 4
        %v4849 = vsel %vm1568, %v4848, %v4516
        %v4851 = vunpack.c.l.s4 1983009808
        %v4852 = vunpack.c.0.s8 %v4851
        %v4853 = vperm.slane %v4849, %v4852
        %v4854 = vsel %vm1568, %v4521, %v4510
        %v4856 = vunpack.c.l.s4 1983009808
        %v4857 = vunpack.c.0.s8 %v4856
        %v4858 = vperm.slane %v4854, %v4857
        %v4859 = vrot.slane %v4522, 4
        %v4860 = vsel %vm1568, %v4859, %v4520
        %v4862 = vunpack.c.l.s4 1983009808
        %v4863 = vunpack.c.0.s8 %v4862
        %v4864 = vperm.slane %v4860, %v4863
        %v4865 = vrot.slane %v4853, 4
        %v4866 = vsel %vm1568, %v4865, %v4847
        %v4867 = vrot.slane %v4847, 4
        %v4868 = vsel %vm1568, %v4853, %v4867
        %v4870 = vunpack.c.l.s4 1934713408
        %v4871 = vunpack.c.0.s8 %v4870
        %v4872 = vperm.slane %v4866, %v4871
        %v4874 = vunpack.c.l.s4 1934713408
        %v4875 = vunpack.c.0.s8 %v4874
        %v4876 = vperm.slane %v4868, %v4875
        %v4877 = vrot.slane %v4864, 4
        %v4878 = vsel %vm1568, %v4877, %v4858
        %v4879 = vrot.slane %v4858, 4
        %v4880 = vsel %vm1568, %v4864, %v4879
        %v4882 = vunpack.c.l.s4 1934713408
        %v4883 = vunpack.c.0.s8 %v4882
        %v4884 = vperm.slane %v4878, %v4883
        %v4886 = vunpack.c.l.s4 1934713408
        %v4887 = vunpack.c.0.s8 %v4886
        %v4888 = vperm.slane %v4880, %v4887
        %v4889 = vrot.slane %v4884, 4
        %v4890 = vsel %vm1568, %v4889, %v4872
        %v4891 = vrot.slane %v4872, 4
        %v4892 = vsel %vm1568, %v4884, %v4891
        %v4893 = vrot.slane %v4888, 4
        %v4894 = vsel %vm1568, %v4893, %v4876
        %v4895 = vrot.slane %v4876, 4
        %v4896 = vsel %vm1568, %v4888, %v4895
        %v4897 = vsel %vm1568, %v4573, %v4554
        %v4899 = vunpack.c.l.s4 1983009808
        %v4900 = vunpack.c.0.s8 %v4899
        %v4901 = vperm.slane %v4897, %v4900
        %v4902 = vrot.slane %v4574, 4
        %v4903 = vsel %vm1568, %v4902, %v4572
        %v4905 = vunpack.c.l.s4 1983009808
        %v4906 = vunpack.c.0.s8 %v4905
        %v4907 = vperm.slane %v4903, %v4906
        %v4908 = vsel %vm1568, %v4577, %v4566
        %v4910 = vunpack.c.l.s4 1983009808
        %v4911 = vunpack.c.0.s8 %v4910
        %v4912 = vperm.slane %v4908, %v4911
        %v4913 = vrot.slane %v4578, 4
        %v4914 = vsel %vm1568, %v4913, %v4576
        %v4916 = vunpack.c.l.s4 1983009808
        %v4917 = vunpack.c.0.s8 %v4916
        %v4918 = vperm.slane %v4914, %v4917
        %v4919 = vrot.slane %v4907, 4
        %v4920 = vsel %vm1568, %v4919, %v4901
        %v4921 = vrot.slane %v4901, 4
        %v4922 = vsel %vm1568, %v4907, %v4921
        %v4924 = vunpack.c.l.s4 1934713408
        %v4925 = vunpack.c.0.s8 %v4924
        %v4926 = vperm.slane %v4920, %v4925
        %v4928 = vunpack.c.l.s4 1934713408
        %v4929 = vunpack.c.0.s8 %v4928
        %v4930 = vperm.slane %v4922, %v4929
        %v4931 = vrot.slane %v4918, 4
        %v4932 = vsel %vm1568, %v4931, %v4912
        %v4933 = vrot.slane %v4912, 4
        %v4934 = vsel %vm1568, %v4918, %v4933
        %v4936 = vunpack.c.l.s4 1934713408
        %v4937 = vunpack.c.0.s8 %v4936
        %v4938 = vperm.slane %v4932, %v4937
        %v4940 = vunpack.c.l.s4 1934713408
        %v4941 = vunpack.c.0.s8 %v4940
        %v4942 = vperm.slane %v4934, %v4941
        %v4943 = vrot.slane %v4938, 4
        %v4944 = vsel %vm1568, %v4943, %v4926
        %v4945 = vrot.slane %v4926, 4
        %v4946 = vsel %vm1568, %v4938, %v4945
        %v4947 = vrot.slane %v4942, 4
        %v4948 = vsel %vm1568, %v4947, %v4930
        %v4949 = vrot.slane %v4930, 4
        %v4950 = vsel %vm1568, %v4942, %v4949
        %v4951 = vpack.c.bf16 %v4890, %v4890
        %v4952 = vpack.c.bf16 %v4944, %v4944
        %v4953 = vpack.c.bf16 %v4892, %v4892
        %v4954 = vpack.c.bf16 %v4946, %v4946
        %v4955 = vpack.c.bf16 %v4894, %v4894
        %v4956 = vpack.c.bf16 %v4948, %v4948
        %v4957 = vpack.c.bf16 %v4896, %v4896
        %v4958 = vpack.c.bf16 %v4950, %v4950
        %v4959 = vsel %vm1568, %v4649, %v4630
        %v4961 = vunpack.c.l.s4 1983009808
        %v4962 = vunpack.c.0.s8 %v4961
        %v4963 = vperm.slane %v4959, %v4962
        %v4964 = vrot.slane %v4650, 4
        %v4965 = vsel %vm1568, %v4964, %v4648
        %v4967 = vunpack.c.l.s4 1983009808
        %v4968 = vunpack.c.0.s8 %v4967
        %v4969 = vperm.slane %v4965, %v4968
        %v4970 = vsel %vm1568, %v4653, %v4642
        %v4972 = vunpack.c.l.s4 1983009808
        %v4973 = vunpack.c.0.s8 %v4972
        %v4974 = vperm.slane %v4970, %v4973
        %v4975 = vrot.slane %v4654, 4
        %v4976 = vsel %vm1568, %v4975, %v4652
        %v4978 = vunpack.c.l.s4 1983009808
        %v4979 = vunpack.c.0.s8 %v4978
        %v4980 = vperm.slane %v4976, %v4979
        %v4981 = vrot.slane %v4969, 4
        %v4982 = vsel %vm1568, %v4981, %v4963
        %v4983 = vrot.slane %v4963, 4
        %v4984 = vsel %vm1568, %v4969, %v4983
        %v4986 = vunpack.c.l.s4 1934713408
        %v4987 = vunpack.c.0.s8 %v4986
        %v4988 = vperm.slane %v4982, %v4987
        %v4990 = vunpack.c.l.s4 1934713408
        %v4991 = vunpack.c.0.s8 %v4990
        %v4992 = vperm.slane %v4984, %v4991
        %v4993 = vrot.slane %v4980, 4
        %v4994 = vsel %vm1568, %v4993, %v4974
        %v4995 = vrot.slane %v4974, 4
        %v4996 = vsel %vm1568, %v4980, %v4995
        %v4998 = vunpack.c.l.s4 1934713408
        %v4999 = vunpack.c.0.s8 %v4998
        %v5000 = vperm.slane %v4994, %v4999
        %v5002 = vunpack.c.l.s4 1934713408
        %v5003 = vunpack.c.0.s8 %v5002
        %v5004 = vperm.slane %v4996, %v5003
        %v5005 = vrot.slane %v5000, 4
        %v5006 = vsel %vm1568, %v5005, %v4988
        %v5007 = vrot.slane %v4988, 4
        %v5008 = vsel %vm1568, %v5000, %v5007
        %v5009 = vrot.slane %v5004, 4
        %v5010 = vsel %vm1568, %v5009, %v4992
        %v5011 = vrot.slane %v4992, 4
        %v5012 = vsel %vm1568, %v5004, %v5011
        %v5013 = vsel %vm1568, %v4705, %v4686
        %v5015 = vunpack.c.l.s4 1983009808
        %v5016 = vunpack.c.0.s8 %v5015
        %v5017 = vperm.slane %v5013, %v5016
        %v5018 = vrot.slane %v4706, 4
        %v5019 = vsel %vm1568, %v5018, %v4704
        %v5021 = vunpack.c.l.s4 1983009808
        %v5022 = vunpack.c.0.s8 %v5021
        %v5023 = vperm.slane %v5019, %v5022
        %v5024 = vsel %vm1568, %v4709, %v4698
        %v5026 = vunpack.c.l.s4 1983009808
        %v5027 = vunpack.c.0.s8 %v5026
        %v5028 = vperm.slane %v5024, %v5027
        %v5029 = vrot.slane %v4710, 4
        %v5030 = vsel %vm1568, %v5029, %v4708
        %v5032 = vunpack.c.l.s4 1983009808
        %v5033 = vunpack.c.0.s8 %v5032
        %v5034 = vperm.slane %v5030, %v5033
        %v5035 = vrot.slane %v5023, 4
        %v5036 = vsel %vm1568, %v5035, %v5017
        %v5037 = vrot.slane %v5017, 4
        %v5038 = vsel %vm1568, %v5023, %v5037
        %v5040 = vunpack.c.l.s4 1934713408
        %v5041 = vunpack.c.0.s8 %v5040
        %v5042 = vperm.slane %v5036, %v5041
        %v5044 = vunpack.c.l.s4 1934713408
        %v5045 = vunpack.c.0.s8 %v5044
        %v5046 = vperm.slane %v5038, %v5045
        %v5047 = vrot.slane %v5034, 4
        %v5048 = vsel %vm1568, %v5047, %v5028
        %v5049 = vrot.slane %v5028, 4
        %v5050 = vsel %vm1568, %v5034, %v5049
        %v5052 = vunpack.c.l.s4 1934713408
        %v5053 = vunpack.c.0.s8 %v5052
        %v5054 = vperm.slane %v5048, %v5053
        %v5056 = vunpack.c.l.s4 1934713408
        %v5057 = vunpack.c.0.s8 %v5056
        %v5058 = vperm.slane %v5050, %v5057
        %v5059 = vrot.slane %v5054, 4
        %v5060 = vsel %vm1568, %v5059, %v5042
        %v5061 = vrot.slane %v5042, 4
        %v5062 = vsel %vm1568, %v5054, %v5061
        %v5063 = vrot.slane %v5058, 4
        %v5064 = vsel %vm1568, %v5063, %v5046
        %v5065 = vrot.slane %v5046, 4
        %v5066 = vsel %vm1568, %v5058, %v5065
        %v5067 = vpack.c.bf16 %v5006, %v5006
        %v5068 = vpack.c.bf16 %v5060, %v5060
        %v5069 = vpack.c.bf16 %v5008, %v5008
        %v5070 = vpack.c.bf16 %v5062, %v5062
        %v5071 = vpack.c.bf16 %v5010, %v5010
        %v5072 = vpack.c.bf16 %v5064, %v5064
        %v5073 = vpack.c.bf16 %v5012, %v5012
        %v5074 = vpack.c.bf16 %v5066, %v5066
        %v5075 = vsel %vm1568, %v4781, %v4762
        %v5077 = vunpack.c.l.s4 1983009808
        %v5078 = vunpack.c.0.s8 %v5077
        %v5079 = vperm.slane %v5075, %v5078
        %v5080 = vrot.slane %v4782, 4
        %v5081 = vsel %vm1568, %v5080, %v4780
        %v5083 = vunpack.c.l.s4 1983009808
        %v5084 = vunpack.c.0.s8 %v5083
        %v5085 = vperm.slane %v5081, %v5084
        %v5086 = vsel %vm1568, %v4785, %v4774
        %v5088 = vunpack.c.l.s4 1983009808
        %v5089 = vunpack.c.0.s8 %v5088
        %v5090 = vperm.slane %v5086, %v5089
        %v5091 = vrot.slane %v4786, 4
        %v5092 = vsel %vm1568, %v5091, %v4784
        %v5094 = vunpack.c.l.s4 1983009808
        %v5095 = vunpack.c.0.s8 %v5094
        %v5096 = vperm.slane %v5092, %v5095
        %v5097 = vrot.slane %v5085, 4
        %v5098 = vsel %vm1568, %v5097, %v5079
        %v5099 = vrot.slane %v5079, 4
        %v5100 = vsel %vm1568, %v5085, %v5099
        %v5102 = vunpack.c.l.s4 1934713408
        %v5103 = vunpack.c.0.s8 %v5102
        %v5104 = vperm.slane %v5098, %v5103
        %v5106 = vunpack.c.l.s4 1934713408
        %v5107 = vunpack.c.0.s8 %v5106
        %v5108 = vperm.slane %v5100, %v5107
        %v5109 = vrot.slane %v5096, 4
        %v5110 = vsel %vm1568, %v5109, %v5090
        %v5111 = vrot.slane %v5090, 4
        %v5112 = vsel %vm1568, %v5096, %v5111
        %v5114 = vunpack.c.l.s4 1934713408
        %v5115 = vunpack.c.0.s8 %v5114
        %v5116 = vperm.slane %v5110, %v5115
        %v5118 = vunpack.c.l.s4 1934713408
        %v5119 = vunpack.c.0.s8 %v5118
        %v5120 = vperm.slane %v5112, %v5119
        %v5121 = vrot.slane %v5116, 4
        %v5122 = vsel %vm1568, %v5121, %v5104
        %v5123 = vrot.slane %v5104, 4
        %v5124 = vsel %vm1568, %v5116, %v5123
        %v5125 = vrot.slane %v5120, 4
        %v5126 = vsel %vm1568, %v5125, %v5108
        %v5127 = vrot.slane %v5108, 4
        %v5128 = vsel %vm1568, %v5120, %v5127
        %v5129 = vsel %vm1568, %v4837, %v4818
        %v5131 = vunpack.c.l.s4 1983009808
        %v5132 = vunpack.c.0.s8 %v5131
        %v5133 = vperm.slane %v5129, %v5132
        %v5134 = vrot.slane %v4838, 4
        %v5135 = vsel %vm1568, %v5134, %v4836
        %v5137 = vunpack.c.l.s4 1983009808
        %v5138 = vunpack.c.0.s8 %v5137
        %v5139 = vperm.slane %v5135, %v5138
        %v5140 = vsel %vm1568, %v4841, %v4830
        %v5142 = vunpack.c.l.s4 1983009808
        %v5143 = vunpack.c.0.s8 %v5142
        %v5144 = vperm.slane %v5140, %v5143
        %v5145 = vrot.slane %v4842, 4
        %v5146 = vsel %vm1568, %v5145, %v4840
        %v5148 = vunpack.c.l.s4 1983009808
        %v5149 = vunpack.c.0.s8 %v5148
        %v5150 = vperm.slane %v5146, %v5149
        %v5151 = vrot.slane %v5139, 4
        %v5152 = vsel %vm1568, %v5151, %v5133
        %v5153 = vrot.slane %v5133, 4
        %v5154 = vsel %vm1568, %v5139, %v5153
        %v5156 = vunpack.c.l.s4 1934713408
        %v5157 = vunpack.c.0.s8 %v5156
        %v5158 = vperm.slane %v5152, %v5157
        %v5160 = vunpack.c.l.s4 1934713408
        %v5161 = vunpack.c.0.s8 %v5160
        %v5162 = vperm.slane %v5154, %v5161
        %v5163 = vrot.slane %v5150, 4
        %v5164 = vsel %vm1568, %v5163, %v5144
        %v5165 = vrot.slane %v5144, 4
        %v5166 = vsel %vm1568, %v5150, %v5165
        %v5168 = vunpack.c.l.s4 1934713408
        %v5169 = vunpack.c.0.s8 %v5168
        %v5170 = vperm.slane %v5164, %v5169
        %v5172 = vunpack.c.l.s4 1934713408
        %v5173 = vunpack.c.0.s8 %v5172
        %v5174 = vperm.slane %v5166, %v5173
        %v5175 = vrot.slane %v5170, 4
        %v5176 = vsel %vm1568, %v5175, %v5158
        %v5177 = vrot.slane %v5158, 4
        %v5178 = vsel %vm1568, %v5170, %v5177
        %v5179 = vrot.slane %v5174, 4
        %v5180 = vsel %vm1568, %v5179, %v5162
        %v5181 = vrot.slane %v5162, 4
        %v5182 = vsel %vm1568, %v5174, %v5181
        %v5183 = vpack.c.bf16 %v5122, %v5122
        %v5184 = vpack.c.bf16 %v5176, %v5176
        %v5185 = vpack.c.bf16 %v5124, %v5124
        %v5186 = vpack.c.bf16 %v5178, %v5178
        %v5187 = vpack.c.bf16 %v5126, %v5126
        %v5188 = vpack.c.bf16 %v5180, %v5180
        %v5189 = vpack.c.bf16 %v5128, %v5128
        %v5190 = vpack.c.bf16 %v5182, %v5182
        %v5193 = vunpack.c.l.b16 %v4951
        %v5194 = vunpack.c.l.b16 %v4952
        %v5195 = vpack.c.b16 %v5194, %v5193
        %v5198 = vunpack.c.l.b16 %v5067
        %v5199 = vunpack.c.l.b16 %v5068
        %v5200 = vpack.c.b16 %v5199, %v5198
        %v5202 = vsel %vm2302, %v5195, 0
        %v5205 = vsel %vm2302, %v5200, 0
        %5207 = vmatpush.bf16.xpose.msra.mxu0 0
        %5208 = vmatpush.bf16.xpose.msra.mxu0 0
        %5209 = vmatpush.bf16.xpose.msra.mxu0 0
        %5210 = vmatpush.bf16.xpose.msra.mxu0 0
        %5211 = vmatpush.bf16.xpose.msra.mxu0 0
        %5212 = vmatpush.bf16.xpose.msra.mxu0 0
        %5213 = vmatpush.bf16.xpose.msra.mxu0 0
        %5214 = vmatpush.bf16.xpose.msra.mxu0 %v5205
        %5215 = vmatmul.bf16.gmra.mxu0 %v5202
        %v5216 = vpop.f32.mrf.mxu0
        %v5217 = vadd.f32 0.0, %v5216
        %v5218 = vpop.f32.mrf.mxu0
        %v5219 = vadd.f32 0.0, %v5218
        %5220 = vdwg.mxu0
        %v5223 = vunpack.c.l.b16 %v4953
        %v5224 = vunpack.c.l.b16 %v4954
        %v5225 = vpack.c.b16 %v5224, %v5223
        %v5228 = vunpack.c.l.b16 %v5069
        %v5229 = vunpack.c.l.b16 %v5070
        %v5230 = vpack.c.b16 %v5229, %v5228
        %v5232 = vsel %vm2302, %v5225, 0
        %v5235 = vsel %vm2302, %v5230, 0
        %5237 = vmatpush.bf16.xpose.msra.mxu0 0
        %5238 = vmatpush.bf16.xpose.msra.mxu0 0
        %5239 = vmatpush.bf16.xpose.msra.mxu0 0
        %5240 = vmatpush.bf16.xpose.msra.mxu0 0
        %5241 = vmatpush.bf16.xpose.msra.mxu0 0
        %5242 = vmatpush.bf16.xpose.msra.mxu0 0
        %5243 = vmatpush.bf16.xpose.msra.mxu0 0
        %5244 = vmatpush.bf16.xpose.msra.mxu0 %v5235
        %5245 = vmatmul.bf16.gmra.mxu0 %v5232
        %v5246 = vpop.f32.mrf.mxu0
        %v5247 = vadd.f32 0.0, %v5246
        %v5248 = vpop.f32.mrf.mxu0
        %v5249 = vadd.f32 0.0, %v5248
        %5250 = vdwg.mxu0
        %v5253 = vunpack.c.l.b16 %v4955
        %v5254 = vunpack.c.l.b16 %v4956
        %v5255 = vpack.c.b16 %v5254, %v5253
        %v5258 = vunpack.c.l.b16 %v5071
        %v5259 = vunpack.c.l.b16 %v5072
        %v5260 = vpack.c.b16 %v5259, %v5258
        %v5262 = vsel %vm2302, %v5255, 0
        %v5265 = vsel %vm2302, %v5260, 0
        %5267 = vmatpush.bf16.xpose.msra.mxu0 0
        %5268 = vmatpush.bf16.xpose.msra.mxu0 0
        %5269 = vmatpush.bf16.xpose.msra.mxu0 0
        %5270 = vmatpush.bf16.xpose.msra.mxu0 0
        %5271 = vmatpush.bf16.xpose.msra.mxu0 0
        %5272 = vmatpush.bf16.xpose.msra.mxu0 0
        %5273 = vmatpush.bf16.xpose.msra.mxu0 0
        %5274 = vmatpush.bf16.xpose.msra.mxu0 %v5265
        %5275 = vmatmul.bf16.gmra.mxu0 %v5262
        %v5276 = vpop.f32.mrf.mxu0
        %v5277 = vadd.f32 0.0, %v5276
        %v5278 = vpop.f32.mrf.mxu0
        %v5279 = vadd.f32 0.0, %v5278
        %5280 = vdwg.mxu0
        %v5283 = vunpack.c.l.b16 %v4957
        %v5284 = vunpack.c.l.b16 %v4958
        %v5285 = vpack.c.b16 %v5284, %v5283
        %v5288 = vunpack.c.l.b16 %v5073
        %v5289 = vunpack.c.l.b16 %v5074
        %v5290 = vpack.c.b16 %v5289, %v5288
        %v5292 = vsel %vm2302, %v5285, 0
        %v5295 = vsel %vm2302, %v5290, 0
        %5297 = vmatpush.bf16.xpose.msra.mxu0 0
        %5298 = vmatpush.bf16.xpose.msra.mxu0 0
        %5299 = vmatpush.bf16.xpose.msra.mxu0 0
        %5300 = vmatpush.bf16.xpose.msra.mxu0 0
        %5301 = vmatpush.bf16.xpose.msra.mxu0 0
        %5302 = vmatpush.bf16.xpose.msra.mxu0 0
        %5303 = vmatpush.bf16.xpose.msra.mxu0 0
        %5304 = vmatpush.bf16.xpose.msra.mxu0 %v5295
        %5305 = vmatmul.bf16.gmra.mxu0 %v5292
        %v5306 = vpop.f32.mrf.mxu0
        %v5307 = vadd.f32 0.0, %v5306
        %v5308 = vpop.f32.mrf.mxu0
        %v5309 = vadd.f32 0.0, %v5308
        %5310 = vdwg.mxu0
        %v5311 = vmul.f32 %v5217, 0.17677669
        %v5312 = vmul.f32 %v5219, 0.17677669
        %v5313 = vmul.f32 %v5247, 0.17677669
        %v5314 = vmul.f32 %v5249, 0.17677669
        %v5315 = vmul.f32 %v5277, 0.17677669
        %v5316 = vmul.f32 %v5279, 0.17677669
        %v5317 = vmul.f32 %v5307, 0.17677669
        %v5318 = vmul.f32 %v5309, 0.17677669
        %s5319 = scalar_lea.vmem %s835, 2 [#allocation3]
        %v5320 = vld [vmem:[%s5319] sm:$0x1]
        %vm5321 = vcmp.gt.f32.partialorder %v5320, 0.0
        %v5322 = vsel %vm5321, 1, 0
        %v5323 = vperm.slane %v5322, 0
        %vm5324 = vcmp.eq.s32.totalorder %v5323, 1
        %v5325 = vsel %vm5324, %v5311, -1e+09
        %v5326 = vsel %vm5324, %v5312, -1e+09
        %v5327 = vsel %vm5324, %v5313, -1e+09
        %v5328 = vsel %vm5324, %v5314, -1e+09
        %v5329 = vsel %vm5324, %v5315, -1e+09
        %v5330 = vsel %vm5324, %v5316, -1e+09
        %v5331 = vsel %vm5324, %v5317, -1e+09
        %v5332 = vsel %vm5324, %v5318, -1e+09
        %v5333 = vsel %vm2434, %v5325, -inf
        %5334 = vmax.xlane.f32.xlu0 %v5333
        %v5335 = vpop.xlane.xlu0 %5334
        %v5336 = vsel %vm2434, %v5326, -inf
        %5337 = vmax.xlane.f32.xlu0 %v5336
        %v5338 = vpop.xlane.xlu0 %5337
        %v5339 = vsel %vm2434, %v5327, -inf
        %5340 = vmax.xlane.f32.xlu0 %v5339
        %v5341 = vpop.xlane.xlu0 %5340
        %v5342 = vsel %vm2434, %v5328, -inf
        %5343 = vmax.xlane.f32.xlu0 %v5342
        %v5344 = vpop.xlane.xlu0 %5343
        %v5345 = vsel %vm2434, %v5329, -inf
        %5346 = vmax.xlane.f32.xlu0 %v5345
        %v5347 = vpop.xlane.xlu0 %5346
        %v5348 = vsel %vm2434, %v5330, -inf
        %5349 = vmax.xlane.f32.xlu0 %v5348
        %v5350 = vpop.xlane.xlu0 %5349
        %v5351 = vsel %vm2434, %v5331, -inf
        %5352 = vmax.xlane.f32.xlu0 %v5351
        %v5353 = vpop.xlane.xlu0 %5352
        %v5354 = vsel %vm2434, %v5332, -inf
        %5355 = vmax.xlane.f32.xlu0 %v5354
        %v5356 = vpop.xlane.xlu0 %5355
        %v5357 = vsub.f32 %v5325, %v5335
        %v5358 = vsub.f32 %v5326, %v5338
        %v5359 = vsub.f32 %v5327, %v5341
        %v5360 = vsub.f32 %v5328, %v5344
        %v5361 = vsub.f32 %v5329, %v5347
        %v5362 = vsub.f32 %v5330, %v5350
        %v5363 = vsub.f32 %v5331, %v5353
        %v5364 = vsub.f32 %v5332, %v5356
        %v5365 = vmul.f32 %v5357, 1.442695
        %v5366 = vpow.pop %v5365
        %v5367 = vmul.f32 %v5358, 1.442695
        %v5368 = vpow.pop %v5367
        %v5369 = vmul.f32 %v5359, 1.442695
        %v5370 = vpow.pop %v5369
        %v5371 = vmul.f32 %v5360, 1.442695
        %v5372 = vpow.pop %v5371
        %v5373 = vmul.f32 %v5361, 1.442695
        %v5374 = vpow.pop %v5373
        %v5375 = vmul.f32 %v5362, 1.442695
        %v5376 = vpow.pop %v5375
        %v5377 = vmul.f32 %v5363, 1.442695
        %v5378 = vpow.pop %v5377
        %v5379 = vmul.f32 %v5364, 1.442695
        %v5380 = vpow.pop %v5379
        %v5381 = vsel %vm2434, %v5366, 0.0
        %5382 = vadd.xlane.f32.xlu0 %v5381
        %v5383 = vpop.xlane.xlu0 %5382
        %v5384 = vsel %vm2434, %v5368, 0.0
        %5385 = vadd.xlane.f32.xlu0 %v5384
        %v5386 = vpop.xlane.xlu0 %5385
        %v5387 = vsel %vm2434, %v5370, 0.0
        %5388 = vadd.xlane.f32.xlu0 %v5387
        %v5389 = vpop.xlane.xlu0 %5388
        %v5390 = vsel %vm2434, %v5372, 0.0
        %5391 = vadd.xlane.f32.xlu0 %v5390
        %v5392 = vpop.xlane.xlu0 %5391
        %v5393 = vsel %vm2434, %v5374, 0.0
        %5394 = vadd.xlane.f32.xlu0 %v5393
        %v5395 = vpop.xlane.xlu0 %5394
        %v5396 = vsel %vm2434, %v5376, 0.0
        %5397 = vadd.xlane.f32.xlu0 %v5396
        %v5398 = vpop.xlane.xlu0 %5397
        %v5399 = vsel %vm2434, %v5378, 0.0
        %5400 = vadd.xlane.f32.xlu0 %v5399
        %v5401 = vpop.xlane.xlu0 %5400
        %v5402 = vsel %vm2434, %v5380, 0.0
        %5403 = vadd.xlane.f32.xlu0 %v5402
        %v5404 = vpop.xlane.xlu0 %5403
        %v5405 = vrcp.pop %v5383
        %v5406 = vmul.f32 %v5383, %v5405
        %v5407 = vsub.f32 1.0, %v5406
        %v5408 = vmul.f32 %v5405, %v5407
        %v5409 = vadd.f32 %v5405, %v5408
        %vm5410 = vweird.f32 %v5383
        %vm5411 = vweird.f32 %v5405
        %vm5412 = vmor %vm5410, %vm5411
        %v5413 = vsel %vm5412, %v5405, %v5409
        %v5414 = vand.u32 2147483647, %v5383
        %vm5415 = vcmp.eq.f32.partialorder %v5414, 8.507059e+37
        %v5416 = vand.u32 %v5383, 2147483648
        %v5417 = vor.u32 1.1754944e-38, %v5416
        %v5418 = vsel %vm5415, %v5417, %v5413
        %v5419 = vmul.f32 %v5366, %v5418
        %v5420 = vrcp.pop %v5386
        %v5421 = vmul.f32 %v5386, %v5420
        %v5422 = vsub.f32 1.0, %v5421
        %v5423 = vmul.f32 %v5420, %v5422
        %v5424 = vadd.f32 %v5420, %v5423
        %vm5425 = vweird.f32 %v5386
        %vm5426 = vweird.f32 %v5420
        %vm5427 = vmor %vm5425, %vm5426
        %v5428 = vsel %vm5427, %v5420, %v5424
        %v5429 = vand.u32 2147483647, %v5386
        %vm5430 = vcmp.eq.f32.partialorder %v5429, 8.507059e+37
        %v5431 = vand.u32 %v5386, 2147483648
        %v5432 = vor.u32 1.1754944e-38, %v5431
        %v5433 = vsel %vm5430, %v5432, %v5428
        %v5434 = vmul.f32 %v5368, %v5433
        %v5435 = vrcp.pop %v5389
        %v5436 = vmul.f32 %v5389, %v5435
        %v5437 = vsub.f32 1.0, %v5436
        %v5438 = vmul.f32 %v5435, %v5437
        %v5439 = vadd.f32 %v5435, %v5438
        %vm5440 = vweird.f32 %v5389
        %vm5441 = vweird.f32 %v5435
        %vm5442 = vmor %vm5440, %vm5441
        %v5443 = vsel %vm5442, %v5435, %v5439
        %v5444 = vand.u32 2147483647, %v5389
        %vm5445 = vcmp.eq.f32.partialorder %v5444, 8.507059e+37
        %v5446 = vand.u32 %v5389, 2147483648
        %v5447 = vor.u32 1.1754944e-38, %v5446
        %v5448 = vsel %vm5445, %v5447, %v5443
        %v5449 = vmul.f32 %v5370, %v5448
        %v5450 = vrcp.pop %v5392
        %v5451 = vmul.f32 %v5392, %v5450
        %v5452 = vsub.f32 1.0, %v5451
        %v5453 = vmul.f32 %v5450, %v5452
        %v5454 = vadd.f32 %v5450, %v5453
        %vm5455 = vweird.f32 %v5392
        %vm5456 = vweird.f32 %v5450
        %vm5457 = vmor %vm5455, %vm5456
        %v5458 = vsel %vm5457, %v5450, %v5454
        %v5459 = vand.u32 2147483647, %v5392
        %vm5460 = vcmp.eq.f32.partialorder %v5459, 8.507059e+37
        %v5461 = vand.u32 %v5392, 2147483648
        %v5462 = vor.u32 1.1754944e-38, %v5461
        %v5463 = vsel %vm5460, %v5462, %v5458
        %v5464 = vmul.f32 %v5372, %v5463
        %v5465 = vrcp.pop %v5395
        %v5466 = vmul.f32 %v5395, %v5465
        %v5467 = vsub.f32 1.0, %v5466
        %v5468 = vmul.f32 %v5465, %v5467
        %v5469 = vadd.f32 %v5465, %v5468
        %vm5470 = vweird.f32 %v5395
        %vm5471 = vweird.f32 %v5465
        %vm5472 = vmor %vm5470, %vm5471
        %v5473 = vsel %vm5472, %v5465, %v5469
        %v5474 = vand.u32 2147483647, %v5395
        %vm5475 = vcmp.eq.f32.partialorder %v5474, 8.507059e+37
        %v5476 = vand.u32 %v5395, 2147483648
        %v5477 = vor.u32 1.1754944e-38, %v5476
        %v5478 = vsel %vm5475, %v5477, %v5473
        %v5479 = vmul.f32 %v5374, %v5478
        %v5480 = vrcp.pop %v5398
        %v5481 = vmul.f32 %v5398, %v5480
        %v5482 = vsub.f32 1.0, %v5481
        %v5483 = vmul.f32 %v5480, %v5482
        %v5484 = vadd.f32 %v5480, %v5483
        %vm5485 = vweird.f32 %v5398
        %vm5486 = vweird.f32 %v5480
        %vm5487 = vmor %vm5485, %vm5486
        %v5488 = vsel %vm5487, %v5480, %v5484
        %v5489 = vand.u32 2147483647, %v5398
        %vm5490 = vcmp.eq.f32.partialorder %v5489, 8.507059e+37
        %v5491 = vand.u32 %v5398, 2147483648
        %v5492 = vor.u32 1.1754944e-38, %v5491
        %v5493 = vsel %vm5490, %v5492, %v5488
        %v5494 = vmul.f32 %v5376, %v5493
        %v5495 = vrcp.pop %v5401
        %v5496 = vmul.f32 %v5401, %v5495
        %v5497 = vsub.f32 1.0, %v5496
        %v5498 = vmul.f32 %v5495, %v5497
        %v5499 = vadd.f32 %v5495, %v5498
        %vm5500 = vweird.f32 %v5401
        %vm5501 = vweird.f32 %v5495
        %vm5502 = vmor %vm5500, %vm5501
        %v5503 = vsel %vm5502, %v5495, %v5499
        %v5504 = vand.u32 2147483647, %v5401
        %vm5505 = vcmp.eq.f32.partialorder %v5504, 8.507059e+37
        %v5506 = vand.u32 %v5401, 2147483648
        %v5507 = vor.u32 1.1754944e-38, %v5506
        %v5508 = vsel %vm5505, %v5507, %v5503
        %v5509 = vmul.f32 %v5378, %v5508
        %v5510 = vrcp.pop %v5404
        %v5511 = vmul.f32 %v5404, %v5510
        %v5512 = vsub.f32 1.0, %v5511
        %v5513 = vmul.f32 %v5510, %v5512
        %v5514 = vadd.f32 %v5510, %v5513
        %vm5515 = vweird.f32 %v5404
        %vm5516 = vweird.f32 %v5510
        %vm5517 = vmor %vm5515, %vm5516
        %v5518 = vsel %vm5517, %v5510, %v5514
        %v5519 = vand.u32 2147483647, %v5404
        %vm5520 = vcmp.eq.f32.partialorder %v5519, 8.507059e+37
        %v5521 = vand.u32 %v5404, 2147483648
        %v5522 = vor.u32 1.1754944e-38, %v5521
        %v5523 = vsel %vm5520, %v5522, %v5518
        %v5524 = vmul.f32 %v5380, %v5523
        %v5525 = vpack.c.bf16 %v5419, %v5419
        %v5526 = vpack.c.bf16 %v5434, %v5434
        %v5527 = vpack.c.bf16 %v5449, %v5449
        %v5528 = vpack.c.bf16 %v5464, %v5464
        %v5529 = vpack.c.bf16 %v5479, %v5479
        %v5530 = vpack.c.bf16 %v5494, %v5494
        %v5531 = vpack.c.bf16 %v5509, %v5509
        %v5532 = vpack.c.bf16 %v5524, %v5524
        %v5535 = vunpack.c.l.b16 %v5525
        %v5536 = vunpack.c.l.b16 %v5526
        %v5537 = vpack.c.b16 %v5536, %v5535
        %v5540 = vunpack.c.l.b16 %v5183
        %v5541 = vunpack.c.l.b16 %v5184
        %v5542 = vpack.c.b16 %v5541, %v5540
        %v5545 = vsel %vm2434, %v5537, 0
        %5547 = vmatpush.bf16.msra.mxu0 0
        %5548 = vmatpush.bf16.msra.mxu0 0
        %5549 = vmatpush.bf16.msra.mxu0 0
        %5550 = vmatpush.bf16.msra.mxu0 0
        %5551 = vmatpush.bf16.msra.mxu0 0
        %5552 = vmatpush.bf16.msra.mxu0 0
        %5553 = vmatpush.bf16.msra.mxu0 0
        %5554 = vmatpush.bf16.msra.mxu0 %v5542
        %5555 = vmatmul.bf16.gmra.mxu0 %v5545
        %v5556 = vpop.f32.mrf.mxu0
        %v5557 = vadd.f32 0.0, %v5556
        %v5558 = vpop.f32.mrf.mxu0
        %v5559 = vadd.f32 0.0, %v5558
        %5560 = vdwg.mxu0
        %v5563 = vunpack.c.l.b16 %v5527
        %v5564 = vunpack.c.l.b16 %v5528
        %v5565 = vpack.c.b16 %v5564, %v5563
        %v5568 = vunpack.c.l.b16 %v5185
        %v5569 = vunpack.c.l.b16 %v5186
        %v5570 = vpack.c.b16 %v5569, %v5568
        %v5573 = vsel %vm2434, %v5565, 0
        %5575 = vmatpush.bf16.msra.mxu0 0
        %5576 = vmatpush.bf16.msra.mxu0 0
        %5577 = vmatpush.bf16.msra.mxu0 0
        %5578 = vmatpush.bf16.msra.mxu0 0
        %5579 = vmatpush.bf16.msra.mxu0 0
        %5580 = vmatpush.bf16.msra.mxu0 0
        %5581 = vmatpush.bf16.msra.mxu0 0
        %5582 = vmatpush.bf16.msra.mxu0 %v5570
        %5583 = vmatmul.bf16.gmra.mxu0 %v5573
        %v5584 = vpop.f32.mrf.mxu0
        %v5585 = vadd.f32 0.0, %v5584
        %v5586 = vpop.f32.mrf.mxu0
        %v5587 = vadd.f32 0.0, %v5586
        %5588 = vdwg.mxu0
        %v5591 = vunpack.c.l.b16 %v5529
        %v5592 = vunpack.c.l.b16 %v5530
        %v5593 = vpack.c.b16 %v5592, %v5591
        %v5596 = vunpack.c.l.b16 %v5187
        %v5597 = vunpack.c.l.b16 %v5188
        %v5598 = vpack.c.b16 %v5597, %v5596
        %v5601 = vsel %vm2434, %v5593, 0
        %5603 = vmatpush.bf16.msra.mxu0 0
        %5604 = vmatpush.bf16.msra.mxu0 0
        %5605 = vmatpush.bf16.msra.mxu0 0
        %5606 = vmatpush.bf16.msra.mxu0 0
        %5607 = vmatpush.bf16.msra.mxu0 0
        %5608 = vmatpush.bf16.msra.mxu0 0
        %5609 = vmatpush.bf16.msra.mxu0 0
        %5610 = vmatpush.bf16.msra.mxu0 %v5598
        %5611 = vmatmul.bf16.gmra.mxu0 %v5601
        %v5612 = vpop.f32.mrf.mxu0
        %v5613 = vadd.f32 0.0, %v5612
        %v5614 = vpop.f32.mrf.mxu0
        %v5615 = vadd.f32 0.0, %v5614
        %5616 = vdwg.mxu0
        %v5619 = vunpack.c.l.b16 %v5531
        %v5620 = vunpack.c.l.b16 %v5532
        %v5621 = vpack.c.b16 %v5620, %v5619
        %v5624 = vunpack.c.l.b16 %v5189
        %v5625 = vunpack.c.l.b16 %v5190
        %v5626 = vpack.c.b16 %v5625, %v5624
        %v5629 = vsel %vm2434, %v5621, 0
        %5631 = vmatpush.bf16.msra.mxu0 0
        %5632 = vmatpush.bf16.msra.mxu0 0
        %5633 = vmatpush.bf16.msra.mxu0 0
        %5634 = vmatpush.bf16.msra.mxu0 0
        %5635 = vmatpush.bf16.msra.mxu0 0
        %5636 = vmatpush.bf16.msra.mxu0 0
        %5637 = vmatpush.bf16.msra.mxu0 0
        %5638 = vmatpush.bf16.msra.mxu0 %v5626
        %5639 = vmatmul.bf16.gmra.mxu0 %v5629
        %v5640 = vpop.f32.mrf.mxu0
        %v5641 = vadd.f32 0.0, %v5640
        %v5642 = vpop.f32.mrf.mxu0
        %v5643 = vadd.f32 0.0, %v5642
        %5644 = vdwg.mxu0
        %v5645 = vrot.slane %v5613, 4
        %v5646 = vsel %vm1568, %v5645, %v5557
        %v5647 = vrot.slane %v5557, 4
        %v5648 = vsel %vm1568, %v5613, %v5647
        %v5650 = vunpack.c.l.s4 1983009808
        %v5651 = vunpack.c.0.s8 %v5650
        %v5652 = vperm.slane %v5646, %v5651
        %v5654 = vunpack.c.l.s4 1983009808
        %v5655 = vunpack.c.0.s8 %v5654
        %v5656 = vperm.slane %v5648, %v5655
        %v5657 = vrot.slane %v5641, 4
        %v5658 = vsel %vm1568, %v5657, %v5585
        %v5659 = vrot.slane %v5585, 4
        %v5660 = vsel %vm1568, %v5641, %v5659
        %v5662 = vunpack.c.l.s4 1983009808
        %v5663 = vunpack.c.0.s8 %v5662
        %v5664 = vperm.slane %v5658, %v5663
        %v5666 = vunpack.c.l.s4 1983009808
        %v5667 = vunpack.c.0.s8 %v5666
        %v5668 = vperm.slane %v5660, %v5667
        %v5669 = vrot.slane %v5664, 4
        %v5670 = vsel %vm1568, %v5669, %v5652
        %v5671 = vrot.slane %v5652, 4
        %v5672 = vsel %vm1568, %v5664, %v5671
        %v5674 = vunpack.c.l.s4 1934713408
        %v5675 = vunpack.c.0.s8 %v5674
        %v5676 = vperm.slane %v5670, %v5675
        %v5678 = vunpack.c.l.s4 1934713408
        %v5679 = vunpack.c.0.s8 %v5678
        %v5680 = vperm.slane %v5672, %v5679
        %v5681 = vrot.slane %v5668, 4
        %v5682 = vsel %vm1568, %v5681, %v5656
        %v5683 = vrot.slane %v5656, 4
        %v5684 = vsel %vm1568, %v5668, %v5683
        %v5686 = vunpack.c.l.s4 1934713408
        %v5687 = vunpack.c.0.s8 %v5686
        %v5688 = vperm.slane %v5682, %v5687
        %v5690 = vunpack.c.l.s4 1934713408
        %v5691 = vunpack.c.0.s8 %v5690
        %v5692 = vperm.slane %v5684, %v5691
        %v5693 = vrot.slane %v5676, 4
        %v5694 = vsel %vm1568, 0.0, %v5693
        %v5695 = vrot.slane %v5680, 4
        %v5696 = vsel %vm1568, 0.0, %v5695
        %v5697 = vrot.slane %v5688, 4
        %v5698 = vsel %vm1568, 0.0, %v5697
        %v5699 = vrot.slane %v5692, 4
        %v5700 = vsel %vm1568, 0.0, %v5699
        %v5701 = vrot.slane %v5615, 4
        %v5702 = vsel %vm1568, %v5701, %v5559
        %v5703 = vrot.slane %v5559, 4
        %v5704 = vsel %vm1568, %v5615, %v5703
        %v5706 = vunpack.c.l.s4 1983009808
        %v5707 = vunpack.c.0.s8 %v5706
        %v5708 = vperm.slane %v5702, %v5707
        %v5710 = vunpack.c.l.s4 1983009808
        %v5711 = vunpack.c.0.s8 %v5710
        %v5712 = vperm.slane %v5704, %v5711
        %v5713 = vrot.slane %v5643, 4
        %v5714 = vsel %vm1568, %v5713, %v5587
        %v5715 = vrot.slane %v5587, 4
        %v5716 = vsel %vm1568, %v5643, %v5715
        %v5718 = vunpack.c.l.s4 1983009808
        %v5719 = vunpack.c.0.s8 %v5718
        %v5720 = vperm.slane %v5714, %v5719
        %v5722 = vunpack.c.l.s4 1983009808
        %v5723 = vunpack.c.0.s8 %v5722
        %v5724 = vperm.slane %v5716, %v5723
        %v5725 = vrot.slane %v5720, 4
        %v5726 = vsel %vm1568, %v5725, %v5708
        %v5727 = vrot.slane %v5708, 4
        %v5728 = vsel %vm1568, %v5720, %v5727
        %v5730 = vunpack.c.l.s4 1934713408
        %v5731 = vunpack.c.0.s8 %v5730
        %v5732 = vperm.slane %v5726, %v5731
        %v5734 = vunpack.c.l.s4 1934713408
        %v5735 = vunpack.c.0.s8 %v5734
        %v5736 = vperm.slane %v5728, %v5735
        %v5737 = vrot.slane %v5724, 4
        %v5738 = vsel %vm1568, %v5737, %v5712
        %v5739 = vrot.slane %v5712, 4
        %v5740 = vsel %vm1568, %v5724, %v5739
        %v5742 = vunpack.c.l.s4 1934713408
        %v5743 = vunpack.c.0.s8 %v5742
        %v5744 = vperm.slane %v5738, %v5743
        %v5746 = vunpack.c.l.s4 1934713408
        %v5747 = vunpack.c.0.s8 %v5746
        %v5748 = vperm.slane %v5740, %v5747
        %v5749 = vrot.slane %v5732, 4
        %v5750 = vsel %vm1568, 0.0, %v5749
        %v5751 = vrot.slane %v5736, 4
        %v5752 = vsel %vm1568, 0.0, %v5751
        %v5753 = vrot.slane %v5744, 4
        %v5754 = vsel %vm1568, 0.0, %v5753
        %v5755 = vrot.slane %v5748, 4
        %v5756 = vsel %vm1568, 0.0, %v5755
        %v5757 = vsel %vm1568, %v5695, %v5676
        %v5759 = vunpack.c.l.s4 1983009808
        %v5760 = vunpack.c.0.s8 %v5759
        %v5761 = vperm.slane %v5757, %v5760
        %v5762 = vrot.slane %v5696, 4
        %v5763 = vsel %vm1568, %v5762, %v5694
        %v5765 = vunpack.c.l.s4 1983009808
        %v5766 = vunpack.c.0.s8 %v5765
        %v5767 = vperm.slane %v5763, %v5766
        %v5768 = vsel %vm1568, %v5699, %v5688
        %v5770 = vunpack.c.l.s4 1983009808
        %v5771 = vunpack.c.0.s8 %v5770
        %v5772 = vperm.slane %v5768, %v5771
        %v5773 = vrot.slane %v5700, 4
        %v5774 = vsel %vm1568, %v5773, %v5698
        %v5776 = vunpack.c.l.s4 1983009808
        %v5777 = vunpack.c.0.s8 %v5776
        %v5778 = vperm.slane %v5774, %v5777
        %v5779 = vrot.slane %v5767, 4
        %v5780 = vsel %vm1568, %v5779, %v5761
        %v5781 = vrot.slane %v5761, 4
        %v5782 = vsel %vm1568, %v5767, %v5781
        %v5784 = vunpack.c.l.s4 1934713408
        %v5785 = vunpack.c.0.s8 %v5784
        %v5786 = vperm.slane %v5780, %v5785
        %v5788 = vunpack.c.l.s4 1934713408
        %v5789 = vunpack.c.0.s8 %v5788
        %v5790 = vperm.slane %v5782, %v5789
        %v5791 = vrot.slane %v5778, 4
        %v5792 = vsel %vm1568, %v5791, %v5772
        %v5793 = vrot.slane %v5772, 4
        %v5794 = vsel %vm1568, %v5778, %v5793
        %v5796 = vunpack.c.l.s4 1934713408
        %v5797 = vunpack.c.0.s8 %v5796
        %v5798 = vperm.slane %v5792, %v5797
        %v5800 = vunpack.c.l.s4 1934713408
        %v5801 = vunpack.c.0.s8 %v5800
        %v5802 = vperm.slane %v5794, %v5801
        %v5803 = vrot.slane %v5798, 4
        %v5804 = vsel %vm1568, %v5803, %v5786
        %v5805 = vrot.slane %v5786, 4
        %v5806 = vsel %vm1568, %v5798, %v5805
        %v5807 = vrot.slane %v5802, 4
        %v5808 = vsel %vm1568, %v5807, %v5790
        %v5809 = vrot.slane %v5790, 4
        %v5810 = vsel %vm1568, %v5802, %v5809
        %v5811 = vsel %vm1568, %v5751, %v5732
        %v5813 = vunpack.c.l.s4 1983009808
        %v5814 = vunpack.c.0.s8 %v5813
        %v5815 = vperm.slane %v5811, %v5814
        %v5816 = vrot.slane %v5752, 4
        %v5817 = vsel %vm1568, %v5816, %v5750
        %v5819 = vunpack.c.l.s4 1983009808
        %v5820 = vunpack.c.0.s8 %v5819
        %v5821 = vperm.slane %v5817, %v5820
        %v5822 = vsel %vm1568, %v5755, %v5744
        %v5824 = vunpack.c.l.s4 1983009808
        %v5825 = vunpack.c.0.s8 %v5824
        %v5826 = vperm.slane %v5822, %v5825
        %v5827 = vrot.slane %v5756, 4
        %v5828 = vsel %vm1568, %v5827, %v5754
        %v5830 = vunpack.c.l.s4 1983009808
        %v5831 = vunpack.c.0.s8 %v5830
        %v5832 = vperm.slane %v5828, %v5831
        %v5833 = vrot.slane %v5821, 4
        %v5834 = vsel %vm1568, %v5833, %v5815
        %v5835 = vrot.slane %v5815, 4
        %v5836 = vsel %vm1568, %v5821, %v5835
        %v5838 = vunpack.c.l.s4 1934713408
        %v5839 = vunpack.c.0.s8 %v5838
        %v5840 = vperm.slane %v5834, %v5839
        %v5842 = vunpack.c.l.s4 1934713408
        %v5843 = vunpack.c.0.s8 %v5842
        %v5844 = vperm.slane %v5836, %v5843
        %v5845 = vrot.slane %v5832, 4
        %v5846 = vsel %vm1568, %v5845, %v5826
        %v5847 = vrot.slane %v5826, 4
        %v5848 = vsel %vm1568, %v5832, %v5847
        %v5850 = vunpack.c.l.s4 1934713408
        %v5851 = vunpack.c.0.s8 %v5850
        %v5852 = vperm.slane %v5846, %v5851
        %v5854 = vunpack.c.l.s4 1934713408
        %v5855 = vunpack.c.0.s8 %v5854
        %v5856 = vperm.slane %v5848, %v5855
        %v5857 = vrot.slane %v5852, 4
        %v5858 = vsel %vm1568, %v5857, %v5840
        %v5859 = vrot.slane %v5840, 4
        %v5860 = vsel %vm1568, %v5852, %v5859
        %v5861 = vrot.slane %v5856, 4
        %v5862 = vsel %vm1568, %v5861, %v5844
        %v5863 = vrot.slane %v5844, 4
        %v5864 = vsel %vm1568, %v5856, %v5863
        %5867 = vrot.lane.b32.xlu0 %v5806, 32
        %v5868 = vpop.permute.xlu0 %5867
        %5869 = vrot.lane.b32.xlu0 %v5860, 32
        %v5870 = vpop.permute.xlu0 %5869
        %5875 = vrot.lane.b32.xlu0 %v5808, 64
        %v5876 = vpop.permute.xlu0 %5875
        %5877 = vrot.lane.b32.xlu0 %v5862, 64
        %v5878 = vpop.permute.xlu0 %5877
        %5883 = vrot.lane.b32.xlu0 %v5810, 96
        %v5884 = vpop.permute.xlu0 %5883
        %5885 = vrot.lane.b32.xlu0 %v5864, 96
        %v5886 = vpop.permute.xlu0 %5885
        %v5889 = vsel %vm2302, %v5804, %v5868
        %v5890 = vsel %vm2302, %v5858, %v5870
        %v5891 = vsel %vm2993, %v5889, %v5876
        %v5892 = vsel %vm2993, %v5890, %v5878
        %v5893 = vsel %vm2996, %v5891, %v5884
        %v5894 = vsel %vm2996, %v5892, %v5886
        %5897 = vrot.lane.b32.xlu0 %v1485, 96
        %v5898 = vpop.permute.xlu0 %5897
        %5899 = vrot.lane.b32.xlu0 %v1487, 96
        %v5900 = vpop.permute.xlu0 %5899
        %5903 = vrot.lane.b32.xlu0 %v1485, 64
        %v5904 = vpop.permute.xlu0 %5903
        %5905 = vrot.lane.b32.xlu0 %v1487, 64
        %v5906 = vpop.permute.xlu0 %5905
        %5909 = vrot.lane.b32.xlu0 %v1485, 32
        %v5910 = vpop.permute.xlu0 %5909
        %5911 = vrot.lane.b32.xlu0 %v1487, 32
        %v5912 = vpop.permute.xlu0 %5911
        %v5915 = vrot.slane %v5904, 4
        %v5916 = vsel %vm1568, %v5915, %v1485
        %v5917 = vrot.slane %v1485, 4
        %v5918 = vsel %vm1568, %v5904, %v5917
        %v5920 = vunpack.c.l.s4 1983009808
        %v5921 = vunpack.c.0.s8 %v5920
        %v5922 = vperm.slane %v5916, %v5921
        %v5924 = vunpack.c.l.s4 1983009808
        %v5925 = vunpack.c.0.s8 %v5924
        %v5926 = vperm.slane %v5918, %v5925
        %v5927 = vrot.slane %v5910, 4
        %v5928 = vsel %vm1568, %v5927, %v5898
        %v5929 = vrot.slane %v5898, 4
        %v5930 = vsel %vm1568, %v5910, %v5929
        %v5932 = vunpack.c.l.s4 1983009808
        %v5933 = vunpack.c.0.s8 %v5932
        %v5934 = vperm.slane %v5928, %v5933
        %v5936 = vunpack.c.l.s4 1983009808
        %v5937 = vunpack.c.0.s8 %v5936
        %v5938 = vperm.slane %v5930, %v5937
        %v5939 = vrot.slane %v5934, 4
        %v5940 = vsel %vm1568, %v5939, %v5922
        %v5941 = vrot.slane %v5922, 4
        %v5942 = vsel %vm1568, %v5934, %v5941
        %v5944 = vunpack.c.l.s4 1934713408
        %v5945 = vunpack.c.0.s8 %v5944
        %v5946 = vperm.slane %v5940, %v5945
        %v5948 = vunpack.c.l.s4 1934713408
        %v5949 = vunpack.c.0.s8 %v5948
        %v5950 = vperm.slane %v5942, %v5949
        %v5951 = vrot.slane %v5938, 4
        %v5952 = vsel %vm1568, %v5951, %v5926
        %v5953 = vrot.slane %v5926, 4
        %v5954 = vsel %vm1568, %v5938, %v5953
        %v5956 = vunpack.c.l.s4 1934713408
        %v5957 = vunpack.c.0.s8 %v5956
        %v5958 = vperm.slane %v5952, %v5957
        %v5960 = vunpack.c.l.s4 1934713408
        %v5961 = vunpack.c.0.s8 %v5960
        %v5962 = vperm.slane %v5954, %v5961
        %v5963 = vrot.slane %v5946, 4
        %v5964 = vsel %vm1568, 0.0, %v5963
        %v5965 = vrot.slane %v5950, 4
        %v5966 = vsel %vm1568, 0.0, %v5965
        %v5967 = vrot.slane %v5958, 4
        %v5968 = vsel %vm1568, 0.0, %v5967
        %v5969 = vrot.slane %v5962, 4
        %v5970 = vsel %vm1568, 0.0, %v5969
        %v5971 = vrot.slane %v5906, 4
        %v5972 = vsel %vm1568, %v5971, %v1487
        %v5973 = vrot.slane %v1487, 4
        %v5974 = vsel %vm1568, %v5906, %v5973
        %v5976 = vunpack.c.l.s4 1983009808
        %v5977 = vunpack.c.0.s8 %v5976
        %v5978 = vperm.slane %v5972, %v5977
        %v5980 = vunpack.c.l.s4 1983009808
        %v5981 = vunpack.c.0.s8 %v5980
        %v5982 = vperm.slane %v5974, %v5981
        %v5983 = vrot.slane %v5912, 4
        %v5984 = vsel %vm1568, %v5983, %v5900
        %v5985 = vrot.slane %v5900, 4
        %v5986 = vsel %vm1568, %v5912, %v5985
        %v5988 = vunpack.c.l.s4 1983009808
        %v5989 = vunpack.c.0.s8 %v5988
        %v5990 = vperm.slane %v5984, %v5989
        %v5992 = vunpack.c.l.s4 1983009808
        %v5993 = vunpack.c.0.s8 %v5992
        %v5994 = vperm.slane %v5986, %v5993
        %v5995 = vrot.slane %v5990, 4
        %v5996 = vsel %vm1568, %v5995, %v5978
        %v5997 = vrot.slane %v5978, 4
        %v5998 = vsel %vm1568, %v5990, %v5997
        %v6000 = vunpack.c.l.s4 1934713408
        %v6001 = vunpack.c.0.s8 %v6000
        %v6002 = vperm.slane %v5996, %v6001
        %v6004 = vunpack.c.l.s4 1934713408
        %v6005 = vunpack.c.0.s8 %v6004
        %v6006 = vperm.slane %v5998, %v6005
        %v6007 = vrot.slane %v5994, 4
        %v6008 = vsel %vm1568, %v6007, %v5982
        %v6009 = vrot.slane %v5982, 4
        %v6010 = vsel %vm1568, %v5994, %v6009
        %v6012 = vunpack.c.l.s4 1934713408
        %v6013 = vunpack.c.0.s8 %v6012
        %v6014 = vperm.slane %v6008, %v6013
        %v6016 = vunpack.c.l.s4 1934713408
        %v6017 = vunpack.c.0.s8 %v6016
        %v6018 = vperm.slane %v6010, %v6017
        %v6019 = vrot.slane %v6002, 4
        %v6020 = vsel %vm1568, 0.0, %v6019
        %v6021 = vrot.slane %v6006, 4
        %v6022 = vsel %vm1568, 0.0, %v6021
        %v6023 = vrot.slane %v6014, 4
        %v6024 = vsel %vm1568, 0.0, %v6023
        %v6025 = vrot.slane %v6018, 4
        %v6026 = vsel %vm1568, 0.0, %v6025
        %6029 = vrot.lane.b32.xlu0 %v1514, 96
        %v6030 = vpop.permute.xlu0 %6029
        %6031 = vrot.lane.b32.xlu0 %v1516, 96
        %v6032 = vpop.permute.xlu0 %6031
        %6035 = vrot.lane.b32.xlu0 %v1514, 64
        %v6036 = vpop.permute.xlu0 %6035
        %6037 = vrot.lane.b32.xlu0 %v1516, 64
        %v6038 = vpop.permute.xlu0 %6037
        %6041 = vrot.lane.b32.xlu0 %v1514, 32
        %v6042 = vpop.permute.xlu0 %6041
        %6043 = vrot.lane.b32.xlu0 %v1516, 32
        %v6044 = vpop.permute.xlu0 %6043
        %v6047 = vrot.slane %v6036, 4
        %v6048 = vsel %vm1568, %v6047, %v1514
        %v6049 = vrot.slane %v1514, 4
        %v6050 = vsel %vm1568, %v6036, %v6049
        %v6052 = vunpack.c.l.s4 1983009808
        %v6053 = vunpack.c.0.s8 %v6052
        %v6054 = vperm.slane %v6048, %v6053
        %v6056 = vunpack.c.l.s4 1983009808
        %v6057 = vunpack.c.0.s8 %v6056
        %v6058 = vperm.slane %v6050, %v6057
        %v6059 = vrot.slane %v6042, 4
        %v6060 = vsel %vm1568, %v6059, %v6030
        %v6061 = vrot.slane %v6030, 4
        %v6062 = vsel %vm1568, %v6042, %v6061
        %v6064 = vunpack.c.l.s4 1983009808
        %v6065 = vunpack.c.0.s8 %v6064
        %v6066 = vperm.slane %v6060, %v6065
        %v6068 = vunpack.c.l.s4 1983009808
        %v6069 = vunpack.c.0.s8 %v6068
        %v6070 = vperm.slane %v6062, %v6069
        %v6071 = vrot.slane %v6066, 4
        %v6072 = vsel %vm1568, %v6071, %v6054
        %v6073 = vrot.slane %v6054, 4
        %v6074 = vsel %vm1568, %v6066, %v6073
        %v6076 = vunpack.c.l.s4 1934713408
        %v6077 = vunpack.c.0.s8 %v6076
        %v6078 = vperm.slane %v6072, %v6077
        %v6080 = vunpack.c.l.s4 1934713408
        %v6081 = vunpack.c.0.s8 %v6080
        %v6082 = vperm.slane %v6074, %v6081
        %v6083 = vrot.slane %v6070, 4
        %v6084 = vsel %vm1568, %v6083, %v6058
        %v6085 = vrot.slane %v6058, 4
        %v6086 = vsel %vm1568, %v6070, %v6085
        %v6088 = vunpack.c.l.s4 1934713408
        %v6089 = vunpack.c.0.s8 %v6088
        %v6090 = vperm.slane %v6084, %v6089
        %v6092 = vunpack.c.l.s4 1934713408
        %v6093 = vunpack.c.0.s8 %v6092
        %v6094 = vperm.slane %v6086, %v6093
        %v6095 = vrot.slane %v6078, 4
        %v6096 = vsel %vm1568, 0.0, %v6095
        %v6097 = vrot.slane %v6082, 4
        %v6098 = vsel %vm1568, 0.0, %v6097
        %v6099 = vrot.slane %v6090, 4
        %v6100 = vsel %vm1568, 0.0, %v6099
        %v6101 = vrot.slane %v6094, 4
        %v6102 = vsel %vm1568, 0.0, %v6101
        %v6103 = vrot.slane %v6038, 4
        %v6104 = vsel %vm1568, %v6103, %v1516
        %v6105 = vrot.slane %v1516, 4
        %v6106 = vsel %vm1568, %v6038, %v6105
        %v6108 = vunpack.c.l.s4 1983009808
        %v6109 = vunpack.c.0.s8 %v6108
        %v6110 = vperm.slane %v6104, %v6109
        %v6112 = vunpack.c.l.s4 1983009808
        %v6113 = vunpack.c.0.s8 %v6112
        %v6114 = vperm.slane %v6106, %v6113
        %v6115 = vrot.slane %v6044, 4
        %v6116 = vsel %vm1568, %v6115, %v6032
        %v6117 = vrot.slane %v6032, 4
        %v6118 = vsel %vm1568, %v6044, %v6117
        %v6120 = vunpack.c.l.s4 1983009808
        %v6121 = vunpack.c.0.s8 %v6120
        %v6122 = vperm.slane %v6116, %v6121
        %v6124 = vunpack.c.l.s4 1983009808
        %v6125 = vunpack.c.0.s8 %v6124
        %v6126 = vperm.slane %v6118, %v6125
        %v6127 = vrot.slane %v6122, 4
        %v6128 = vsel %vm1568, %v6127, %v6110
        %v6129 = vrot.slane %v6110, 4
        %v6130 = vsel %vm1568, %v6122, %v6129
        %v6132 = vunpack.c.l.s4 1934713408
        %v6133 = vunpack.c.0.s8 %v6132
        %v6134 = vperm.slane %v6128, %v6133
        %v6136 = vunpack.c.l.s4 1934713408
        %v6137 = vunpack.c.0.s8 %v6136
        %v6138 = vperm.slane %v6130, %v6137
        %v6139 = vrot.slane %v6126, 4
        %v6140 = vsel %vm1568, %v6139, %v6114
        %v6141 = vrot.slane %v6114, 4
        %v6142 = vsel %vm1568, %v6126, %v6141
        %v6144 = vunpack.c.l.s4 1934713408
        %v6145 = vunpack.c.0.s8 %v6144
        %v6146 = vperm.slane %v6140, %v6145
        %v6148 = vunpack.c.l.s4 1934713408
        %v6149 = vunpack.c.0.s8 %v6148
        %v6150 = vperm.slane %v6142, %v6149
        %v6151 = vrot.slane %v6134, 4
        %v6152 = vsel %vm1568, 0.0, %v6151
        %v6153 = vrot.slane %v6138, 4
        %v6154 = vsel %vm1568, 0.0, %v6153
        %v6155 = vrot.slane %v6146, 4
        %v6156 = vsel %vm1568, 0.0, %v6155
        %v6157 = vrot.slane %v6150, 4
        %v6158 = vsel %vm1568, 0.0, %v6157
        %6161 = vrot.lane.b32.xlu0 %v1543, 96
        %v6162 = vpop.permute.xlu0 %6161
        %6163 = vrot.lane.b32.xlu0 %v1545, 96
        %v6164 = vpop.permute.xlu0 %6163
        %6167 = vrot.lane.b32.xlu0 %v1543, 64
        %v6168 = vpop.permute.xlu0 %6167
        %6169 = vrot.lane.b32.xlu0 %v1545, 64
        %v6170 = vpop.permute.xlu0 %6169
        %6173 = vrot.lane.b32.xlu0 %v1543, 32
        %v6174 = vpop.permute.xlu0 %6173
        %6175 = vrot.lane.b32.xlu0 %v1545, 32
        %v6176 = vpop.permute.xlu0 %6175
        %v6179 = vrot.slane %v6168, 4
        %v6180 = vsel %vm1568, %v6179, %v1543
        %v6181 = vrot.slane %v1543, 4
        %v6182 = vsel %vm1568, %v6168, %v6181
        %v6184 = vunpack.c.l.s4 1983009808
        %v6185 = vunpack.c.0.s8 %v6184
        %v6186 = vperm.slane %v6180, %v6185
        %v6188 = vunpack.c.l.s4 1983009808
        %v6189 = vunpack.c.0.s8 %v6188
        %v6190 = vperm.slane %v6182, %v6189
        %v6191 = vrot.slane %v6174, 4
        %v6192 = vsel %vm1568, %v6191, %v6162
        %v6193 = vrot.slane %v6162, 4
        %v6194 = vsel %vm1568, %v6174, %v6193
        %v6196 = vunpack.c.l.s4 1983009808
        %v6197 = vunpack.c.0.s8 %v6196
        %v6198 = vperm.slane %v6192, %v6197
        %v6200 = vunpack.c.l.s4 1983009808
        %v6201 = vunpack.c.0.s8 %v6200
        %v6202 = vperm.slane %v6194, %v6201
        %v6203 = vrot.slane %v6198, 4
        %v6204 = vsel %vm1568, %v6203, %v6186
        %v6205 = vrot.slane %v6186, 4
        %v6206 = vsel %vm1568, %v6198, %v6205
        %v6208 = vunpack.c.l.s4 1934713408
        %v6209 = vunpack.c.0.s8 %v6208
        %v6210 = vperm.slane %v6204, %v6209
        %v6212 = vunpack.c.l.s4 1934713408
        %v6213 = vunpack.c.0.s8 %v6212
        %v6214 = vperm.slane %v6206, %v6213
        %v6215 = vrot.slane %v6202, 4
        %v6216 = vsel %vm1568, %v6215, %v6190
        %v6217 = vrot.slane %v6190, 4
        %v6218 = vsel %vm1568, %v6202, %v6217
        %v6220 = vunpack.c.l.s4 1934713408
        %v6221 = vunpack.c.0.s8 %v6220
        %v6222 = vperm.slane %v6216, %v6221
        %v6224 = vunpack.c.l.s4 1934713408
        %v6225 = vunpack.c.0.s8 %v6224
        %v6226 = vperm.slane %v6218, %v6225
        %v6227 = vrot.slane %v6210, 4
        %v6228 = vsel %vm1568, 0.0, %v6227
        %v6229 = vrot.slane %v6214, 4
        %v6230 = vsel %vm1568, 0.0, %v6229
        %v6231 = vrot.slane %v6222, 4
        %v6232 = vsel %vm1568, 0.0, %v6231
        %v6233 = vrot.slane %v6226, 4
        %v6234 = vsel %vm1568, 0.0, %v6233
        %v6235 = vrot.slane %v6170, 4
        %v6236 = vsel %vm1568, %v6235, %v1545
        %v6237 = vrot.slane %v1545, 4
        %v6238 = vsel %vm1568, %v6170, %v6237
        %v6240 = vunpack.c.l.s4 1983009808
        %v6241 = vunpack.c.0.s8 %v6240
        %v6242 = vperm.slane %v6236, %v6241
        %v6244 = vunpack.c.l.s4 1983009808
        %v6245 = vunpack.c.0.s8 %v6244
        %v6246 = vperm.slane %v6238, %v6245
        %v6247 = vrot.slane %v6176, 4
        %v6248 = vsel %vm1568, %v6247, %v6164
        %v6249 = vrot.slane %v6164, 4
        %v6250 = vsel %vm1568, %v6176, %v6249
        %v6252 = vunpack.c.l.s4 1983009808
        %v6253 = vunpack.c.0.s8 %v6252
        %v6254 = vperm.slane %v6248, %v6253
        %v6256 = vunpack.c.l.s4 1983009808
        %v6257 = vunpack.c.0.s8 %v6256
        %v6258 = vperm.slane %v6250, %v6257
        %v6259 = vrot.slane %v6254, 4
        %v6260 = vsel %vm1568, %v6259, %v6242
        %v6261 = vrot.slane %v6242, 4
        %v6262 = vsel %vm1568, %v6254, %v6261
        %v6264 = vunpack.c.l.s4 1934713408
        %v6265 = vunpack.c.0.s8 %v6264
        %v6266 = vperm.slane %v6260, %v6265
        %v6268 = vunpack.c.l.s4 1934713408
        %v6269 = vunpack.c.0.s8 %v6268
        %v6270 = vperm.slane %v6262, %v6269
        %v6271 = vrot.slane %v6258, 4
        %v6272 = vsel %vm1568, %v6271, %v6246
        %v6273 = vrot.slane %v6246, 4
        %v6274 = vsel %vm1568, %v6258, %v6273
        %v6276 = vunpack.c.l.s4 1934713408
        %v6277 = vunpack.c.0.s8 %v6276
        %v6278 = vperm.slane %v6272, %v6277
        %v6280 = vunpack.c.l.s4 1934713408
        %v6281 = vunpack.c.0.s8 %v6280
        %v6282 = vperm.slane %v6274, %v6281
        %v6283 = vrot.slane %v6266, 4
        %v6284 = vsel %vm1568, 0.0, %v6283
        %v6285 = vrot.slane %v6270, 4
        %v6286 = vsel %vm1568, 0.0, %v6285
        %v6287 = vrot.slane %v6278, 4
        %v6288 = vsel %vm1568, 0.0, %v6287
        %v6289 = vrot.slane %v6282, 4
        %v6290 = vsel %vm1568, 0.0, %v6289
        %v6291 = vsel %vm1568, %v5965, %v5946
        %v6293 = vunpack.c.l.s4 1983009808
        %v6294 = vunpack.c.0.s8 %v6293
        %v6295 = vperm.slane %v6291, %v6294
        %v6296 = vrot.slane %v5966, 4
        %v6297 = vsel %vm1568, %v6296, %v5964
        %v6299 = vunpack.c.l.s4 1983009808
        %v6300 = vunpack.c.0.s8 %v6299
        %v6301 = vperm.slane %v6297, %v6300
        %v6302 = vsel %vm1568, %v5969, %v5958
        %v6304 = vunpack.c.l.s4 1983009808
        %v6305 = vunpack.c.0.s8 %v6304
        %v6306 = vperm.slane %v6302, %v6305
        %v6307 = vrot.slane %v5970, 4
        %v6308 = vsel %vm1568, %v6307, %v5968
        %v6310 = vunpack.c.l.s4 1983009808
        %v6311 = vunpack.c.0.s8 %v6310
        %v6312 = vperm.slane %v6308, %v6311
        %v6313 = vrot.slane %v6301, 4
        %v6314 = vsel %vm1568, %v6313, %v6295
        %v6315 = vrot.slane %v6295, 4
        %v6316 = vsel %vm1568, %v6301, %v6315
        %v6318 = vunpack.c.l.s4 1934713408
        %v6319 = vunpack.c.0.s8 %v6318
        %v6320 = vperm.slane %v6314, %v6319
        %v6322 = vunpack.c.l.s4 1934713408
        %v6323 = vunpack.c.0.s8 %v6322
        %v6324 = vperm.slane %v6316, %v6323
        %v6325 = vrot.slane %v6312, 4
        %v6326 = vsel %vm1568, %v6325, %v6306
        %v6327 = vrot.slane %v6306, 4
        %v6328 = vsel %vm1568, %v6312, %v6327
        %v6330 = vunpack.c.l.s4 1934713408
        %v6331 = vunpack.c.0.s8 %v6330
        %v6332 = vperm.slane %v6326, %v6331
        %v6334 = vunpack.c.l.s4 1934713408
        %v6335 = vunpack.c.0.s8 %v6334
        %v6336 = vperm.slane %v6328, %v6335
        %v6337 = vrot.slane %v6332, 4
        %v6338 = vsel %vm1568, %v6337, %v6320
        %v6339 = vrot.slane %v6320, 4
        %v6340 = vsel %vm1568, %v6332, %v6339
        %v6341 = vrot.slane %v6336, 4
        %v6342 = vsel %vm1568, %v6341, %v6324
        %v6343 = vrot.slane %v6324, 4
        %v6344 = vsel %vm1568, %v6336, %v6343
        %v6345 = vsel %vm1568, %v6021, %v6002
        %v6347 = vunpack.c.l.s4 1983009808
        %v6348 = vunpack.c.0.s8 %v6347
        %v6349 = vperm.slane %v6345, %v6348
        %v6350 = vrot.slane %v6022, 4
        %v6351 = vsel %vm1568, %v6350, %v6020
        %v6353 = vunpack.c.l.s4 1983009808
        %v6354 = vunpack.c.0.s8 %v6353
        %v6355 = vperm.slane %v6351, %v6354
        %v6356 = vsel %vm1568, %v6025, %v6014
        %v6358 = vunpack.c.l.s4 1983009808
        %v6359 = vunpack.c.0.s8 %v6358
        %v6360 = vperm.slane %v6356, %v6359
        %v6361 = vrot.slane %v6026, 4
        %v6362 = vsel %vm1568, %v6361, %v6024
        %v6364 = vunpack.c.l.s4 1983009808
        %v6365 = vunpack.c.0.s8 %v6364
        %v6366 = vperm.slane %v6362, %v6365
        %v6367 = vrot.slane %v6355, 4
        %v6368 = vsel %vm1568, %v6367, %v6349
        %v6369 = vrot.slane %v6349, 4
        %v6370 = vsel %vm1568, %v6355, %v6369
        %v6372 = vunpack.c.l.s4 1934713408
        %v6373 = vunpack.c.0.s8 %v6372
        %v6374 = vperm.slane %v6368, %v6373
        %v6376 = vunpack.c.l.s4 1934713408
        %v6377 = vunpack.c.0.s8 %v6376
        %v6378 = vperm.slane %v6370, %v6377
        %v6379 = vrot.slane %v6366, 4
        %v6380 = vsel %vm1568, %v6379, %v6360
        %v6381 = vrot.slane %v6360, 4
        %v6382 = vsel %vm1568, %v6366, %v6381
        %v6384 = vunpack.c.l.s4 1934713408
        %v6385 = vunpack.c.0.s8 %v6384
        %v6386 = vperm.slane %v6380, %v6385
        %v6388 = vunpack.c.l.s4 1934713408
        %v6389 = vunpack.c.0.s8 %v6388
        %v6390 = vperm.slane %v6382, %v6389
        %v6391 = vrot.slane %v6386, 4
        %v6392 = vsel %vm1568, %v6391, %v6374
        %v6393 = vrot.slane %v6374, 4
        %v6394 = vsel %vm1568, %v6386, %v6393
        %v6395 = vrot.slane %v6390, 4
        %v6396 = vsel %vm1568, %v6395, %v6378
        %v6397 = vrot.slane %v6378, 4
        %v6398 = vsel %vm1568, %v6390, %v6397
        %v6399 = vpack.c.bf16 %v6338, %v6338
        %v6400 = vpack.c.bf16 %v6392, %v6392
        %v6401 = vpack.c.bf16 %v6340, %v6340
        %v6402 = vpack.c.bf16 %v6394, %v6394
        %v6403 = vpack.c.bf16 %v6342, %v6342
        %v6404 = vpack.c.bf16 %v6396, %v6396
        %v6405 = vpack.c.bf16 %v6344, %v6344
        %v6406 = vpack.c.bf16 %v6398, %v6398
        %v6407 = vsel %vm1568, %v6097, %v6078
        %v6409 = vunpack.c.l.s4 1983009808
        %v6410 = vunpack.c.0.s8 %v6409
        %v6411 = vperm.slane %v6407, %v6410
        %v6412 = vrot.slane %v6098, 4
        %v6413 = vsel %vm1568, %v6412, %v6096
        %v6415 = vunpack.c.l.s4 1983009808
        %v6416 = vunpack.c.0.s8 %v6415
        %v6417 = vperm.slane %v6413, %v6416
        %v6418 = vsel %vm1568, %v6101, %v6090
        %v6420 = vunpack.c.l.s4 1983009808
        %v6421 = vunpack.c.0.s8 %v6420
        %v6422 = vperm.slane %v6418, %v6421
        %v6423 = vrot.slane %v6102, 4
        %v6424 = vsel %vm1568, %v6423, %v6100
        %v6426 = vunpack.c.l.s4 1983009808
        %v6427 = vunpack.c.0.s8 %v6426
        %v6428 = vperm.slane %v6424, %v6427
        %v6429 = vrot.slane %v6417, 4
        %v6430 = vsel %vm1568, %v6429, %v6411
        %v6431 = vrot.slane %v6411, 4
        %v6432 = vsel %vm1568, %v6417, %v6431
        %v6434 = vunpack.c.l.s4 1934713408
        %v6435 = vunpack.c.0.s8 %v6434
        %v6436 = vperm.slane %v6430, %v6435
        %v6438 = vunpack.c.l.s4 1934713408
        %v6439 = vunpack.c.0.s8 %v6438
        %v6440 = vperm.slane %v6432, %v6439
        %v6441 = vrot.slane %v6428, 4
        %v6442 = vsel %vm1568, %v6441, %v6422
        %v6443 = vrot.slane %v6422, 4
        %v6444 = vsel %vm1568, %v6428, %v6443
        %v6446 = vunpack.c.l.s4 1934713408
        %v6447 = vunpack.c.0.s8 %v6446
        %v6448 = vperm.slane %v6442, %v6447
        %v6450 = vunpack.c.l.s4 1934713408
        %v6451 = vunpack.c.0.s8 %v6450
        %v6452 = vperm.slane %v6444, %v6451
        %v6453 = vrot.slane %v6448, 4
        %v6454 = vsel %vm1568, %v6453, %v6436
        %v6455 = vrot.slane %v6436, 4
        %v6456 = vsel %vm1568, %v6448, %v6455
        %v6457 = vrot.slane %v6452, 4
        %v6458 = vsel %vm1568, %v6457, %v6440
        %v6459 = vrot.slane %v6440, 4
        %v6460 = vsel %vm1568, %v6452, %v6459
        %v6461 = vsel %vm1568, %v6153, %v6134
        %v6463 = vunpack.c.l.s4 1983009808
        %v6464 = vunpack.c.0.s8 %v6463
        %v6465 = vperm.slane %v6461, %v6464
        %v6466 = vrot.slane %v6154, 4
        %v6467 = vsel %vm1568, %v6466, %v6152
        %v6469 = vunpack.c.l.s4 1983009808
        %v6470 = vunpack.c.0.s8 %v6469
        %v6471 = vperm.slane %v6467, %v6470
        %v6472 = vsel %vm1568, %v6157, %v6146
        %v6474 = vunpack.c.l.s4 1983009808
        %v6475 = vunpack.c.0.s8 %v6474
        %v6476 = vperm.slane %v6472, %v6475
        %v6477 = vrot.slane %v6158, 4
        %v6478 = vsel %vm1568, %v6477, %v6156
        %v6480 = vunpack.c.l.s4 1983009808
        %v6481 = vunpack.c.0.s8 %v6480
        %v6482 = vperm.slane %v6478, %v6481
        %v6483 = vrot.slane %v6471, 4
        %v6484 = vsel %vm1568, %v6483, %v6465
        %v6485 = vrot.slane %v6465, 4
        %v6486 = vsel %vm1568, %v6471, %v6485
        %v6488 = vunpack.c.l.s4 1934713408
        %v6489 = vunpack.c.0.s8 %v6488
        %v6490 = vperm.slane %v6484, %v6489
        %v6492 = vunpack.c.l.s4 1934713408
        %v6493 = vunpack.c.0.s8 %v6492
        %v6494 = vperm.slane %v6486, %v6493
        %v6495 = vrot.slane %v6482, 4
        %v6496 = vsel %vm1568, %v6495, %v6476
        %v6497 = vrot.slane %v6476, 4
        %v6498 = vsel %vm1568, %v6482, %v6497
        %v6500 = vunpack.c.l.s4 1934713408
        %v6501 = vunpack.c.0.s8 %v6500
        %v6502 = vperm.slane %v6496, %v6501
        %v6504 = vunpack.c.l.s4 1934713408
        %v6505 = vunpack.c.0.s8 %v6504
        %v6506 = vperm.slane %v6498, %v6505
        %v6507 = vrot.slane %v6502, 4
        %v6508 = vsel %vm1568, %v6507, %v6490
        %v6509 = vrot.slane %v6490, 4
        %v6510 = vsel %vm1568, %v6502, %v6509
        %v6511 = vrot.slane %v6506, 4
        %v6512 = vsel %vm1568, %v6511, %v6494
        %v6513 = vrot.slane %v6494, 4
        %v6514 = vsel %vm1568, %v6506, %v6513
        %v6515 = vpack.c.bf16 %v6454, %v6454
        %v6516 = vpack.c.bf16 %v6508, %v6508
        %v6517 = vpack.c.bf16 %v6456, %v6456
        %v6518 = vpack.c.bf16 %v6510, %v6510
        %v6519 = vpack.c.bf16 %v6458, %v6458
        %v6520 = vpack.c.bf16 %v6512, %v6512
        %v6521 = vpack.c.bf16 %v6460, %v6460
        %v6522 = vpack.c.bf16 %v6514, %v6514
        %v6523 = vsel %vm1568, %v6229, %v6210
        %v6525 = vunpack.c.l.s4 1983009808
        %v6526 = vunpack.c.0.s8 %v6525
        %v6527 = vperm.slane %v6523, %v6526
        %v6528 = vrot.slane %v6230, 4
        %v6529 = vsel %vm1568, %v6528, %v6228
        %v6531 = vunpack.c.l.s4 1983009808
        %v6532 = vunpack.c.0.s8 %v6531
        %v6533 = vperm.slane %v6529, %v6532
        %v6534 = vsel %vm1568, %v6233, %v6222
        %v6536 = vunpack.c.l.s4 1983009808
        %v6537 = vunpack.c.0.s8 %v6536
        %v6538 = vperm.slane %v6534, %v6537
        %v6539 = vrot.slane %v6234, 4
        %v6540 = vsel %vm1568, %v6539, %v6232
        %v6542 = vunpack.c.l.s4 1983009808
        %v6543 = vunpack.c.0.s8 %v6542
        %v6544 = vperm.slane %v6540, %v6543
        %v6545 = vrot.slane %v6533, 4
        %v6546 = vsel %vm1568, %v6545, %v6527
        %v6547 = vrot.slane %v6527, 4
        %v6548 = vsel %vm1568, %v6533, %v6547
        %v6550 = vunpack.c.l.s4 1934713408
        %v6551 = vunpack.c.0.s8 %v6550
        %v6552 = vperm.slane %v6546, %v6551
        %v6554 = vunpack.c.l.s4 1934713408
        %v6555 = vunpack.c.0.s8 %v6554
        %v6556 = vperm.slane %v6548, %v6555
        %v6557 = vrot.slane %v6544, 4
        %v6558 = vsel %vm1568, %v6557, %v6538
        %v6559 = vrot.slane %v6538, 4
        %v6560 = vsel %vm1568, %v6544, %v6559
        %v6562 = vunpack.c.l.s4 1934713408
        %v6563 = vunpack.c.0.s8 %v6562
        %v6564 = vperm.slane %v6558, %v6563
        %v6566 = vunpack.c.l.s4 1934713408
        %v6567 = vunpack.c.0.s8 %v6566
        %v6568 = vperm.slane %v6560, %v6567
        %v6569 = vrot.slane %v6564, 4
        %v6570 = vsel %vm1568, %v6569, %v6552
        %v6571 = vrot.slane %v6552, 4
        %v6572 = vsel %vm1568, %v6564, %v6571
        %v6573 = vrot.slane %v6568, 4
        %v6574 = vsel %vm1568, %v6573, %v6556
        %v6575 = vrot.slane %v6556, 4
        %v6576 = vsel %vm1568, %v6568, %v6575
        %v6577 = vsel %vm1568, %v6285, %v6266
        %v6579 = vunpack.c.l.s4 1983009808
        %v6580 = vunpack.c.0.s8 %v6579
        %v6581 = vperm.slane %v6577, %v6580
        %v6582 = vrot.slane %v6286, 4
        %v6583 = vsel %vm1568, %v6582, %v6284
        %v6585 = vunpack.c.l.s4 1983009808
        %v6586 = vunpack.c.0.s8 %v6585
        %v6587 = vperm.slane %v6583, %v6586
        %v6588 = vsel %vm1568, %v6289, %v6278
        %v6590 = vunpack.c.l.s4 1983009808
        %v6591 = vunpack.c.0.s8 %v6590
        %v6592 = vperm.slane %v6588, %v6591
        %v6593 = vrot.slane %v6290, 4
        %v6594 = vsel %vm1568, %v6593, %v6288
        %v6596 = vunpack.c.l.s4 1983009808
        %v6597 = vunpack.c.0.s8 %v6596
        %v6598 = vperm.slane %v6594, %v6597
        %v6599 = vrot.slane %v6587, 4
        %v6600 = vsel %vm1568, %v6599, %v6581
        %v6601 = vrot.slane %v6581, 4
        %v6602 = vsel %vm1568, %v6587, %v6601
        %v6604 = vunpack.c.l.s4 1934713408
        %v6605 = vunpack.c.0.s8 %v6604
        %v6606 = vperm.slane %v6600, %v6605
        %v6608 = vunpack.c.l.s4 1934713408
        %v6609 = vunpack.c.0.s8 %v6608
        %v6610 = vperm.slane %v6602, %v6609
        %v6611 = vrot.slane %v6598, 4
        %v6612 = vsel %vm1568, %v6611, %v6592
        %v6613 = vrot.slane %v6592, 4
        %v6614 = vsel %vm1568, %v6598, %v6613
        %v6616 = vunpack.c.l.s4 1934713408
        %v6617 = vunpack.c.0.s8 %v6616
        %v6618 = vperm.slane %v6612, %v6617
        %v6620 = vunpack.c.l.s4 1934713408
        %v6621 = vunpack.c.0.s8 %v6620
        %v6622 = vperm.slane %v6614, %v6621
        %v6623 = vrot.slane %v6618, 4
        %v6624 = vsel %vm1568, %v6623, %v6606
        %v6625 = vrot.slane %v6606, 4
        %v6626 = vsel %vm1568, %v6618, %v6625
        %v6627 = vrot.slane %v6622, 4
        %v6628 = vsel %vm1568, %v6627, %v6610
        %v6629 = vrot.slane %v6610, 4
        %v6630 = vsel %vm1568, %v6622, %v6629
        %v6631 = vpack.c.bf16 %v6570, %v6570
        %v6632 = vpack.c.bf16 %v6624, %v6624
        %v6633 = vpack.c.bf16 %v6572, %v6572
        %v6634 = vpack.c.bf16 %v6626, %v6626
        %v6635 = vpack.c.bf16 %v6574, %v6574
        %v6636 = vpack.c.bf16 %v6628, %v6628
        %v6637 = vpack.c.bf16 %v6576, %v6576
        %v6638 = vpack.c.bf16 %v6630, %v6630
        %v6641 = vunpack.c.l.b16 %v6399
        %v6642 = vunpack.c.l.b16 %v6400
        %v6643 = vpack.c.b16 %v6642, %v6641
        %v6646 = vunpack.c.l.b16 %v6515
        %v6647 = vunpack.c.l.b16 %v6516
        %v6648 = vpack.c.b16 %v6647, %v6646
        %v6650 = vsel %vm2302, %v6643, 0
        %v6653 = vsel %vm2302, %v6648, 0
        %6655 = vmatpush.bf16.xpose.msra.mxu0 0
        %6656 = vmatpush.bf16.xpose.msra.mxu0 0
        %6657 = vmatpush.bf16.xpose.msra.mxu0 0
        %6658 = vmatpush.bf16.xpose.msra.mxu0 0
        %6659 = vmatpush.bf16.xpose.msra.mxu0 0
        %6660 = vmatpush.bf16.xpose.msra.mxu0 0
        %6661 = vmatpush.bf16.xpose.msra.mxu0 0
        %6662 = vmatpush.bf16.xpose.msra.mxu0 %v6653
        %6663 = vmatmul.bf16.gmra.mxu0 %v6650
        %v6664 = vpop.f32.mrf.mxu0
        %v6665 = vadd.f32 0.0, %v6664
        %v6666 = vpop.f32.mrf.mxu0
        %v6667 = vadd.f32 0.0, %v6666
        %6668 = vdwg.mxu0
        %v6671 = vunpack.c.l.b16 %v6401
        %v6672 = vunpack.c.l.b16 %v6402
        %v6673 = vpack.c.b16 %v6672, %v6671
        %v6676 = vunpack.c.l.b16 %v6517
        %v6677 = vunpack.c.l.b16 %v6518
        %v6678 = vpack.c.b16 %v6677, %v6676
        %v6680 = vsel %vm2302, %v6673, 0
        %v6683 = vsel %vm2302, %v6678, 0
        %6685 = vmatpush.bf16.xpose.msra.mxu0 0
        %6686 = vmatpush.bf16.xpose.msra.mxu0 0
        %6687 = vmatpush.bf16.xpose.msra.mxu0 0
        %6688 = vmatpush.bf16.xpose.msra.mxu0 0
        %6689 = vmatpush.bf16.xpose.msra.mxu0 0
        %6690 = vmatpush.bf16.xpose.msra.mxu0 0
        %6691 = vmatpush.bf16.xpose.msra.mxu0 0
        %6692 = vmatpush.bf16.xpose.msra.mxu0 %v6683
        %6693 = vmatmul.bf16.gmra.mxu0 %v6680
        %v6694 = vpop.f32.mrf.mxu0
        %v6695 = vadd.f32 0.0, %v6694
        %v6696 = vpop.f32.mrf.mxu0
        %v6697 = vadd.f32 0.0, %v6696
        %6698 = vdwg.mxu0
        %v6701 = vunpack.c.l.b16 %v6403
        %v6702 = vunpack.c.l.b16 %v6404
        %v6703 = vpack.c.b16 %v6702, %v6701
        %v6706 = vunpack.c.l.b16 %v6519
        %v6707 = vunpack.c.l.b16 %v6520
        %v6708 = vpack.c.b16 %v6707, %v6706
        %v6710 = vsel %vm2302, %v6703, 0
        %v6713 = vsel %vm2302, %v6708, 0
        %6715 = vmatpush.bf16.xpose.msra.mxu0 0
        %6716 = vmatpush.bf16.xpose.msra.mxu0 0
        %6717 = vmatpush.bf16.xpose.msra.mxu0 0
        %6718 = vmatpush.bf16.xpose.msra.mxu0 0
        %6719 = vmatpush.bf16.xpose.msra.mxu0 0
        %6720 = vmatpush.bf16.xpose.msra.mxu0 0
        %6721 = vmatpush.bf16.xpose.msra.mxu0 0
        %6722 = vmatpush.bf16.xpose.msra.mxu0 %v6713
        %6723 = vmatmul.bf16.gmra.mxu0 %v6710
        %v6724 = vpop.f32.mrf.mxu0
        %v6725 = vadd.f32 0.0, %v6724
        %v6726 = vpop.f32.mrf.mxu0
        %v6727 = vadd.f32 0.0, %v6726
        %6728 = vdwg.mxu0
        %v6731 = vunpack.c.l.b16 %v6405
        %v6732 = vunpack.c.l.b16 %v6406
        %v6733 = vpack.c.b16 %v6732, %v6731
        %v6736 = vunpack.c.l.b16 %v6521
        %v6737 = vunpack.c.l.b16 %v6522
        %v6738 = vpack.c.b16 %v6737, %v6736
        %v6740 = vsel %vm2302, %v6733, 0
        %v6743 = vsel %vm2302, %v6738, 0
        %6745 = vmatpush.bf16.xpose.msra.mxu0 0
        %6746 = vmatpush.bf16.xpose.msra.mxu0 0
        %6747 = vmatpush.bf16.xpose.msra.mxu0 0
        %6748 = vmatpush.bf16.xpose.msra.mxu0 0
        %6749 = vmatpush.bf16.xpose.msra.mxu0 0
        %6750 = vmatpush.bf16.xpose.msra.mxu0 0
        %6751 = vmatpush.bf16.xpose.msra.mxu0 0
        %6752 = vmatpush.bf16.xpose.msra.mxu0 %v6743
        %6753 = vmatmul.bf16.gmra.mxu0 %v6740
        %v6754 = vpop.f32.mrf.mxu0
        %v6755 = vadd.f32 0.0, %v6754
        %v6756 = vpop.f32.mrf.mxu0
        %v6757 = vadd.f32 0.0, %v6756
        %6758 = vdwg.mxu0
        %v6759 = vmul.f32 %v6665, 0.17677669
        %v6760 = vmul.f32 %v6667, 0.17677669
        %v6761 = vmul.f32 %v6695, 0.17677669
        %v6762 = vmul.f32 %v6697, 0.17677669
        %v6763 = vmul.f32 %v6725, 0.17677669
        %v6764 = vmul.f32 %v6727, 0.17677669
        %v6765 = vmul.f32 %v6755, 0.17677669
        %v6766 = vmul.f32 %v6757, 0.17677669
        %s6767 = scalar_lea.vmem %s835, 3 [#allocation3]
        %v6768 = vld [vmem:[%s6767] sm:$0x1]
        %vm6769 = vcmp.gt.f32.partialorder %v6768, 0.0
        %v6770 = vsel %vm6769, 1, 0
        %v6771 = vperm.slane %v6770, 0
        %vm6772 = vcmp.eq.s32.totalorder %v6771, 1
        %v6773 = vsel %vm6772, %v6759, -1e+09
        %v6774 = vsel %vm6772, %v6760, -1e+09
        %v6775 = vsel %vm6772, %v6761, -1e+09
        %v6776 = vsel %vm6772, %v6762, -1e+09
        %v6777 = vsel %vm6772, %v6763, -1e+09
        %v6778 = vsel %vm6772, %v6764, -1e+09
        %v6779 = vsel %vm6772, %v6765, -1e+09
        %v6780 = vsel %vm6772, %v6766, -1e+09
        %v6781 = vsel %vm2434, %v6773, -inf
        %6782 = vmax.xlane.f32.xlu0 %v6781
        %v6783 = vpop.xlane.xlu0 %6782
        %v6784 = vsel %vm2434, %v6774, -inf
        %6785 = vmax.xlane.f32.xlu0 %v6784
        %v6786 = vpop.xlane.xlu0 %6785
        %v6787 = vsel %vm2434, %v6775, -inf
        %6788 = vmax.xlane.f32.xlu0 %v6787
        %v6789 = vpop.xlane.xlu0 %6788
        %v6790 = vsel %vm2434, %v6776, -inf
        %6791 = vmax.xlane.f32.xlu0 %v6790
        %v6792 = vpop.xlane.xlu0 %6791
        %v6793 = vsel %vm2434, %v6777, -inf
        %6794 = vmax.xlane.f32.xlu0 %v6793
        %v6795 = vpop.xlane.xlu0 %6794
        %v6796 = vsel %vm2434, %v6778, -inf
        %6797 = vmax.xlane.f32.xlu0 %v6796
        %v6798 = vpop.xlane.xlu0 %6797
        %v6799 = vsel %vm2434, %v6779, -inf
        %6800 = vmax.xlane.f32.xlu0 %v6799
        %v6801 = vpop.xlane.xlu0 %6800
        %v6802 = vsel %vm2434, %v6780, -inf
        %6803 = vmax.xlane.f32.xlu0 %v6802
        %v6804 = vpop.xlane.xlu0 %6803
        %v6805 = vsub.f32 %v6773, %v6783
        %v6806 = vsub.f32 %v6774, %v6786
        %v6807 = vsub.f32 %v6775, %v6789
        %v6808 = vsub.f32 %v6776, %v6792
        %v6809 = vsub.f32 %v6777, %v6795
        %v6810 = vsub.f32 %v6778, %v6798
        %v6811 = vsub.f32 %v6779, %v6801
        %v6812 = vsub.f32 %v6780, %v6804
        %v6813 = vmul.f32 %v6805, 1.442695
        %v6814 = vpow.pop %v6813
        %v6815 = vmul.f32 %v6806, 1.442695
        %v6816 = vpow.pop %v6815
        %v6817 = vmul.f32 %v6807, 1.442695
        %v6818 = vpow.pop %v6817
        %v6819 = vmul.f32 %v6808, 1.442695
        %v6820 = vpow.pop %v6819
        %v6821 = vmul.f32 %v6809, 1.442695
        %v6822 = vpow.pop %v6821
        %v6823 = vmul.f32 %v6810, 1.442695
        %v6824 = vpow.pop %v6823
        %v6825 = vmul.f32 %v6811, 1.442695
        %v6826 = vpow.pop %v6825
        %v6827 = vmul.f32 %v6812, 1.442695
        %v6828 = vpow.pop %v6827
        %v6829 = vsel %vm2434, %v6814, 0.0
        %6830 = vadd.xlane.f32.xlu0 %v6829
        %v6831 = vpop.xlane.xlu0 %6830
        %v6832 = vsel %vm2434, %v6816, 0.0
        %6833 = vadd.xlane.f32.xlu0 %v6832
        %v6834 = vpop.xlane.xlu0 %6833
        %v6835 = vsel %vm2434, %v6818, 0.0
        %6836 = vadd.xlane.f32.xlu0 %v6835
        %v6837 = vpop.xlane.xlu0 %6836
        %v6838 = vsel %vm2434, %v6820, 0.0
        %6839 = vadd.xlane.f32.xlu0 %v6838
        %v6840 = vpop.xlane.xlu0 %6839
        %v6841 = vsel %vm2434, %v6822, 0.0
        %6842 = vadd.xlane.f32.xlu0 %v6841
        %v6843 = vpop.xlane.xlu0 %6842
        %v6844 = vsel %vm2434, %v6824, 0.0
        %6845 = vadd.xlane.f32.xlu0 %v6844
        %v6846 = vpop.xlane.xlu0 %6845
        %v6847 = vsel %vm2434, %v6826, 0.0
        %6848 = vadd.xlane.f32.xlu0 %v6847
        %v6849 = vpop.xlane.xlu0 %6848
        %v6850 = vsel %vm2434, %v6828, 0.0
        %6851 = vadd.xlane.f32.xlu0 %v6850
        %v6852 = vpop.xlane.xlu0 %6851
        %v6853 = vrcp.pop %v6831
        %v6854 = vmul.f32 %v6831, %v6853
        %v6855 = vsub.f32 1.0, %v6854
        %v6856 = vmul.f32 %v6853, %v6855
        %v6857 = vadd.f32 %v6853, %v6856
        %vm6858 = vweird.f32 %v6831
        %vm6859 = vweird.f32 %v6853
        %vm6860 = vmor %vm6858, %vm6859
        %v6861 = vsel %vm6860, %v6853, %v6857
        %v6862 = vand.u32 2147483647, %v6831
        %vm6863 = vcmp.eq.f32.partialorder %v6862, 8.507059e+37
        %v6864 = vand.u32 %v6831, 2147483648
        %v6865 = vor.u32 1.1754944e-38, %v6864
        %v6866 = vsel %vm6863, %v6865, %v6861
        %v6867 = vmul.f32 %v6814, %v6866
        %v6868 = vrcp.pop %v6834
        %v6869 = vmul.f32 %v6834, %v6868
        %v6870 = vsub.f32 1.0, %v6869
        %v6871 = vmul.f32 %v6868, %v6870
        %v6872 = vadd.f32 %v6868, %v6871
        %vm6873 = vweird.f32 %v6834
        %vm6874 = vweird.f32 %v6868
        %vm6875 = vmor %vm6873, %vm6874
        %v6876 = vsel %vm6875, %v6868, %v6872
        %v6877 = vand.u32 2147483647, %v6834
        %vm6878 = vcmp.eq.f32.partialorder %v6877, 8.507059e+37
        %v6879 = vand.u32 %v6834, 2147483648
        %v6880 = vor.u32 1.1754944e-38, %v6879
        %v6881 = vsel %vm6878, %v6880, %v6876
        %v6882 = vmul.f32 %v6816, %v6881
        %v6883 = vrcp.pop %v6837
        %v6884 = vmul.f32 %v6837, %v6883
        %v6885 = vsub.f32 1.0, %v6884
        %v6886 = vmul.f32 %v6883, %v6885
        %v6887 = vadd.f32 %v6883, %v6886
        %vm6888 = vweird.f32 %v6837
        %vm6889 = vweird.f32 %v6883
        %vm6890 = vmor %vm6888, %vm6889
        %v6891 = vsel %vm6890, %v6883, %v6887
        %v6892 = vand.u32 2147483647, %v6837
        %vm6893 = vcmp.eq.f32.partialorder %v6892, 8.507059e+37
        %v6894 = vand.u32 %v6837, 2147483648
        %v6895 = vor.u32 1.1754944e-38, %v6894
        %v6896 = vsel %vm6893, %v6895, %v6891
        %v6897 = vmul.f32 %v6818, %v6896
        %v6898 = vrcp.pop %v6840
        %v6899 = vmul.f32 %v6840, %v6898
        %v6900 = vsub.f32 1.0, %v6899
        %v6901 = vmul.f32 %v6898, %v6900
        %v6902 = vadd.f32 %v6898, %v6901
        %vm6903 = vweird.f32 %v6840
        %vm6904 = vweird.f32 %v6898
        %vm6905 = vmor %vm6903, %vm6904
        %v6906 = vsel %vm6905, %v6898, %v6902
        %v6907 = vand.u32 2147483647, %v6840
        %vm6908 = vcmp.eq.f32.partialorder %v6907, 8.507059e+37
        %v6909 = vand.u32 %v6840, 2147483648
        %v6910 = vor.u32 1.1754944e-38, %v6909
        %v6911 = vsel %vm6908, %v6910, %v6906
        %v6912 = vmul.f32 %v6820, %v6911
        %v6913 = vrcp.pop %v6843
        %v6914 = vmul.f32 %v6843, %v6913
        %v6915 = vsub.f32 1.0, %v6914
        %v6916 = vmul.f32 %v6913, %v6915
        %v6917 = vadd.f32 %v6913, %v6916
        %vm6918 = vweird.f32 %v6843
        %vm6919 = vweird.f32 %v6913
        %vm6920 = vmor %vm6918, %vm6919
        %v6921 = vsel %vm6920, %v6913, %v6917
        %v6922 = vand.u32 2147483647, %v6843
        %vm6923 = vcmp.eq.f32.partialorder %v6922, 8.507059e+37
        %v6924 = vand.u32 %v6843, 2147483648
        %v6925 = vor.u32 1.1754944e-38, %v6924
        %v6926 = vsel %vm6923, %v6925, %v6921
        %v6927 = vmul.f32 %v6822, %v6926
        %v6928 = vrcp.pop %v6846
        %v6929 = vmul.f32 %v6846, %v6928
        %v6930 = vsub.f32 1.0, %v6929
        %v6931 = vmul.f32 %v6928, %v6930
        %v6932 = vadd.f32 %v6928, %v6931
        %vm6933 = vweird.f32 %v6846
        %vm6934 = vweird.f32 %v6928
        %vm6935 = vmor %vm6933, %vm6934
        %v6936 = vsel %vm6935, %v6928, %v6932
        %v6937 = vand.u32 2147483647, %v6846
        %vm6938 = vcmp.eq.f32.partialorder %v6937, 8.507059e+37
        %v6939 = vand.u32 %v6846, 2147483648
        %v6940 = vor.u32 1.1754944e-38, %v6939
        %v6941 = vsel %vm6938, %v6940, %v6936
        %v6942 = vmul.f32 %v6824, %v6941
        %v6943 = vrcp.pop %v6849
        %v6944 = vmul.f32 %v6849, %v6943
        %v6945 = vsub.f32 1.0, %v6944
        %v6946 = vmul.f32 %v6943, %v6945
        %v6947 = vadd.f32 %v6943, %v6946
        %vm6948 = vweird.f32 %v6849
        %vm6949 = vweird.f32 %v6943
        %vm6950 = vmor %vm6948, %vm6949
        %v6951 = vsel %vm6950, %v6943, %v6947
        %v6952 = vand.u32 2147483647, %v6849
        %vm6953 = vcmp.eq.f32.partialorder %v6952, 8.507059e+37
        %v6954 = vand.u32 %v6849, 2147483648
        %v6955 = vor.u32 1.1754944e-38, %v6954
        %v6956 = vsel %vm6953, %v6955, %v6951
        %v6957 = vmul.f32 %v6826, %v6956
        %v6958 = vrcp.pop %v6852
        %v6959 = vmul.f32 %v6852, %v6958
        %v6960 = vsub.f32 1.0, %v6959
        %v6961 = vmul.f32 %v6958, %v6960
        %v6962 = vadd.f32 %v6958, %v6961
        %vm6963 = vweird.f32 %v6852
        %vm6964 = vweird.f32 %v6958
        %vm6965 = vmor %vm6963, %vm6964
        %v6966 = vsel %vm6965, %v6958, %v6962
        %v6967 = vand.u32 2147483647, %v6852
        %vm6968 = vcmp.eq.f32.partialorder %v6967, 8.507059e+37
        %v6969 = vand.u32 %v6852, 2147483648
        %v6970 = vor.u32 1.1754944e-38, %v6969
        %v6971 = vsel %vm6968, %v6970, %v6966
        %v6972 = vmul.f32 %v6828, %v6971
        %v6973 = vpack.c.bf16 %v6867, %v6867
        %v6974 = vpack.c.bf16 %v6882, %v6882
        %v6975 = vpack.c.bf16 %v6897, %v6897
        %v6976 = vpack.c.bf16 %v6912, %v6912
        %v6977 = vpack.c.bf16 %v6927, %v6927
        %v6978 = vpack.c.bf16 %v6942, %v6942
        %v6979 = vpack.c.bf16 %v6957, %v6957
        %v6980 = vpack.c.bf16 %v6972, %v6972
        %v6983 = vunpack.c.l.b16 %v6973
        %v6984 = vunpack.c.l.b16 %v6974
        %v6985 = vpack.c.b16 %v6984, %v6983
        %v6988 = vunpack.c.l.b16 %v6631
        %v6989 = vunpack.c.l.b16 %v6632
        %v6990 = vpack.c.b16 %v6989, %v6988
        %v6993 = vsel %vm2434, %v6985, 0
        %6995 = vmatpush.bf16.msra.mxu0 0
        %6996 = vmatpush.bf16.msra.mxu0 0
        %6997 = vmatpush.bf16.msra.mxu0 0
        %6998 = vmatpush.bf16.msra.mxu0 0
        %6999 = vmatpush.bf16.msra.mxu0 0
        %7000 = vmatpush.bf16.msra.mxu0 0
        %7001 = vmatpush.bf16.msra.mxu0 0
        %7002 = vmatpush.bf16.msra.mxu0 %v6990
        %7003 = vmatmul.bf16.gmra.mxu0 %v6993
        %v7004 = vpop.f32.mrf.mxu0
        %v7005 = vadd.f32 0.0, %v7004
        %v7006 = vpop.f32.mrf.mxu0
        %v7007 = vadd.f32 0.0, %v7006
        %7008 = vdwg.mxu0
        %v7011 = vunpack.c.l.b16 %v6975
        %v7012 = vunpack.c.l.b16 %v6976
        %v7013 = vpack.c.b16 %v7012, %v7011
        %v7016 = vunpack.c.l.b16 %v6633
        %v7017 = vunpack.c.l.b16 %v6634
        %v7018 = vpack.c.b16 %v7017, %v7016
        %v7021 = vsel %vm2434, %v7013, 0
        %7023 = vmatpush.bf16.msra.mxu0 0
        %7024 = vmatpush.bf16.msra.mxu0 0
        %7025 = vmatpush.bf16.msra.mxu0 0
        %7026 = vmatpush.bf16.msra.mxu0 0
        %7027 = vmatpush.bf16.msra.mxu0 0
        %7028 = vmatpush.bf16.msra.mxu0 0
        %7029 = vmatpush.bf16.msra.mxu0 0
        %7030 = vmatpush.bf16.msra.mxu0 %v7018
        %7031 = vmatmul.bf16.gmra.mxu0 %v7021
        %v7032 = vpop.f32.mrf.mxu0
        %v7033 = vadd.f32 0.0, %v7032
        %v7034 = vpop.f32.mrf.mxu0
        %v7035 = vadd.f32 0.0, %v7034
        %7036 = vdwg.mxu0
        %v7039 = vunpack.c.l.b16 %v6977
        %v7040 = vunpack.c.l.b16 %v6978
        %v7041 = vpack.c.b16 %v7040, %v7039
        %v7044 = vunpack.c.l.b16 %v6635
        %v7045 = vunpack.c.l.b16 %v6636
        %v7046 = vpack.c.b16 %v7045, %v7044
        %v7049 = vsel %vm2434, %v7041, 0
        %7051 = vmatpush.bf16.msra.mxu0 0
        %7052 = vmatpush.bf16.msra.mxu0 0
        %7053 = vmatpush.bf16.msra.mxu0 0
        %7054 = vmatpush.bf16.msra.mxu0 0
        %7055 = vmatpush.bf16.msra.mxu0 0
        %7056 = vmatpush.bf16.msra.mxu0 0
        %7057 = vmatpush.bf16.msra.mxu0 0
        %7058 = vmatpush.bf16.msra.mxu0 %v7046
        %7059 = vmatmul.bf16.gmra.mxu0 %v7049
        %v7060 = vpop.f32.mrf.mxu0
        %v7061 = vadd.f32 0.0, %v7060
        %v7062 = vpop.f32.mrf.mxu0
        %v7063 = vadd.f32 0.0, %v7062
        %7064 = vdwg.mxu0
        %v7067 = vunpack.c.l.b16 %v6979
        %v7068 = vunpack.c.l.b16 %v6980
        %v7069 = vpack.c.b16 %v7068, %v7067
        %v7072 = vunpack.c.l.b16 %v6637
        %v7073 = vunpack.c.l.b16 %v6638
        %v7074 = vpack.c.b16 %v7073, %v7072
        %v7077 = vsel %vm2434, %v7069, 0
        %7079 = vmatpush.bf16.msra.mxu0 0
        %7080 = vmatpush.bf16.msra.mxu0 0
        %7081 = vmatpush.bf16.msra.mxu0 0
        %7082 = vmatpush.bf16.msra.mxu0 0
        %7083 = vmatpush.bf16.msra.mxu0 0
        %7084 = vmatpush.bf16.msra.mxu0 0
        %7085 = vmatpush.bf16.msra.mxu0 0
        %7086 = vmatpush.bf16.msra.mxu0 %v7074
        %7087 = vmatmul.bf16.gmra.mxu0 %v7077
        %v7088 = vpop.f32.mrf.mxu0
        %v7089 = vadd.f32 0.0, %v7088
        %v7090 = vpop.f32.mrf.mxu0
        %v7091 = vadd.f32 0.0, %v7090
        %7092 = vdwg.mxu0
        %v7093 = vrot.slane %v7061, 4
        %v7094 = vsel %vm1568, %v7093, %v7005
        %v7095 = vrot.slane %v7005, 4
        %v7096 = vsel %vm1568, %v7061, %v7095
        %v7098 = vunpack.c.l.s4 1983009808
        %v7099 = vunpack.c.0.s8 %v7098
        %v7100 = vperm.slane %v7094, %v7099
        %v7102 = vunpack.c.l.s4 1983009808
        %v7103 = vunpack.c.0.s8 %v7102
        %v7104 = vperm.slane %v7096, %v7103
        %v7105 = vrot.slane %v7089, 4
        %v7106 = vsel %vm1568, %v7105, %v7033
        %v7107 = vrot.slane %v7033, 4
        %v7108 = vsel %vm1568, %v7089, %v7107
        %v7110 = vunpack.c.l.s4 1983009808
        %v7111 = vunpack.c.0.s8 %v7110
        %v7112 = vperm.slane %v7106, %v7111
        %v7114 = vunpack.c.l.s4 1983009808
        %v7115 = vunpack.c.0.s8 %v7114
        %v7116 = vperm.slane %v7108, %v7115
        %v7117 = vrot.slane %v7112, 4
        %v7118 = vsel %vm1568, %v7117, %v7100
        %v7119 = vrot.slane %v7100, 4
        %v7120 = vsel %vm1568, %v7112, %v7119
        %v7122 = vunpack.c.l.s4 1934713408
        %v7123 = vunpack.c.0.s8 %v7122
        %v7124 = vperm.slane %v7118, %v7123
        %v7126 = vunpack.c.l.s4 1934713408
        %v7127 = vunpack.c.0.s8 %v7126
        %v7128 = vperm.slane %v7120, %v7127
        %v7129 = vrot.slane %v7116, 4
        %v7130 = vsel %vm1568, %v7129, %v7104
        %v7131 = vrot.slane %v7104, 4
        %v7132 = vsel %vm1568, %v7116, %v7131
        %v7134 = vunpack.c.l.s4 1934713408
        %v7135 = vunpack.c.0.s8 %v7134
        %v7136 = vperm.slane %v7130, %v7135
        %v7138 = vunpack.c.l.s4 1934713408
        %v7139 = vunpack.c.0.s8 %v7138
        %v7140 = vperm.slane %v7132, %v7139
        %v7141 = vrot.slane %v7124, 4
        %v7142 = vsel %vm1568, 0.0, %v7141
        %v7143 = vrot.slane %v7128, 4
        %v7144 = vsel %vm1568, 0.0, %v7143
        %v7145 = vrot.slane %v7136, 4
        %v7146 = vsel %vm1568, 0.0, %v7145
        %v7147 = vrot.slane %v7140, 4
        %v7148 = vsel %vm1568, 0.0, %v7147
        %v7149 = vrot.slane %v7063, 4
        %v7150 = vsel %vm1568, %v7149, %v7007
        %v7151 = vrot.slane %v7007, 4
        %v7152 = vsel %vm1568, %v7063, %v7151
        %v7154 = vunpack.c.l.s4 1983009808
        %v7155 = vunpack.c.0.s8 %v7154
        %v7156 = vperm.slane %v7150, %v7155
        %v7158 = vunpack.c.l.s4 1983009808
        %v7159 = vunpack.c.0.s8 %v7158
        %v7160 = vperm.slane %v7152, %v7159
        %v7161 = vrot.slane %v7091, 4
        %v7162 = vsel %vm1568, %v7161, %v7035
        %v7163 = vrot.slane %v7035, 4
        %v7164 = vsel %vm1568, %v7091, %v7163
        %v7166 = vunpack.c.l.s4 1983009808
        %v7167 = vunpack.c.0.s8 %v7166
        %v7168 = vperm.slane %v7162, %v7167
        %v7170 = vunpack.c.l.s4 1983009808
        %v7171 = vunpack.c.0.s8 %v7170
        %v7172 = vperm.slane %v7164, %v7171
        %v7173 = vrot.slane %v7168, 4
        %v7174 = vsel %vm1568, %v7173, %v7156
        %v7175 = vrot.slane %v7156, 4
        %v7176 = vsel %vm1568, %v7168, %v7175
        %v7178 = vunpack.c.l.s4 1934713408
        %v7179 = vunpack.c.0.s8 %v7178
        %v7180 = vperm.slane %v7174, %v7179
        %v7182 = vunpack.c.l.s4 1934713408
        %v7183 = vunpack.c.0.s8 %v7182
        %v7184 = vperm.slane %v7176, %v7183
        %v7185 = vrot.slane %v7172, 4
        %v7186 = vsel %vm1568, %v7185, %v7160
        %v7187 = vrot.slane %v7160, 4
        %v7188 = vsel %vm1568, %v7172, %v7187
        %v7190 = vunpack.c.l.s4 1934713408
        %v7191 = vunpack.c.0.s8 %v7190
        %v7192 = vperm.slane %v7186, %v7191
        %v7194 = vunpack.c.l.s4 1934713408
        %v7195 = vunpack.c.0.s8 %v7194
        %v7196 = vperm.slane %v7188, %v7195
        %v7197 = vrot.slane %v7180, 4
        %v7198 = vsel %vm1568, 0.0, %v7197
        %v7199 = vrot.slane %v7184, 4
        %v7200 = vsel %vm1568, 0.0, %v7199
        %v7201 = vrot.slane %v7192, 4
        %v7202 = vsel %vm1568, 0.0, %v7201
        %v7203 = vrot.slane %v7196, 4
        %v7204 = vsel %vm1568, 0.0, %v7203
        %v7205 = vsel %vm1568, %v7143, %v7124
        %v7207 = vunpack.c.l.s4 1983009808
        %v7208 = vunpack.c.0.s8 %v7207
        %v7209 = vperm.slane %v7205, %v7208
        %v7210 = vrot.slane %v7144, 4
        %v7211 = vsel %vm1568, %v7210, %v7142
        %v7213 = vunpack.c.l.s4 1983009808
        %v7214 = vunpack.c.0.s8 %v7213
        %v7215 = vperm.slane %v7211, %v7214
        %v7216 = vsel %vm1568, %v7147, %v7136
        %v7218 = vunpack.c.l.s4 1983009808
        %v7219 = vunpack.c.0.s8 %v7218
        %v7220 = vperm.slane %v7216, %v7219
        %v7221 = vrot.slane %v7148, 4
        %v7222 = vsel %vm1568, %v7221, %v7146
        %v7224 = vunpack.c.l.s4 1983009808
        %v7225 = vunpack.c.0.s8 %v7224
        %v7226 = vperm.slane %v7222, %v7225
        %v7227 = vrot.slane %v7215, 4
        %v7228 = vsel %vm1568, %v7227, %v7209
        %v7229 = vrot.slane %v7209, 4
        %v7230 = vsel %vm1568, %v7215, %v7229
        %v7232 = vunpack.c.l.s4 1934713408
        %v7233 = vunpack.c.0.s8 %v7232
        %v7234 = vperm.slane %v7228, %v7233
        %v7236 = vunpack.c.l.s4 1934713408
        %v7237 = vunpack.c.0.s8 %v7236
        %v7238 = vperm.slane %v7230, %v7237
        %v7239 = vrot.slane %v7226, 4
        %v7240 = vsel %vm1568, %v7239, %v7220
        %v7241 = vrot.slane %v7220, 4
        %v7242 = vsel %vm1568, %v7226, %v7241
        %v7244 = vunpack.c.l.s4 1934713408
        %v7245 = vunpack.c.0.s8 %v7244
        %v7246 = vperm.slane %v7240, %v7245
        %v7248 = vunpack.c.l.s4 1934713408
        %v7249 = vunpack.c.0.s8 %v7248
        %v7250 = vperm.slane %v7242, %v7249
        %v7251 = vrot.slane %v7246, 4
        %v7252 = vsel %vm1568, %v7251, %v7234
        %v7253 = vrot.slane %v7234, 4
        %v7254 = vsel %vm1568, %v7246, %v7253
        %v7255 = vrot.slane %v7250, 4
        %v7256 = vsel %vm1568, %v7255, %v7238
        %v7257 = vrot.slane %v7238, 4
        %v7258 = vsel %vm1568, %v7250, %v7257
        %v7259 = vsel %vm1568, %v7199, %v7180
        %v7261 = vunpack.c.l.s4 1983009808
        %v7262 = vunpack.c.0.s8 %v7261
        %v7263 = vperm.slane %v7259, %v7262
        %v7264 = vrot.slane %v7200, 4
        %v7265 = vsel %vm1568, %v7264, %v7198
        %v7267 = vunpack.c.l.s4 1983009808
        %v7268 = vunpack.c.0.s8 %v7267
        %v7269 = vperm.slane %v7265, %v7268
        %v7270 = vsel %vm1568, %v7203, %v7192
        %v7272 = vunpack.c.l.s4 1983009808
        %v7273 = vunpack.c.0.s8 %v7272
        %v7274 = vperm.slane %v7270, %v7273
        %v7275 = vrot.slane %v7204, 4
        %v7276 = vsel %vm1568, %v7275, %v7202
        %v7278 = vunpack.c.l.s4 1983009808
        %v7279 = vunpack.c.0.s8 %v7278
        %v7280 = vperm.slane %v7276, %v7279
        %v7281 = vrot.slane %v7269, 4
        %v7282 = vsel %vm1568, %v7281, %v7263
        %v7283 = vrot.slane %v7263, 4
        %v7284 = vsel %vm1568, %v7269, %v7283
        %v7286 = vunpack.c.l.s4 1934713408
        %v7287 = vunpack.c.0.s8 %v7286
        %v7288 = vperm.slane %v7282, %v7287
        %v7290 = vunpack.c.l.s4 1934713408
        %v7291 = vunpack.c.0.s8 %v7290
        %v7292 = vperm.slane %v7284, %v7291
        %v7293 = vrot.slane %v7280, 4
        %v7294 = vsel %vm1568, %v7293, %v7274
        %v7295 = vrot.slane %v7274, 4
        %v7296 = vsel %vm1568, %v7280, %v7295
        %v7298 = vunpack.c.l.s4 1934713408
        %v7299 = vunpack.c.0.s8 %v7298
        %v7300 = vperm.slane %v7294, %v7299
        %v7302 = vunpack.c.l.s4 1934713408
        %v7303 = vunpack.c.0.s8 %v7302
        %v7304 = vperm.slane %v7296, %v7303
        %v7305 = vrot.slane %v7300, 4
        %v7306 = vsel %vm1568, %v7305, %v7288
        %v7307 = vrot.slane %v7288, 4
        %v7308 = vsel %vm1568, %v7300, %v7307
        %v7309 = vrot.slane %v7304, 4
        %v7310 = vsel %vm1568, %v7309, %v7292
        %v7311 = vrot.slane %v7292, 4
        %v7312 = vsel %vm1568, %v7304, %v7311
        %7315 = vrot.lane.b32.xlu0 %v7254, 32
        %v7316 = vpop.permute.xlu0 %7315
        %7317 = vrot.lane.b32.xlu0 %v7308, 32
        %v7318 = vpop.permute.xlu0 %7317
        %7323 = vrot.lane.b32.xlu0 %v7256, 64
        %v7324 = vpop.permute.xlu0 %7323
        %7325 = vrot.lane.b32.xlu0 %v7310, 64
        %v7326 = vpop.permute.xlu0 %7325
        %7331 = vrot.lane.b32.xlu0 %v7258, 96
        %v7332 = vpop.permute.xlu0 %7331
        %7333 = vrot.lane.b32.xlu0 %v7312, 96
        %v7334 = vpop.permute.xlu0 %7333
        %v7337 = vsel %vm2302, %v7252, %v7316
        %v7338 = vsel %vm2302, %v7306, %v7318
        %v7339 = vsel %vm2993, %v7337, %v7324
        %v7340 = vsel %vm2993, %v7338, %v7326
        %v7341 = vsel %vm2996, %v7339, %v7332
        %v7342 = vsel %vm2996, %v7340, %v7334
        %v7343 = vld [vmem:[%s845] sm:$0xf]
        %v7344 = vld [vmem:[%s845 + $0x4] sm:$0xf]
        %v7345 = vld [vmem:[%s845 + $0x8] sm:$0xf]
        %v7346 = vld [vmem:[%s845 + $0xc] sm:$0xf]
        %v7347 = vld [vmem:[%s845 + $0x10] sm:$0xf]
        %v7348 = vld [vmem:[%s845 + $0x14] sm:$0xf]
        %v7349 = vld [vmem:[%s845 + $0x18] sm:$0xf]
        %v7350 = vld [vmem:[%s845 + $0x1c] sm:$0xf]
        %v7351 = vld [vmem:[%s845 + $0x20] sm:$0xf]
        %v7352 = vld [vmem:[%s845 + $0x24] sm:$0xf]
        %v7353 = vld [vmem:[%s845 + $0x28] sm:$0xf]
        %v7354 = vld [vmem:[%s845 + $0x2c] sm:$0xf]
        %v7355 = vld [vmem:[%s845 + $0x30] sm:$0xf]
        %v7356 = vld [vmem:[%s845 + $0x34] sm:$0xf]
        %v7357 = vld [vmem:[%s845 + $0x38] sm:$0xf]
        %v7358 = vld [vmem:[%s845 + $0x3c] sm:$0xf]
        %v7359 = vpack.c.bf16 %v2998, %v2997
        %v7360 = vpack.c.bf16 %v4446, %v4445
        %v7361 = vpack.c.bf16 %v5894, %v5893
        %v7362 = vpack.c.bf16 %v7342, %v7341
        %v7363 = vld [vmem:[%s1049] sm:$0x1]
        %v7365 = vperm.slane %v7363, 0
        %v7383 = vunpack.c.l.b16 %v7343
        %v7384 = vunpack.c.l.b16 %v7344
        %v7385 = vunpack.c.l.b16 %v7345
        %v7386 = vunpack.c.l.b16 %v7346
        %v7387 = vunpack.c.l.b16 %v7347
        %v7388 = vunpack.c.l.b16 %v7348
        %v7389 = vunpack.c.l.b16 %v7349
        %v7390 = vunpack.c.l.b16 %v7350
        %v7391 = vunpack.c.l.b16 %v7351
        %v7392 = vunpack.c.l.b16 %v7352
        %v7393 = vunpack.c.l.b16 %v7353
        %v7394 = vunpack.c.l.b16 %v7354
        %v7395 = vunpack.c.l.b16 %v7355
        %v7396 = vunpack.c.l.b16 %v7356
        %v7397 = vunpack.c.l.b16 %v7357
        %v7398 = vunpack.c.l.b16 %v7358
        %v7399 = vpack.c.b16 %v7384, %v7383
        %v7400 = vpack.c.b16 %v7386, %v7385
        %v7401 = vpack.c.b16 %v7388, %v7387
        %v7402 = vpack.c.b16 %v7390, %v7389
        %v7403 = vpack.c.b16 %v7392, %v7391
        %v7404 = vpack.c.b16 %v7394, %v7393
        %v7405 = vpack.c.b16 %v7396, %v7395
        %v7406 = vpack.c.b16 %v7398, %v7397
        %7415 = vmatpush.bf16.msra.mxu0 %v7406
        %7416 = vmatpush.bf16.msra.mxu0 %v7405
        %7417 = vmatpush.bf16.msra.mxu0 %v7404
        %7418 = vmatpush.bf16.msra.mxu0 %v7403
        %7419 = vmatpush.bf16.msra.mxu0 %v7402
        %7420 = vmatpush.bf16.msra.mxu0 %v7401
        %7421 = vmatpush.bf16.msra.mxu0 %v7400
        %7422 = vmatpush.bf16.msra.mxu0 %v7399
        %7423 = vmatmul.bf16.gmra.mxu0 %v7359
        %v7424 = vpop.f32.mrf.mxu0
        %v7425 = vadd.f32 %v7365, %v7424
        %v7426 = vpop.f32.mrf.mxu0
        %v7427 = vadd.f32 %v7365, %v7426
        %7428 = vmatmul.bf16.gmra.mxu0 %v7360
        %v7429 = vpop.f32.mrf.mxu0
        %v7430 = vadd.f32 %v7365, %v7429
        %v7431 = vpop.f32.mrf.mxu0
        %v7432 = vadd.f32 %v7365, %v7431
        %7433 = vmatmul.bf16.gmra.mxu0 %v7361
        %v7434 = vpop.f32.mrf.mxu0
        %v7435 = vadd.f32 %v7365, %v7434
        %v7436 = vpop.f32.mrf.mxu0
        %v7437 = vadd.f32 %v7365, %v7436
        %7438 = vmatmul.bf16.gmra.mxu0 %v7362
        %v7439 = vpop.f32.mrf.mxu0
        %v7440 = vadd.f32 %v7365, %v7439
        %v7441 = vpop.f32.mrf.mxu0
        %v7442 = vadd.f32 %v7365, %v7441
        %7443 = vdwg.mxu0
        %v7444 = vadd.f32 %v7425, %v1280
        %v7445 = vadd.f32 %v7427, %v1281
        %v7446 = vadd.f32 %v7430, %v1282
        %v7447 = vadd.f32 %v7432, %v1283
        %v7448 = vadd.f32 %v7435, %v1284
        %v7449 = vadd.f32 %v7437, %v1285
        %v7450 = vadd.f32 %v7440, %v1286
        %v7451 = vadd.f32 %v7442, %v1287
        %v7452 = vld [vmem:[%s854] sm:$0x1]
        %v7453 = vld [vmem:[%s863] sm:$0x1]
        %7454 = vadd.xlane.f32.xlu0 %v7444
        %v7455 = vpop.xlane.xlu0 %7454
        %7456 = vadd.xlane.f32.xlu0 %v7445
        %v7457 = vpop.xlane.xlu0 %7456
        %7458 = vadd.xlane.f32.xlu0 %v7446
        %v7459 = vpop.xlane.xlu0 %7458
        %7460 = vadd.xlane.f32.xlu0 %v7447
        %v7461 = vpop.xlane.xlu0 %7460
        %7462 = vadd.xlane.f32.xlu0 %v7448
        %v7463 = vpop.xlane.xlu0 %7462
        %7464 = vadd.xlane.f32.xlu0 %v7449
        %v7465 = vpop.xlane.xlu0 %7464
        %7466 = vadd.xlane.f32.xlu0 %v7450
        %v7467 = vpop.xlane.xlu0 %7466
        %7468 = vadd.xlane.f32.xlu0 %v7451
        %v7469 = vpop.xlane.xlu0 %7468
        %v7470 = vrcp.pop 128.0
        %v7471 = vmul.f32 128.0, %v7470
        %v7472 = vsub.f32 1.0, %v7471
        %v7473 = vmul.f32 %v7470, %v7472
        %v7474 = vadd.f32 %v7470, %v7473
        %vm7475 = vweird.f32 %v7470
        %v7476 = vsel %vm7475, %v7470, %v7474
        %v7477 = vmul.f32 %v7455, %v7476
        %v7478 = vmul.f32 %v7457, %v7476
        %v7479 = vmul.f32 %v7459, %v7476
        %v7480 = vmul.f32 %v7461, %v7476
        %v7481 = vmul.f32 %v7463, %v7476
        %v7482 = vmul.f32 %v7465, %v7476
        %v7483 = vmul.f32 %v7467, %v7476
        %v7484 = vmul.f32 %v7469, %v7476
        %v7485 = vsub.f32 %v7444, %v7477
        %v7486 = vsub.f32 %v7445, %v7478
        %v7487 = vsub.f32 %v7446, %v7479
        %v7488 = vsub.f32 %v7447, %v7480
        %v7489 = vsub.f32 %v7448, %v7481
        %v7490 = vsub.f32 %v7449, %v7482
        %v7491 = vsub.f32 %v7450, %v7483
        %v7492 = vsub.f32 %v7451, %v7484
        %v7493 = vmul.f32 %v7485, %v7485
        %v7494 = vmul.f32 %v7486, %v7486
        %v7495 = vmul.f32 %v7487, %v7487
        %v7496 = vmul.f32 %v7488, %v7488
        %v7497 = vmul.f32 %v7489, %v7489
        %v7498 = vmul.f32 %v7490, %v7490
        %v7499 = vmul.f32 %v7491, %v7491
        %v7500 = vmul.f32 %v7492, %v7492
        %7501 = vadd.xlane.f32.xlu0 %v7493
        %v7502 = vpop.xlane.xlu0 %7501
        %7503 = vadd.xlane.f32.xlu0 %v7494
        %v7504 = vpop.xlane.xlu0 %7503
        %7505 = vadd.xlane.f32.xlu0 %v7495
        %v7506 = vpop.xlane.xlu0 %7505
        %7507 = vadd.xlane.f32.xlu0 %v7496
        %v7508 = vpop.xlane.xlu0 %7507
        %7509 = vadd.xlane.f32.xlu0 %v7497
        %v7510 = vpop.xlane.xlu0 %7509
        %7511 = vadd.xlane.f32.xlu0 %v7498
        %v7512 = vpop.xlane.xlu0 %7511
        %7513 = vadd.xlane.f32.xlu0 %v7499
        %v7514 = vpop.xlane.xlu0 %7513
        %7515 = vadd.xlane.f32.xlu0 %v7500
        %v7516 = vpop.xlane.xlu0 %7515
        %v7517 = vmul.f32 %v7502, %v7476
        %v7518 = vmul.f32 %v7504, %v7476
        %v7519 = vmul.f32 %v7506, %v7476
        %v7520 = vmul.f32 %v7508, %v7476
        %v7521 = vmul.f32 %v7510, %v7476
        %v7522 = vmul.f32 %v7512, %v7476
        %v7523 = vmul.f32 %v7514, %v7476
        %v7524 = vmul.f32 %v7516, %v7476
        %v7525 = vadd.f32 %v7517, 1e-12
        %v7526 = vadd.f32 %v7518, 1e-12
        %v7527 = vadd.f32 %v7519, 1e-12
        %v7528 = vadd.f32 %v7520, 1e-12
        %v7529 = vadd.f32 %v7521, 1e-12
        %v7530 = vadd.f32 %v7522, 1e-12
        %v7531 = vadd.f32 %v7523, 1e-12
        %v7532 = vadd.f32 %v7524, 1e-12
        %v7533 = vrsqrt.pop %v7525
        %v7534 = vmul.f32 %v7533, %v7525
        %v7535 = vmul.f32 %v7534, %v7533
        %v7536 = vmul.f32 0.5, %v7535
        %v7537 = vsub.f32 1.5, %v7536
        %v7538 = vmul.f32 %v7533, %v7537
        %vm7539 = vweird.f32 %v7525
        %vm7540 = vweird.f32 %v7533
        %vm7541 = vmor %vm7539, %vm7540
        %v7542 = vsel %vm7541, %v7533, %v7538
        %v7543 = vrsqrt.pop %v7526
        %v7544 = vmul.f32 %v7543, %v7526
        %v7545 = vmul.f32 %v7544, %v7543
        %v7546 = vmul.f32 0.5, %v7545
        %v7547 = vsub.f32 1.5, %v7546
        %v7548 = vmul.f32 %v7543, %v7547
        %vm7549 = vweird.f32 %v7526
        %vm7550 = vweird.f32 %v7543
        %vm7551 = vmor %vm7549, %vm7550
        %v7552 = vsel %vm7551, %v7543, %v7548
        %v7553 = vrsqrt.pop %v7527
        %v7554 = vmul.f32 %v7553, %v7527
        %v7555 = vmul.f32 %v7554, %v7553
        %v7556 = vmul.f32 0.5, %v7555
        %v7557 = vsub.f32 1.5, %v7556
        %v7558 = vmul.f32 %v7553, %v7557
        %vm7559 = vweird.f32 %v7527
        %vm7560 = vweird.f32 %v7553
        %vm7561 = vmor %vm7559, %vm7560
        %v7562 = vsel %vm7561, %v7553, %v7558
        %v7563 = vrsqrt.pop %v7528
        %v7564 = vmul.f32 %v7563, %v7528
        %v7565 = vmul.f32 %v7564, %v7563
        %v7566 = vmul.f32 0.5, %v7565
        %v7567 = vsub.f32 1.5, %v7566
        %v7568 = vmul.f32 %v7563, %v7567
        %vm7569 = vweird.f32 %v7528
        %vm7570 = vweird.f32 %v7563
        %vm7571 = vmor %vm7569, %vm7570
        %v7572 = vsel %vm7571, %v7563, %v7568
        %v7573 = vrsqrt.pop %v7529
        %v7574 = vmul.f32 %v7573, %v7529
        %v7575 = vmul.f32 %v7574, %v7573
        %v7576 = vmul.f32 0.5, %v7575
        %v7577 = vsub.f32 1.5, %v7576
        %v7578 = vmul.f32 %v7573, %v7577
        %vm7579 = vweird.f32 %v7529
        %vm7580 = vweird.f32 %v7573
        %vm7581 = vmor %vm7579, %vm7580
        %v7582 = vsel %vm7581, %v7573, %v7578
        %v7583 = vrsqrt.pop %v7530
        %v7584 = vmul.f32 %v7583, %v7530
        %v7585 = vmul.f32 %v7584, %v7583
        %v7586 = vmul.f32 0.5, %v7585
        %v7587 = vsub.f32 1.5, %v7586
        %v7588 = vmul.f32 %v7583, %v7587
        %vm7589 = vweird.f32 %v7530
        %vm7590 = vweird.f32 %v7583
        %vm7591 = vmor %vm7589, %vm7590
        %v7592 = vsel %vm7591, %v7583, %v7588
        %v7593 = vrsqrt.pop %v7531
        %v7594 = vmul.f32 %v7593, %v7531
        %v7595 = vmul.f32 %v7594, %v7593
        %v7596 = vmul.f32 0.5, %v7595
        %v7597 = vsub.f32 1.5, %v7596
        %v7598 = vmul.f32 %v7593, %v7597
        %vm7599 = vweird.f32 %v7531
        %vm7600 = vweird.f32 %v7593
        %vm7601 = vmor %vm7599, %vm7600
        %v7602 = vsel %vm7601, %v7593, %v7598
        %v7603 = vrsqrt.pop %v7532
        %v7604 = vmul.f32 %v7603, %v7532
        %v7605 = vmul.f32 %v7604, %v7603
        %v7606 = vmul.f32 0.5, %v7605
        %v7607 = vsub.f32 1.5, %v7606
        %v7608 = vmul.f32 %v7603, %v7607
        %vm7609 = vweird.f32 %v7532
        %vm7610 = vweird.f32 %v7603
        %vm7611 = vmor %vm7609, %vm7610
        %v7612 = vsel %vm7611, %v7603, %v7608
        %v7613 = vmul.f32 %v7485, %v7542
        %v7614 = vmul.f32 %v7486, %v7552
        %v7615 = vmul.f32 %v7487, %v7562
        %v7616 = vmul.f32 %v7488, %v7572
        %v7617 = vmul.f32 %v7489, %v7582
        %v7618 = vmul.f32 %v7490, %v7592
        %v7619 = vmul.f32 %v7491, %v7602
        %v7620 = vmul.f32 %v7492, %v7612
        %v7622 = vperm.slane %v7452, 0
        %v7624 = vmul.f32 %v7613, %v7622
        %v7625 = vmul.f32 %v7614, %v7622
        %v7626 = vmul.f32 %v7615, %v7622
        %v7627 = vmul.f32 %v7616, %v7622
        %v7628 = vmul.f32 %v7617, %v7622
        %v7629 = vmul.f32 %v7618, %v7622
        %v7630 = vmul.f32 %v7619, %v7622
        %v7631 = vmul.f32 %v7620, %v7622
        %v7633 = vperm.slane %v7453, 0
        %v7635 = vadd.f32 %v7624, %v7633
        %v7636 = vadd.f32 %v7625, %v7633
        %v7637 = vadd.f32 %v7626, %v7633
        %v7638 = vadd.f32 %v7627, %v7633
        %v7639 = vadd.f32 %v7628, %v7633
        %v7640 = vadd.f32 %v7629, %v7633
        %v7641 = vadd.f32 %v7630, %v7633
        %v7642 = vadd.f32 %v7631, %v7633
        %v7643 = vld [vmem:[%s1054] sm:$0xff]
        %v7644 = vld [vmem:[%s1054 + $0x8] sm:$0xff]
        %v7645 = vld [vmem:[%s1054 + $0x10] sm:$0xff]
        %v7646 = vld [vmem:[%s1054 + $0x18] sm:$0xff]
        %v7647 = vld [vmem:[%s1054 + $0x20] sm:$0xff]
        %v7648 = vld [vmem:[%s1054 + $0x28] sm:$0xff]
        %v7649 = vld [vmem:[%s1054 + $0x30] sm:$0xff]
        %v7650 = vld [vmem:[%s1054 + $0x38] sm:$0xff]
        %v7651 = vld [vmem:[%s1054 + $0x40] sm:$0xff]
        %v7652 = vld [vmem:[%s1054 + $0x48] sm:$0xff]
        %v7653 = vld [vmem:[%s1054 + $0x50] sm:$0xff]
        %v7654 = vld [vmem:[%s1054 + $0x58] sm:$0xff]
        %v7655 = vld [vmem:[%s1054 + $0x60] sm:$0xff]
        %v7656 = vld [vmem:[%s1054 + $0x68] sm:$0xff]
        %v7657 = vld [vmem:[%s1054 + $0x70] sm:$0xff]
        %v7658 = vld [vmem:[%s1054 + $0x78] sm:$0xff]
        %v7659 = vpack.c.bf16 %v7636, %v7635
        %v7660 = vpack.c.bf16 %v7638, %v7637
        %v7661 = vpack.c.bf16 %v7640, %v7639
        %v7662 = vpack.c.bf16 %v7642, %v7641
        %v7663 = vld [vmem:[%s873] sm:$0x3]
        %v7665 = vperm.slane %v7663, 0
        %v7666 = vperm.slane %v7663, 1
        %v7685 = vunpack.c.l.b16 %v7643
        %v7686 = vunpack.c.h.b16 %v7643
        %v7687 = vunpack.c.l.b16 %v7644
        %v7688 = vunpack.c.h.b16 %v7644
        %v7689 = vunpack.c.l.b16 %v7645
        %v7690 = vunpack.c.h.b16 %v7645
        %v7691 = vunpack.c.l.b16 %v7646
        %v7692 = vunpack.c.h.b16 %v7646
        %v7693 = vunpack.c.l.b16 %v7647
        %v7694 = vunpack.c.h.b16 %v7647
        %v7695 = vunpack.c.l.b16 %v7648
        %v7696 = vunpack.c.h.b16 %v7648
        %v7697 = vunpack.c.l.b16 %v7649
        %v7698 = vunpack.c.h.b16 %v7649
        %v7699 = vunpack.c.l.b16 %v7650
        %v7700 = vunpack.c.h.b16 %v7650
        %v7701 = vunpack.c.l.b16 %v7651
        %v7702 = vunpack.c.h.b16 %v7651
        %v7703 = vunpack.c.l.b16 %v7652
        %v7704 = vunpack.c.h.b16 %v7652
        %v7705 = vunpack.c.l.b16 %v7653
        %v7706 = vunpack.c.h.b16 %v7653
        %v7707 = vunpack.c.l.b16 %v7654
        %v7708 = vunpack.c.h.b16 %v7654
        %v7709 = vunpack.c.l.b16 %v7655
        %v7710 = vunpack.c.h.b16 %v7655
        %v7711 = vunpack.c.l.b16 %v7656
        %v7712 = vunpack.c.h.b16 %v7656
        %v7713 = vunpack.c.l.b16 %v7657
        %v7714 = vunpack.c.h.b16 %v7657
        %v7715 = vunpack.c.l.b16 %v7658
        %v7716 = vunpack.c.h.b16 %v7658
        %v7717 = vpack.c.b16 %v7687, %v7685
        %v7718 = vpack.c.b16 %v7688, %v7686
        %v7719 = vpack.c.b16 %v7691, %v7689
        %v7720 = vpack.c.b16 %v7692, %v7690
        %v7721 = vpack.c.b16 %v7695, %v7693
        %v7722 = vpack.c.b16 %v7696, %v7694
        %v7723 = vpack.c.b16 %v7699, %v7697
        %v7724 = vpack.c.b16 %v7700, %v7698
        %v7725 = vpack.c.b16 %v7703, %v7701
        %v7726 = vpack.c.b16 %v7704, %v7702
        %v7727 = vpack.c.b16 %v7707, %v7705
        %v7728 = vpack.c.b16 %v7708, %v7706
        %v7729 = vpack.c.b16 %v7711, %v7709
        %v7730 = vpack.c.b16 %v7712, %v7710
        %v7731 = vpack.c.b16 %v7715, %v7713
        %v7732 = vpack.c.b16 %v7716, %v7714
        %7749 = vmatpush.bf16.msra.mxu0 %v7731
        %7750 = vmatpush.bf16.msra.mxu0 %v7729
        %7751 = vmatpush.bf16.msra.mxu0 %v7727
        %7752 = vmatpush.bf16.msra.mxu0 %v7725
        %7753 = vmatpush.bf16.msra.mxu0 %v7723
        %7754 = vmatpush.bf16.msra.mxu0 %v7721
        %7755 = vmatpush.bf16.msra.mxu0 %v7719
        %7756 = vmatpush.bf16.msra.mxu0 %v7717
        %7757 = vmatmul.bf16.gmra.mxu0 %v7659
        %v7758 = vpop.f32.mrf.mxu0
        %v7759 = vadd.f32 %v7665, %v7758
        %v7760 = vpop.f32.mrf.mxu0
        %v7761 = vadd.f32 %v7665, %v7760
        %7762 = vmatmul.bf16.gmra.mxu0 %v7660
        %v7763 = vpop.f32.mrf.mxu0
        %v7764 = vadd.f32 %v7665, %v7763
        %v7765 = vpop.f32.mrf.mxu0
        %v7766 = vadd.f32 %v7665, %v7765
        %7767 = vmatmul.bf16.gmra.mxu0 %v7661
        %v7768 = vpop.f32.mrf.mxu0
        %v7769 = vadd.f32 %v7665, %v7768
        %v7770 = vpop.f32.mrf.mxu0
        %v7771 = vadd.f32 %v7665, %v7770
        %7772 = vmatmul.bf16.gmra.mxu0 %v7662
        %v7773 = vpop.f32.mrf.mxu0
        %v7774 = vadd.f32 %v7665, %v7773
        %v7775 = vpop.f32.mrf.mxu0
        %v7776 = vadd.f32 %v7665, %v7775
        %7777 = vdwg.mxu0
        %7778 = vmatpush.bf16.msra.mxu0 %v7732
        %7779 = vmatpush.bf16.msra.mxu0 %v7730
        %7780 = vmatpush.bf16.msra.mxu0 %v7728
        %7781 = vmatpush.bf16.msra.mxu0 %v7726
        %7782 = vmatpush.bf16.msra.mxu0 %v7724
        %7783 = vmatpush.bf16.msra.mxu0 %v7722
        %7784 = vmatpush.bf16.msra.mxu0 %v7720
        %7785 = vmatpush.bf16.msra.mxu0 %v7718
        %7786 = vmatmul.bf16.gmra.mxu0 %v7659
        %v7787 = vpop.f32.mrf.mxu0
        %v7788 = vadd.f32 %v7666, %v7787
        %v7789 = vpop.f32.mrf.mxu0
        %v7790 = vadd.f32 %v7666, %v7789
        %7791 = vmatmul.bf16.gmra.mxu0 %v7660
        %v7792 = vpop.f32.mrf.mxu0
        %v7793 = vadd.f32 %v7666, %v7792
        %v7794 = vpop.f32.mrf.mxu0
        %v7795 = vadd.f32 %v7666, %v7794
        %7796 = vmatmul.bf16.gmra.mxu0 %v7661
        %v7797 = vpop.f32.mrf.mxu0
        %v7798 = vadd.f32 %v7666, %v7797
        %v7799 = vpop.f32.mrf.mxu0
        %v7800 = vadd.f32 %v7666, %v7799
        %7801 = vmatmul.bf16.gmra.mxu0 %v7662
        %v7802 = vpop.f32.mrf.mxu0
        %v7803 = vadd.f32 %v7666, %v7802
        %v7804 = vpop.f32.mrf.mxu0
        %v7805 = vadd.f32 %v7666, %v7804
        %7806 = vdwg.mxu0
        %v7807 = vmul.f32 %v7759, %v7759
        %v7808 = vmul.f32 %v7788, %v7788
        %v7809 = vmul.f32 %v7761, %v7761
        %v7810 = vmul.f32 %v7790, %v7790
        %v7811 = vmul.f32 %v7764, %v7764
        %v7812 = vmul.f32 %v7793, %v7793
        %v7813 = vmul.f32 %v7766, %v7766
        %v7814 = vmul.f32 %v7795, %v7795
        %v7815 = vmul.f32 %v7769, %v7769
        %v7816 = vmul.f32 %v7798, %v7798
        %v7817 = vmul.f32 %v7771, %v7771
        %v7818 = vmul.f32 %v7800, %v7800
        %v7819 = vmul.f32 %v7774, %v7774
        %v7820 = vmul.f32 %v7803, %v7803
        %v7821 = vmul.f32 %v7776, %v7776
        %v7822 = vmul.f32 %v7805, %v7805
        %v7823 = vmul.f32 %v7759, %v7807
        %v7824 = vmul.f32 %v7788, %v7808
        %v7825 = vmul.f32 %v7761, %v7809
        %v7826 = vmul.f32 %v7790, %v7810
        %v7827 = vmul.f32 %v7764, %v7811
        %v7828 = vmul.f32 %v7793, %v7812
        %v7829 = vmul.f32 %v7766, %v7813
        %v7830 = vmul.f32 %v7795, %v7814
        %v7831 = vmul.f32 %v7769, %v7815
        %v7832 = vmul.f32 %v7798, %v7816
        %v7833 = vmul.f32 %v7771, %v7817
        %v7834 = vmul.f32 %v7800, %v7818
        %v7835 = vmul.f32 %v7774, %v7819
        %v7836 = vmul.f32 %v7803, %v7820
        %v7837 = vmul.f32 %v7776, %v7821
        %v7838 = vmul.f32 %v7805, %v7822
        %v7839 = vmul.f32 %v7823, 0.044715
        %v7840 = vmul.f32 %v7824, 0.044715
        %v7841 = vmul.f32 %v7825, 0.044715
        %v7842 = vmul.f32 %v7826, 0.044715
        %v7843 = vmul.f32 %v7827, 0.044715
        %v7844 = vmul.f32 %v7828, 0.044715
        %v7845 = vmul.f32 %v7829, 0.044715
        %v7846 = vmul.f32 %v7830, 0.044715
        %v7847 = vmul.f32 %v7831, 0.044715
        %v7848 = vmul.f32 %v7832, 0.044715
        %v7849 = vmul.f32 %v7833, 0.044715
        %v7850 = vmul.f32 %v7834, 0.044715
        %v7851 = vmul.f32 %v7835, 0.044715
        %v7852 = vmul.f32 %v7836, 0.044715
        %v7853 = vmul.f32 %v7837, 0.044715
        %v7854 = vmul.f32 %v7838, 0.044715
        %v7855 = vadd.f32 %v7759, %v7839
        %v7856 = vadd.f32 %v7788, %v7840
        %v7857 = vadd.f32 %v7761, %v7841
        %v7858 = vadd.f32 %v7790, %v7842
        %v7859 = vadd.f32 %v7764, %v7843
        %v7860 = vadd.f32 %v7793, %v7844
        %v7861 = vadd.f32 %v7766, %v7845
        %v7862 = vadd.f32 %v7795, %v7846
        %v7863 = vadd.f32 %v7769, %v7847
        %v7864 = vadd.f32 %v7798, %v7848
        %v7865 = vadd.f32 %v7771, %v7849
        %v7866 = vadd.f32 %v7800, %v7850
        %v7867 = vadd.f32 %v7774, %v7851
        %v7868 = vadd.f32 %v7803, %v7852
        %v7869 = vadd.f32 %v7776, %v7853
        %v7870 = vadd.f32 %v7805, %v7854
        %v7871 = vmul.f32 %v7855, 0.7978846
        %v7872 = vmul.f32 %v7856, 0.7978846
        %v7873 = vmul.f32 %v7857, 0.7978846
        %v7874 = vmul.f32 %v7858, 0.7978846
        %v7875 = vmul.f32 %v7859, 0.7978846
        %v7876 = vmul.f32 %v7860, 0.7978846
        %v7877 = vmul.f32 %v7861, 0.7978846
        %v7878 = vmul.f32 %v7862, 0.7978846
        %v7879 = vmul.f32 %v7863, 0.7978846
        %v7880 = vmul.f32 %v7864, 0.7978846
        %v7881 = vmul.f32 %v7865, 0.7978846
        %v7882 = vmul.f32 %v7866, 0.7978846
        %v7883 = vmul.f32 %v7867, 0.7978846
        %v7884 = vmul.f32 %v7868, 0.7978846
        %v7885 = vmul.f32 %v7869, 0.7978846
        %v7886 = vmul.f32 %v7870, 0.7978846
        %v7887 = vtanh.pop %v7871
        %v7888 = vtanh.pop %v7872
        %v7889 = vtanh.pop %v7873
        %v7890 = vtanh.pop %v7874
        %v7891 = vtanh.pop %v7875
        %v7892 = vtanh.pop %v7876
        %v7893 = vtanh.pop %v7877
        %v7894 = vtanh.pop %v7878
        %v7895 = vtanh.pop %v7879
        %v7896 = vtanh.pop %v7880
        %v7897 = vtanh.pop %v7881
        %v7898 = vtanh.pop %v7882
        %v7899 = vtanh.pop %v7883
        %v7900 = vtanh.pop %v7884
        %v7901 = vtanh.pop %v7885
        %v7902 = vtanh.pop %v7886
        %v7903 = vadd.f32 %v7887, 1.0
        %v7904 = vadd.f32 %v7888, 1.0
        %v7905 = vadd.f32 %v7889, 1.0
        %v7906 = vadd.f32 %v7890, 1.0
        %v7907 = vadd.f32 %v7891, 1.0
        %v7908 = vadd.f32 %v7892, 1.0
        %v7909 = vadd.f32 %v7893, 1.0
        %v7910 = vadd.f32 %v7894, 1.0
        %v7911 = vadd.f32 %v7895, 1.0
        %v7912 = vadd.f32 %v7896, 1.0
        %v7913 = vadd.f32 %v7897, 1.0
        %v7914 = vadd.f32 %v7898, 1.0
        %v7915 = vadd.f32 %v7899, 1.0
        %v7916 = vadd.f32 %v7900, 1.0
        %v7917 = vadd.f32 %v7901, 1.0
        %v7918 = vadd.f32 %v7902, 1.0
        %v7919 = vmul.f32 %v7903, 0.5
        %v7920 = vmul.f32 %v7904, 0.5
        %v7921 = vmul.f32 %v7905, 0.5
        %v7922 = vmul.f32 %v7906, 0.5
        %v7923 = vmul.f32 %v7907, 0.5
        %v7924 = vmul.f32 %v7908, 0.5
        %v7925 = vmul.f32 %v7909, 0.5
        %v7926 = vmul.f32 %v7910, 0.5
        %v7927 = vmul.f32 %v7911, 0.5
        %v7928 = vmul.f32 %v7912, 0.5
        %v7929 = vmul.f32 %v7913, 0.5
        %v7930 = vmul.f32 %v7914, 0.5
        %v7931 = vmul.f32 %v7915, 0.5
        %v7932 = vmul.f32 %v7916, 0.5
        %v7933 = vmul.f32 %v7917, 0.5
        %v7934 = vmul.f32 %v7918, 0.5
        %v7935 = vmul.f32 %v7759, %v7919
        %v7936 = vmul.f32 %v7788, %v7920
        %v7937 = vmul.f32 %v7761, %v7921
        %v7938 = vmul.f32 %v7790, %v7922
        %v7939 = vmul.f32 %v7764, %v7923
        %v7940 = vmul.f32 %v7793, %v7924
        %v7941 = vmul.f32 %v7766, %v7925
        %v7942 = vmul.f32 %v7795, %v7926
        %v7943 = vmul.f32 %v7769, %v7927
        %v7944 = vmul.f32 %v7798, %v7928
        %v7945 = vmul.f32 %v7771, %v7929
        %v7946 = vmul.f32 %v7800, %v7930
        %v7947 = vmul.f32 %v7774, %v7931
        %v7948 = vmul.f32 %v7803, %v7932
        %v7949 = vmul.f32 %v7776, %v7933
        %v7950 = vmul.f32 %v7805, %v7934
        %v7951 = vld [vmem:[%s883] sm:$0xf]
        %v7952 = vld [vmem:[%s883 + $0x4] sm:$0xf]
        %v7953 = vld [vmem:[%s883 + $0x8] sm:$0xf]
        %v7954 = vld [vmem:[%s883 + $0xc] sm:$0xf]
        %v7955 = vld [vmem:[%s883 + $0x10] sm:$0xf]
        %v7956 = vld [vmem:[%s883 + $0x14] sm:$0xf]
        %v7957 = vld [vmem:[%s883 + $0x18] sm:$0xf]
        %v7958 = vld [vmem:[%s883 + $0x1c] sm:$0xf]
        %v7959 = vld [vmem:[%s883 + $0x20] sm:$0xf]
        %v7960 = vld [vmem:[%s883 + $0x24] sm:$0xf]
        %v7961 = vld [vmem:[%s883 + $0x28] sm:$0xf]
        %v7962 = vld [vmem:[%s883 + $0x2c] sm:$0xf]
        %v7963 = vld [vmem:[%s883 + $0x30] sm:$0xf]
        %v7964 = vld [vmem:[%s883 + $0x34] sm:$0xf]
        %v7965 = vld [vmem:[%s883 + $0x38] sm:$0xf]
        %v7966 = vld [vmem:[%s883 + $0x3c] sm:$0xf]
        %v7967 = vld [vmem:[%s883 + $0x40] sm:$0xf]
        %v7968 = vld [vmem:[%s883 + $0x44] sm:$0xf]
        %v7969 = vld [vmem:[%s883 + $0x48] sm:$0xf]
        %v7970 = vld [vmem:[%s883 + $0x4c] sm:$0xf]
        %v7971 = vld [vmem:[%s883 + $0x50] sm:$0xf]
        %v7972 = vld [vmem:[%s883 + $0x54] sm:$0xf]
        %v7973 = vld [vmem:[%s883 + $0x58] sm:$0xf]
        %v7974 = vld [vmem:[%s883 + $0x5c] sm:$0xf]
        %v7975 = vld [vmem:[%s883 + $0x60] sm:$0xf]
        %v7976 = vld [vmem:[%s883 + $0x64] sm:$0xf]
        %v7977 = vld [vmem:[%s883 + $0x68] sm:$0xf]
        %v7978 = vld [vmem:[%s883 + $0x6c] sm:$0xf]
        %v7979 = vld [vmem:[%s883 + $0x70] sm:$0xf]
        %v7980 = vld [vmem:[%s883 + $0x74] sm:$0xf]
        %v7981 = vld [vmem:[%s883 + $0x78] sm:$0xf]
        %v7982 = vld [vmem:[%s883 + $0x7c] sm:$0xf]
        %v7983 = vpack.c.bf16 %v7937, %v7935
        %v7984 = vpack.c.bf16 %v7938, %v7936
        %v7985 = vpack.c.bf16 %v7941, %v7939
        %v7986 = vpack.c.bf16 %v7942, %v7940
        %v7987 = vpack.c.bf16 %v7945, %v7943
        %v7988 = vpack.c.bf16 %v7946, %v7944
        %v7989 = vpack.c.bf16 %v7949, %v7947
        %v7990 = vpack.c.bf16 %v7950, %v7948
        %v7991 = vld [vmem:[%s892] sm:$0x1]
        %v7993 = vperm.slane %v7991, 0
        %v8027 = vunpack.c.l.b16 %v7951
        %v8028 = vunpack.c.l.b16 %v7952
        %v8029 = vunpack.c.l.b16 %v7953
        %v8030 = vunpack.c.l.b16 %v7954
        %v8031 = vunpack.c.l.b16 %v7955
        %v8032 = vunpack.c.l.b16 %v7956
        %v8033 = vunpack.c.l.b16 %v7957
        %v8034 = vunpack.c.l.b16 %v7958
        %v8035 = vunpack.c.l.b16 %v7959
        %v8036 = vunpack.c.l.b16 %v7960
        %v8037 = vunpack.c.l.b16 %v7961
        %v8038 = vunpack.c.l.b16 %v7962
        %v8039 = vunpack.c.l.b16 %v7963
        %v8040 = vunpack.c.l.b16 %v7964
        %v8041 = vunpack.c.l.b16 %v7965
        %v8042 = vunpack.c.l.b16 %v7966
        %v8043 = vunpack.c.l.b16 %v7967
        %v8044 = vunpack.c.l.b16 %v7968
        %v8045 = vunpack.c.l.b16 %v7969
        %v8046 = vunpack.c.l.b16 %v7970
        %v8047 = vunpack.c.l.b16 %v7971
        %v8048 = vunpack.c.l.b16 %v7972
        %v8049 = vunpack.c.l.b16 %v7973
        %v8050 = vunpack.c.l.b16 %v7974
        %v8051 = vunpack.c.l.b16 %v7975
        %v8052 = vunpack.c.l.b16 %v7976
        %v8053 = vunpack.c.l.b16 %v7977
        %v8054 = vunpack.c.l.b16 %v7978
        %v8055 = vunpack.c.l.b16 %v7979
        %v8056 = vunpack.c.l.b16 %v7980
        %v8057 = vunpack.c.l.b16 %v7981
        %v8058 = vunpack.c.l.b16 %v7982
        %v8059 = vpack.c.b16 %v8028, %v8027
        %v8060 = vpack.c.b16 %v8030, %v8029
        %v8061 = vpack.c.b16 %v8032, %v8031
        %v8062 = vpack.c.b16 %v8034, %v8033
        %v8063 = vpack.c.b16 %v8036, %v8035
        %v8064 = vpack.c.b16 %v8038, %v8037
        %v8065 = vpack.c.b16 %v8040, %v8039
        %v8066 = vpack.c.b16 %v8042, %v8041
        %v8067 = vpack.c.b16 %v8044, %v8043
        %v8068 = vpack.c.b16 %v8046, %v8045
        %v8069 = vpack.c.b16 %v8048, %v8047
        %v8070 = vpack.c.b16 %v8050, %v8049
        %v8071 = vpack.c.b16 %v8052, %v8051
        %v8072 = vpack.c.b16 %v8054, %v8053
        %v8073 = vpack.c.b16 %v8056, %v8055
        %v8074 = vpack.c.b16 %v8058, %v8057
        %8091 = vmatpush.bf16.msra.mxu0 %v8066
        %8092 = vmatpush.bf16.msra.mxu0 %v8065
        %8093 = vmatpush.bf16.msra.mxu0 %v8064
        %8094 = vmatpush.bf16.msra.mxu0 %v8063
        %8095 = vmatpush.bf16.msra.mxu0 %v8062
        %8096 = vmatpush.bf16.msra.mxu0 %v8061
        %8097 = vmatpush.bf16.msra.mxu0 %v8060
        %8098 = vmatpush.bf16.msra.mxu0 %v8059
        %8099 = vmatmul.bf16.gmra.mxu0 %v7983
        %v8100 = vpop.f32.mrf.mxu0
        %v8101 = vadd.f32 %v7993, %v8100
        %v8102 = vpop.f32.mrf.mxu0
        %v8103 = vadd.f32 %v7993, %v8102
        %8104 = vmatmul.bf16.gmra.mxu0 %v7985
        %v8105 = vpop.f32.mrf.mxu0
        %v8106 = vadd.f32 %v7993, %v8105
        %v8107 = vpop.f32.mrf.mxu0
        %v8108 = vadd.f32 %v7993, %v8107
        %8109 = vmatmul.bf16.gmra.mxu0 %v7987
        %v8110 = vpop.f32.mrf.mxu0
        %v8111 = vadd.f32 %v7993, %v8110
        %v8112 = vpop.f32.mrf.mxu0
        %v8113 = vadd.f32 %v7993, %v8112
        %8114 = vmatmul.bf16.gmra.mxu0 %v7989
        %v8115 = vpop.f32.mrf.mxu0
        %v8116 = vadd.f32 %v7993, %v8115
        %v8117 = vpop.f32.mrf.mxu0
        %v8118 = vadd.f32 %v7993, %v8117
        %8119 = vdwg.mxu0
        %8120 = vmatpush.bf16.msra.mxu0 %v8074
        %8121 = vmatpush.bf16.msra.mxu0 %v8073
        %8122 = vmatpush.bf16.msra.mxu0 %v8072
        %8123 = vmatpush.bf16.msra.mxu0 %v8071
        %8124 = vmatpush.bf16.msra.mxu0 %v8070
        %8125 = vmatpush.bf16.msra.mxu0 %v8069
        %8126 = vmatpush.bf16.msra.mxu0 %v8068
        %8127 = vmatpush.bf16.msra.mxu0 %v8067
        %8128 = vmatmul.bf16.gmra.mxu0 %v7984
        %v8129 = vpop.f32.mrf.mxu0
        %v8130 = vadd.f32 %v8101, %v8129
        %v8131 = vpop.f32.mrf.mxu0
        %v8132 = vadd.f32 %v8103, %v8131
        %8133 = vmatmul.bf16.gmra.mxu0 %v7986
        %v8134 = vpop.f32.mrf.mxu0
        %v8135 = vadd.f32 %v8106, %v8134
        %v8136 = vpop.f32.mrf.mxu0
        %v8137 = vadd.f32 %v8108, %v8136
        %8138 = vmatmul.bf16.gmra.mxu0 %v7988
        %v8139 = vpop.f32.mrf.mxu0
        %v8140 = vadd.f32 %v8111, %v8139
        %v8141 = vpop.f32.mrf.mxu0
        %v8142 = vadd.f32 %v8113, %v8141
        %8143 = vmatmul.bf16.gmra.mxu0 %v7990
        %v8144 = vpop.f32.mrf.mxu0
        %v8145 = vadd.f32 %v8116, %v8144
        %v8146 = vpop.f32.mrf.mxu0
        %v8147 = vadd.f32 %v8118, %v8146
        %8148 = vdwg.mxu0
        %v8149 = vadd.f32 %v8130, %v7635
        %v8150 = vadd.f32 %v8132, %v7636
        %v8151 = vadd.f32 %v8135, %v7637
        %v8152 = vadd.f32 %v8137, %v7638
        %v8153 = vadd.f32 %v8140, %v7639
        %v8154 = vadd.f32 %v8142, %v7640
        %v8155 = vadd.f32 %v8145, %v7641
        %v8156 = vadd.f32 %v8147, %v7642
        %v8157 = vld [vmem:[%s901] sm:$0x1]
        %v8158 = vld [vmem:[%s910] sm:$0x1]
        %8159 = vadd.xlane.f32.xlu0 %v8149
        %v8160 = vpop.xlane.xlu0 %8159
        %8161 = vadd.xlane.f32.xlu0 %v8150
        %v8162 = vpop.xlane.xlu0 %8161
        %8163 = vadd.xlane.f32.xlu0 %v8151
        %v8164 = vpop.xlane.xlu0 %8163
        %8165 = vadd.xlane.f32.xlu0 %v8152
        %v8166 = vpop.xlane.xlu0 %8165
        %8167 = vadd.xlane.f32.xlu0 %v8153
        %v8168 = vpop.xlane.xlu0 %8167
        %8169 = vadd.xlane.f32.xlu0 %v8154
        %v8170 = vpop.xlane.xlu0 %8169
        %8171 = vadd.xlane.f32.xlu0 %v8155
        %v8172 = vpop.xlane.xlu0 %8171
        %8173 = vadd.xlane.f32.xlu0 %v8156
        %v8174 = vpop.xlane.xlu0 %8173
        %v8175 = vmul.f32 %v8160, %v7476
        %v8176 = vmul.f32 %v8162, %v7476
        %v8177 = vmul.f32 %v8164, %v7476
        %v8178 = vmul.f32 %v8166, %v7476
        %v8179 = vmul.f32 %v8168, %v7476
        %v8180 = vmul.f32 %v8170, %v7476
        %v8181 = vmul.f32 %v8172, %v7476
        %v8182 = vmul.f32 %v8174, %v7476
        %v8183 = vsub.f32 %v8149, %v8175
        %v8184 = vsub.f32 %v8150, %v8176
        %v8185 = vsub.f32 %v8151, %v8177
        %v8186 = vsub.f32 %v8152, %v8178
        %v8187 = vsub.f32 %v8153, %v8179
        %v8188 = vsub.f32 %v8154, %v8180
        %v8189 = vsub.f32 %v8155, %v8181
        %v8190 = vsub.f32 %v8156, %v8182
        %v8191 = vmul.f32 %v8183, %v8183
        %v8192 = vmul.f32 %v8184, %v8184
        %v8193 = vmul.f32 %v8185, %v8185
        %v8194 = vmul.f32 %v8186, %v8186
        %v8195 = vmul.f32 %v8187, %v8187
        %v8196 = vmul.f32 %v8188, %v8188
        %v8197 = vmul.f32 %v8189, %v8189
        %v8198 = vmul.f32 %v8190, %v8190
        %8199 = vadd.xlane.f32.xlu0 %v8191
        %v8200 = vpop.xlane.xlu0 %8199
        %8201 = vadd.xlane.f32.xlu0 %v8192
        %v8202 = vpop.xlane.xlu0 %8201
        %8203 = vadd.xlane.f32.xlu0 %v8193
        %v8204 = vpop.xlane.xlu0 %8203
        %8205 = vadd.xlane.f32.xlu0 %v8194
        %v8206 = vpop.xlane.xlu0 %8205
        %8207 = vadd.xlane.f32.xlu0 %v8195
        %v8208 = vpop.xlane.xlu0 %8207
        %8209 = vadd.xlane.f32.xlu0 %v8196
        %v8210 = vpop.xlane.xlu0 %8209
        %8211 = vadd.xlane.f32.xlu0 %v8197
        %v8212 = vpop.xlane.xlu0 %8211
        %8213 = vadd.xlane.f32.xlu0 %v8198
        %v8214 = vpop.xlane.xlu0 %8213
        %v8215 = vmul.f32 %v8200, %v7476
        %v8216 = vmul.f32 %v8202, %v7476
        %v8217 = vmul.f32 %v8204, %v7476
        %v8218 = vmul.f32 %v8206, %v7476
        %v8219 = vmul.f32 %v8208, %v7476
        %v8220 = vmul.f32 %v8210, %v7476
        %v8221 = vmul.f32 %v8212, %v7476
        %v8222 = vmul.f32 %v8214, %v7476
        %v8223 = vadd.f32 %v8215, 1e-12
        %v8224 = vadd.f32 %v8216, 1e-12
        %v8225 = vadd.f32 %v8217, 1e-12
        %v8226 = vadd.f32 %v8218, 1e-12
        %v8227 = vadd.f32 %v8219, 1e-12
        %v8228 = vadd.f32 %v8220, 1e-12
        %v8229 = vadd.f32 %v8221, 1e-12
        %v8230 = vadd.f32 %v8222, 1e-12
        %v8231 = vrsqrt.pop %v8223
        %v8232 = vmul.f32 %v8231, %v8223
        %v8233 = vmul.f32 %v8232, %v8231
        %v8234 = vmul.f32 0.5, %v8233
        %v8235 = vsub.f32 1.5, %v8234
        %v8236 = vmul.f32 %v8231, %v8235
        %vm8237 = vweird.f32 %v8223
        %vm8238 = vweird.f32 %v8231
        %vm8239 = vmor %vm8237, %vm8238
        %v8240 = vsel %vm8239, %v8231, %v8236
        %v8241 = vrsqrt.pop %v8224
        %v8242 = vmul.f32 %v8241, %v8224
        %v8243 = vmul.f32 %v8242, %v8241
        %v8244 = vmul.f32 0.5, %v8243
        %v8245 = vsub.f32 1.5, %v8244
        %v8246 = vmul.f32 %v8241, %v8245
        %vm8247 = vweird.f32 %v8224
        %vm8248 = vweird.f32 %v8241
        %vm8249 = vmor %vm8247, %vm8248
        %v8250 = vsel %vm8249, %v8241, %v8246
        %v8251 = vrsqrt.pop %v8225
        %v8252 = vmul.f32 %v8251, %v8225
        %v8253 = vmul.f32 %v8252, %v8251
        %v8254 = vmul.f32 0.5, %v8253
        %v8255 = vsub.f32 1.5, %v8254
        %v8256 = vmul.f32 %v8251, %v8255
        %vm8257 = vweird.f32 %v8225
        %vm8258 = vweird.f32 %v8251
        %vm8259 = vmor %vm8257, %vm8258
        %v8260 = vsel %vm8259, %v8251, %v8256
        %v8261 = vrsqrt.pop %v8226
        %v8262 = vmul.f32 %v8261, %v8226
        %v8263 = vmul.f32 %v8262, %v8261
        %v8264 = vmul.f32 0.5, %v8263
        %v8265 = vsub.f32 1.5, %v8264
        %v8266 = vmul.f32 %v8261, %v8265
        %vm8267 = vweird.f32 %v8226
        %vm8268 = vweird.f32 %v8261
        %vm8269 = vmor %vm8267, %vm8268
        %v8270 = vsel %vm8269, %v8261, %v8266
        %v8271 = vrsqrt.pop %v8227
        %v8272 = vmul.f32 %v8271, %v8227
        %v8273 = vmul.f32 %v8272, %v8271
        %v8274 = vmul.f32 0.5, %v8273
        %v8275 = vsub.f32 1.5, %v8274
        %v8276 = vmul.f32 %v8271, %v8275
        %vm8277 = vweird.f32 %v8227
        %vm8278 = vweird.f32 %v8271
        %vm8279 = vmor %vm8277, %vm8278
        %v8280 = vsel %vm8279, %v8271, %v8276
        %v8281 = vrsqrt.pop %v8228
        %v8282 = vmul.f32 %v8281, %v8228
        %v8283 = vmul.f32 %v8282, %v8281
        %v8284 = vmul.f32 0.5, %v8283
        %v8285 = vsub.f32 1.5, %v8284
        %v8286 = vmul.f32 %v8281, %v8285
        %vm8287 = vweird.f32 %v8228
        %vm8288 = vweird.f32 %v8281
        %vm8289 = vmor %vm8287, %vm8288
        %v8290 = vsel %vm8289, %v8281, %v8286
        %v8291 = vrsqrt.pop %v8229
        %v8292 = vmul.f32 %v8291, %v8229
        %v8293 = vmul.f32 %v8292, %v8291
        %v8294 = vmul.f32 0.5, %v8293
        %v8295 = vsub.f32 1.5, %v8294
        %v8296 = vmul.f32 %v8291, %v8295
        %vm8297 = vweird.f32 %v8229
        %vm8298 = vweird.f32 %v8291
        %vm8299 = vmor %vm8297, %vm8298
        %v8300 = vsel %vm8299, %v8291, %v8296
        %v8301 = vrsqrt.pop %v8230
        %v8302 = vmul.f32 %v8301, %v8230
        %v8303 = vmul.f32 %v8302, %v8301
        %v8304 = vmul.f32 0.5, %v8303
        %v8305 = vsub.f32 1.5, %v8304
        %v8306 = vmul.f32 %v8301, %v8305
        %vm8307 = vweird.f32 %v8230
        %vm8308 = vweird.f32 %v8301
        %vm8309 = vmor %vm8307, %vm8308
        %v8310 = vsel %vm8309, %v8301, %v8306
        %v8311 = vmul.f32 %v8183, %v8240
        %v8312 = vmul.f32 %v8184, %v8250
        %v8313 = vmul.f32 %v8185, %v8260
        %v8314 = vmul.f32 %v8186, %v8270
        %v8315 = vmul.f32 %v8187, %v8280
        %v8316 = vmul.f32 %v8188, %v8290
        %v8317 = vmul.f32 %v8189, %v8300
        %v8318 = vmul.f32 %v8190, %v8310
        %v8320 = vperm.slane %v8157, 0
        %v8322 = vmul.f32 %v8311, %v8320
        %v8323 = vmul.f32 %v8312, %v8320
        %v8324 = vmul.f32 %v8313, %v8320
        %v8325 = vmul.f32 %v8314, %v8320
        %v8326 = vmul.f32 %v8315, %v8320
        %v8327 = vmul.f32 %v8316, %v8320
        %v8328 = vmul.f32 %v8317, %v8320
        %v8329 = vmul.f32 %v8318, %v8320
        %v8331 = vperm.slane %v8158, 0
        %v8333 = vadd.f32 %v8322, %v8331
        %v8334 = vadd.f32 %v8323, %v8331
        %v8335 = vadd.f32 %v8324, %v8331
        %v8336 = vadd.f32 %v8325, %v8331
        %v8337 = vadd.f32 %v8326, %v8331
        %v8338 = vadd.f32 %v8327, %v8331
        %v8339 = vadd.f32 %v8328, %v8331
        %v8340 = vadd.f32 %v8329, %v8331
        %8341 = vst [vmem:[#allocation2] sm:$0xff] %v8333
        %8342 = vst [vmem:[#allocation2 + $0x8] sm:$0xff] %v8334
        %8343 = vst [vmem:[#allocation2 + $0x10] sm:$0xff] %v8335
        %8344 = vst [vmem:[#allocation2 + $0x18] sm:$0xff] %v8336
        %8345 = vst [vmem:[#allocation2 + $0x20] sm:$0xff] %v8337
        %8346 = vst [vmem:[#allocation2 + $0x28] sm:$0xff] %v8338
        %8347 = vst [vmem:[#allocation2 + $0x30] sm:$0xff] %v8339
        %8348 = vst [vmem:[#allocation2 + $0x38] sm:$0xff] %v8340
        %p8349 = scmp.eq.s32.totalorder %s52, 3
        // Predicated region
        $region145: #{forward.1} parent=99 // pred_check
          %p8350 = pneg %p8349
        $region146: #{forward.1} parent=99 // pred_check_branch
          %8352 = sbr.rel (%p8350) target = $region148
        $region147: #{forward.1} parent=99 // pred_region
          %v8354 = vrot.slane %v8335, 7
          %v8357 = vrot.slane %v8337, 6
          %v8360 = vrot.slane %v8339, 5
          %vm8362 = vcmask 1040384
          %v8363 = vsel %vm8362, %v8333, %v8354
          %vm8364 = vcmask 1041408
          %v8365 = vsel %vm8364, %v8363, %v8357
          %vm8366 = vcmask 1042432
          %v8367 = vsel %vm8366, %v8365, %v8360
          %v8368 = vld [vmem:[%s16] sm:$0xf]
          %v8369 = vld [vmem:[%s16 + $0x4] sm:$0xf]
          %v8370 = vld [vmem:[%s16 + $0x8] sm:$0xf]
          %v8371 = vld [vmem:[%s16 + $0xc] sm:$0xf]
          %v8372 = vld [vmem:[%s16 + $0x10] sm:$0xf]
          %v8373 = vld [vmem:[%s16 + $0x14] sm:$0xf]
          %v8374 = vld [vmem:[%s16 + $0x18] sm:$0xf]
          %v8375 = vld [vmem:[%s16 + $0x1c] sm:$0xf]
          %v8376 = vld [vmem:[%s16 + $0x20] sm:$0xf]
          %v8377 = vld [vmem:[%s16 + $0x24] sm:$0xf]
          %v8378 = vld [vmem:[%s16 + $0x28] sm:$0xf]
          %v8379 = vld [vmem:[%s16 + $0x2c] sm:$0xf]
          %v8380 = vld [vmem:[%s16 + $0x30] sm:$0xf]
          %v8381 = vld [vmem:[%s16 + $0x34] sm:$0xf]
          %v8382 = vld [vmem:[%s16 + $0x38] sm:$0xf]
          %v8383 = vld [vmem:[%s16 + $0x3c] sm:$0xf]
          %v8384 = vpack.c.bf16 %v8367, %v8367
          %v8385 = vld [vmem:[%s17] sm:$0x1]
          %v8387 = vperm.slane %v8385, 0
          %v8405 = vunpack.c.l.b16 %v8368
          %v8406 = vunpack.c.l.b16 %v8369
          %v8407 = vunpack.c.l.b16 %v8370
          %v8408 = vunpack.c.l.b16 %v8371
          %v8409 = vunpack.c.l.b16 %v8372
          %v8410 = vunpack.c.l.b16 %v8373
          %v8411 = vunpack.c.l.b16 %v8374
          %v8412 = vunpack.c.l.b16 %v8375
          %v8413 = vunpack.c.l.b16 %v8376
          %v8414 = vunpack.c.l.b16 %v8377
          %v8415 = vunpack.c.l.b16 %v8378
          %v8416 = vunpack.c.l.b16 %v8379
          %v8417 = vunpack.c.l.b16 %v8380
          %v8418 = vunpack.c.l.b16 %v8381
          %v8419 = vunpack.c.l.b16 %v8382
          %v8420 = vunpack.c.l.b16 %v8383
          %v8421 = vpack.c.b16 %v8406, %v8405
          %v8422 = vpack.c.b16 %v8408, %v8407
          %v8423 = vpack.c.b16 %v8410, %v8409
          %v8424 = vpack.c.b16 %v8412, %v8411
          %v8425 = vpack.c.b16 %v8414, %v8413
          %v8426 = vpack.c.b16 %v8416, %v8415
          %v8427 = vpack.c.b16 %v8418, %v8417
          %v8428 = vpack.c.b16 %v8420, %v8419
          %8437 = vmatpush.bf16.msra.mxu0 %v8428
          %8438 = vmatpush.bf16.msra.mxu0 %v8427
          %8439 = vmatpush.bf16.msra.mxu0 %v8426
          %8440 = vmatpush.bf16.msra.mxu0 %v8425
          %8441 = vmatpush.bf16.msra.mxu0 %v8424
          %8442 = vmatpush.bf16.msra.mxu0 %v8423
          %8443 = vmatpush.bf16.msra.mxu0 %v8422
          %8444 = vmatpush.bf16.msra.mxu0 %v8421
          %8445 = vmatmul.bf16.gmra.mxu0 %v8384
          %v8446 = vpop.f32.mrf.mxu0
          %v8447 = vadd.f32 %v8387, %v8446
          %v8448 = vpop.f32.mrf.mxu0
          %8449 = vdwg.mxu0
          %v8450 = vtanh.pop %v8447
          %v8451 = vld [vmem:[%s18] sm:$0xf]
          %v8452 = vld [vmem:[%s18 + $0x4] sm:$0xf]
          %v8453 = vld [vmem:[%s18 + $0x8] sm:$0xf]
          %v8454 = vld [vmem:[%s18 + $0xc] sm:$0xf]
          %v8455 = vld [vmem:[%s18 + $0x10] sm:$0xf]
          %v8456 = vld [vmem:[%s18 + $0x14] sm:$0xf]
          %v8457 = vld [vmem:[%s18 + $0x18] sm:$0xf]
          %v8458 = vld [vmem:[%s18 + $0x1c] sm:$0xf]
          %v8459 = vld [vmem:[%s18 + $0x20] sm:$0xf]
          %v8460 = vld [vmem:[%s18 + $0x24] sm:$0xf]
          %v8461 = vld [vmem:[%s18 + $0x28] sm:$0xf]
          %v8462 = vld [vmem:[%s18 + $0x2c] sm:$0xf]
          %v8463 = vld [vmem:[%s18 + $0x30] sm:$0xf]
          %v8464 = vld [vmem:[%s18 + $0x34] sm:$0xf]
          %v8465 = vld [vmem:[%s18 + $0x38] sm:$0xf]
          %v8466 = vld [vmem:[%s18 + $0x3c] sm:$0xf]
          %v8467 = vpack.c.bf16 %v8450, %v8450
          %v8468 = vld [vmem:[#allocation17] sm:$0x1]
          %v8470 = vperm.slane %v8468, 0
          %v8488 = vunpack.c.l.b16 %v8451
          %v8489 = vunpack.c.l.b16 %v8452
          %v8490 = vunpack.c.l.b16 %v8453
          %v8491 = vunpack.c.l.b16 %v8454
          %v8492 = vunpack.c.l.b16 %v8455
          %v8493 = vunpack.c.l.b16 %v8456
          %v8494 = vunpack.c.l.b16 %v8457
          %v8495 = vunpack.c.l.b16 %v8458
          %v8496 = vunpack.c.l.b16 %v8459
          %v8497 = vunpack.c.l.b16 %v8460
          %v8498 = vunpack.c.l.b16 %v8461
          %v8499 = vunpack.c.l.b16 %v8462
          %v8500 = vunpack.c.l.b16 %v8463
          %v8501 = vunpack.c.l.b16 %v8464
          %v8502 = vunpack.c.l.b16 %v8465
          %v8503 = vunpack.c.l.b16 %v8466
          %v8504 = vpack.c.b16 %v8489, %v8488
          %v8505 = vpack.c.b16 %v8491, %v8490
          %v8506 = vpack.c.b16 %v8493, %v8492
          %v8507 = vpack.c.b16 %v8495, %v8494
          %v8508 = vpack.c.b16 %v8497, %v8496
          %v8509 = vpack.c.b16 %v8499, %v8498
          %v8510 = vpack.c.b16 %v8501, %v8500
          %v8511 = vpack.c.b16 %v8503, %v8502
          %8520 = vmatpush.bf16.msra.mxu0 %v8511
          %8521 = vmatpush.bf16.msra.mxu0 %v8510
          %8522 = vmatpush.bf16.msra.mxu0 %v8509
          %8523 = vmatpush.bf16.msra.mxu0 %v8508
          %8524 = vmatpush.bf16.msra.mxu0 %v8507
          %8525 = vmatpush.bf16.msra.mxu0 %v8506
          %8526 = vmatpush.bf16.msra.mxu0 %v8505
          %8527 = vmatpush.bf16.msra.mxu0 %v8504
          %8528 = vmatmul.bf16.gmra.mxu0 %v8467
          %v8529 = vpop.f32.mrf.mxu0
          %v8530 = vadd.f32 %v8470, %v8529
          %v8531 = vpop.f32.mrf.mxu0
          %8532 = vdwg.mxu0
          %v8534 = vrot.slane %v8530, 1
          %v8535 = vrot.slane %v8530, 2
          %v8536 = vrot.slane %v8530, 3
          %8540 = vst [vmem:[%s1058] sm:$0x1] %v8530
          %8541 = vst [vmem:[%s1058 + $0x1] sm:$0x1] %v8534
          %8542 = vst [vmem:[%s1058 + $0x2] sm:$0x1] %v8535
          %8543 = vst [vmem:[%s1058 + $0x3] sm:$0x1] %v8536
        $region148: #{forward.1} parent=99 // pred_fallthru
          _
        %s8544 = smul.u32 4, %s51
        %p8545 = scmp.lt.s32.totalorder %s8544, 7
        %s8546 = scalar_select %p8545, %s8544, 7
        %s8547 = scalar_lea.vmem %s20, %s8546
        // Predicated region
        $region149: #{forward.1} parent=99 // pred_check
          %p8548 = pneg %p567
        $region150: #{forward.1} parent=99 // pred_check_branch
          %8550 = sbr.rel (%p8548) target = $region152
        $region151: #{forward.1} parent=99 // pred_region
          %s8551 = smul.u32 4, %s51
        $region152: #{forward.1} parent=99 // pred_fallthru
          _
      $region100: #{forward.1} parent=5 // pred_fallthru
        _
      %p8552 = scmp.le.s32.totalorder 2, %s42
      // Predicated region
      $region153: #{forward.1} parent=5 // pred_check
        %p8553 = pneg %p8552
      $region154: #{forward.1} parent=5 // pred_check_branch
        %8555 = sbr.rel (%p8553) target = $region156
      $region155: #{forward.1} parent=5 // pred_region
        %s8556 = ssub.s32 %s42, 2
        // Predicated region
        $region157: #{forward.1} parent=155 // pred_check
          %p8557 = pneg %p573
        $region158: #{forward.1} parent=155 // pred_check_branch
          %8559 = sbr.rel (%p8557) target = $region160
        $region159: #{forward.1} parent=155 // pred_region
          %s8560 = smul.u32 4, %s53
          %p8561 = scmp.lt.s32.totalorder %s8560, 7
          %s8562 = scalar_select %p8561, %s8560, 7
          %s8563 = scalar_lea.vmem %s20, %s8562
        $region160: #{forward.1} parent=155 // pred_fallthru
          _
      $region156: #{forward.1} parent=5 // pred_fallthru
        _
    $region6: #{forward.1} parent=1 // loop_footer
      %s46 = sadd.s32 1, %s42
    $region7: #{forward.1} parent=1 // loop_footer_branch
      %41 = sbr.rel target = $region3
    $region8: #{forward.1} parent=1 // loop_exit
      _
    %8564 = vsyncpa [#allocation4], 1
    %s8565 = scalar_lea.sflag [#allocation4], 1
    %8566 = vsyncpa %s8565, 1
    %8567 = vsyncpa [#allocation6], 1
    %s8568 = scalar_lea.sflag [#allocation6], 1
    %8569 = vsyncpa %s8568, 1
    %8570 = vsyncpa [#allocation9], 1
    %s8571 = scalar_lea.sflag [#allocation9], 1
    %8572 = vsyncpa %s8571, 1
    %8573 = vsyncpa [#allocation12], 1
    %s8574 = scalar_lea.sflag [#allocation12], 1
    %8575 = vsyncpa %s8574, 1
    %8576 = vsyncpa [#allocation15], 1
    %s8577 = scalar_lea.sflag [#allocation15], 1
    %8578 = vsyncpa %s8577, 1
    %8579 = vsyncpa [#allocation18], 1

</llo_original>
